<compile_context>
chip_gen: v6e
topology: v6e:2x2x1
jax: 0.10.0
libtpu: 0.0.40
codegen_flags: <defaults>
</compile_context>

<pallas_src>
import numpy as np
import jax
import jax.numpy as jnp
from jax.experimental import pallas as pl
from jax.experimental.pallas import tpu as pltpu

H1, H2, H3 = 7, 14, 28       # spatial sizes fixed by the architecture
_LANE = 128


def _round_up(x, m):
    return (x + m - 1) // m * m


# ----------------------------------------------------------------------------
# One-time host-side weight packing (outside the jitted forward).
# ----------------------------------------------------------------------------
def _convT_toeplitz(w, win, wout, stride=2, pad=1):
    """Dense matrix of ConvTranspose2d(k=4, s=2, p=1) in flat-lane layout.

    w: (Cin, Cout, k, k) PyTorch ConvTranspose2d weight.
    Returns M with shape (win*win*Cin, wout*wout*Cout) such that
      y[(oy*wout+ox)*Cout+co] = sum x[(iy*win+ix)*Cin+ci] * M[row, col]
    where oy = iy*stride - pad + ky (same for columns); taps that fall on the
    transposed conv's implicit zero padding are simply dropped.
    """
    w = np.asarray(w, np.float32)
    cin, cout, k, _ = w.shape
    M = np.zeros((win * win * cin, wout * wout * cout), np.float32)
    for oy in range(wout):
        for ky in range(k):
            t = oy + pad - ky
            if t % stride:
                continue
            iy = t // stride
            if not (0 <= iy < win):
                continue
            for ox in range(wout):
                for kx in range(k):
                    u = ox + pad - kx
                    if u % stride:
                        continue
                    ix = u // stride
                    if not (0 <= ix < win):
                        continue
                    r = (iy * win + ix) * cin
                    c = (oy * wout + ox) * cout
                    M[r:r + cin, c:c + cout] += w[:, :, ky, kx]
    return M


def pack_generator_params(w1, w2, w3):
    """Call once per parameter set.  w1:(Cin,C1,7,7) w2:(C1,C2,4,4) w3:(C2,nc,4,4)."""
    cin, c1 = w1.shape[0], w1.shape[1]
    nc = w3.shape[1]
    # Layer 1: k=7 transposed conv on a 1x1 input is a dense (Cin, 7*7*C1) map.
    w1f = np.transpose(np.asarray(w1, np.float32), (0, 2, 3, 1)).reshape(
        cin, H1 * H1 * c1)
    t2 = _convT_toeplitz(w2, H1, H2)                     # (49*C1, 196*C2)
    t3 = _convT_toeplitz(w3, H2, H3)                     # (196*C2, 784*nc)
    # Pad the only tensor leaving the chip to a lane-dense multiple of 128.
    out_pad = _round_up(H3 * H3 * nc, _LANE)
    t3 = np.pad(t3, ((0, 0), (0, out_pad - t3.shape[1])))
    total = 2 * 4 * (w1f.size + t2.size + t3.size)       # double-buffered f32
    assert total < 24 * 1024 * 1024, (
        f"packed weights need {total / 2**20:.1f} MiB double-buffered VMEM; "
        "reduce nfg (dense-Toeplitz packing targets DCGAN/MNIST scale)")
    return (jnp.asarray(w1f), jnp.asarray(t2), jnp.asarray(t3))


# ----------------------------------------------------------------------------
# Fused generator kernel: matmul+ReLU -> matmul+ReLU -> matmul+Tanh per tile.
# ----------------------------------------------------------------------------
def _generator_kernel(z_ref, w1_ref, t2_ref, t3_ref, o_ref):
    y1 = jnp.maximum(
        jnp.dot(z_ref[...], w1_ref[...], preferred_element_type=jnp.float32),
        0.0)                                              # (B, 49*C1)
    y2 = jnp.maximum(
        jnp.dot(y1, t2_ref[...], preferred_element_type=jnp.float32),
        0.0)                                              # (B, 196*C2)
    y3 = jnp.tanh(
        jnp.dot(y2, t3_ref[...], preferred_element_type=jnp.float32))
    o_ref[...] = y3.astype(o_ref.dtype)                   # (B, out_pad)


# ----------------------------------------------------------------------------
# Forward (NCHW in / NCHW out, like PyTorch).  `packed` = pack_generator_params.
# ----------------------------------------------------------------------------
def generator_forward(z_nchw, packed, *, batch_tile=8):
    w1f, t2, t3 = packed
    n, cin, h, w = z_nchw.shape
    assert h == 1 and w == 1, "DCGAN latent input must be 1x1 spatial"
    out_pad = t3.shape[1]
    nc = out_pad // (H3 * H3)          # pad < 128 < 784, so floor-div is exact

    z2 = z_nchw.reshape(n, cin)
    n_pad = _round_up(max(n, 1), batch_tile)
    if n_pad != n:                     # tail-block handling for N % batch_tile
        z2 = jnp.pad(z2, ((0, n_pad - n), (0, 0)))
    grid = n_pad // batch_tile

    flops = 2 * n_pad * (cin * w1f.shape[1]
                         + t2.shape[0] * t2.shape[1]
                         + t3.shape[0] * t3.shape[1])
    bytes_accessed = 4 * (z2.size + w1f.size + t2.size + t3.size
                          + n_pad * out_pad)

    out_flat = pl.pallas_call(
        _generator_kernel,
        out_shape=jax.ShapeDtypeStruct((n_pad, out_pad), jnp.float32),
        grid=(grid,),
        in_specs=[
            pl.BlockSpec((batch_tile, cin), lambda i: (i, 0)),   # z tile (VMEM)
            pl.BlockSpec(w1f.shape, lambda i: (0, 0)),           # W1f (resident)
            pl.BlockSpec(t2.shape, lambda i: (0, 0)),            # T2  (resident)
            pl.BlockSpec(t3.shape, lambda i: (0, 0)),            # T3  (resident)
        ],
        out_specs=pl.BlockSpec((batch_tile, out_pad), lambda i: (i, 0)),
        compiler_params=pltpu.CompilerParams(
            dimension_semantics=("parallel",),
            vmem_limit_bytes=32 * 1024 * 1024),
        cost_estimate=pl.CostEstimate(flops=flops,
                                      transcendentals=n_pad * out_pad,
                                      bytes_accessed=bytes_accessed),
    )(z2, w1f, t2, t3)

    out = out_flat[:n, :H3 * H3 * nc].reshape(n, H3, H3, nc)
    return jnp.transpose(out, (0, 3, 1, 2))               # NHWC-flat -> NCHW


# ----------------------------------------------------------------------------
# Pure-JAX/XLA reference (independent lowering) for the numerical check.
# ----------------------------------------------------------------------------
def _ref_conv_transpose(x_nchw, w_pt, stride, padding):
    _, _, k, _ = w_pt.shape
    w_conv = jnp.transpose(w_pt[:, :, ::-1, ::-1], (1, 0, 2, 3))   # OIHW
    return jax.lax.conv_general_dilated(
        x_nchw, w_conv, window_strides=(1, 1),
        padding=[(k - 1 - padding,) * 2] * 2,
        lhs_dilation=(stride, stride),
        dimension_numbers=("NCHW", "OIHW", "NCHW"),
        precision=jax.lax.Precision.HIGHEST)


def generator_forward_ref(z_nchw, params):
    w1, w2, w3 = params
    x = jax.nn.relu(_ref_conv_transpose(z_nchw, w1, 1, 0))
    x = jax.nn.relu(_ref_conv_transpose(x, w2, 2, 1))
    return jnp.tanh(_ref_conv_transpose(x, w3, 2, 1))


if __name__ == "__main__":
    # Small DCGAN-consistent sizes: latent 8, nfg=8, nc=1, batch=16
    # (batch_tile=8 -> grid of 2 "parallel" steps).
    N, in_channels, nfg, nc = 16, 8, 8, 1

    key = jax.random.PRNGKey(0)
    kz, k1, k2, k3 = jax.random.split(key, 4)

    # ConvTranspose2d weight layout: (in_channels, out_channels, K, K).
    w1 = 0.02 * jax.random.normal(k1, (in_channels, nfg * 2, 7, 7), jnp.float32)
    w2 = 0.02 * jax.random.normal(k2, (nfg * 2, nfg, 4, 4), jnp.float32)
    w3 = 0.02 * jax.random.normal(k3, (nfg, nc, 4, 4), jnp.float32)
    z = jax.random.normal(kz, (N, in_channels, 1, 1), jnp.float32)

    packed = pack_generator_params(w1, w2, w3)   # hoisted: once per param set
    fwd = jax.jit(generator_forward)

    out = jax.block_until_ready(fwd(z, packed))
    assert out.shape == (N, nc, 28, 28), out.shape

    ref = jax.block_until_ready(generator_forward_ref(z, (w1, w2, w3)))
    np.testing.assert_allclose(np.asarray(out), np.asarray(ref),
                               rtol=2e-2, atol=2e-5)

    print("KERNEL_OK")
</pallas_src>

<mosaic_0001>
module attributes {stable_mosaic.version = 11 : i64} {
  func.func @_generator_kernel(%arg0: i32, %arg1: memref<8x8xf32, #tpu.memory_space<vmem>>, %arg2: memref<8x784xf32, #tpu.memory_space<vmem>>, %arg3: memref<784x1568xf32, #tpu.memory_space<vmem>>, %arg4: memref<1568x896xf32, #tpu.memory_space<vmem>>, %arg5: memref<8x896xf32, #tpu.memory_space<vmem>>) attributes {dimension_semantics = [#tpu.dimension_semantics<parallel>], iteration_bounds = array<i64: 2>, scalar_prefetch = 0 : i64, scratch_operands = 0 : i64, tpu.core_type = #tpu.core_type<tc>, window_params = [{transform_indices = @transform_0, window_bounds = array<i64: 8, 8>}, {pipeline_mode = #tpu.pipeline_mode<synchronous>, transform_indices = @transform_1, window_bounds = array<i64: 8, 784>}, {pipeline_mode = #tpu.pipeline_mode<synchronous>, transform_indices = @transform_2, window_bounds = array<i64: 784, 1568>}, {pipeline_mode = #tpu.pipeline_mode<synchronous>, transform_indices = @transform_3, window_bounds = array<i64: 1568, 896>}, {transform_indices = @transform_4, window_bounds = array<i64: 8, 896>}]} {
    %c0 = arith.constant 0 : index
    %c0_0 = arith.constant 0 : index
    %0 = vector.load %arg1[%c0, %c0_0] : memref<8x8xf32, #tpu.memory_space<vmem>>, vector<8x8xf32>
    %c0_1 = arith.constant 0 : index
    %c0_2 = arith.constant 0 : index
    %1 = vector.load %arg2[%c0_1, %c0_2] : memref<8x784xf32, #tpu.memory_space<vmem>>, vector<8x784xf32>
    %cst = arith.constant dense<0.000000e+00> : vector<8x784xf32>
    %2 = tpu.matmul %0, %1, %cst {dimension_numbers = #tpu.dot_dimension_numbers<[1], [0], [0], [1], [0, 0, 1, 1], [], []>} : vector<8x8xf32>, vector<8x784xf32>, vector<8x784xf32> -> vector<8x784xf32>
    %cst_3 = arith.constant 0.000000e+00 : f32
    %3 = vector.broadcast %cst_3 : f32 to vector<8x784xf32>
    %4 = arith.maximumf %2, %3 : vector<8x784xf32>
    %c0_4 = arith.constant 0 : index
    %c0_5 = arith.constant 0 : index
    %5 = vector.load %arg3[%c0_4, %c0_5] : memref<784x1568xf32, #tpu.memory_space<vmem>>, vector<784x1568xf32>
    %cst_6 = arith.constant dense<0.000000e+00> : vector<8x1568xf32>
    %6 = tpu.matmul %4, %5, %cst_6 {dimension_numbers = #tpu.dot_dimension_numbers<[1], [0], [0], [1], [0, 0, 1, 1], [], []>} : vector<8x784xf32>, vector<784x1568xf32>, vector<8x1568xf32> -> vector<8x1568xf32>
    %cst_7 = arith.constant 0.000000e+00 : f32
    %7 = vector.broadcast %cst_7 : f32 to vector<8x1568xf32>
    %8 = arith.maximumf %6, %7 : vector<8x1568xf32>
    %c0_8 = arith.constant 0 : index
    %c0_9 = arith.constant 0 : index
    %9 = vector.load %arg4[%c0_8, %c0_9] : memref<1568x896xf32, #tpu.memory_space<vmem>>, vector<1568x896xf32>
    %cst_10 = arith.constant dense<0.000000e+00> : vector<8x896xf32>
    %10 = tpu.matmul %8, %9, %cst_10 {dimension_numbers = #tpu.dot_dimension_numbers<[1], [0], [0], [1], [0, 0, 1, 1], [], []>} : vector<8x1568xf32>, vector<1568x896xf32>, vector<8x896xf32> -> vector<8x896xf32>
    %11 = math.tanh %10 : vector<8x896xf32>
    %c0_11 = arith.constant 0 : index
    %c0_12 = arith.constant 0 : index
    %12 = vector.load %arg5[%c0_11, %c0_12] : memref<8x896xf32, #tpu.memory_space<vmem>>, vector<8x896xf32>
    tpu.vector_store %arg5[%c0_11, %c0_12], %11 {strides = array<i32>} : memref<8x896xf32, #tpu.memory_space<vmem>>, vector<8x896xf32>,
    return
  }
  func.func @transform_0(%arg0: i32) -> (i32, i32) {
    %c0_i32 = arith.constant 0 : i32
    %c0_i32_0 = arith.constant 0 : i32
    return %arg0, %c0_i32 : i32, i32
  }
  func.func @transform_1(%arg0: i32) -> (i32, i32) {
    %c0_i32 = arith.constant 0 : i32
    %c0_i32_0 = arith.constant 0 : i32
    %c0_i32_1 = arith.constant 0 : i32
    return %c0_i32, %c0_i32_0 : i32, i32
  }
  func.func @transform_2(%arg0: i32) -> (i32, i32) {
    %c0_i32 = arith.constant 0 : i32
    %c0_i32_0 = arith.constant 0 : i32
    %c0_i32_1 = arith.constant 0 : i32
    return %c0_i32, %c0_i32_0 : i32, i32
  }
  func.func @transform_3(%arg0: i32) -> (i32, i32) {
    %c0_i32 = arith.constant 0 : i32
    %c0_i32_0 = arith.constant 0 : i32
    %c0_i32_1 = arith.constant 0 : i32
    return %c0_i32, %c0_i32_0 : i32, i32
  }
  func.func @transform_4(%arg0: i32) -> (i32, i32) {
    %c0_i32 = arith.constant 0 : i32
    %c0_i32_0 = arith.constant 0 : i32
    return %arg0, %c0_i32 : i32, i32
  }
}

</mosaic_0001>

<llo_original>
// kernel: generator_forward.1
$region0: #{generator_forward.1}
  #allocation0 [shape = 'u32[]', space=smem, size = 0x4, offset = 0x4, fixed_abs, tag = 'smem constant byte address 0x4 - core index']
  #allocation1 [shape = 'u32[144,128]{1,0:T(1,128)}', space=vmem, size = 0x12000, scoped, tag = 'internal scratch']
  %s0 = inlined_call_operand.vmem [shape: f32[16,8], index: 0, kind: input, shape index: {}]
  %s1 = inlined_call_operand.hbm [shape: f32[8,784], index: 1, kind: input, shape index: {}]
  %s2 = inlined_call_operand.hbm [shape: f32[784,1568], index: 2, kind: input, shape index: {}]
  %s3 = inlined_call_operand.hbm [shape: f32[1568,896], index: 3, kind: input, shape index: {}]
  %s4 = inlined_call_operand.vmem [shape: f32[16,896], index: 4, kind: output, shape index: {}]
  %s5 = sld [smem:[#allocation0]]
  $region61: #{generator_forward.1} parent=0
    _
  %s7 = ssub.s32 1, %s5
  %s8 = scalar_select 0, %s7, %s5
  $region1: #{generator_forward.1} parent=0
    #allocation2 [shape = 'u8[28672]{0}', space=vmem, size = 0x7000, scoped, tag = 'input window, operand 1, single buffered']
    #allocation3 [shape = 's32[2]{0}', space=sflag, size = 0x8, scoped, tag = 'scoped memory for generator_forward.1']
    #allocation4 [shape = 'u8[5218304]{0}', space=vmem, size = 0x4fa000, scoped, tag = 'input window, operand 2, single buffered']
    #allocation5 [shape = 's32[1]{0}', space=sflag, size = 0x4, scoped, tag = 'scoped memory for generator_forward.1']
    #allocation6 [shape = 'u8[5619712]{0}', space=vmem, size = 0x55c000, scoped, tag = 'input window, operand 3, single buffered']
    %9 = vsyncpa [#allocation3], 0
    %10 = vsyncpa [#allocation5], 0
    loop: start=0, step=1, limit=4
    $region2: #{generator_forward.1} parent=1 // loop_pre_header
      _
    $region3: #{generator_forward.1} parent=1 // loop_header
      %s12 = sphi 0, %s16
      %p13 = scmp.ge.s32.totalorder %s12, 4
      %s22 = sphi 0, %s24
      %s25 = sphi 0, %s22
      %s26 = sphi 0, %s25
      %s42 = sphi 0, %s26
      %s46 = sphi 0, %s46
      %s48 = sphi 0, %s46
      %s49 = sphi 0, %s48
      %s63 = sphi 0, %s49
      %s67 = sphi 0, %s67
      %s69 = sphi 0, %s67
      %s70 = sphi 0, %s69
      %s84 = sphi 0, %s70
      %s88 = sphi 0, %s88
      %s90 = sphi 0, %s88
      %s91 = sphi 0, %s90
      %s105 = sphi 0, %s91
      %s111 = sphi 0, %s113
      %s114 = sphi 0, %s111
      %s115 = sphi 0, %s114
      %s131 = sphi 0, %s115
    $region4: #{generator_forward.1} parent=1 // loop_header_branch
      %15 = sbr.rel (%p13) target = $region8
    $region5: #{generator_forward.1} parent=1 // loop_body
      %s17 = ssub.s32 %s12, 1
      %s18 = ssub.s32 %s12, 2
      %s19 = sadd.s32 %s12, 1
      %s20 = ssub.s32 %s12, %s19
      %p21 = scmp.eq.s32.totalorder %s20, 0
      %s23 = sadd.s32 %s22, 1
      %s24 = scalar_select %p21, %s22, %s23
      %p27 = pneg %p21
      %p28 = scmp.eq.s32.totalorder %s12, 1
      %p29 = por %p27, %p28
      %p30 = scmp.ne.s32.totalorder %s22, %s25
      %p31 = scmp.eq.s32.totalorder %s12, 0
      %p32 = por %p30, %p31
      %p33 = scmp.ne.s32.totalorder %s22, %s25
      %p34 = scmp.eq.s32.totalorder %s17, 1
      %p35 = por %p33, %p34
      %p36 = scmp.ne.s32.totalorder %s25, %s26
      %p37 = scmp.eq.s32.totalorder %s17, 0
      %p38 = por %p36, %p37
      %p39 = scmp.ne.s32.totalorder %s25, %s26
      %p40 = scmp.eq.s32.totalorder %s18, 1
      %p41 = por %p39, %p40
      %p43 = scmp.ne.s32.totalorder %s26, %s42
      %p44 = scmp.eq.s32.totalorder %s18, 0
      %p45 = por %p43, %p44
      %s47 = sadd.s32 %s46, 1
      %p50 = scmp.eq.s32.totalorder %s12, 1
      %p51 = scmp.ne.s32.totalorder %s46, %s48
      %p52 = scmp.eq.s32.totalorder %s12, 0
      %p53 = por %p51, %p52
      %p54 = scmp.ne.s32.totalorder %s46, %s48
      %p55 = scmp.eq.s32.totalorder %s17, 1
      %p56 = por %p54, %p55
      %p57 = scmp.ne.s32.totalorder %s48, %s49
      %p58 = scmp.eq.s32.totalorder %s17, 0
      %p59 = por %p57, %p58
      %p60 = scmp.ne.s32.totalorder %s48, %s49
      %p61 = scmp.eq.s32.totalorder %s18, 1
      %p62 = por %p60, %p61
      %p64 = scmp.ne.s32.totalorder %s49, %s63
      %p65 = scmp.eq.s32.totalorder %s18, 0
      %p66 = por %p64, %p65
      %s68 = sadd.s32 %s67, 1
      %p71 = scmp.eq.s32.totalorder %s12, 1
      %p72 = scmp.ne.s32.totalorder %s67, %s69
      %p73 = scmp.eq.s32.totalorder %s12, 0
      %p74 = por %p72, %p73
      %p75 = scmp.ne.s32.totalorder %s67, %s69
      %p76 = scmp.eq.s32.totalorder %s17, 1
      %p77 = por %p75, %p76
      %p78 = scmp.ne.s32.totalorder %s69, %s70
      %p79 = scmp.eq.s32.totalorder %s17, 0
      %p80 = por %p78, %p79
      %p81 = scmp.ne.s32.totalorder %s69, %s70
      %p82 = scmp.eq.s32.totalorder %s18, 1
      %p83 = por %p81, %p82
      %p85 = scmp.ne.s32.totalorder %s70, %s84
      %p86 = scmp.eq.s32.totalorder %s18, 0
      %p87 = por %p85, %p86
      %s89 = sadd.s32 %s88, 1
      %p92 = scmp.eq.s32.totalorder %s12, 1
      %p93 = scmp.ne.s32.totalorder %s88, %s90
      %p94 = scmp.eq.s32.totalorder %s12, 0
      %p95 = por %p93, %p94
      %p96 = scmp.ne.s32.totalorder %s88, %s90
      %p97 = scmp.eq.s32.totalorder %s17, 1
      %p98 = por %p96, %p97
      %p99 = scmp.ne.s32.totalorder %s90, %s91
      %p100 = scmp.eq.s32.totalorder %s17, 0
      %p101 = por %p99, %p100
      %p102 = scmp.ne.s32.totalorder %s90, %s91
      %p103 = scmp.eq.s32.totalorder %s18, 1
      %p104 = por %p102, %p103
      %p106 = scmp.ne.s32.totalorder %s91, %s105
      %p107 = scmp.eq.s32.totalorder %s18, 0
      %p108 = por %p106, %p107
      %s109 = ssub.s32 %s12, %s19
      %p110 = scmp.eq.s32.totalorder %s109, 0
      %s112 = sadd.s32 %s111, 1
      %s113 = scalar_select %p110, %s111, %s112
      %p116 = pneg %p110
      %p117 = scmp.eq.s32.totalorder %s12, 1
      %p118 = por %p116, %p117
      %p119 = scmp.ne.s32.totalorder %s111, %s114
      %p120 = scmp.eq.s32.totalorder %s12, 0
      %p121 = por %p119, %p120
      %p122 = scmp.ne.s32.totalorder %s111, %s114
      %p123 = scmp.eq.s32.totalorder %s17, 1
      %p124 = por %p122, %p123
      %p125 = scmp.ne.s32.totalorder %s114, %s115
      %p126 = scmp.eq.s32.totalorder %s17, 0
      %p127 = por %p125, %p126
      %p128 = scmp.ne.s32.totalorder %s114, %s115
      %p129 = scmp.eq.s32.totalorder %s18, 1
      %p130 = por %p128, %p129
      %p132 = scmp.ne.s32.totalorder %s115, %s131
      %p133 = scmp.eq.s32.totalorder %s18, 0
      %p134 = por %p132, %p133
      %p135 = scmp.le.s32.totalorder 1, %s12
      %p136 = scmp.lt.s32.totalorder %s12, 3
      %p137 = pnand %p135, %p136
      %p138 = pneg %p137
      // Predicated region
      $region9: #{generator_forward.1} parent=5 // pred_check
        _
      $region10: #{generator_forward.1} parent=5 // pred_check_branch
        %140 = sbr.rel (%p137) target = $region12
      $region11: #{generator_forward.1} parent=5 // pred_region
        %s141 = ssub.s32 %s12, 1
        // Predicated region
        $region13: #{generator_forward.1} parent=11 // pred_check
          %p142 = pneg %p59
        $region14: #{generator_forward.1} parent=11 // pred_check_branch
          %144 = sbr.rel (%p142) target = $region16
        $region15: #{generator_forward.1} parent=11 // pred_region
          %s146 = ssub.s32 896, 896
          %147 = vsyncadd [#allocation3], %s146
          %s149 = sshll.u32 [#allocation2], 4
          %s150 = int_to_ptr.vmem [resolvable:$true] %s149
          %152 = dma.hbm_to_vmem [thread:$0]  %s1, 896, %s150, [#allocation3]
        $region16: #{generator_forward.1} parent=11 // pred_fallthru
          _
        // Predicated region
        $region17: #{generator_forward.1} parent=11 // pred_check
          %p153 = pneg %p80
        $region18: #{generator_forward.1} parent=11 // pred_check_branch
          %155 = sbr.rel (%p153) target = $region20
        $region19: #{generator_forward.1} parent=11 // pred_region
          %s157 = ssub.s32 163072, 163072
          %158 = vsyncadd [#allocation5], %s157
          %s159 = sshll.u32 [#allocation4], 4
          %s160 = int_to_ptr.vmem [resolvable:$true] %s159
          %165 = dma.hbm_to_vmem [thread:$0]  %s2, 163072, %s160, [#allocation5], 1664, 1664, 104
        $region20: #{generator_forward.1} parent=11 // pred_fallthru
          _
        // Predicated region
        $region21: #{generator_forward.1} parent=11 // pred_check
          %p166 = pneg %p101
        $region22: #{generator_forward.1} parent=11 // pred_check_branch
          %168 = sbr.rel (%p166) target = $region24
        $region23: #{generator_forward.1} parent=11 // pred_region
          %s170 = ssub.s32 175616, 175616
          %171 = vsyncadd [#allocation5], %s170
          %s172 = sshll.u32 [#allocation6], 4
          %s173 = int_to_ptr.vmem [resolvable:$true] %s172
          %178 = dma.hbm_to_vmem [thread:$0]  %s3, 175616, %s173, [#allocation5], 896, 896, 56
        $region24: #{generator_forward.1} parent=11 // pred_fallthru
          _
      $region12: #{generator_forward.1} parent=5 // pred_fallthru
        _
      %p179 = scmp.lt.s32.totalorder %s12, 2
      // Predicated region
      $region25: #{generator_forward.1} parent=5 // pred_check
        %p180 = pneg %p179
      $region26: #{generator_forward.1} parent=5 // pred_check_branch
        %182 = sbr.rel (%p180) target = $region28
      $region27: #{generator_forward.1} parent=5 // pred_region
        // Predicated region
        $region29: #{generator_forward.1} parent=27 // pred_check
          %p183 = pneg %p32
        $region30: #{generator_forward.1} parent=27 // pred_check_branch
          %185 = sbr.rel (%p183) target = $region32
        $region31: #{generator_forward.1} parent=27 // pred_region
          %p186 = scmp.lt.s32.totalorder %s12, 1
          %s187 = scalar_select %p186, %s12, 1
          %s188 = smul.addr %s187, 8
          %s189 = scalar_lea.vmem %s0, %s188
        $region32: #{generator_forward.1} parent=27 // pred_fallthru
          _
      $region28: #{generator_forward.1} parent=5 // pred_fallthru
        _
      %p190 = scmp.le.s32.totalorder 1, %s12
      %p191 = scmp.lt.s32.totalorder %s12, 3
      %p192 = pnand %p190, %p191
      %p193 = pneg %p192
      // Predicated region
      $region33: #{generator_forward.1} parent=5 // pred_check
        _
      $region34: #{generator_forward.1} parent=5 // pred_check_branch
        %195 = sbr.rel (%p192) target = $region36
      $region35: #{generator_forward.1} parent=5 // pred_region
        %s196 = ssub.s32 %s12, 1
        // Predicated region
        $region37: #{generator_forward.1} parent=35 // pred_check
          %p197 = pneg %p59
        $region38: #{generator_forward.1} parent=35 // pred_check_branch
          %199 = sbr.rel (%p197) target = $region40
        $region39: #{generator_forward.1} parent=35 // pred_region
          %200 = dma.done [#allocation3], 896
        $region40: #{generator_forward.1} parent=35 // pred_fallthru
          _
        // Predicated region
        $region41: #{generator_forward.1} parent=35 // pred_check
          %p201 = pneg %p80
        $region42: #{generator_forward.1} parent=35 // pred_check_branch
          %203 = sbr.rel (%p201) target = $region44
        $region43: #{generator_forward.1} parent=35 // pred_region
          %204 = dma.done [#allocation5], 163072
        $region44: #{generator_forward.1} parent=35 // pred_fallthru
          _
        // Predicated region
        $region45: #{generator_forward.1} parent=35 // pred_check
          %p205 = pneg %p101
        $region46: #{generator_forward.1} parent=35 // pred_check_branch
          %207 = sbr.rel (%p205) target = $region48
        $region47: #{generator_forward.1} parent=35 // pred_region
          %208 = dma.done [#allocation5], 175616
        $region48: #{generator_forward.1} parent=35 // pred_fallthru
          _
        %p209 = scmp.lt.s32.totalorder %s17, 1
        %s210 = scalar_select %p209, %s17, 1
        %s211 = smul.addr %s210, 8
        %s212 = scalar_lea.vmem %s0, %s211
        %p213 = pneg %p38
        %p214 = pneg %p35
        %p215 = pneg %p59
        %p216 = pneg %p56
        %p217 = pneg %p80
        %p218 = pneg %p77
        %p219 = pneg %p101
        %p220 = pneg %p98
        %p221 = pneg %p127
        %p222 = pneg %p124
        %p223 = scmp.lt.s32.totalorder %s17, 1
        %s224 = scalar_select %p223, %s17, 1
        %s225 = smul.addr %s224, 7
        %s226 = smul.addr %s225, 8
        %s227 = scalar_lea.vmem %s4, %s226
        %p228 = scmp.lt.s32.totalorder %s17, 1
        %s229 = scalar_select %p228, %s17, 1
        %s230 = smul.addr %s229, 8
        %s231 = scalar_lea.vmem %s0, %s230
        %p232 = scmp.lt.s32.totalorder %s17, 1
        %s233 = scalar_select %p232, %s17, 1
        %s234 = smul.addr %s233, 7
        %s235 = smul.addr %s234, 8
        %s236 = scalar_lea.vmem %s4, %s235
        %v237 = vld [vmem:[%s231] sm:$0xff]
        %v238 = vld [vmem:[#allocation2] sm:$0xff]
        %v239 = vld [vmem:[#allocation2 + $0x8] sm:$0xff]
        %v240 = vld [vmem:[#allocation2 + $0x10] sm:$0xff]
        %v241 = vld [vmem:[#allocation2 + $0x18] sm:$0xff]
        %v242 = vld [vmem:[#allocation2 + $0x20] sm:$0xff]
        %v243 = vld [vmem:[#allocation2 + $0x28] sm:$0xff]
        %v244 = vld [vmem:[#allocation2 + $0x30] sm:$0xff]
        %vm245 = vcmask 64512
        %v247 = vsel %vm245, %v237, 0
        %249 = vmatprep.subr.mxu0 0.0
        %250 = vmatpush1.msra.mxu0 0.0
        %251 = vmatprep.subr.mxu0 0.0
        %252 = vmatpush1.msra.mxu0 0.0
        %253 = vmatprep.subr.mxu0 0.0
        %254 = vmatpush1.msra.mxu0 0.0
        %255 = vmatprep.subr.mxu0 0.0
        %256 = vmatpush1.msra.mxu0 0.0
        %257 = vmatprep.subr.mxu0 0.0
        %258 = vmatpush1.msra.mxu0 0.0
        %259 = vmatprep.subr.mxu0 0.0
        %260 = vmatpush1.msra.mxu0 0.0
        %261 = vmatprep.subr.mxu0 0.0
        %262 = vmatpush1.msra.mxu0 0.0
        %263 = vmatprep.subr.mxu0 0.0
        %264 = vmatpush1.msra.mxu0 0.0
        %265 = vmatprep.subr.mxu0 0.0
        %266 = vmatpush1.msra.mxu0 0.0
        %267 = vmatprep.subr.mxu0 0.0
        %268 = vmatpush1.msra.mxu0 0.0
        %269 = vmatprep.subr.mxu0 0.0
        %270 = vmatpush1.msra.mxu0 0.0
        %271 = vmatprep.subr.mxu0 0.0
        %272 = vmatpush1.msra.mxu0 0.0
        %273 = vmatprep.subr.mxu0 0.0
        %274 = vmatpush1.msra.mxu0 0.0
        %275 = vmatprep.subr.mxu0 0.0
        %276 = vmatpush1.msra.mxu0 0.0
        %277 = vmatprep.subr.mxu0 0.0
        %278 = vmatpush1.msra.mxu0 0.0
        %279 = vmatprep.subr.mxu0 %v239
        %280 = vmatpush1.msra.mxu0 %v238
        %281 = vmatprep.subr.mxu0 0.0
        %282 = vmatpush2.msra.mxu0 0.0
        %283 = vmatprep.subr.mxu0 0.0
        %284 = vmatpush2.msra.mxu0 0.0
        %285 = vmatprep.subr.mxu0 0.0
        %286 = vmatpush2.msra.mxu0 0.0
        %287 = vmatprep.subr.mxu0 0.0
        %288 = vmatpush2.msra.mxu0 0.0
        %289 = vmatprep.subr.mxu0 0.0
        %290 = vmatpush2.msra.mxu0 0.0
        %291 = vmatprep.subr.mxu0 0.0
        %292 = vmatpush2.msra.mxu0 0.0
        %293 = vmatprep.subr.mxu0 0.0
        %294 = vmatpush2.msra.mxu0 0.0
        %295 = vmatprep.subr.mxu0 0.0
        %296 = vmatpush2.msra.mxu0 0.0
        %297 = vmatprep.subr.mxu0 0.0
        %298 = vmatpush2.msra.mxu0 0.0
        %299 = vmatprep.subr.mxu0 0.0
        %300 = vmatpush2.msra.mxu0 0.0
        %301 = vmatprep.subr.mxu0 0.0
        %302 = vmatpush2.msra.mxu0 0.0
        %303 = vmatprep.subr.mxu0 0.0
        %304 = vmatpush2.msra.mxu0 0.0
        %305 = vmatprep.subr.mxu0 0.0
        %306 = vmatpush2.msra.mxu0 0.0
        %307 = vmatprep.subr.mxu0 0.0
        %308 = vmatpush2.msra.mxu0 0.0
        %309 = vmatprep.subr.mxu0 0.0
        %310 = vmatpush2.msra.mxu0 0.0
        %311 = vmatprep.subr.mxu0 0.0
        %312 = vmatpush2.msra.mxu0 0.0
        %313 = vmatprep.mubr.f32.mxu0 0.0
        %314 = vmatmul.mubr.f32.gmra.mxu0 %v247
        %v315 = vpop.f32.mrf.mxu0
        %v316 = vadd.f32 0.0, %v315
        %v317 = vpop.f32.mrf.mxu0
        %v318 = vadd.f32 0.0, %v317
        %319 = vdwg.mxu0
        %320 = vmatprep.subr.mxu0 0.0
        %321 = vmatpush1.msra.mxu0 0.0
        %322 = vmatprep.subr.mxu0 0.0
        %323 = vmatpush1.msra.mxu0 0.0
        %324 = vmatprep.subr.mxu0 0.0
        %325 = vmatpush1.msra.mxu0 0.0
        %326 = vmatprep.subr.mxu0 0.0
        %327 = vmatpush1.msra.mxu0 0.0
        %328 = vmatprep.subr.mxu0 0.0
        %329 = vmatpush1.msra.mxu0 0.0
        %330 = vmatprep.subr.mxu0 0.0
        %331 = vmatpush1.msra.mxu0 0.0
        %332 = vmatprep.subr.mxu0 0.0
        %333 = vmatpush1.msra.mxu0 0.0
        %334 = vmatprep.subr.mxu0 0.0
        %335 = vmatpush1.msra.mxu0 0.0
        %336 = vmatprep.subr.mxu0 0.0
        %337 = vmatpush1.msra.mxu0 0.0
        %338 = vmatprep.subr.mxu0 0.0
        %339 = vmatpush1.msra.mxu0 0.0
        %340 = vmatprep.subr.mxu0 0.0
        %341 = vmatpush1.msra.mxu0 0.0
        %342 = vmatprep.subr.mxu0 0.0
        %343 = vmatpush1.msra.mxu0 0.0
        %344 = vmatprep.subr.mxu0 0.0
        %345 = vmatpush1.msra.mxu0 0.0
        %346 = vmatprep.subr.mxu0 0.0
        %347 = vmatpush1.msra.mxu0 0.0
        %348 = vmatprep.subr.mxu0 0.0
        %349 = vmatpush1.msra.mxu0 0.0
        %350 = vmatprep.subr.mxu0 %v241
        %351 = vmatpush1.msra.mxu0 %v240
        %352 = vmatprep.subr.mxu0 0.0
        %353 = vmatpush2.msra.mxu0 0.0
        %354 = vmatprep.subr.mxu0 0.0
        %355 = vmatpush2.msra.mxu0 0.0
        %356 = vmatprep.subr.mxu0 0.0
        %357 = vmatpush2.msra.mxu0 0.0
        %358 = vmatprep.subr.mxu0 0.0
        %359 = vmatpush2.msra.mxu0 0.0
        %360 = vmatprep.subr.mxu0 0.0
        %361 = vmatpush2.msra.mxu0 0.0
        %362 = vmatprep.subr.mxu0 0.0
        %363 = vmatpush2.msra.mxu0 0.0
        %364 = vmatprep.subr.mxu0 0.0
        %365 = vmatpush2.msra.mxu0 0.0
        %366 = vmatprep.subr.mxu0 0.0
        %367 = vmatpush2.msra.mxu0 0.0
        %368 = vmatprep.subr.mxu0 0.0
        %369 = vmatpush2.msra.mxu0 0.0
        %370 = vmatprep.subr.mxu0 0.0
        %371 = vmatpush2.msra.mxu0 0.0
        %372 = vmatprep.subr.mxu0 0.0
        %373 = vmatpush2.msra.mxu0 0.0
        %374 = vmatprep.subr.mxu0 0.0
        %375 = vmatpush2.msra.mxu0 0.0
        %376 = vmatprep.subr.mxu0 0.0
        %377 = vmatpush2.msra.mxu0 0.0
        %378 = vmatprep.subr.mxu0 0.0
        %379 = vmatpush2.msra.mxu0 0.0
        %380 = vmatprep.subr.mxu0 0.0
        %381 = vmatpush2.msra.mxu0 0.0
        %382 = vmatprep.subr.mxu0 0.0
        %383 = vmatpush2.msra.mxu0 0.0
        %384 = vmatprep.mubr.f32.mxu0 0.0
        %385 = vmatmul.mubr.f32.gmra.mxu0 %v247
        %v386 = vpop.f32.mrf.mxu0
        %v387 = vadd.f32 0.0, %v386
        %v388 = vpop.f32.mrf.mxu0
        %v389 = vadd.f32 0.0, %v388
        %390 = vdwg.mxu0
        %391 = vmatprep.subr.mxu0 0.0
        %392 = vmatpush1.msra.mxu0 0.0
        %393 = vmatprep.subr.mxu0 0.0
        %394 = vmatpush1.msra.mxu0 0.0
        %395 = vmatprep.subr.mxu0 0.0
        %396 = vmatpush1.msra.mxu0 0.0
        %397 = vmatprep.subr.mxu0 0.0
        %398 = vmatpush1.msra.mxu0 0.0
        %399 = vmatprep.subr.mxu0 0.0
        %400 = vmatpush1.msra.mxu0 0.0
        %401 = vmatprep.subr.mxu0 0.0
        %402 = vmatpush1.msra.mxu0 0.0
        %403 = vmatprep.subr.mxu0 0.0
        %404 = vmatpush1.msra.mxu0 0.0
        %405 = vmatprep.subr.mxu0 0.0
        %406 = vmatpush1.msra.mxu0 0.0
        %407 = vmatprep.subr.mxu0 0.0
        %408 = vmatpush1.msra.mxu0 0.0
        %409 = vmatprep.subr.mxu0 0.0
        %410 = vmatpush1.msra.mxu0 0.0
        %411 = vmatprep.subr.mxu0 0.0
        %412 = vmatpush1.msra.mxu0 0.0
        %413 = vmatprep.subr.mxu0 0.0
        %414 = vmatpush1.msra.mxu0 0.0
        %415 = vmatprep.subr.mxu0 0.0
        %416 = vmatpush1.msra.mxu0 0.0
        %417 = vmatprep.subr.mxu0 0.0
        %418 = vmatpush1.msra.mxu0 0.0
        %419 = vmatprep.subr.mxu0 0.0
        %420 = vmatpush1.msra.mxu0 0.0
        %421 = vmatprep.subr.mxu0 %v243
        %422 = vmatpush1.msra.mxu0 %v242
        %423 = vmatprep.subr.mxu0 0.0
        %424 = vmatpush2.msra.mxu0 0.0
        %425 = vmatprep.subr.mxu0 0.0
        %426 = vmatpush2.msra.mxu0 0.0
        %427 = vmatprep.subr.mxu0 0.0
        %428 = vmatpush2.msra.mxu0 0.0
        %429 = vmatprep.subr.mxu0 0.0
        %430 = vmatpush2.msra.mxu0 0.0
        %431 = vmatprep.subr.mxu0 0.0
        %432 = vmatpush2.msra.mxu0 0.0
        %433 = vmatprep.subr.mxu0 0.0
        %434 = vmatpush2.msra.mxu0 0.0
        %435 = vmatprep.subr.mxu0 0.0
        %436 = vmatpush2.msra.mxu0 0.0
        %437 = vmatprep.subr.mxu0 0.0
        %438 = vmatpush2.msra.mxu0 0.0
        %439 = vmatprep.subr.mxu0 0.0
        %440 = vmatpush2.msra.mxu0 0.0
        %441 = vmatprep.subr.mxu0 0.0
        %442 = vmatpush2.msra.mxu0 0.0
        %443 = vmatprep.subr.mxu0 0.0
        %444 = vmatpush2.msra.mxu0 0.0
        %445 = vmatprep.subr.mxu0 0.0
        %446 = vmatpush2.msra.mxu0 0.0
        %447 = vmatprep.subr.mxu0 0.0
        %448 = vmatpush2.msra.mxu0 0.0
        %449 = vmatprep.subr.mxu0 0.0
        %450 = vmatpush2.msra.mxu0 0.0
        %451 = vmatprep.subr.mxu0 0.0
        %452 = vmatpush2.msra.mxu0 0.0
        %453 = vmatprep.subr.mxu0 0.0
        %454 = vmatpush2.msra.mxu0 0.0
        %455 = vmatprep.mubr.f32.mxu0 0.0
        %456 = vmatmul.mubr.f32.gmra.mxu0 %v247
        %v457 = vpop.f32.mrf.mxu0
        %v458 = vadd.f32 0.0, %v457
        %v459 = vpop.f32.mrf.mxu0
        %v460 = vadd.f32 0.0, %v459
        %461 = vdwg.mxu0
        %462 = vmatprep.subr.mxu0 0.0
        %463 = vmatpush1.msra.mxu0 0.0
        %464 = vmatprep.subr.mxu0 0.0
        %465 = vmatpush1.msra.mxu0 0.0
        %466 = vmatprep.subr.mxu0 0.0
        %467 = vmatpush1.msra.mxu0 0.0
        %468 = vmatprep.subr.mxu0 0.0
        %469 = vmatpush1.msra.mxu0 0.0
        %470 = vmatprep.subr.mxu0 0.0
        %471 = vmatpush1.msra.mxu0 0.0
        %472 = vmatprep.subr.mxu0 0.0
        %473 = vmatpush1.msra.mxu0 0.0
        %474 = vmatprep.subr.mxu0 0.0
        %475 = vmatpush1.msra.mxu0 0.0
        %476 = vmatprep.subr.mxu0 0.0
        %477 = vmatpush1.msra.mxu0 0.0
        %478 = vmatprep.subr.mxu0 0.0
        %479 = vmatpush1.msra.mxu0 0.0
        %480 = vmatprep.subr.mxu0 0.0
        %481 = vmatpush1.msra.mxu0 0.0
        %482 = vmatprep.subr.mxu0 0.0
        %483 = vmatpush1.msra.mxu0 0.0
        %484 = vmatprep.subr.mxu0 0.0
        %485 = vmatpush1.msra.mxu0 0.0
        %486 = vmatprep.subr.mxu0 0.0
        %487 = vmatpush1.msra.mxu0 0.0
        %488 = vmatprep.subr.mxu0 0.0
        %489 = vmatpush1.msra.mxu0 0.0
        %490 = vmatprep.subr.mxu0 0.0
        %491 = vmatpush1.msra.mxu0 0.0
        %492 = vmatprep.subr.mxu0 0.0
        %493 = vmatpush1.msra.mxu0 %v244
        %494 = vmatprep.subr.mxu0 0.0
        %495 = vmatpush2.msra.mxu0 0.0
        %496 = vmatprep.subr.mxu0 0.0
        %497 = vmatpush2.msra.mxu0 0.0
        %498 = vmatprep.subr.mxu0 0.0
        %499 = vmatpush2.msra.mxu0 0.0
        %500 = vmatprep.subr.mxu0 0.0
        %501 = vmatpush2.msra.mxu0 0.0
        %502 = vmatprep.subr.mxu0 0.0
        %503 = vmatpush2.msra.mxu0 0.0
        %504 = vmatprep.subr.mxu0 0.0
        %505 = vmatpush2.msra.mxu0 0.0
        %506 = vmatprep.subr.mxu0 0.0
        %507 = vmatpush2.msra.mxu0 0.0
        %508 = vmatprep.subr.mxu0 0.0
        %509 = vmatpush2.msra.mxu0 0.0
        %510 = vmatprep.subr.mxu0 0.0
        %511 = vmatpush2.msra.mxu0 0.0
        %512 = vmatprep.subr.mxu0 0.0
        %513 = vmatpush2.msra.mxu0 0.0
        %514 = vmatprep.subr.mxu0 0.0
        %515 = vmatpush2.msra.mxu0 0.0
        %516 = vmatprep.subr.mxu0 0.0
        %517 = vmatpush2.msra.mxu0 0.0
        %518 = vmatprep.subr.mxu0 0.0
        %519 = vmatpush2.msra.mxu0 0.0
        %520 = vmatprep.subr.mxu0 0.0
        %521 = vmatpush2.msra.mxu0 0.0
        %522 = vmatprep.subr.mxu0 0.0
        %523 = vmatpush2.msra.mxu0 0.0
        %524 = vmatprep.subr.mxu0 0.0
        %525 = vmatpush2.msra.mxu0 0.0
        %526 = vmatprep.mubr.f32.mxu0 0.0
        %527 = vmatmul.mubr.f32.gmra.mxu0 %v247
        %v528 = vpop.f32.mrf.mxu0
        %v529 = vadd.f32 0.0, %v528
        %v530 = vpop.f32.mrf.mxu0
        %531 = vdwg.mxu0
        %v532 = vmax.f32 %v316, 0.0
        %v533 = vmax.f32 %v318, 0.0
        %v534 = vmax.f32 %v387, 0.0
        %v535 = vmax.f32 %v389, 0.0
        %v536 = vmax.f32 %v458, 0.0
        %v537 = vmax.f32 %v460, 0.0
        %v538 = vmax.f32 %v529, 0.0
        %v539 = vld [vmem:[#allocation4] sm:$0xff]
        %v540 = vld [vmem:[#allocation4 + $0x8] sm:$0xff]
        %v541 = vld [vmem:[#allocation4 + $0x10] sm:$0xff]
        %v542 = vld [vmem:[#allocation4 + $0x18] sm:$0xff]
        %v543 = vld [vmem:[#allocation4 + $0x20] sm:$0xff]
        %v544 = vld [vmem:[#allocation4 + $0x28] sm:$0xff]
        %v545 = vld [vmem:[#allocation4 + $0x30] sm:$0xff]
        %v546 = vld [vmem:[#allocation4 + $0x38] sm:$0xff]
        %v547 = vld [vmem:[#allocation4 + $0x40] sm:$0xff]
        %v548 = vld [vmem:[#allocation4 + $0x48] sm:$0xff]
        %v549 = vld [vmem:[#allocation4 + $0x50] sm:$0xff]
        %v550 = vld [vmem:[#allocation4 + $0x58] sm:$0xff]
        %v551 = vld [vmem:[#allocation4 + $0x60] sm:$0xff]
        %v552 = vld [vmem:[#allocation4 + $0x68] sm:$0xff]
        %v553 = vld [vmem:[#allocation4 + $0x70] sm:$0xff]
        %v554 = vld [vmem:[#allocation4 + $0x78] sm:$0xff]
        %v555 = vld [vmem:[#allocation4 + $0x80] sm:$0xff]
        %v556 = vld [vmem:[#allocation4 + $0x88] sm:$0xff]
        %v557 = vld [vmem:[#allocation4 + $0x90] sm:$0xff]
        %v558 = vld [vmem:[#allocation4 + $0x98] sm:$0xff]
        %v559 = vld [vmem:[#allocation4 + $0xa0] sm:$0xff]
        %v560 = vld [vmem:[#allocation4 + $0xa8] sm:$0xff]
        %v561 = vld [vmem:[#allocation4 + $0xb0] sm:$0xff]
        %v562 = vld [vmem:[#allocation4 + $0xb8] sm:$0xff]
        %v563 = vld [vmem:[#allocation4 + $0xc0] sm:$0xff]
        %v564 = vld [vmem:[#allocation4 + $0xc8] sm:$0xff]
        %v565 = vld [vmem:[#allocation4 + $0xd0] sm:$0xff]
        %v566 = vld [vmem:[#allocation4 + $0xd8] sm:$0xff]
        %v567 = vld [vmem:[#allocation4 + $0xe0] sm:$0xff]
        %v568 = vld [vmem:[#allocation4 + $0xe8] sm:$0xff]
        %v569 = vld [vmem:[#allocation4 + $0xf0] sm:$0xff]
        %v570 = vld [vmem:[#allocation4 + $0xf8] sm:$0xff]
        %v571 = vld [vmem:[#allocation4 + $0x100] sm:$0xff]
        %v572 = vld [vmem:[#allocation4 + $0x108] sm:$0xff]
        %v573 = vld [vmem:[#allocation4 + $0x110] sm:$0xff]
        %v574 = vld [vmem:[#allocation4 + $0x118] sm:$0xff]
        %v575 = vld [vmem:[#allocation4 + $0x120] sm:$0xff]
        %v576 = vld [vmem:[#allocation4 + $0x128] sm:$0xff]
        %v577 = vld [vmem:[#allocation4 + $0x130] sm:$0xff]
        %v578 = vld [vmem:[#allocation4 + $0x138] sm:$0xff]
        %v579 = vld [vmem:[#allocation4 + $0x140] sm:$0xff]
        %v580 = vld [vmem:[#allocation4 + $0x148] sm:$0xff]
        %v581 = vld [vmem:[#allocation4 + $0x150] sm:$0xff]
        %v582 = vld [vmem:[#allocation4 + $0x158] sm:$0xff]
        %v583 = vld [vmem:[#allocation4 + $0x160] sm:$0xff]
        %v584 = vld [vmem:[#allocation4 + $0x168] sm:$0xff]
        %v585 = vld [vmem:[#allocation4 + $0x170] sm:$0xff]
        %v586 = vld [vmem:[#allocation4 + $0x178] sm:$0xff]
        %v587 = vld [vmem:[#allocation4 + $0x180] sm:$0xff]
        %v588 = vld [vmem:[#allocation4 + $0x188] sm:$0xff]
        %v589 = vld [vmem:[#allocation4 + $0x190] sm:$0xff]
        %v590 = vld [vmem:[#allocation4 + $0x198] sm:$0xff]
        %v591 = vld [vmem:[#allocation4 + $0x1a0] sm:$0xff]
        %v592 = vld [vmem:[#allocation4 + $0x1a8] sm:$0xff]
        %v593 = vld [vmem:[#allocation4 + $0x1b0] sm:$0xff]
        %v594 = vld [vmem:[#allocation4 + $0x1b8] sm:$0xff]
        %v595 = vld [vmem:[#allocation4 + $0x1c0] sm:$0xff]
        %v596 = vld [vmem:[#allocation4 + $0x1c8] sm:$0xff]
        %v597 = vld [vmem:[#allocation4 + $0x1d0] sm:$0xff]
        %v598 = vld [vmem:[#allocation4 + $0x1d8] sm:$0xff]
        %v599 = vld [vmem:[#allocation4 + $0x1e0] sm:$0xff]
        %v600 = vld [vmem:[#allocation4 + $0x1e8] sm:$0xff]
        %v601 = vld [vmem:[#allocation4 + $0x1f0] sm:$0xff]
        %v602 = vld [vmem:[#allocation4 + $0x1f8] sm:$0xff]
        %v603 = vld [vmem:[#allocation4 + $0x200] sm:$0xff]
        %v604 = vld [vmem:[#allocation4 + $0x208] sm:$0xff]
        %v605 = vld [vmem:[#allocation4 + $0x210] sm:$0xff]
        %v606 = vld [vmem:[#allocation4 + $0x218] sm:$0xff]
        %v607 = vld [vmem:[#allocation4 + $0x220] sm:$0xff]
        %v608 = vld [vmem:[#allocation4 + $0x228] sm:$0xff]
        %v609 = vld [vmem:[#allocation4 + $0x230] sm:$0xff]
        %v610 = vld [vmem:[#allocation4 + $0x238] sm:$0xff]
        %v611 = vld [vmem:[#allocation4 + $0x240] sm:$0xff]
        %v612 = vld [vmem:[#allocation4 + $0x248] sm:$0xff]
        %v613 = vld [vmem:[#allocation4 + $0x250] sm:$0xff]
        %v614 = vld [vmem:[#allocation4 + $0x258] sm:$0xff]
        %v615 = vld [vmem:[#allocation4 + $0x260] sm:$0xff]
        %v616 = vld [vmem:[#allocation4 + $0x268] sm:$0xff]
        %v617 = vld [vmem:[#allocation4 + $0x270] sm:$0xff]
        %v618 = vld [vmem:[#allocation4 + $0x278] sm:$0xff]
        %v619 = vld [vmem:[#allocation4 + $0x280] sm:$0xff]
        %v620 = vld [vmem:[#allocation4 + $0x288] sm:$0xff]
        %v621 = vld [vmem:[#allocation4 + $0x290] sm:$0xff]
        %v622 = vld [vmem:[#allocation4 + $0x298] sm:$0xff]
        %v623 = vld [vmem:[#allocation4 + $0x2a0] sm:$0xff]
        %v624 = vld [vmem:[#allocation4 + $0x2a8] sm:$0xff]
        %v625 = vld [vmem:[#allocation4 + $0x2b0] sm:$0xff]
        %v626 = vld [vmem:[#allocation4 + $0x2b8] sm:$0xff]
        %v627 = vld [vmem:[#allocation4 + $0x2c0] sm:$0xff]
        %v628 = vld [vmem:[#allocation4 + $0x2c8] sm:$0xff]
        %v629 = vld [vmem:[#allocation4 + $0x2d0] sm:$0xff]
        %v630 = vld [vmem:[#allocation4 + $0x2d8] sm:$0xff]
        %v631 = vld [vmem:[#allocation4 + $0x2e0] sm:$0xff]
        %v632 = vld [vmem:[#allocation4 + $0x2e8] sm:$0xff]
        %v633 = vld [vmem:[#allocation4 + $0x2f0] sm:$0xff]
        %v634 = vld [vmem:[#allocation4 + $0x2f8] sm:$0xff]
        %v635 = vld [vmem:[#allocation4 + $0x300] sm:$0xff]
        %v636 = vld [vmem:[#allocation4 + $0x308] sm:$0xff]
        %v637 = vld [vmem:[#allocation4 + $0x310] sm:$0xff]
        %v638 = vld [vmem:[#allocation4 + $0x318] sm:$0xff]
        %v639 = vld [vmem:[#allocation4 + $0x320] sm:$0xff]
        %v640 = vld [vmem:[#allocation4 + $0x328] sm:$0xff]
        %v641 = vld [vmem:[#allocation4 + $0x330] sm:$0xff]
        %v642 = vld [vmem:[#allocation4 + $0x338] sm:$0xff]
        %v643 = vld [vmem:[#allocation4 + $0x340] sm:$0xff]
        %v644 = vld [vmem:[#allocation4 + $0x348] sm:$0xff]
        %v645 = vld [vmem:[#allocation4 + $0x350] sm:$0xff]
        %v646 = vld [vmem:[#allocation4 + $0x358] sm:$0xff]
        %v647 = vld [vmem:[#allocation4 + $0x360] sm:$0xff]
        %v648 = vld [vmem:[#allocation4 + $0x368] sm:$0xff]
        %v649 = vld [vmem:[#allocation4 + $0x370] sm:$0xff]
        %v650 = vld [vmem:[#allocation4 + $0x378] sm:$0xff]
        %v651 = vld [vmem:[#allocation4 + $0x380] sm:$0xff]
        %v652 = vld [vmem:[#allocation4 + $0x388] sm:$0xff]
        %v653 = vld [vmem:[#allocation4 + $0x390] sm:$0xff]
        %v654 = vld [vmem:[#allocation4 + $0x398] sm:$0xff]
        %v655 = vld [vmem:[#allocation4 + $0x3a0] sm:$0xff]
        %v656 = vld [vmem:[#allocation4 + $0x3a8] sm:$0xff]
        %v657 = vld [vmem:[#allocation4 + $0x3b0] sm:$0xff]
        %v658 = vld [vmem:[#allocation4 + $0x3b8] sm:$0xff]
        %v659 = vld [vmem:[#allocation4 + $0x3c0] sm:$0xff]
        %v660 = vld [vmem:[#allocation4 + $0x3c8] sm:$0xff]
        %v661 = vld [vmem:[#allocation4 + $0x3d0] sm:$0xff]
        %v662 = vld [vmem:[#allocation4 + $0x3d8] sm:$0xff]
        %v663 = vld [vmem:[#allocation4 + $0x3e0] sm:$0xff]
        %v664 = vld [vmem:[#allocation4 + $0x3e8] sm:$0xff]
        %v665 = vld [vmem:[#allocation4 + $0x3f0] sm:$0xff]
        %v666 = vld [vmem:[#allocation4 + $0x3f8] sm:$0xff]
        %v667 = vld [vmem:[#allocation4 + $0x400] sm:$0xff]
        %v668 = vld [vmem:[#allocation4 + $0x408] sm:$0xff]
        %v669 = vld [vmem:[#allocation4 + $0x410] sm:$0xff]
        %v670 = vld [vmem:[#allocation4 + $0x418] sm:$0xff]
        %v671 = vld [vmem:[#allocation4 + $0x420] sm:$0xff]
        %v672 = vld [vmem:[#allocation4 + $0x428] sm:$0xff]
        %v673 = vld [vmem:[#allocation4 + $0x430] sm:$0xff]
        %v674 = vld [vmem:[#allocation4 + $0x438] sm:$0xff]
        %v675 = vld [vmem:[#allocation4 + $0x440] sm:$0xff]
        %v676 = vld [vmem:[#allocation4 + $0x448] sm:$0xff]
        %v677 = vld [vmem:[#allocation4 + $0x450] sm:$0xff]
        %v678 = vld [vmem:[#allocation4 + $0x458] sm:$0xff]
        %v679 = vld [vmem:[#allocation4 + $0x460] sm:$0xff]
        %v680 = vld [vmem:[#allocation4 + $0x468] sm:$0xff]
        %v681 = vld [vmem:[#allocation4 + $0x470] sm:$0xff]
        %v682 = vld [vmem:[#allocation4 + $0x478] sm:$0xff]
        %v683 = vld [vmem:[#allocation4 + $0x480] sm:$0xff]
        %v684 = vld [vmem:[#allocation4 + $0x488] sm:$0xff]
        %v685 = vld [vmem:[#allocation4 + $0x490] sm:$0xff]
        %v686 = vld [vmem:[#allocation4 + $0x498] sm:$0xff]
        %v687 = vld [vmem:[#allocation4 + $0x4a0] sm:$0xff]
        %v688 = vld [vmem:[#allocation4 + $0x4a8] sm:$0xff]
        %v689 = vld [vmem:[#allocation4 + $0x4b0] sm:$0xff]
        %v690 = vld [vmem:[#allocation4 + $0x4b8] sm:$0xff]
        %v691 = vld [vmem:[#allocation4 + $0x4c0] sm:$0xff]
        %v692 = vld [vmem:[#allocation4 + $0x4c8] sm:$0xff]
        %v693 = vld [vmem:[#allocation4 + $0x4d0] sm:$0xff]
        %v694 = vld [vmem:[#allocation4 + $0x4d8] sm:$0xff]
        %v695 = vld [vmem:[#allocation4 + $0x4e0] sm:$0xff]
        %v696 = vld [vmem:[#allocation4 + $0x4e8] sm:$0xff]
        %v697 = vld [vmem:[#allocation4 + $0x4f0] sm:$0xff]
        %v698 = vld [vmem:[#allocation4 + $0x4f8] sm:$0xff]
        %v699 = vld [vmem:[#allocation4 + $0x500] sm:$0xff]
        %v700 = vld [vmem:[#allocation4 + $0x508] sm:$0xff]
        %v701 = vld [vmem:[#allocation4 + $0x510] sm:$0xff]
        %v702 = vld [vmem:[#allocation4 + $0x518] sm:$0xff]
        %v703 = vld [vmem:[#allocation4 + $0x520] sm:$0xff]
        %v704 = vld [vmem:[#allocation4 + $0x528] sm:$0xff]
        %v705 = vld [vmem:[#allocation4 + $0x530] sm:$0xff]
        %v706 = vld [vmem:[#allocation4 + $0x538] sm:$0xff]
        %v707 = vld [vmem:[#allocation4 + $0x540] sm:$0xff]
        %v708 = vld [vmem:[#allocation4 + $0x548] sm:$0xff]
        %v709 = vld [vmem:[#allocation4 + $0x550] sm:$0xff]
        %v710 = vld [vmem:[#allocation4 + $0x558] sm:$0xff]
        %v711 = vld [vmem:[#allocation4 + $0x560] sm:$0xff]
        %v712 = vld [vmem:[#allocation4 + $0x568] sm:$0xff]
        %v713 = vld [vmem:[#allocation4 + $0x570] sm:$0xff]
        %v714 = vld [vmem:[#allocation4 + $0x578] sm:$0xff]
        %v715 = vld [vmem:[#allocation4 + $0x580] sm:$0xff]
        %v716 = vld [vmem:[#allocation4 + $0x588] sm:$0xff]
        %v717 = vld [vmem:[#allocation4 + $0x590] sm:$0xff]
        %v718 = vld [vmem:[#allocation4 + $0x598] sm:$0xff]
        %v719 = vld [vmem:[#allocation4 + $0x5a0] sm:$0xff]
        %v720 = vld [vmem:[#allocation4 + $0x5a8] sm:$0xff]
        %v721 = vld [vmem:[#allocation4 + $0x5b0] sm:$0xff]
        %v722 = vld [vmem:[#allocation4 + $0x5b8] sm:$0xff]
        %v723 = vld [vmem:[#allocation4 + $0x5c0] sm:$0xff]
        %v724 = vld [vmem:[#allocation4 + $0x5c8] sm:$0xff]
        %v725 = vld [vmem:[#allocation4 + $0x5d0] sm:$0xff]
        %v726 = vld [vmem:[#allocation4 + $0x5d8] sm:$0xff]
        %v727 = vld [vmem:[#allocation4 + $0x5e0] sm:$0xff]
        %v728 = vld [vmem:[#allocation4 + $0x5e8] sm:$0xff]
        %v729 = vld [vmem:[#allocation4 + $0x5f0] sm:$0xff]
        %v730 = vld [vmem:[#allocation4 + $0x5f8] sm:$0xff]
        %v731 = vld [vmem:[#allocation4 + $0x600] sm:$0xff]
        %v732 = vld [vmem:[#allocation4 + $0x608] sm:$0xff]
        %v733 = vld [vmem:[#allocation4 + $0x610] sm:$0xff]
        %v734 = vld [vmem:[#allocation4 + $0x618] sm:$0xff]
        %v735 = vld [vmem:[#allocation4 + $0x620] sm:$0xff]
        %v736 = vld [vmem:[#allocation4 + $0x628] sm:$0xff]
        %v737 = vld [vmem:[#allocation4 + $0x630] sm:$0xff]
        %v738 = vld [vmem:[#allocation4 + $0x638] sm:$0xff]
        %v739 = vld [vmem:[#allocation4 + $0x640] sm:$0xff]
        %v740 = vld [vmem:[#allocation4 + $0x648] sm:$0xff]
        %v741 = vld [vmem:[#allocation4 + $0x650] sm:$0xff]
        %v742 = vld [vmem:[#allocation4 + $0x658] sm:$0xff]
        %v743 = vld [vmem:[#allocation4 + $0x660] sm:$0xff]
        %v744 = vld [vmem:[#allocation4 + $0x668] sm:$0xff]
        %v745 = vld [vmem:[#allocation4 + $0x670] sm:$0xff]
        %v746 = vld [vmem:[#allocation4 + $0x678] sm:$0xff]
        %v747 = vld [vmem:[#allocation4 + $0x680] sm:$0xff]
        %v748 = vld [vmem:[#allocation4 + $0x688] sm:$0xff]
        %v749 = vld [vmem:[#allocation4 + $0x690] sm:$0xff]
        %v750 = vld [vmem:[#allocation4 + $0x698] sm:$0xff]
        %v751 = vld [vmem:[#allocation4 + $0x6a0] sm:$0xff]
        %v752 = vld [vmem:[#allocation4 + $0x6a8] sm:$0xff]
        %v753 = vld [vmem:[#allocation4 + $0x6b0] sm:$0xff]
        %v754 = vld [vmem:[#allocation4 + $0x6b8] sm:$0xff]
        %v755 = vld [vmem:[#allocation4 + $0x6c0] sm:$0xff]
        %v756 = vld [vmem:[#allocation4 + $0x6c8] sm:$0xff]
        %v757 = vld [vmem:[#allocation4 + $0x6d0] sm:$0xff]
        %v758 = vld [vmem:[#allocation4 + $0x6d8] sm:$0xff]
        %v759 = vld [vmem:[#allocation4 + $0x6e0] sm:$0xff]
        %v760 = vld [vmem:[#allocation4 + $0x6e8] sm:$0xff]
        %v761 = vld [vmem:[#allocation4 + $0x6f0] sm:$0xff]
        %v762 = vld [vmem:[#allocation4 + $0x6f8] sm:$0xff]
        %v763 = vld [vmem:[#allocation4 + $0x700] sm:$0xff]
        %v764 = vld [vmem:[#allocation4 + $0x708] sm:$0xff]
        %v765 = vld [vmem:[#allocation4 + $0x710] sm:$0xff]
        %v766 = vld [vmem:[#allocation4 + $0x718] sm:$0xff]
        %v767 = vld [vmem:[#allocation4 + $0x720] sm:$0xff]
        %v768 = vld [vmem:[#allocation4 + $0x728] sm:$0xff]
        %v769 = vld [vmem:[#allocation4 + $0x730] sm:$0xff]
        %v770 = vld [vmem:[#allocation4 + $0x738] sm:$0xff]
        %v771 = vld [vmem:[#allocation4 + $0x740] sm:$0xff]
        %v772 = vld [vmem:[#allocation4 + $0x748] sm:$0xff]
        %v773 = vld [vmem:[#allocation4 + $0x750] sm:$0xff]
        %v774 = vld [vmem:[#allocation4 + $0x758] sm:$0xff]
        %v775 = vld [vmem:[#allocation4 + $0x760] sm:$0xff]
        %v776 = vld [vmem:[#allocation4 + $0x768] sm:$0xff]
        %v777 = vld [vmem:[#allocation4 + $0x770] sm:$0xff]
        %v778 = vld [vmem:[#allocation4 + $0x778] sm:$0xff]
        %v779 = vld [vmem:[#allocation4 + $0x780] sm:$0xff]
        %v780 = vld [vmem:[#allocation4 + $0x788] sm:$0xff]
        %v781 = vld [vmem:[#allocation4 + $0x790] sm:$0xff]
        %v782 = vld [vmem:[#allocation4 + $0x798] sm:$0xff]
        %v783 = vld [vmem:[#allocation4 + $0x7a0] sm:$0xff]
        %v784 = vld [vmem:[#allocation4 + $0x7a8] sm:$0xff]
        %v785 = vld [vmem:[#allocation4 + $0x7b0] sm:$0xff]
        %v786 = vld [vmem:[#allocation4 + $0x7b8] sm:$0xff]
        %v787 = vld [vmem:[#allocation4 + $0x7c0] sm:$0xff]
        %v788 = vld [vmem:[#allocation4 + $0x7c8] sm:$0xff]
        %v789 = vld [vmem:[#allocation4 + $0x7d0] sm:$0xff]
        %v790 = vld [vmem:[#allocation4 + $0x7d8] sm:$0xff]
        %v791 = vld [vmem:[#allocation4 + $0x7e0] sm:$0xff]
        %v792 = vld [vmem:[#allocation4 + $0x7e8] sm:$0xff]
        %v793 = vld [vmem:[#allocation4 + $0x7f0] sm:$0xff]
        %v794 = vld [vmem:[#allocation4 + $0x7f8] sm:$0xff]
        %v795 = vld [vmem:[#allocation4 + $0x800] sm:$0xff]
        %v796 = vld [vmem:[#allocation4 + $0x808] sm:$0xff]
        %v797 = vld [vmem:[#allocation4 + $0x810] sm:$0xff]
        %v798 = vld [vmem:[#allocation4 + $0x818] sm:$0xff]
        %v799 = vld [vmem:[#allocation4 + $0x820] sm:$0xff]
        %v800 = vld [vmem:[#allocation4 + $0x828] sm:$0xff]
        %v801 = vld [vmem:[#allocation4 + $0x830] sm:$0xff]
        %v802 = vld [vmem:[#allocation4 + $0x838] sm:$0xff]
        %v803 = vld [vmem:[#allocation4 + $0x840] sm:$0xff]
        %v804 = vld [vmem:[#allocation4 + $0x848] sm:$0xff]
        %v805 = vld [vmem:[#allocation4 + $0x850] sm:$0xff]
        %v806 = vld [vmem:[#allocation4 + $0x858] sm:$0xff]
        %v807 = vld [vmem:[#allocation4 + $0x860] sm:$0xff]
        %v808 = vld [vmem:[#allocation4 + $0x868] sm:$0xff]
        %v809 = vld [vmem:[#allocation4 + $0x870] sm:$0xff]
        %v810 = vld [vmem:[#allocation4 + $0x878] sm:$0xff]
        %v811 = vld [vmem:[#allocation4 + $0x880] sm:$0xff]
        %v812 = vld [vmem:[#allocation4 + $0x888] sm:$0xff]
        %v813 = vld [vmem:[#allocation4 + $0x890] sm:$0xff]
        %v814 = vld [vmem:[#allocation4 + $0x898] sm:$0xff]
        %v815 = vld [vmem:[#allocation4 + $0x8a0] sm:$0xff]
        %v816 = vld [vmem:[#allocation4 + $0x8a8] sm:$0xff]
        %v817 = vld [vmem:[#allocation4 + $0x8b0] sm:$0xff]
        %v818 = vld [vmem:[#allocation4 + $0x8b8] sm:$0xff]
        %v819 = vld [vmem:[#allocation4 + $0x8c0] sm:$0xff]
        %v820 = vld [vmem:[#allocation4 + $0x8c8] sm:$0xff]
        %v821 = vld [vmem:[#allocation4 + $0x8d0] sm:$0xff]
        %v822 = vld [vmem:[#allocation4 + $0x8d8] sm:$0xff]
        %v823 = vld [vmem:[#allocation4 + $0x8e0] sm:$0xff]
        %v824 = vld [vmem:[#allocation4 + $0x8e8] sm:$0xff]
        %v825 = vld [vmem:[#allocation4 + $0x8f0] sm:$0xff]
        %v826 = vld [vmem:[#allocation4 + $0x8f8] sm:$0xff]
        %v827 = vld [vmem:[#allocation4 + $0x900] sm:$0xff]
        %v828 = vld [vmem:[#allocation4 + $0x908] sm:$0xff]
        %v829 = vld [vmem:[#allocation4 + $0x910] sm:$0xff]
        %v830 = vld [vmem:[#allocation4 + $0x918] sm:$0xff]
        %v831 = vld [vmem:[#allocation4 + $0x920] sm:$0xff]
        %v832 = vld [vmem:[#allocation4 + $0x928] sm:$0xff]
        %v833 = vld [vmem:[#allocation4 + $0x930] sm:$0xff]
        %v834 = vld [vmem:[#allocation4 + $0x938] sm:$0xff]
        %v835 = vld [vmem:[#allocation4 + $0x940] sm:$0xff]
        %v836 = vld [vmem:[#allocation4 + $0x948] sm:$0xff]
        %v837 = vld [vmem:[#allocation4 + $0x950] sm:$0xff]
        %v838 = vld [vmem:[#allocation4 + $0x958] sm:$0xff]
        %v839 = vld [vmem:[#allocation4 + $0x960] sm:$0xff]
        %v840 = vld [vmem:[#allocation4 + $0x968] sm:$0xff]
        %v841 = vld [vmem:[#allocation4 + $0x970] sm:$0xff]
        %v842 = vld [vmem:[#allocation4 + $0x978] sm:$0xff]
        %v843 = vld [vmem:[#allocation4 + $0x980] sm:$0xff]
        %v844 = vld [vmem:[#allocation4 + $0x988] sm:$0xff]
        %v845 = vld [vmem:[#allocation4 + $0x990] sm:$0xff]
        %v846 = vld [vmem:[#allocation4 + $0x998] sm:$0xff]
        %v847 = vld [vmem:[#allocation4 + $0x9a0] sm:$0xff]
        %v848 = vld [vmem:[#allocation4 + $0x9a8] sm:$0xff]
        %v849 = vld [vmem:[#allocation4 + $0x9b0] sm:$0xff]
        %v850 = vld [vmem:[#allocation4 + $0x9b8] sm:$0xff]
        %v851 = vld [vmem:[#allocation4 + $0x9c0] sm:$0xff]
        %v852 = vld [vmem:[#allocation4 + $0x9c8] sm:$0xff]
        %v853 = vld [vmem:[#allocation4 + $0x9d0] sm:$0xff]
        %v854 = vld [vmem:[#allocation4 + $0x9d8] sm:$0xff]
        %v855 = vld [vmem:[#allocation4 + $0x9e0] sm:$0xff]
        %v856 = vld [vmem:[#allocation4 + $0x9e8] sm:$0xff]
        %v857 = vld [vmem:[#allocation4 + $0x9f0] sm:$0xff]
        %v858 = vld [vmem:[#allocation4 + $0x9f8] sm:$0xff]
        %v859 = vld [vmem:[#allocation4 + $0xa00] sm:$0xff]
        %v860 = vld [vmem:[#allocation4 + $0xa08] sm:$0xff]
        %v861 = vld [vmem:[#allocation4 + $0xa10] sm:$0xff]
        %v862 = vld [vmem:[#allocation4 + $0xa18] sm:$0xff]
        %v863 = vld [vmem:[#allocation4 + $0xa20] sm:$0xff]
        %v864 = vld [vmem:[#allocation4 + $0xa28] sm:$0xff]
        %v865 = vld [vmem:[#allocation4 + $0xa30] sm:$0xff]
        %v866 = vld [vmem:[#allocation4 + $0xa38] sm:$0xff]
        %v867 = vld [vmem:[#allocation4 + $0xa40] sm:$0xff]
        %v868 = vld [vmem:[#allocation4 + $0xa48] sm:$0xff]
        %v869 = vld [vmem:[#allocation4 + $0xa50] sm:$0xff]
        %v870 = vld [vmem:[#allocation4 + $0xa58] sm:$0xff]
        %v871 = vld [vmem:[#allocation4 + $0xa60] sm:$0xff]
        %v872 = vld [vmem:[#allocation4 + $0xa68] sm:$0xff]
        %v873 = vld [vmem:[#allocation4 + $0xa70] sm:$0xff]
        %v874 = vld [vmem:[#allocation4 + $0xa78] sm:$0xff]
        %v875 = vld [vmem:[#allocation4 + $0xa80] sm:$0xff]
        %v876 = vld [vmem:[#allocation4 + $0xa88] sm:$0xff]
        %v877 = vld [vmem:[#allocation4 + $0xa90] sm:$0xff]
        %v878 = vld [vmem:[#allocation4 + $0xa98] sm:$0xff]
        %v879 = vld [vmem:[#allocation4 + $0xaa0] sm:$0xff]
        %v880 = vld [vmem:[#allocation4 + $0xaa8] sm:$0xff]
        %v881 = vld [vmem:[#allocation4 + $0xab0] sm:$0xff]
        %v882 = vld [vmem:[#allocation4 + $0xab8] sm:$0xff]
        %v883 = vld [vmem:[#allocation4 + $0xac0] sm:$0xff]
        %v884 = vld [vmem:[#allocation4 + $0xac8] sm:$0xff]
        %v885 = vld [vmem:[#allocation4 + $0xad0] sm:$0xff]
        %v886 = vld [vmem:[#allocation4 + $0xad8] sm:$0xff]
        %v887 = vld [vmem:[#allocation4 + $0xae0] sm:$0xff]
        %v888 = vld [vmem:[#allocation4 + $0xae8] sm:$0xff]
        %v889 = vld [vmem:[#allocation4 + $0xaf0] sm:$0xff]
        %v890 = vld [vmem:[#allocation4 + $0xaf8] sm:$0xff]
        %v891 = vld [vmem:[#allocation4 + $0xb00] sm:$0xff]
        %v892 = vld [vmem:[#allocation4 + $0xb08] sm:$0xff]
        %v893 = vld [vmem:[#allocation4 + $0xb10] sm:$0xff]
        %v894 = vld [vmem:[#allocation4 + $0xb18] sm:$0xff]
        %v895 = vld [vmem:[#allocation4 + $0xb20] sm:$0xff]
        %v896 = vld [vmem:[#allocation4 + $0xb28] sm:$0xff]
        %v897 = vld [vmem:[#allocation4 + $0xb30] sm:$0xff]
        %v898 = vld [vmem:[#allocation4 + $0xb38] sm:$0xff]
        %v899 = vld [vmem:[#allocation4 + $0xb40] sm:$0xff]
        %v900 = vld [vmem:[#allocation4 + $0xb48] sm:$0xff]
        %v901 = vld [vmem:[#allocation4 + $0xb50] sm:$0xff]
        %v902 = vld [vmem:[#allocation4 + $0xb58] sm:$0xff]
        %v903 = vld [vmem:[#allocation4 + $0xb60] sm:$0xff]
        %v904 = vld [vmem:[#allocation4 + $0xb68] sm:$0xff]
        %v905 = vld [vmem:[#allocation4 + $0xb70] sm:$0xff]
        %v906 = vld [vmem:[#allocation4 + $0xb78] sm:$0xff]
        %v907 = vld [vmem:[#allocation4 + $0xb80] sm:$0xff]
        %v908 = vld [vmem:[#allocation4 + $0xb88] sm:$0xff]
        %v909 = vld [vmem:[#allocation4 + $0xb90] sm:$0xff]
        %v910 = vld [vmem:[#allocation4 + $0xb98] sm:$0xff]
        %v911 = vld [vmem:[#allocation4 + $0xba0] sm:$0xff]
        %v912 = vld [vmem:[#allocation4 + $0xba8] sm:$0xff]
        %v913 = vld [vmem:[#allocation4 + $0xbb0] sm:$0xff]
        %v914 = vld [vmem:[#allocation4 + $0xbb8] sm:$0xff]
        %v915 = vld [vmem:[#allocation4 + $0xbc0] sm:$0xff]
        %v916 = vld [vmem:[#allocation4 + $0xbc8] sm:$0xff]
        %v917 = vld [vmem:[#allocation4 + $0xbd0] sm:$0xff]
        %v918 = vld [vmem:[#allocation4 + $0xbd8] sm:$0xff]
        %v919 = vld [vmem:[#allocation4 + $0xbe0] sm:$0xff]
        %v920 = vld [vmem:[#allocation4 + $0xbe8] sm:$0xff]
        %v921 = vld [vmem:[#allocation4 + $0xbf0] sm:$0xff]
        %v922 = vld [vmem:[#allocation4 + $0xbf8] sm:$0xff]
        %v923 = vld [vmem:[#allocation4 + $0xc00] sm:$0xff]
        %v924 = vld [vmem:[#allocation4 + $0xc08] sm:$0xff]
        %v925 = vld [vmem:[#allocation4 + $0xc10] sm:$0xff]
        %v926 = vld [vmem:[#allocation4 + $0xc18] sm:$0xff]
        %v927 = vld [vmem:[#allocation4 + $0xc20] sm:$0xff]
        %v928 = vld [vmem:[#allocation4 + $0xc28] sm:$0xff]
        %v929 = vld [vmem:[#allocation4 + $0xc30] sm:$0xff]
        %v930 = vld [vmem:[#allocation4 + $0xc38] sm:$0xff]
        %v931 = vld [vmem:[#allocation4 + $0xc40] sm:$0xff]
        %v932 = vld [vmem:[#allocation4 + $0xc48] sm:$0xff]
        %v933 = vld [vmem:[#allocation4 + $0xc50] sm:$0xff]
        %v934 = vld [vmem:[#allocation4 + $0xc58] sm:$0xff]
        %v935 = vld [vmem:[#allocation4 + $0xc60] sm:$0xff]
        %v936 = vld [vmem:[#allocation4 + $0xc68] sm:$0xff]
        %v937 = vld [vmem:[#allocation4 + $0xc70] sm:$0xff]
        %v938 = vld [vmem:[#allocation4 + $0xc78] sm:$0xff]
        %v939 = vld [vmem:[#allocation4 + $0xc80] sm:$0xff]
        %v940 = vld [vmem:[#allocation4 + $0xc88] sm:$0xff]
        %v941 = vld [vmem:[#allocation4 + $0xc90] sm:$0xff]
        %v942 = vld [vmem:[#allocation4 + $0xc98] sm:$0xff]
        %v943 = vld [vmem:[#allocation4 + $0xca0] sm:$0xff]
        %v944 = vld [vmem:[#allocation4 + $0xca8] sm:$0xff]
        %v945 = vld [vmem:[#allocation4 + $0xcb0] sm:$0xff]
        %v946 = vld [vmem:[#allocation4 + $0xcb8] sm:$0xff]
        %v947 = vld [vmem:[#allocation4 + $0xcc0] sm:$0xff]
        %v948 = vld [vmem:[#allocation4 + $0xcc8] sm:$0xff]
        %v949 = vld [vmem:[#allocation4 + $0xcd0] sm:$0xff]
        %v950 = vld [vmem:[#allocation4 + $0xcd8] sm:$0xff]
        %v951 = vld [vmem:[#allocation4 + $0xce0] sm:$0xff]
        %v952 = vld [vmem:[#allocation4 + $0xce8] sm:$0xff]
        %v953 = vld [vmem:[#allocation4 + $0xcf0] sm:$0xff]
        %v954 = vld [vmem:[#allocation4 + $0xcf8] sm:$0xff]
        %v955 = vld [vmem:[#allocation4 + $0xd00] sm:$0xff]
        %v956 = vld [vmem:[#allocation4 + $0xd08] sm:$0xff]
        %v957 = vld [vmem:[#allocation4 + $0xd10] sm:$0xff]
        %v958 = vld [vmem:[#allocation4 + $0xd18] sm:$0xff]
        %v959 = vld [vmem:[#allocation4 + $0xd20] sm:$0xff]
        %v960 = vld [vmem:[#allocation4 + $0xd28] sm:$0xff]
        %v961 = vld [vmem:[#allocation4 + $0xd30] sm:$0xff]
        %v962 = vld [vmem:[#allocation4 + $0xd38] sm:$0xff]
        %v963 = vld [vmem:[#allocation4 + $0xd40] sm:$0xff]
        %v964 = vld [vmem:[#allocation4 + $0xd48] sm:$0xff]
        %v965 = vld [vmem:[#allocation4 + $0xd50] sm:$0xff]
        %v966 = vld [vmem:[#allocation4 + $0xd58] sm:$0xff]
        %v967 = vld [vmem:[#allocation4 + $0xd60] sm:$0xff]
        %v968 = vld [vmem:[#allocation4 + $0xd68] sm:$0xff]
        %v969 = vld [vmem:[#allocation4 + $0xd70] sm:$0xff]
        %v970 = vld [vmem:[#allocation4 + $0xd78] sm:$0xff]
        %v971 = vld [vmem:[#allocation4 + $0xd80] sm:$0xff]
        %v972 = vld [vmem:[#allocation4 + $0xd88] sm:$0xff]
        %v973 = vld [vmem:[#allocation4 + $0xd90] sm:$0xff]
        %v974 = vld [vmem:[#allocation4 + $0xd98] sm:$0xff]
        %v975 = vld [vmem:[#allocation4 + $0xda0] sm:$0xff]
        %v976 = vld [vmem:[#allocation4 + $0xda8] sm:$0xff]
        %v977 = vld [vmem:[#allocation4 + $0xdb0] sm:$0xff]
        %v978 = vld [vmem:[#allocation4 + $0xdb8] sm:$0xff]
        %v979 = vld [vmem:[#allocation4 + $0xdc0] sm:$0xff]
        %v980 = vld [vmem:[#allocation4 + $0xdc8] sm:$0xff]
        %v981 = vld [vmem:[#allocation4 + $0xdd0] sm:$0xff]
        %v982 = vld [vmem:[#allocation4 + $0xdd8] sm:$0xff]
        %v983 = vld [vmem:[#allocation4 + $0xde0] sm:$0xff]
        %v984 = vld [vmem:[#allocation4 + $0xde8] sm:$0xff]
        %v985 = vld [vmem:[#allocation4 + $0xdf0] sm:$0xff]
        %v986 = vld [vmem:[#allocation4 + $0xdf8] sm:$0xff]
        %v987 = vld [vmem:[#allocation4 + $0xe00] sm:$0xff]
        %v988 = vld [vmem:[#allocation4 + $0xe08] sm:$0xff]
        %v989 = vld [vmem:[#allocation4 + $0xe10] sm:$0xff]
        %v990 = vld [vmem:[#allocation4 + $0xe18] sm:$0xff]
        %v991 = vld [vmem:[#allocation4 + $0xe20] sm:$0xff]
        %v992 = vld [vmem:[#allocation4 + $0xe28] sm:$0xff]
        %v993 = vld [vmem:[#allocation4 + $0xe30] sm:$0xff]
        %v994 = vld [vmem:[#allocation4 + $0xe38] sm:$0xff]
        %v995 = vld [vmem:[#allocation4 + $0xe40] sm:$0xff]
        %v996 = vld [vmem:[#allocation4 + $0xe48] sm:$0xff]
        %v997 = vld [vmem:[#allocation4 + $0xe50] sm:$0xff]
        %v998 = vld [vmem:[#allocation4 + $0xe58] sm:$0xff]
        %v999 = vld [vmem:[#allocation4 + $0xe60] sm:$0xff]
        %v1000 = vld [vmem:[#allocation4 + $0xe68] sm:$0xff]
        %v1001 = vld [vmem:[#allocation4 + $0xe70] sm:$0xff]
        %v1002 = vld [vmem:[#allocation4 + $0xe78] sm:$0xff]
        %v1003 = vld [vmem:[#allocation4 + $0xe80] sm:$0xff]
        %v1004 = vld [vmem:[#allocation4 + $0xe88] sm:$0xff]
        %v1005 = vld [vmem:[#allocation4 + $0xe90] sm:$0xff]
        %v1006 = vld [vmem:[#allocation4 + $0xe98] sm:$0xff]
        %v1007 = vld [vmem:[#allocation4 + $0xea0] sm:$0xff]
        %v1008 = vld [vmem:[#allocation4 + $0xea8] sm:$0xff]
        %v1009 = vld [vmem:[#allocation4 + $0xeb0] sm:$0xff]
        %v1010 = vld [vmem:[#allocation4 + $0xeb8] sm:$0xff]
        %v1011 = vld [vmem:[#allocation4 + $0xec0] sm:$0xff]
        %v1012 = vld [vmem:[#allocation4 + $0xec8] sm:$0xff]
        %v1013 = vld [vmem:[#allocation4 + $0xed0] sm:$0xff]
        %v1014 = vld [vmem:[#allocation4 + $0xed8] sm:$0xff]
        %v1015 = vld [vmem:[#allocation4 + $0xee0] sm:$0xff]
        %v1016 = vld [vmem:[#allocation4 + $0xee8] sm:$0xff]
        %v1017 = vld [vmem:[#allocation4 + $0xef0] sm:$0xff]
        %v1018 = vld [vmem:[#allocation4 + $0xef8] sm:$0xff]
        %v1019 = vld [vmem:[#allocation4 + $0xf00] sm:$0xff]
        %v1020 = vld [vmem:[#allocation4 + $0xf08] sm:$0xff]
        %v1021 = vld [vmem:[#allocation4 + $0xf10] sm:$0xff]
        %v1022 = vld [vmem:[#allocation4 + $0xf18] sm:$0xff]
        %v1023 = vld [vmem:[#allocation4 + $0xf20] sm:$0xff]
        %v1024 = vld [vmem:[#allocation4 + $0xf28] sm:$0xff]
        %v1025 = vld [vmem:[#allocation4 + $0xf30] sm:$0xff]
        %v1026 = vld [vmem:[#allocation4 + $0xf38] sm:$0xff]
        %v1027 = vld [vmem:[#allocation4 + $0xf40] sm:$0xff]
        %v1028 = vld [vmem:[#allocation4 + $0xf48] sm:$0xff]
        %v1029 = vld [vmem:[#allocation4 + $0xf50] sm:$0xff]
        %v1030 = vld [vmem:[#allocation4 + $0xf58] sm:$0xff]
        %v1031 = vld [vmem:[#allocation4 + $0xf60] sm:$0xff]
        %v1032 = vld [vmem:[#allocation4 + $0xf68] sm:$0xff]
        %v1033 = vld [vmem:[#allocation4 + $0xf70] sm:$0xff]
        %v1034 = vld [vmem:[#allocation4 + $0xf78] sm:$0xff]
        %v1035 = vld [vmem:[#allocation4 + $0xf80] sm:$0xff]
        %v1036 = vld [vmem:[#allocation4 + $0xf88] sm:$0xff]
        %v1037 = vld [vmem:[#allocation4 + $0xf90] sm:$0xff]
        %v1038 = vld [vmem:[#allocation4 + $0xf98] sm:$0xff]
        %v1039 = vld [vmem:[#allocation4 + $0xfa0] sm:$0xff]
        %v1040 = vld [vmem:[#allocation4 + $0xfa8] sm:$0xff]
        %v1041 = vld [vmem:[#allocation4 + $0xfb0] sm:$0xff]
        %v1042 = vld [vmem:[#allocation4 + $0xfb8] sm:$0xff]
        %v1043 = vld [vmem:[#allocation4 + $0xfc0] sm:$0xff]
        %v1044 = vld [vmem:[#allocation4 + $0xfc8] sm:$0xff]
        %v1045 = vld [vmem:[#allocation4 + $0xfd0] sm:$0xff]
        %v1046 = vld [vmem:[#allocation4 + $0xfd8] sm:$0xff]
        %v1047 = vld [vmem:[#allocation4 + $0xfe0] sm:$0xff]
        %v1048 = vld [vmem:[#allocation4 + $0xfe8] sm:$0xff]
        %v1049 = vld [vmem:[#allocation4 + $0xff0] sm:$0xff]
        %v1050 = vld [vmem:[#allocation4 + $0xff8] sm:$0xff]
        %v1051 = vld [vmem:[#allocation4 + $0x1000] sm:$0xff]
        %v1052 = vld [vmem:[#allocation4 + $0x1008] sm:$0xff]
        %v1053 = vld [vmem:[#allocation4 + $0x1010] sm:$0xff]
        %v1054 = vld [vmem:[#allocation4 + $0x1018] sm:$0xff]
        %v1055 = vld [vmem:[#allocation4 + $0x1020] sm:$0xff]
        %v1056 = vld [vmem:[#allocation4 + $0x1028] sm:$0xff]
        %v1057 = vld [vmem:[#allocation4 + $0x1030] sm:$0xff]
        %v1058 = vld [vmem:[#allocation4 + $0x1038] sm:$0xff]
        %v1059 = vld [vmem:[#allocation4 + $0x1040] sm:$0xff]
        %v1060 = vld [vmem:[#allocation4 + $0x1048] sm:$0xff]
        %v1061 = vld [vmem:[#allocation4 + $0x1050] sm:$0xff]
        %v1062 = vld [vmem:[#allocation4 + $0x1058] sm:$0xff]
        %v1063 = vld [vmem:[#allocation4 + $0x1060] sm:$0xff]
        %v1064 = vld [vmem:[#allocation4 + $0x1068] sm:$0xff]
        %v1065 = vld [vmem:[#allocation4 + $0x1070] sm:$0xff]
        %v1066 = vld [vmem:[#allocation4 + $0x1078] sm:$0xff]
        %v1067 = vld [vmem:[#allocation4 + $0x1080] sm:$0xff]
        %v1068 = vld [vmem:[#allocation4 + $0x1088] sm:$0xff]
        %v1069 = vld [vmem:[#allocation4 + $0x1090] sm:$0xff]
        %v1070 = vld [vmem:[#allocation4 + $0x1098] sm:$0xff]
        %v1071 = vld [vmem:[#allocation4 + $0x10a0] sm:$0xff]
        %v1072 = vld [vmem:[#allocation4 + $0x10a8] sm:$0xff]
        %v1073 = vld [vmem:[#allocation4 + $0x10b0] sm:$0xff]
        %v1074 = vld [vmem:[#allocation4 + $0x10b8] sm:$0xff]
        %v1075 = vld [vmem:[#allocation4 + $0x10c0] sm:$0xff]
        %v1076 = vld [vmem:[#allocation4 + $0x10c8] sm:$0xff]
        %v1077 = vld [vmem:[#allocation4 + $0x10d0] sm:$0xff]
        %v1078 = vld [vmem:[#allocation4 + $0x10d8] sm:$0xff]
        %v1079 = vld [vmem:[#allocation4 + $0x10e0] sm:$0xff]
        %v1080 = vld [vmem:[#allocation4 + $0x10e8] sm:$0xff]
        %v1081 = vld [vmem:[#allocation4 + $0x10f0] sm:$0xff]
        %v1082 = vld [vmem:[#allocation4 + $0x10f8] sm:$0xff]
        %v1083 = vld [vmem:[#allocation4 + $0x1100] sm:$0xff]
        %v1084 = vld [vmem:[#allocation4 + $0x1108] sm:$0xff]
        %v1085 = vld [vmem:[#allocation4 + $0x1110] sm:$0xff]
        %v1086 = vld [vmem:[#allocation4 + $0x1118] sm:$0xff]
        %v1087 = vld [vmem:[#allocation4 + $0x1120] sm:$0xff]
        %v1088 = vld [vmem:[#allocation4 + $0x1128] sm:$0xff]
        %v1089 = vld [vmem:[#allocation4 + $0x1130] sm:$0xff]
        %v1090 = vld [vmem:[#allocation4 + $0x1138] sm:$0xff]
        %v1091 = vld [vmem:[#allocation4 + $0x1140] sm:$0xff]
        %v1092 = vld [vmem:[#allocation4 + $0x1148] sm:$0xff]
        %v1093 = vld [vmem:[#allocation4 + $0x1150] sm:$0xff]
        %v1094 = vld [vmem:[#allocation4 + $0x1158] sm:$0xff]
        %v1095 = vld [vmem:[#allocation4 + $0x1160] sm:$0xff]
        %v1096 = vld [vmem:[#allocation4 + $0x1168] sm:$0xff]
        %v1097 = vld [vmem:[#allocation4 + $0x1170] sm:$0xff]
        %v1098 = vld [vmem:[#allocation4 + $0x1178] sm:$0xff]
        %v1099 = vld [vmem:[#allocation4 + $0x1180] sm:$0xff]
        %v1100 = vld [vmem:[#allocation4 + $0x1188] sm:$0xff]
        %v1101 = vld [vmem:[#allocation4 + $0x1190] sm:$0xff]
        %v1102 = vld [vmem:[#allocation4 + $0x1198] sm:$0xff]
        %v1103 = vld [vmem:[#allocation4 + $0x11a0] sm:$0xff]
        %v1104 = vld [vmem:[#allocation4 + $0x11a8] sm:$0xff]
        %v1105 = vld [vmem:[#allocation4 + $0x11b0] sm:$0xff]
        %v1106 = vld [vmem:[#allocation4 + $0x11b8] sm:$0xff]
        %v1107 = vld [vmem:[#allocation4 + $0x11c0] sm:$0xff]
        %v1108 = vld [vmem:[#allocation4 + $0x11c8] sm:$0xff]
        %v1109 = vld [vmem:[#allocation4 + $0x11d0] sm:$0xff]
        %v1110 = vld [vmem:[#allocation4 + $0x11d8] sm:$0xff]
        %v1111 = vld [vmem:[#allocation4 + $0x11e0] sm:$0xff]
        %v1112 = vld [vmem:[#allocation4 + $0x11e8] sm:$0xff]
        %v1113 = vld [vmem:[#allocation4 + $0x11f0] sm:$0xff]
        %v1114 = vld [vmem:[#allocation4 + $0x11f8] sm:$0xff]
        %v1115 = vld [vmem:[#allocation4 + $0x1200] sm:$0xff]
        %v1116 = vld [vmem:[#allocation4 + $0x1208] sm:$0xff]
        %v1117 = vld [vmem:[#allocation4 + $0x1210] sm:$0xff]
        %v1118 = vld [vmem:[#allocation4 + $0x1218] sm:$0xff]
        %v1119 = vld [vmem:[#allocation4 + $0x1220] sm:$0xff]
        %v1120 = vld [vmem:[#allocation4 + $0x1228] sm:$0xff]
        %v1121 = vld [vmem:[#allocation4 + $0x1230] sm:$0xff]
        %v1122 = vld [vmem:[#allocation4 + $0x1238] sm:$0xff]
        %v1123 = vld [vmem:[#allocation4 + $0x1240] sm:$0xff]
        %v1124 = vld [vmem:[#allocation4 + $0x1248] sm:$0xff]
        %v1125 = vld [vmem:[#allocation4 + $0x1250] sm:$0xff]
        %v1126 = vld [vmem:[#allocation4 + $0x1258] sm:$0xff]
        %v1127 = vld [vmem:[#allocation4 + $0x1260] sm:$0xff]
        %v1128 = vld [vmem:[#allocation4 + $0x1268] sm:$0xff]
        %v1129 = vld [vmem:[#allocation4 + $0x1270] sm:$0xff]
        %v1130 = vld [vmem:[#allocation4 + $0x1278] sm:$0xff]
        %v1131 = vld [vmem:[#allocation4 + $0x1280] sm:$0xff]
        %v1132 = vld [vmem:[#allocation4 + $0x1288] sm:$0xff]
        %v1133 = vld [vmem:[#allocation4 + $0x1290] sm:$0xff]
        %v1134 = vld [vmem:[#allocation4 + $0x1298] sm:$0xff]
        %v1135 = vld [vmem:[#allocation4 + $0x12a0] sm:$0xff]
        %v1136 = vld [vmem:[#allocation4 + $0x12a8] sm:$0xff]
        %v1137 = vld [vmem:[#allocation4 + $0x12b0] sm:$0xff]
        %v1138 = vld [vmem:[#allocation4 + $0x12b8] sm:$0xff]
        %v1139 = vld [vmem:[#allocation4 + $0x12c0] sm:$0xff]
        %v1140 = vld [vmem:[#allocation4 + $0x12c8] sm:$0xff]
        %v1141 = vld [vmem:[#allocation4 + $0x12d0] sm:$0xff]
        %v1142 = vld [vmem:[#allocation4 + $0x12d8] sm:$0xff]
        %v1143 = vld [vmem:[#allocation4 + $0x12e0] sm:$0xff]
        %v1144 = vld [vmem:[#allocation4 + $0x12e8] sm:$0xff]
        %v1145 = vld [vmem:[#allocation4 + $0x12f0] sm:$0xff]
        %v1146 = vld [vmem:[#allocation4 + $0x12f8] sm:$0xff]
        %v1147 = vld [vmem:[#allocation4 + $0x1300] sm:$0xff]
        %v1148 = vld [vmem:[#allocation4 + $0x1308] sm:$0xff]
        %v1149 = vld [vmem:[#allocation4 + $0x1310] sm:$0xff]
        %v1150 = vld [vmem:[#allocation4 + $0x1318] sm:$0xff]
        %v1151 = vld [vmem:[#allocation4 + $0x1320] sm:$0xff]
        %v1152 = vld [vmem:[#allocation4 + $0x1328] sm:$0xff]
        %v1153 = vld [vmem:[#allocation4 + $0x1330] sm:$0xff]
        %v1154 = vld [vmem:[#allocation4 + $0x1338] sm:$0xff]
        %v1155 = vld [vmem:[#allocation4 + $0x1340] sm:$0xff]
        %v1156 = vld [vmem:[#allocation4 + $0x1348] sm:$0xff]
        %v1157 = vld [vmem:[#allocation4 + $0x1350] sm:$0xff]
        %v1158 = vld [vmem:[#allocation4 + $0x1358] sm:$0xff]
        %v1159 = vld [vmem:[#allocation4 + $0x1360] sm:$0xff]
        %v1160 = vld [vmem:[#allocation4 + $0x1368] sm:$0xff]
        %v1161 = vld [vmem:[#allocation4 + $0x1370] sm:$0xff]
        %v1162 = vld [vmem:[#allocation4 + $0x1378] sm:$0xff]
        %v1163 = vld [vmem:[#allocation4 + $0x1380] sm:$0xff]
        %v1164 = vld [vmem:[#allocation4 + $0x1388] sm:$0xff]
        %v1165 = vld [vmem:[#allocation4 + $0x1390] sm:$0xff]
        %v1166 = vld [vmem:[#allocation4 + $0x1398] sm:$0xff]
        %v1167 = vld [vmem:[#allocation4 + $0x13a0] sm:$0xff]
        %v1168 = vld [vmem:[#allocation4 + $0x13a8] sm:$0xff]
        %v1169 = vld [vmem:[#allocation4 + $0x13b0] sm:$0xff]
        %v1170 = vld [vmem:[#allocation4 + $0x13b8] sm:$0xff]
        %v1171 = vld [vmem:[#allocation4 + $0x13c0] sm:$0xff]
        %v1172 = vld [vmem:[#allocation4 + $0x13c8] sm:$0xff]
        %v1173 = vld [vmem:[#allocation4 + $0x13d0] sm:$0xff]
        %v1174 = vld [vmem:[#allocation4 + $0x13d8] sm:$0xff]
        %v1175 = vld [vmem:[#allocation4 + $0x13e0] sm:$0xff]
        %v1176 = vld [vmem:[#allocation4 + $0x13e8] sm:$0xff]
        %v1177 = vld [vmem:[#allocation4 + $0x13f0] sm:$0xff]
        %v1178 = vld [vmem:[#allocation4 + $0x13f8] sm:$0xff]
        %v1179 = vld [vmem:[#allocation4 + $0x1400] sm:$0xff]
        %v1180 = vld [vmem:[#allocation4 + $0x1408] sm:$0xff]
        %v1181 = vld [vmem:[#allocation4 + $0x1410] sm:$0xff]
        %v1182 = vld [vmem:[#allocation4 + $0x1418] sm:$0xff]
        %v1183 = vld [vmem:[#allocation4 + $0x1420] sm:$0xff]
        %v1184 = vld [vmem:[#allocation4 + $0x1428] sm:$0xff]
        %v1185 = vld [vmem:[#allocation4 + $0x1430] sm:$0xff]
        %v1186 = vld [vmem:[#allocation4 + $0x1438] sm:$0xff]
        %v1187 = vld [vmem:[#allocation4 + $0x1440] sm:$0xff]
        %v1188 = vld [vmem:[#allocation4 + $0x1448] sm:$0xff]
        %v1189 = vld [vmem:[#allocation4 + $0x1450] sm:$0xff]
        %v1190 = vld [vmem:[#allocation4 + $0x1458] sm:$0xff]
        %v1191 = vld [vmem:[#allocation4 + $0x1460] sm:$0xff]
        %v1192 = vld [vmem:[#allocation4 + $0x1468] sm:$0xff]
        %v1193 = vld [vmem:[#allocation4 + $0x1470] sm:$0xff]
        %v1194 = vld [vmem:[#allocation4 + $0x1478] sm:$0xff]
        %v1195 = vld [vmem:[#allocation4 + $0x1480] sm:$0xff]
        %v1196 = vld [vmem:[#allocation4 + $0x1488] sm:$0xff]
        %v1197 = vld [vmem:[#allocation4 + $0x1490] sm:$0xff]
        %v1198 = vld [vmem:[#allocation4 + $0x1498] sm:$0xff]
        %v1199 = vld [vmem:[#allocation4 + $0x14a0] sm:$0xff]
        %v1200 = vld [vmem:[#allocation4 + $0x14a8] sm:$0xff]
        %v1201 = vld [vmem:[#allocation4 + $0x14b0] sm:$0xff]
        %v1202 = vld [vmem:[#allocation4 + $0x14b8] sm:$0xff]
        %v1203 = vld [vmem:[#allocation4 + $0x14c0] sm:$0xff]
        %v1204 = vld [vmem:[#allocation4 + $0x14c8] sm:$0xff]
        %v1205 = vld [vmem:[#allocation4 + $0x14d0] sm:$0xff]
        %v1206 = vld [vmem:[#allocation4 + $0x14d8] sm:$0xff]
        %v1207 = vld [vmem:[#allocation4 + $0x14e0] sm:$0xff]
        %v1208 = vld [vmem:[#allocation4 + $0x14e8] sm:$0xff]
        %v1209 = vld [vmem:[#allocation4 + $0x14f0] sm:$0xff]
        %v1210 = vld [vmem:[#allocation4 + $0x14f8] sm:$0xff]
        %v1211 = vld [vmem:[#allocation4 + $0x1500] sm:$0xff]
        %v1212 = vld [vmem:[#allocation4 + $0x1508] sm:$0xff]
        %v1213 = vld [vmem:[#allocation4 + $0x1510] sm:$0xff]
        %v1214 = vld [vmem:[#allocation4 + $0x1518] sm:$0xff]
        %v1215 = vld [vmem:[#allocation4 + $0x1520] sm:$0xff]
        %v1216 = vld [vmem:[#allocation4 + $0x1528] sm:$0xff]
        %v1217 = vld [vmem:[#allocation4 + $0x1530] sm:$0xff]
        %v1218 = vld [vmem:[#allocation4 + $0x1538] sm:$0xff]
        %v1219 = vld [vmem:[#allocation4 + $0x1540] sm:$0xff]
        %v1220 = vld [vmem:[#allocation4 + $0x1548] sm:$0xff]
        %v1221 = vld [vmem:[#allocation4 + $0x1550] sm:$0xff]
        %v1222 = vld [vmem:[#allocation4 + $0x1558] sm:$0xff]
        %v1223 = vld [vmem:[#allocation4 + $0x1560] sm:$0xff]
        %v1224 = vld [vmem:[#allocation4 + $0x1568] sm:$0xff]
        %v1225 = vld [vmem:[#allocation4 + $0x1570] sm:$0xff]
        %v1226 = vld [vmem:[#allocation4 + $0x1578] sm:$0xff]
        %v1227 = vld [vmem:[#allocation4 + $0x1580] sm:$0xff]
        %v1228 = vld [vmem:[#allocation4 + $0x1588] sm:$0xff]
        %v1229 = vld [vmem:[#allocation4 + $0x1590] sm:$0xff]
        %v1230 = vld [vmem:[#allocation4 + $0x1598] sm:$0xff]
        %v1231 = vld [vmem:[#allocation4 + $0x15a0] sm:$0xff]
        %v1232 = vld [vmem:[#allocation4 + $0x15a8] sm:$0xff]
        %v1233 = vld [vmem:[#allocation4 + $0x15b0] sm:$0xff]
        %v1234 = vld [vmem:[#allocation4 + $0x15b8] sm:$0xff]
        %v1235 = vld [vmem:[#allocation4 + $0x15c0] sm:$0xff]
        %v1236 = vld [vmem:[#allocation4 + $0x15c8] sm:$0xff]
        %v1237 = vld [vmem:[#allocation4 + $0x15d0] sm:$0xff]
        %v1238 = vld [vmem:[#allocation4 + $0x15d8] sm:$0xff]
        %v1239 = vld [vmem:[#allocation4 + $0x15e0] sm:$0xff]
        %v1240 = vld [vmem:[#allocation4 + $0x15e8] sm:$0xff]
        %v1241 = vld [vmem:[#allocation4 + $0x15f0] sm:$0xff]
        %v1242 = vld [vmem:[#allocation4 + $0x15f8] sm:$0xff]
        %v1243 = vld [vmem:[#allocation4 + $0x1600] sm:$0xff]
        %v1244 = vld [vmem:[#allocation4 + $0x1608] sm:$0xff]
        %v1245 = vld [vmem:[#allocation4 + $0x1610] sm:$0xff]
        %v1246 = vld [vmem:[#allocation4 + $0x1618] sm:$0xff]
        %v1247 = vld [vmem:[#allocation4 + $0x1620] sm:$0xff]
        %v1248 = vld [vmem:[#allocation4 + $0x1628] sm:$0xff]
        %v1249 = vld [vmem:[#allocation4 + $0x1630] sm:$0xff]
        %v1250 = vld [vmem:[#allocation4 + $0x1638] sm:$0xff]
        %v1251 = vld [vmem:[#allocation4 + $0x1640] sm:$0xff]
        %v1252 = vld [vmem:[#allocation4 + $0x1648] sm:$0xff]
        %v1253 = vld [vmem:[#allocation4 + $0x1650] sm:$0xff]
        %v1254 = vld [vmem:[#allocation4 + $0x1658] sm:$0xff]
        %v1255 = vld [vmem:[#allocation4 + $0x1660] sm:$0xff]
        %v1256 = vld [vmem:[#allocation4 + $0x1668] sm:$0xff]
        %v1257 = vld [vmem:[#allocation4 + $0x1670] sm:$0xff]
        %v1258 = vld [vmem:[#allocation4 + $0x1678] sm:$0xff]
        %v1259 = vld [vmem:[#allocation4 + $0x1680] sm:$0xff]
        %v1260 = vld [vmem:[#allocation4 + $0x1688] sm:$0xff]
        %v1261 = vld [vmem:[#allocation4 + $0x1690] sm:$0xff]
        %v1262 = vld [vmem:[#allocation4 + $0x1698] sm:$0xff]
        %v1263 = vld [vmem:[#allocation4 + $0x16a0] sm:$0xff]
        %v1264 = vld [vmem:[#allocation4 + $0x16a8] sm:$0xff]
        %v1265 = vld [vmem:[#allocation4 + $0x16b0] sm:$0xff]
        %v1266 = vld [vmem:[#allocation4 + $0x16b8] sm:$0xff]
        %v1267 = vld [vmem:[#allocation4 + $0x16c0] sm:$0xff]
        %v1268 = vld [vmem:[#allocation4 + $0x16c8] sm:$0xff]
        %v1269 = vld [vmem:[#allocation4 + $0x16d0] sm:$0xff]
        %v1270 = vld [vmem:[#allocation4 + $0x16d8] sm:$0xff]
        %v1271 = vld [vmem:[#allocation4 + $0x16e0] sm:$0xff]
        %v1272 = vld [vmem:[#allocation4 + $0x16e8] sm:$0xff]
        %v1273 = vld [vmem:[#allocation4 + $0x16f0] sm:$0xff]
        %v1274 = vld [vmem:[#allocation4 + $0x16f8] sm:$0xff]
        %v1275 = vld [vmem:[#allocation4 + $0x1700] sm:$0xff]
        %v1276 = vld [vmem:[#allocation4 + $0x1708] sm:$0xff]
        %v1277 = vld [vmem:[#allocation4 + $0x1710] sm:$0xff]
        %v1278 = vld [vmem:[#allocation4 + $0x1718] sm:$0xff]
        %v1279 = vld [vmem:[#allocation4 + $0x1720] sm:$0xff]
        %v1280 = vld [vmem:[#allocation4 + $0x1728] sm:$0xff]
        %v1281 = vld [vmem:[#allocation4 + $0x1730] sm:$0xff]
        %v1282 = vld [vmem:[#allocation4 + $0x1738] sm:$0xff]
        %v1283 = vld [vmem:[#allocation4 + $0x1740] sm:$0xff]
        %v1284 = vld [vmem:[#allocation4 + $0x1748] sm:$0xff]
        %v1285 = vld [vmem:[#allocation4 + $0x1750] sm:$0xff]
        %v1286 = vld [vmem:[#allocation4 + $0x1758] sm:$0xff]
        %v1287 = vld [vmem:[#allocation4 + $0x1760] sm:$0xff]
        %v1288 = vld [vmem:[#allocation4 + $0x1768] sm:$0xff]
        %v1289 = vld [vmem:[#allocation4 + $0x1770] sm:$0xff]
        %v1290 = vld [vmem:[#allocation4 + $0x1778] sm:$0xff]
        %v1291 = vld [vmem:[#allocation4 + $0x1780] sm:$0xff]
        %v1292 = vld [vmem:[#allocation4 + $0x1788] sm:$0xff]
        %v1293 = vld [vmem:[#allocation4 + $0x1790] sm:$0xff]
        %v1294 = vld [vmem:[#allocation4 + $0x1798] sm:$0xff]
        %v1295 = vld [vmem:[#allocation4 + $0x17a0] sm:$0xff]
        %v1296 = vld [vmem:[#allocation4 + $0x17a8] sm:$0xff]
        %v1297 = vld [vmem:[#allocation4 + $0x17b0] sm:$0xff]
        %v1298 = vld [vmem:[#allocation4 + $0x17b8] sm:$0xff]
        %v1299 = vld [vmem:[#allocation4 + $0x17c0] sm:$0xff]
        %v1300 = vld [vmem:[#allocation4 + $0x17c8] sm:$0xff]
        %v1301 = vld [vmem:[#allocation4 + $0x17d0] sm:$0xff]
        %v1302 = vld [vmem:[#allocation4 + $0x17d8] sm:$0xff]
        %v1303 = vld [vmem:[#allocation4 + $0x17e0] sm:$0xff]
        %v1304 = vld [vmem:[#allocation4 + $0x17e8] sm:$0xff]
        %v1305 = vld [vmem:[#allocation4 + $0x17f0] sm:$0xff]
        %v1306 = vld [vmem:[#allocation4 + $0x17f8] sm:$0xff]
        %v1307 = vld [vmem:[#allocation4 + $0x1800] sm:$0xff]
        %v1308 = vld [vmem:[#allocation4 + $0x1808] sm:$0xff]
        %v1309 = vld [vmem:[#allocation4 + $0x1810] sm:$0xff]
        %v1310 = vld [vmem:[#allocation4 + $0x1818] sm:$0xff]
        %v1311 = vld [vmem:[#allocation4 + $0x1820] sm:$0xff]
        %v1312 = vld [vmem:[#allocation4 + $0x1828] sm:$0xff]
        %v1313 = vld [vmem:[#allocation4 + $0x1830] sm:$0xff]
        %v1314 = vld [vmem:[#allocation4 + $0x1838] sm:$0xff]
        %v1315 = vld [vmem:[#allocation4 + $0x1840] sm:$0xff]
        %v1316 = vld [vmem:[#allocation4 + $0x1848] sm:$0xff]
        %v1317 = vld [vmem:[#allocation4 + $0x1850] sm:$0xff]
        %v1318 = vld [vmem:[#allocation4 + $0x1858] sm:$0xff]
        %v1319 = vld [vmem:[#allocation4 + $0x1860] sm:$0xff]
        %v1320 = vld [vmem:[#allocation4 + $0x1868] sm:$0xff]
        %v1321 = vld [vmem:[#allocation4 + $0x1870] sm:$0xff]
        %v1322 = vld [vmem:[#allocation4 + $0x1878] sm:$0xff]
        %v1323 = vld [vmem:[#allocation4 + $0x1880] sm:$0xff]
        %v1324 = vld [vmem:[#allocation4 + $0x1888] sm:$0xff]
        %v1325 = vld [vmem:[#allocation4 + $0x1890] sm:$0xff]
        %v1326 = vld [vmem:[#allocation4 + $0x1898] sm:$0xff]
        %v1327 = vld [vmem:[#allocation4 + $0x18a0] sm:$0xff]
        %v1328 = vld [vmem:[#allocation4 + $0x18a8] sm:$0xff]
        %v1329 = vld [vmem:[#allocation4 + $0x18b0] sm:$0xff]
        %v1330 = vld [vmem:[#allocation4 + $0x18b8] sm:$0xff]
        %v1331 = vld [vmem:[#allocation4 + $0x18c0] sm:$0xff]
        %v1332 = vld [vmem:[#allocation4 + $0x18c8] sm:$0xff]
        %v1333 = vld [vmem:[#allocation4 + $0x18d0] sm:$0xff]
        %v1334 = vld [vmem:[#allocation4 + $0x18d8] sm:$0xff]
        %v1335 = vld [vmem:[#allocation4 + $0x18e0] sm:$0xff]
        %v1336 = vld [vmem:[#allocation4 + $0x18e8] sm:$0xff]
        %v1337 = vld [vmem:[#allocation4 + $0x18f0] sm:$0xff]
        %v1338 = vld [vmem:[#allocation4 + $0x18f8] sm:$0xff]
        %v1339 = vld [vmem:[#allocation4 + $0x1900] sm:$0xff]
        %v1340 = vld [vmem:[#allocation4 + $0x1908] sm:$0xff]
        %v1341 = vld [vmem:[#allocation4 + $0x1910] sm:$0xff]
        %v1342 = vld [vmem:[#allocation4 + $0x1918] sm:$0xff]
        %v1343 = vld [vmem:[#allocation4 + $0x1920] sm:$0xff]
        %v1344 = vld [vmem:[#allocation4 + $0x1928] sm:$0xff]
        %v1345 = vld [vmem:[#allocation4 + $0x1930] sm:$0xff]
        %v1346 = vld [vmem:[#allocation4 + $0x1938] sm:$0xff]
        %v1347 = vld [vmem:[#allocation4 + $0x1940] sm:$0xff]
        %v1348 = vld [vmem:[#allocation4 + $0x1948] sm:$0xff]
        %v1349 = vld [vmem:[#allocation4 + $0x1950] sm:$0xff]
        %v1350 = vld [vmem:[#allocation4 + $0x1958] sm:$0xff]
        %v1351 = vld [vmem:[#allocation4 + $0x1960] sm:$0xff]
        %v1352 = vld [vmem:[#allocation4 + $0x1968] sm:$0xff]
        %v1353 = vld [vmem:[#allocation4 + $0x1970] sm:$0xff]
        %v1354 = vld [vmem:[#allocation4 + $0x1978] sm:$0xff]
        %v1355 = vld [vmem:[#allocation4 + $0x1980] sm:$0xff]
        %v1356 = vld [vmem:[#allocation4 + $0x1988] sm:$0xff]
        %v1357 = vld [vmem:[#allocation4 + $0x1990] sm:$0xff]
        %v1358 = vld [vmem:[#allocation4 + $0x1998] sm:$0xff]
        %v1359 = vld [vmem:[#allocation4 + $0x19a0] sm:$0xff]
        %v1360 = vld [vmem:[#allocation4 + $0x19a8] sm:$0xff]
        %v1361 = vld [vmem:[#allocation4 + $0x19b0] sm:$0xff]
        %v1362 = vld [vmem:[#allocation4 + $0x19b8] sm:$0xff]
        %v1363 = vld [vmem:[#allocation4 + $0x19c0] sm:$0xff]
        %v1364 = vld [vmem:[#allocation4 + $0x19c8] sm:$0xff]
        %v1365 = vld [vmem:[#allocation4 + $0x19d0] sm:$0xff]
        %v1366 = vld [vmem:[#allocation4 + $0x19d8] sm:$0xff]
        %v1367 = vld [vmem:[#allocation4 + $0x19e0] sm:$0xff]
        %v1368 = vld [vmem:[#allocation4 + $0x19e8] sm:$0xff]
        %v1369 = vld [vmem:[#allocation4 + $0x19f0] sm:$0xff]
        %v1370 = vld [vmem:[#allocation4 + $0x19f8] sm:$0xff]
        %v1371 = vld [vmem:[#allocation4 + $0x1a00] sm:$0xff]
        %v1372 = vld [vmem:[#allocation4 + $0x1a08] sm:$0xff]
        %v1373 = vld [vmem:[#allocation4 + $0x1a10] sm:$0xff]
        %v1374 = vld [vmem:[#allocation4 + $0x1a18] sm:$0xff]
        %v1375 = vld [vmem:[#allocation4 + $0x1a20] sm:$0xff]
        %v1376 = vld [vmem:[#allocation4 + $0x1a28] sm:$0xff]
        %v1377 = vld [vmem:[#allocation4 + $0x1a30] sm:$0xff]
        %v1378 = vld [vmem:[#allocation4 + $0x1a38] sm:$0xff]
        %v1379 = vld [vmem:[#allocation4 + $0x1a40] sm:$0xff]
        %v1380 = vld [vmem:[#allocation4 + $0x1a48] sm:$0xff]
        %v1381 = vld [vmem:[#allocation4 + $0x1a50] sm:$0xff]
        %v1382 = vld [vmem:[#allocation4 + $0x1a58] sm:$0xff]
        %v1383 = vld [vmem:[#allocation4 + $0x1a60] sm:$0xff]
        %v1384 = vld [vmem:[#allocation4 + $0x1a68] sm:$0xff]
        %v1385 = vld [vmem:[#allocation4 + $0x1a70] sm:$0xff]
        %v1386 = vld [vmem:[#allocation4 + $0x1a78] sm:$0xff]
        %v1387 = vld [vmem:[#allocation4 + $0x1a80] sm:$0xff]
        %v1388 = vld [vmem:[#allocation4 + $0x1a88] sm:$0xff]
        %v1389 = vld [vmem:[#allocation4 + $0x1a90] sm:$0xff]
        %v1390 = vld [vmem:[#allocation4 + $0x1a98] sm:$0xff]
        %v1391 = vld [vmem:[#allocation4 + $0x1aa0] sm:$0xff]
        %v1392 = vld [vmem:[#allocation4 + $0x1aa8] sm:$0xff]
        %v1393 = vld [vmem:[#allocation4 + $0x1ab0] sm:$0xff]
        %v1394 = vld [vmem:[#allocation4 + $0x1ab8] sm:$0xff]
        %v1395 = vld [vmem:[#allocation4 + $0x1ac0] sm:$0xff]
        %v1396 = vld [vmem:[#allocation4 + $0x1ac8] sm:$0xff]
        %v1397 = vld [vmem:[#allocation4 + $0x1ad0] sm:$0xff]
        %v1398 = vld [vmem:[#allocation4 + $0x1ad8] sm:$0xff]
        %v1399 = vld [vmem:[#allocation4 + $0x1ae0] sm:$0xff]
        %v1400 = vld [vmem:[#allocation4 + $0x1ae8] sm:$0xff]
        %v1401 = vld [vmem:[#allocation4 + $0x1af0] sm:$0xff]
        %v1402 = vld [vmem:[#allocation4 + $0x1af8] sm:$0xff]
        %v1403 = vld [vmem:[#allocation4 + $0x1b00] sm:$0xff]
        %v1404 = vld [vmem:[#allocation4 + $0x1b08] sm:$0xff]
        %v1405 = vld [vmem:[#allocation4 + $0x1b10] sm:$0xff]
        %v1406 = vld [vmem:[#allocation4 + $0x1b18] sm:$0xff]
        %v1407 = vld [vmem:[#allocation4 + $0x1b20] sm:$0xff]
        %v1408 = vld [vmem:[#allocation4 + $0x1b28] sm:$0xff]
        %v1409 = vld [vmem:[#allocation4 + $0x1b30] sm:$0xff]
        %v1410 = vld [vmem:[#allocation4 + $0x1b38] sm:$0xff]
        %v1411 = vld [vmem:[#allocation4 + $0x1b40] sm:$0xff]
        %v1412 = vld [vmem:[#allocation4 + $0x1b48] sm:$0xff]
        %v1413 = vld [vmem:[#allocation4 + $0x1b50] sm:$0xff]
        %v1414 = vld [vmem:[#allocation4 + $0x1b58] sm:$0xff]
        %v1415 = vld [vmem:[#allocation4 + $0x1b60] sm:$0xff]
        %v1416 = vld [vmem:[#allocation4 + $0x1b68] sm:$0xff]
        %v1417 = vld [vmem:[#allocation4 + $0x1b70] sm:$0xff]
        %v1418 = vld [vmem:[#allocation4 + $0x1b78] sm:$0xff]
        %v1419 = vld [vmem:[#allocation4 + $0x1b80] sm:$0xff]
        %v1420 = vld [vmem:[#allocation4 + $0x1b88] sm:$0xff]
        %v1421 = vld [vmem:[#allocation4 + $0x1b90] sm:$0xff]
        %v1422 = vld [vmem:[#allocation4 + $0x1b98] sm:$0xff]
        %v1423 = vld [vmem:[#allocation4 + $0x1ba0] sm:$0xff]
        %v1424 = vld [vmem:[#allocation4 + $0x1ba8] sm:$0xff]
        %v1425 = vld [vmem:[#allocation4 + $0x1bb0] sm:$0xff]
        %v1426 = vld [vmem:[#allocation4 + $0x1bb8] sm:$0xff]
        %v1427 = vld [vmem:[#allocation4 + $0x1bc0] sm:$0xff]
        %v1428 = vld [vmem:[#allocation4 + $0x1bc8] sm:$0xff]
        %v1429 = vld [vmem:[#allocation4 + $0x1bd0] sm:$0xff]
        %v1430 = vld [vmem:[#allocation4 + $0x1bd8] sm:$0xff]
        %v1431 = vld [vmem:[#allocation4 + $0x1be0] sm:$0xff]
        %v1432 = vld [vmem:[#allocation4 + $0x1be8] sm:$0xff]
        %v1433 = vld [vmem:[#allocation4 + $0x1bf0] sm:$0xff]
        %v1434 = vld [vmem:[#allocation4 + $0x1bf8] sm:$0xff]
        %v1435 = vld [vmem:[#allocation4 + $0x1c00] sm:$0xff]
        %v1436 = vld [vmem:[#allocation4 + $0x1c08] sm:$0xff]
        %v1437 = vld [vmem:[#allocation4 + $0x1c10] sm:$0xff]
        %v1438 = vld [vmem:[#allocation4 + $0x1c18] sm:$0xff]
        %v1439 = vld [vmem:[#allocation4 + $0x1c20] sm:$0xff]
        %v1440 = vld [vmem:[#allocation4 + $0x1c28] sm:$0xff]
        %v1441 = vld [vmem:[#allocation4 + $0x1c30] sm:$0xff]
        %v1442 = vld [vmem:[#allocation4 + $0x1c38] sm:$0xff]
        %v1443 = vld [vmem:[#allocation4 + $0x1c40] sm:$0xff]
        %v1444 = vld [vmem:[#allocation4 + $0x1c48] sm:$0xff]
        %v1445 = vld [vmem:[#allocation4 + $0x1c50] sm:$0xff]
        %v1446 = vld [vmem:[#allocation4 + $0x1c58] sm:$0xff]
        %v1447 = vld [vmem:[#allocation4 + $0x1c60] sm:$0xff]
        %v1448 = vld [vmem:[#allocation4 + $0x1c68] sm:$0xff]
        %v1449 = vld [vmem:[#allocation4 + $0x1c70] sm:$0xff]
        %v1450 = vld [vmem:[#allocation4 + $0x1c78] sm:$0xff]
        %v1451 = vld [vmem:[#allocation4 + $0x1c80] sm:$0xff]
        %v1452 = vld [vmem:[#allocation4 + $0x1c88] sm:$0xff]
        %v1453 = vld [vmem:[#allocation4 + $0x1c90] sm:$0xff]
        %v1454 = vld [vmem:[#allocation4 + $0x1c98] sm:$0xff]
        %v1455 = vld [vmem:[#allocation4 + $0x1ca0] sm:$0xff]
        %v1456 = vld [vmem:[#allocation4 + $0x1ca8] sm:$0xff]
        %v1457 = vld [vmem:[#allocation4 + $0x1cb0] sm:$0xff]
        %v1458 = vld [vmem:[#allocation4 + $0x1cb8] sm:$0xff]
        %v1459 = vld [vmem:[#allocation4 + $0x1cc0] sm:$0xff]
        %v1460 = vld [vmem:[#allocation4 + $0x1cc8] sm:$0xff]
        %v1461 = vld [vmem:[#allocation4 + $0x1cd0] sm:$0xff]
        %v1462 = vld [vmem:[#allocation4 + $0x1cd8] sm:$0xff]
        %v1463 = vld [vmem:[#allocation4 + $0x1ce0] sm:$0xff]
        %v1464 = vld [vmem:[#allocation4 + $0x1ce8] sm:$0xff]
        %v1465 = vld [vmem:[#allocation4 + $0x1cf0] sm:$0xff]
        %v1466 = vld [vmem:[#allocation4 + $0x1cf8] sm:$0xff]
        %v1467 = vld [vmem:[#allocation4 + $0x1d00] sm:$0xff]
        %v1468 = vld [vmem:[#allocation4 + $0x1d08] sm:$0xff]
        %v1469 = vld [vmem:[#allocation4 + $0x1d10] sm:$0xff]
        %v1470 = vld [vmem:[#allocation4 + $0x1d18] sm:$0xff]
        %v1471 = vld [vmem:[#allocation4 + $0x1d20] sm:$0xff]
        %v1472 = vld [vmem:[#allocation4 + $0x1d28] sm:$0xff]
        %v1473 = vld [vmem:[#allocation4 + $0x1d30] sm:$0xff]
        %v1474 = vld [vmem:[#allocation4 + $0x1d38] sm:$0xff]
        %v1475 = vld [vmem:[#allocation4 + $0x1d40] sm:$0xff]
        %v1476 = vld [vmem:[#allocation4 + $0x1d48] sm:$0xff]
        %v1477 = vld [vmem:[#allocation4 + $0x1d50] sm:$0xff]
        %v1478 = vld [vmem:[#allocation4 + $0x1d58] sm:$0xff]
        %v1479 = vld [vmem:[#allocation4 + $0x1d60] sm:$0xff]
        %v1480 = vld [vmem:[#allocation4 + $0x1d68] sm:$0xff]
        %v1481 = vld [vmem:[#allocation4 + $0x1d70] sm:$0xff]
        %v1482 = vld [vmem:[#allocation4 + $0x1d78] sm:$0xff]
        %v1483 = vld [vmem:[#allocation4 + $0x1d80] sm:$0xff]
        %v1484 = vld [vmem:[#allocation4 + $0x1d88] sm:$0xff]
        %v1485 = vld [vmem:[#allocation4 + $0x1d90] sm:$0xff]
        %v1486 = vld [vmem:[#allocation4 + $0x1d98] sm:$0xff]
        %v1487 = vld [vmem:[#allocation4 + $0x1da0] sm:$0xff]
        %v1488 = vld [vmem:[#allocation4 + $0x1da8] sm:$0xff]
        %v1489 = vld [vmem:[#allocation4 + $0x1db0] sm:$0xff]
        %v1490 = vld [vmem:[#allocation4 + $0x1db8] sm:$0xff]
        %v1491 = vld [vmem:[#allocation4 + $0x1dc0] sm:$0xff]
        %v1492 = vld [vmem:[#allocation4 + $0x1dc8] sm:$0xff]
        %v1493 = vld [vmem:[#allocation4 + $0x1dd0] sm:$0xff]
        %v1494 = vld [vmem:[#allocation4 + $0x1dd8] sm:$0xff]
        %v1495 = vld [vmem:[#allocation4 + $0x1de0] sm:$0xff]
        %v1496 = vld [vmem:[#allocation4 + $0x1de8] sm:$0xff]
        %v1497 = vld [vmem:[#allocation4 + $0x1df0] sm:$0xff]
        %v1498 = vld [vmem:[#allocation4 + $0x1df8] sm:$0xff]
        %v1499 = vld [vmem:[#allocation4 + $0x1e00] sm:$0xff]
        %v1500 = vld [vmem:[#allocation4 + $0x1e08] sm:$0xff]
        %v1501 = vld [vmem:[#allocation4 + $0x1e10] sm:$0xff]
        %v1502 = vld [vmem:[#allocation4 + $0x1e18] sm:$0xff]
        %v1503 = vld [vmem:[#allocation4 + $0x1e20] sm:$0xff]
        %v1504 = vld [vmem:[#allocation4 + $0x1e28] sm:$0xff]
        %v1505 = vld [vmem:[#allocation4 + $0x1e30] sm:$0xff]
        %v1506 = vld [vmem:[#allocation4 + $0x1e38] sm:$0xff]
        %v1507 = vld [vmem:[#allocation4 + $0x1e40] sm:$0xff]
        %v1508 = vld [vmem:[#allocation4 + $0x1e48] sm:$0xff]
        %v1509 = vld [vmem:[#allocation4 + $0x1e50] sm:$0xff]
        %v1510 = vld [vmem:[#allocation4 + $0x1e58] sm:$0xff]
        %v1511 = vld [vmem:[#allocation4 + $0x1e60] sm:$0xff]
        %v1512 = vld [vmem:[#allocation4 + $0x1e68] sm:$0xff]
        %v1513 = vld [vmem:[#allocation4 + $0x1e70] sm:$0xff]
        %v1514 = vld [vmem:[#allocation4 + $0x1e78] sm:$0xff]
        %v1515 = vld [vmem:[#allocation4 + $0x1e80] sm:$0xff]
        %v1516 = vld [vmem:[#allocation4 + $0x1e88] sm:$0xff]
        %v1517 = vld [vmem:[#allocation4 + $0x1e90] sm:$0xff]
        %v1518 = vld [vmem:[#allocation4 + $0x1e98] sm:$0xff]
        %v1519 = vld [vmem:[#allocation4 + $0x1ea0] sm:$0xff]
        %v1520 = vld [vmem:[#allocation4 + $0x1ea8] sm:$0xff]
        %v1521 = vld [vmem:[#allocation4 + $0x1eb0] sm:$0xff]
        %v1522 = vld [vmem:[#allocation4 + $0x1eb8] sm:$0xff]
        %v1523 = vld [vmem:[#allocation4 + $0x1ec0] sm:$0xff]
        %v1524 = vld [vmem:[#allocation4 + $0x1ec8] sm:$0xff]
        %v1525 = vld [vmem:[#allocation4 + $0x1ed0] sm:$0xff]
        %v1526 = vld [vmem:[#allocation4 + $0x1ed8] sm:$0xff]
        %v1527 = vld [vmem:[#allocation4 + $0x1ee0] sm:$0xff]
        %v1528 = vld [vmem:[#allocation4 + $0x1ee8] sm:$0xff]
        %v1529 = vld [vmem:[#allocation4 + $0x1ef0] sm:$0xff]
        %v1530 = vld [vmem:[#allocation4 + $0x1ef8] sm:$0xff]
        %v1531 = vld [vmem:[#allocation4 + $0x1f00] sm:$0xff]
        %v1532 = vld [vmem:[#allocation4 + $0x1f08] sm:$0xff]
        %v1533 = vld [vmem:[#allocation4 + $0x1f10] sm:$0xff]
        %v1534 = vld [vmem:[#allocation4 + $0x1f18] sm:$0xff]
        %v1535 = vld [vmem:[#allocation4 + $0x1f20] sm:$0xff]
        %v1536 = vld [vmem:[#allocation4 + $0x1f28] sm:$0xff]
        %v1537 = vld [vmem:[#allocation4 + $0x1f30] sm:$0xff]
        %v1538 = vld [vmem:[#allocation4 + $0x1f38] sm:$0xff]
        %v1539 = vld [vmem:[#allocation4 + $0x1f40] sm:$0xff]
        %v1540 = vld [vmem:[#allocation4 + $0x1f48] sm:$0xff]
        %v1541 = vld [vmem:[#allocation4 + $0x1f50] sm:$0xff]
        %v1542 = vld [vmem:[#allocation4 + $0x1f58] sm:$0xff]
        %v1543 = vld [vmem:[#allocation4 + $0x1f60] sm:$0xff]
        %v1544 = vld [vmem:[#allocation4 + $0x1f68] sm:$0xff]
        %v1545 = vld [vmem:[#allocation4 + $0x1f70] sm:$0xff]
        %v1546 = vld [vmem:[#allocation4 + $0x1f78] sm:$0xff]
        %v1547 = vld [vmem:[#allocation4 + $0x1f80] sm:$0xff]
        %v1548 = vld [vmem:[#allocation4 + $0x1f88] sm:$0xff]
        %v1549 = vld [vmem:[#allocation4 + $0x1f90] sm:$0xff]
        %v1550 = vld [vmem:[#allocation4 + $0x1f98] sm:$0xff]
        %v1551 = vld [vmem:[#allocation4 + $0x1fa0] sm:$0xff]
        %v1552 = vld [vmem:[#allocation4 + $0x1fa8] sm:$0xff]
        %v1553 = vld [vmem:[#allocation4 + $0x1fb0] sm:$0xff]
        %v1554 = vld [vmem:[#allocation4 + $0x1fb8] sm:$0xff]
        %v1555 = vld [vmem:[#allocation4 + $0x1fc0] sm:$0xff]
        %v1556 = vld [vmem:[#allocation4 + $0x1fc8] sm:$0xff]
        %v1557 = vld [vmem:[#allocation4 + $0x1fd0] sm:$0xff]
        %v1558 = vld [vmem:[#allocation4 + $0x1fd8] sm:$0xff]
        %v1559 = vld [vmem:[#allocation4 + $0x1fe0] sm:$0xff]
        %v1560 = vld [vmem:[#allocation4 + $0x1fe8] sm:$0xff]
        %v1561 = vld [vmem:[#allocation4 + $0x1ff0] sm:$0xff]
        %v1562 = vld [vmem:[#allocation4 + $0x1ff8] sm:$0xff]
        %v1563 = vld [vmem:[#allocation4 + $0x2000] sm:$0xff]
        %v1564 = vld [vmem:[#allocation4 + $0x2008] sm:$0xff]
        %v1565 = vld [vmem:[#allocation4 + $0x2010] sm:$0xff]
        %v1566 = vld [vmem:[#allocation4 + $0x2018] sm:$0xff]
        %v1567 = vld [vmem:[#allocation4 + $0x2020] sm:$0xff]
        %v1568 = vld [vmem:[#allocation4 + $0x2028] sm:$0xff]
        %v1569 = vld [vmem:[#allocation4 + $0x2030] sm:$0xff]
        %v1570 = vld [vmem:[#allocation4 + $0x2038] sm:$0xff]
        %v1571 = vld [vmem:[#allocation4 + $0x2040] sm:$0xff]
        %v1572 = vld [vmem:[#allocation4 + $0x2048] sm:$0xff]
        %v1573 = vld [vmem:[#allocation4 + $0x2050] sm:$0xff]
        %v1574 = vld [vmem:[#allocation4 + $0x2058] sm:$0xff]
        %v1575 = vld [vmem:[#allocation4 + $0x2060] sm:$0xff]
        %v1576 = vld [vmem:[#allocation4 + $0x2068] sm:$0xff]
        %v1577 = vld [vmem:[#allocation4 + $0x2070] sm:$0xff]
        %v1578 = vld [vmem:[#allocation4 + $0x2078] sm:$0xff]
        %v1579 = vld [vmem:[#allocation4 + $0x2080] sm:$0xff]
        %v1580 = vld [vmem:[#allocation4 + $0x2088] sm:$0xff]
        %v1581 = vld [vmem:[#allocation4 + $0x2090] sm:$0xff]
        %v1582 = vld [vmem:[#allocation4 + $0x2098] sm:$0xff]
        %v1583 = vld [vmem:[#allocation4 + $0x20a0] sm:$0xff]
        %v1584 = vld [vmem:[#allocation4 + $0x20a8] sm:$0xff]
        %v1585 = vld [vmem:[#allocation4 + $0x20b0] sm:$0xff]
        %v1586 = vld [vmem:[#allocation4 + $0x20b8] sm:$0xff]
        %v1587 = vld [vmem:[#allocation4 + $0x20c0] sm:$0xff]
        %v1588 = vld [vmem:[#allocation4 + $0x20c8] sm:$0xff]
        %v1589 = vld [vmem:[#allocation4 + $0x20d0] sm:$0xff]
        %v1590 = vld [vmem:[#allocation4 + $0x20d8] sm:$0xff]
        %v1591 = vld [vmem:[#allocation4 + $0x20e0] sm:$0xff]
        %v1592 = vld [vmem:[#allocation4 + $0x20e8] sm:$0xff]
        %v1593 = vld [vmem:[#allocation4 + $0x20f0] sm:$0xff]
        %v1594 = vld [vmem:[#allocation4 + $0x20f8] sm:$0xff]
        %v1595 = vld [vmem:[#allocation4 + $0x2100] sm:$0xff]
        %v1596 = vld [vmem:[#allocation4 + $0x2108] sm:$0xff]
        %v1597 = vld [vmem:[#allocation4 + $0x2110] sm:$0xff]
        %v1598 = vld [vmem:[#allocation4 + $0x2118] sm:$0xff]
        %v1599 = vld [vmem:[#allocation4 + $0x2120] sm:$0xff]
        %v1600 = vld [vmem:[#allocation4 + $0x2128] sm:$0xff]
        %v1601 = vld [vmem:[#allocation4 + $0x2130] sm:$0xff]
        %v1602 = vld [vmem:[#allocation4 + $0x2138] sm:$0xff]
        %v1603 = vld [vmem:[#allocation4 + $0x2140] sm:$0xff]
        %v1604 = vld [vmem:[#allocation4 + $0x2148] sm:$0xff]
        %v1605 = vld [vmem:[#allocation4 + $0x2150] sm:$0xff]
        %v1606 = vld [vmem:[#allocation4 + $0x2158] sm:$0xff]
        %v1607 = vld [vmem:[#allocation4 + $0x2160] sm:$0xff]
        %v1608 = vld [vmem:[#allocation4 + $0x2168] sm:$0xff]
        %v1609 = vld [vmem:[#allocation4 + $0x2170] sm:$0xff]
        %v1610 = vld [vmem:[#allocation4 + $0x2178] sm:$0xff]
        %v1611 = vld [vmem:[#allocation4 + $0x2180] sm:$0xff]
        %v1612 = vld [vmem:[#allocation4 + $0x2188] sm:$0xff]
        %v1613 = vld [vmem:[#allocation4 + $0x2190] sm:$0xff]
        %v1614 = vld [vmem:[#allocation4 + $0x2198] sm:$0xff]
        %v1615 = vld [vmem:[#allocation4 + $0x21a0] sm:$0xff]
        %v1616 = vld [vmem:[#allocation4 + $0x21a8] sm:$0xff]
        %v1617 = vld [vmem:[#allocation4 + $0x21b0] sm:$0xff]
        %v1618 = vld [vmem:[#allocation4 + $0x21b8] sm:$0xff]
        %v1619 = vld [vmem:[#allocation4 + $0x21c0] sm:$0xff]
        %v1620 = vld [vmem:[#allocation4 + $0x21c8] sm:$0xff]
        %v1621 = vld [vmem:[#allocation4 + $0x21d0] sm:$0xff]
        %v1622 = vld [vmem:[#allocation4 + $0x21d8] sm:$0xff]
        %v1623 = vld [vmem:[#allocation4 + $0x21e0] sm:$0xff]
        %v1624 = vld [vmem:[#allocation4 + $0x21e8] sm:$0xff]
        %v1625 = vld [vmem:[#allocation4 + $0x21f0] sm:$0xff]
        %v1626 = vld [vmem:[#allocation4 + $0x21f8] sm:$0xff]
        %v1627 = vld [vmem:[#allocation4 + $0x2200] sm:$0xff]
        %v1628 = vld [vmem:[#allocation4 + $0x2208] sm:$0xff]
        %v1629 = vld [vmem:[#allocation4 + $0x2210] sm:$0xff]
        %v1630 = vld [vmem:[#allocation4 + $0x2218] sm:$0xff]
        %v1631 = vld [vmem:[#allocation4 + $0x2220] sm:$0xff]
        %v1632 = vld [vmem:[#allocation4 + $0x2228] sm:$0xff]
        %v1633 = vld [vmem:[#allocation4 + $0x2230] sm:$0xff]
        %v1634 = vld [vmem:[#allocation4 + $0x2238] sm:$0xff]
        %v1635 = vld [vmem:[#allocation4 + $0x2240] sm:$0xff]
        %v1636 = vld [vmem:[#allocation4 + $0x2248] sm:$0xff]
        %v1637 = vld [vmem:[#allocation4 + $0x2250] sm:$0xff]
        %v1638 = vld [vmem:[#allocation4 + $0x2258] sm:$0xff]
        %v1639 = vld [vmem:[#allocation4 + $0x2260] sm:$0xff]
        %v1640 = vld [vmem:[#allocation4 + $0x2268] sm:$0xff]
        %v1641 = vld [vmem:[#allocation4 + $0x2270] sm:$0xff]
        %v1642 = vld [vmem:[#allocation4 + $0x2278] sm:$0xff]
        %v1643 = vld [vmem:[#allocation4 + $0x2280] sm:$0xff]
        %v1644 = vld [vmem:[#allocation4 + $0x2288] sm:$0xff]
        %v1645 = vld [vmem:[#allocation4 + $0x2290] sm:$0xff]
        %v1646 = vld [vmem:[#allocation4 + $0x2298] sm:$0xff]
        %v1647 = vld [vmem:[#allocation4 + $0x22a0] sm:$0xff]
        %v1648 = vld [vmem:[#allocation4 + $0x22a8] sm:$0xff]
        %v1649 = vld [vmem:[#allocation4 + $0x22b0] sm:$0xff]
        %v1650 = vld [vmem:[#allocation4 + $0x22b8] sm:$0xff]
        %v1651 = vld [vmem:[#allocation4 + $0x22c0] sm:$0xff]
        %v1652 = vld [vmem:[#allocation4 + $0x22c8] sm:$0xff]
        %v1653 = vld [vmem:[#allocation4 + $0x22d0] sm:$0xff]
        %v1654 = vld [vmem:[#allocation4 + $0x22d8] sm:$0xff]
        %v1655 = vld [vmem:[#allocation4 + $0x22e0] sm:$0xff]
        %v1656 = vld [vmem:[#allocation4 + $0x22e8] sm:$0xff]
        %v1657 = vld [vmem:[#allocation4 + $0x22f0] sm:$0xff]
        %v1658 = vld [vmem:[#allocation4 + $0x22f8] sm:$0xff]
        %v1659 = vld [vmem:[#allocation4 + $0x2300] sm:$0xff]
        %v1660 = vld [vmem:[#allocation4 + $0x2308] sm:$0xff]
        %v1661 = vld [vmem:[#allocation4 + $0x2310] sm:$0xff]
        %v1662 = vld [vmem:[#allocation4 + $0x2318] sm:$0xff]
        %v1663 = vld [vmem:[#allocation4 + $0x2320] sm:$0xff]
        %v1664 = vld [vmem:[#allocation4 + $0x2328] sm:$0xff]
        %v1665 = vld [vmem:[#allocation4 + $0x2330] sm:$0xff]
        %v1666 = vld [vmem:[#allocation4 + $0x2338] sm:$0xff]
        %v1667 = vld [vmem:[#allocation4 + $0x2340] sm:$0xff]
        %v1668 = vld [vmem:[#allocation4 + $0x2348] sm:$0xff]
        %v1669 = vld [vmem:[#allocation4 + $0x2350] sm:$0xff]
        %v1670 = vld [vmem:[#allocation4 + $0x2358] sm:$0xff]
        %v1671 = vld [vmem:[#allocation4 + $0x2360] sm:$0xff]
        %v1672 = vld [vmem:[#allocation4 + $0x2368] sm:$0xff]
        %v1673 = vld [vmem:[#allocation4 + $0x2370] sm:$0xff]
        %v1674 = vld [vmem:[#allocation4 + $0x2378] sm:$0xff]
        %v1675 = vld [vmem:[#allocation4 + $0x2380] sm:$0xff]
        %v1676 = vld [vmem:[#allocation4 + $0x2388] sm:$0xff]
        %v1677 = vld [vmem:[#allocation4 + $0x2390] sm:$0xff]
        %v1678 = vld [vmem:[#allocation4 + $0x2398] sm:$0xff]
        %v1679 = vld [vmem:[#allocation4 + $0x23a0] sm:$0xff]
        %v1680 = vld [vmem:[#allocation4 + $0x23a8] sm:$0xff]
        %v1681 = vld [vmem:[#allocation4 + $0x23b0] sm:$0xff]
        %v1682 = vld [vmem:[#allocation4 + $0x23b8] sm:$0xff]
        %v1683 = vld [vmem:[#allocation4 + $0x23c0] sm:$0xff]
        %v1684 = vld [vmem:[#allocation4 + $0x23c8] sm:$0xff]
        %v1685 = vld [vmem:[#allocation4 + $0x23d0] sm:$0xff]
        %v1686 = vld [vmem:[#allocation4 + $0x23d8] sm:$0xff]
        %v1687 = vld [vmem:[#allocation4 + $0x23e0] sm:$0xff]
        %v1688 = vld [vmem:[#allocation4 + $0x23e8] sm:$0xff]
        %v1689 = vld [vmem:[#allocation4 + $0x23f0] sm:$0xff]
        %v1690 = vld [vmem:[#allocation4 + $0x23f8] sm:$0xff]
        %v1691 = vld [vmem:[#allocation4 + $0x2400] sm:$0xff]
        %v1692 = vld [vmem:[#allocation4 + $0x2408] sm:$0xff]
        %v1693 = vld [vmem:[#allocation4 + $0x2410] sm:$0xff]
        %v1694 = vld [vmem:[#allocation4 + $0x2418] sm:$0xff]
        %v1695 = vld [vmem:[#allocation4 + $0x2420] sm:$0xff]
        %v1696 = vld [vmem:[#allocation4 + $0x2428] sm:$0xff]
        %v1697 = vld [vmem:[#allocation4 + $0x2430] sm:$0xff]
        %v1698 = vld [vmem:[#allocation4 + $0x2438] sm:$0xff]
        %v1699 = vld [vmem:[#allocation4 + $0x2440] sm:$0xff]
        %v1700 = vld [vmem:[#allocation4 + $0x2448] sm:$0xff]
        %v1701 = vld [vmem:[#allocation4 + $0x2450] sm:$0xff]
        %v1702 = vld [vmem:[#allocation4 + $0x2458] sm:$0xff]
        %v1703 = vld [vmem:[#allocation4 + $0x2460] sm:$0xff]
        %v1704 = vld [vmem:[#allocation4 + $0x2468] sm:$0xff]
        %v1705 = vld [vmem:[#allocation4 + $0x2470] sm:$0xff]
        %v1706 = vld [vmem:[#allocation4 + $0x2478] sm:$0xff]
        %v1707 = vld [vmem:[#allocation4 + $0x2480] sm:$0xff]
        %v1708 = vld [vmem:[#allocation4 + $0x2488] sm:$0xff]
        %v1709 = vld [vmem:[#allocation4 + $0x2490] sm:$0xff]
        %v1710 = vld [vmem:[#allocation4 + $0x2498] sm:$0xff]
        %v1711 = vld [vmem:[#allocation4 + $0x24a0] sm:$0xff]
        %v1712 = vld [vmem:[#allocation4 + $0x24a8] sm:$0xff]
        %v1713 = vld [vmem:[#allocation4 + $0x24b0] sm:$0xff]
        %v1714 = vld [vmem:[#allocation4 + $0x24b8] sm:$0xff]
        %v1715 = vld [vmem:[#allocation4 + $0x24c0] sm:$0xff]
        %v1716 = vld [vmem:[#allocation4 + $0x24c8] sm:$0xff]
        %v1717 = vld [vmem:[#allocation4 + $0x24d0] sm:$0xff]
        %v1718 = vld [vmem:[#allocation4 + $0x24d8] sm:$0xff]
        %v1719 = vld [vmem:[#allocation4 + $0x24e0] sm:$0xff]
        %v1720 = vld [vmem:[#allocation4 + $0x24e8] sm:$0xff]
        %v1721 = vld [vmem:[#allocation4 + $0x24f0] sm:$0xff]
        %v1722 = vld [vmem:[#allocation4 + $0x24f8] sm:$0xff]
        %v1723 = vld [vmem:[#allocation4 + $0x2500] sm:$0xff]
        %v1724 = vld [vmem:[#allocation4 + $0x2508] sm:$0xff]
        %v1725 = vld [vmem:[#allocation4 + $0x2510] sm:$0xff]
        %v1726 = vld [vmem:[#allocation4 + $0x2518] sm:$0xff]
        %v1727 = vld [vmem:[#allocation4 + $0x2520] sm:$0xff]
        %v1728 = vld [vmem:[#allocation4 + $0x2528] sm:$0xff]
        %v1729 = vld [vmem:[#allocation4 + $0x2530] sm:$0xff]
        %v1730 = vld [vmem:[#allocation4 + $0x2538] sm:$0xff]
        %v1731 = vld [vmem:[#allocation4 + $0x2540] sm:$0xff]
        %v1732 = vld [vmem:[#allocation4 + $0x2548] sm:$0xff]
        %v1733 = vld [vmem:[#allocation4 + $0x2550] sm:$0xff]
        %v1734 = vld [vmem:[#allocation4 + $0x2558] sm:$0xff]
        %v1735 = vld [vmem:[#allocation4 + $0x2560] sm:$0xff]
        %v1736 = vld [vmem:[#allocation4 + $0x2568] sm:$0xff]
        %v1737 = vld [vmem:[#allocation4 + $0x2570] sm:$0xff]
        %v1738 = vld [vmem:[#allocation4 + $0x2578] sm:$0xff]
        %v1739 = vld [vmem:[#allocation4 + $0x2580] sm:$0xff]
        %v1740 = vld [vmem:[#allocation4 + $0x2588] sm:$0xff]
        %v1741 = vld [vmem:[#allocation4 + $0x2590] sm:$0xff]
        %v1742 = vld [vmem:[#allocation4 + $0x2598] sm:$0xff]
        %v1743 = vld [vmem:[#allocation4 + $0x25a0] sm:$0xff]
        %v1744 = vld [vmem:[#allocation4 + $0x25a8] sm:$0xff]
        %v1745 = vld [vmem:[#allocation4 + $0x25b0] sm:$0xff]
        %v1746 = vld [vmem:[#allocation4 + $0x25b8] sm:$0xff]
        %v1747 = vld [vmem:[#allocation4 + $0x25c0] sm:$0xff]
        %v1748 = vld [vmem:[#allocation4 + $0x25c8] sm:$0xff]
        %v1749 = vld [vmem:[#allocation4 + $0x25d0] sm:$0xff]
        %v1750 = vld [vmem:[#allocation4 + $0x25d8] sm:$0xff]
        %v1751 = vld [vmem:[#allocation4 + $0x25e0] sm:$0xff]
        %v1752 = vld [vmem:[#allocation4 + $0x25e8] sm:$0xff]
        %v1753 = vld [vmem:[#allocation4 + $0x25f0] sm:$0xff]
        %v1754 = vld [vmem:[#allocation4 + $0x25f8] sm:$0xff]
        %v1755 = vld [vmem:[#allocation4 + $0x2600] sm:$0xff]
        %v1756 = vld [vmem:[#allocation4 + $0x2608] sm:$0xff]
        %v1757 = vld [vmem:[#allocation4 + $0x2610] sm:$0xff]
        %v1758 = vld [vmem:[#allocation4 + $0x2618] sm:$0xff]
        %v1759 = vld [vmem:[#allocation4 + $0x2620] sm:$0xff]
        %v1760 = vld [vmem:[#allocation4 + $0x2628] sm:$0xff]
        %v1761 = vld [vmem:[#allocation4 + $0x2630] sm:$0xff]
        %v1762 = vld [vmem:[#allocation4 + $0x2638] sm:$0xff]
        %v1763 = vld [vmem:[#allocation4 + $0x2640] sm:$0xff]
        %v1764 = vld [vmem:[#allocation4 + $0x2648] sm:$0xff]
        %v1765 = vld [vmem:[#allocation4 + $0x2650] sm:$0xff]
        %v1766 = vld [vmem:[#allocation4 + $0x2658] sm:$0xff]
        %v1767 = vld [vmem:[#allocation4 + $0x2660] sm:$0xff]
        %v1768 = vld [vmem:[#allocation4 + $0x2668] sm:$0xff]
        %v1769 = vld [vmem:[#allocation4 + $0x2670] sm:$0xff]
        %v1770 = vld [vmem:[#allocation4 + $0x2678] sm:$0xff]
        %v1771 = vld [vmem:[#allocation4 + $0x2680] sm:$0xff]
        %v1772 = vld [vmem:[#allocation4 + $0x2688] sm:$0xff]
        %v1773 = vld [vmem:[#allocation4 + $0x2690] sm:$0xff]
        %v1774 = vld [vmem:[#allocation4 + $0x2698] sm:$0xff]
        %v1775 = vld [vmem:[#allocation4 + $0x26a0] sm:$0xff]
        %v1776 = vld [vmem:[#allocation4 + $0x26a8] sm:$0xff]
        %v1777 = vld [vmem:[#allocation4 + $0x26b0] sm:$0xff]
        %v1778 = vld [vmem:[#allocation4 + $0x26b8] sm:$0xff]
        %v1779 = vld [vmem:[#allocation4 + $0x26c0] sm:$0xff]
        %v1780 = vld [vmem:[#allocation4 + $0x26c8] sm:$0xff]
        %v1781 = vld [vmem:[#allocation4 + $0x26d0] sm:$0xff]
        %v1782 = vld [vmem:[#allocation4 + $0x26d8] sm:$0xff]
        %v1783 = vld [vmem:[#allocation4 + $0x26e0] sm:$0xff]
        %v1784 = vld [vmem:[#allocation4 + $0x26e8] sm:$0xff]
        %v1785 = vld [vmem:[#allocation4 + $0x26f0] sm:$0xff]
        %v1786 = vld [vmem:[#allocation4 + $0x26f8] sm:$0xff]
        %v1787 = vld [vmem:[#allocation4 + $0x2700] sm:$0xff]
        %v1788 = vld [vmem:[#allocation4 + $0x2708] sm:$0xff]
        %v1789 = vld [vmem:[#allocation4 + $0x2710] sm:$0xff]
        %v1790 = vld [vmem:[#allocation4 + $0x2718] sm:$0xff]
        %v1791 = vld [vmem:[#allocation4 + $0x2720] sm:$0xff]
        %v1792 = vld [vmem:[#allocation4 + $0x2728] sm:$0xff]
        %v1793 = vld [vmem:[#allocation4 + $0x2730] sm:$0xff]
        %v1794 = vld [vmem:[#allocation4 + $0x2738] sm:$0xff]
        %v1795 = vld [vmem:[#allocation4 + $0x2740] sm:$0xff]
        %v1796 = vld [vmem:[#allocation4 + $0x2748] sm:$0xff]
        %v1797 = vld [vmem:[#allocation4 + $0x2750] sm:$0xff]
        %v1798 = vld [vmem:[#allocation4 + $0x2758] sm:$0xff]
        %v1799 = vld [vmem:[#allocation4 + $0x2760] sm:$0xff]
        %v1800 = vld [vmem:[#allocation4 + $0x2768] sm:$0xff]
        %v1801 = vld [vmem:[#allocation4 + $0x2770] sm:$0xff]
        %v1802 = vld [vmem:[#allocation4 + $0x2778] sm:$0xff]
        %v1803 = vld [vmem:[#allocation4 + $0x2780] sm:$0xff]
        %v1804 = vld [vmem:[#allocation4 + $0x2788] sm:$0xff]
        %v1805 = vld [vmem:[#allocation4 + $0x2790] sm:$0xff]
        %v1806 = vld [vmem:[#allocation4 + $0x2798] sm:$0xff]
        %v1807 = vld [vmem:[#allocation4 + $0x27a0] sm:$0xff]
        %v1808 = vld [vmem:[#allocation4 + $0x27a8] sm:$0xff]
        %v1809 = vld [vmem:[#allocation4 + $0x27b0] sm:$0xff]
        %v1810 = vld [vmem:[#allocation4 + $0x27b8] sm:$0xff]
        %v1811 = vld [vmem:[#allocation4 + $0x27c0] sm:$0xff]
        %v1812 = vld [vmem:[#allocation4 + $0x27c8] sm:$0xff]
        %vm1813 = vcmask 130048
        %v1815 = vsel %vm1813, %v538, 0
        %1817 = vmatprep.subr.mxu0 %v735
        %1818 = vmatpush1.msra.mxu0 %v734
        %1819 = vmatprep.subr.mxu0 %v722
        %1820 = vmatpush1.msra.mxu0 %v721
        %1821 = vmatprep.subr.mxu0 %v709
        %1822 = vmatpush1.msra.mxu0 %v708
        %1823 = vmatprep.subr.mxu0 %v696
        %1824 = vmatpush1.msra.mxu0 %v695
        %1825 = vmatprep.subr.mxu0 %v683
        %1826 = vmatpush1.msra.mxu0 %v682
        %1827 = vmatprep.subr.mxu0 %v670
        %1828 = vmatpush1.msra.mxu0 %v669
        %1829 = vmatprep.subr.mxu0 %v657
        %1830 = vmatpush1.msra.mxu0 %v656
        %1831 = vmatprep.subr.mxu0 %v644
        %1832 = vmatpush1.msra.mxu0 %v643
        %1833 = vmatprep.subr.mxu0 %v631
        %1834 = vmatpush1.msra.mxu0 %v630
        %1835 = vmatprep.subr.mxu0 %v618
        %1836 = vmatpush1.msra.mxu0 %v617
        %1837 = vmatprep.subr.mxu0 %v605
        %1838 = vmatpush1.msra.mxu0 %v604
        %1839 = vmatprep.subr.mxu0 %v592
        %1840 = vmatpush1.msra.mxu0 %v591
        %1841 = vmatprep.subr.mxu0 %v579
        %1842 = vmatpush1.msra.mxu0 %v578
        %1843 = vmatprep.subr.mxu0 %v566
        %1844 = vmatpush1.msra.mxu0 %v565
        %1845 = vmatprep.subr.mxu0 %v553
        %1846 = vmatpush1.msra.mxu0 %v552
        %1847 = vmatprep.subr.mxu0 %v540
        %1848 = vmatpush1.msra.mxu0 %v539
        %1849 = vmatprep.subr.mxu0 %v943
        %1850 = vmatpush2.msra.mxu0 %v942
        %1851 = vmatprep.subr.mxu0 %v930
        %1852 = vmatpush2.msra.mxu0 %v929
        %1853 = vmatprep.subr.mxu0 %v917
        %1854 = vmatpush2.msra.mxu0 %v916
        %1855 = vmatprep.subr.mxu0 %v904
        %1856 = vmatpush2.msra.mxu0 %v903
        %1857 = vmatprep.subr.mxu0 %v891
        %1858 = vmatpush2.msra.mxu0 %v890
        %1859 = vmatprep.subr.mxu0 %v878
        %1860 = vmatpush2.msra.mxu0 %v877
        %1861 = vmatprep.subr.mxu0 %v865
        %1862 = vmatpush2.msra.mxu0 %v864
        %1863 = vmatprep.subr.mxu0 %v852
        %1864 = vmatpush2.msra.mxu0 %v851
        %1865 = vmatprep.subr.mxu0 %v839
        %1866 = vmatpush2.msra.mxu0 %v838
        %1867 = vmatprep.subr.mxu0 %v826
        %1868 = vmatpush2.msra.mxu0 %v825
        %1869 = vmatprep.subr.mxu0 %v813
        %1870 = vmatpush2.msra.mxu0 %v812
        %1871 = vmatprep.subr.mxu0 %v800
        %1872 = vmatpush2.msra.mxu0 %v799
        %1873 = vmatprep.subr.mxu0 %v787
        %1874 = vmatpush2.msra.mxu0 %v786
        %1875 = vmatprep.subr.mxu0 %v774
        %1876 = vmatpush2.msra.mxu0 %v773
        %1877 = vmatprep.subr.mxu0 %v761
        %1878 = vmatpush2.msra.mxu0 %v760
        %1879 = vmatprep.subr.mxu0 %v748
        %1880 = vmatpush2.msra.mxu0 %v747
        %1881 = vmatprep.mubr.f32.mxu0 %v533
        %1882 = vmatmul.mubr.f32.gmra.mxu0 %v532
        %v1883 = vpop.f32.mrf.mxu0
        %v1884 = vadd.f32 0.0, %v1883
        %v1885 = vpop.f32.mrf.mxu0
        %v1886 = vadd.f32 0.0, %v1885
        %1887 = vdwg.mxu0
        %1888 = vmatprep.subr.mxu0 %v1151
        %1889 = vmatpush1.msra.mxu0 %v1150
        %1890 = vmatprep.subr.mxu0 %v1138
        %1891 = vmatpush1.msra.mxu0 %v1137
        %1892 = vmatprep.subr.mxu0 %v1125
        %1893 = vmatpush1.msra.mxu0 %v1124
        %1894 = vmatprep.subr.mxu0 %v1112
        %1895 = vmatpush1.msra.mxu0 %v1111
        %1896 = vmatprep.subr.mxu0 %v1099
        %1897 = vmatpush1.msra.mxu0 %v1098
        %1898 = vmatprep.subr.mxu0 %v1086
        %1899 = vmatpush1.msra.mxu0 %v1085
        %1900 = vmatprep.subr.mxu0 %v1073
        %1901 = vmatpush1.msra.mxu0 %v1072
        %1902 = vmatprep.subr.mxu0 %v1060
        %1903 = vmatpush1.msra.mxu0 %v1059
        %1904 = vmatprep.subr.mxu0 %v1047
        %1905 = vmatpush1.msra.mxu0 %v1046
        %1906 = vmatprep.subr.mxu0 %v1034
        %1907 = vmatpush1.msra.mxu0 %v1033
        %1908 = vmatprep.subr.mxu0 %v1021
        %1909 = vmatpush1.msra.mxu0 %v1020
        %1910 = vmatprep.subr.mxu0 %v1008
        %1911 = vmatpush1.msra.mxu0 %v1007
        %1912 = vmatprep.subr.mxu0 %v995
        %1913 = vmatpush1.msra.mxu0 %v994
        %1914 = vmatprep.subr.mxu0 %v982
        %1915 = vmatpush1.msra.mxu0 %v981
        %1916 = vmatprep.subr.mxu0 %v969
        %1917 = vmatpush1.msra.mxu0 %v968
        %1918 = vmatprep.subr.mxu0 %v956
        %1919 = vmatpush1.msra.mxu0 %v955
        %1920 = vmatprep.subr.mxu0 %v1359
        %1921 = vmatpush2.msra.mxu0 %v1358
        %1922 = vmatprep.subr.mxu0 %v1346
        %1923 = vmatpush2.msra.mxu0 %v1345
        %1924 = vmatprep.subr.mxu0 %v1333
        %1925 = vmatpush2.msra.mxu0 %v1332
        %1926 = vmatprep.subr.mxu0 %v1320
        %1927 = vmatpush2.msra.mxu0 %v1319
        %1928 = vmatprep.subr.mxu0 %v1307
        %1929 = vmatpush2.msra.mxu0 %v1306
        %1930 = vmatprep.subr.mxu0 %v1294
        %1931 = vmatpush2.msra.mxu0 %v1293
        %1932 = vmatprep.subr.mxu0 %v1281
        %1933 = vmatpush2.msra.mxu0 %v1280
        %1934 = vmatprep.subr.mxu0 %v1268
        %1935 = vmatpush2.msra.mxu0 %v1267
        %1936 = vmatprep.subr.mxu0 %v1255
        %1937 = vmatpush2.msra.mxu0 %v1254
        %1938 = vmatprep.subr.mxu0 %v1242
        %1939 = vmatpush2.msra.mxu0 %v1241
        %1940 = vmatprep.subr.mxu0 %v1229
        %1941 = vmatpush2.msra.mxu0 %v1228
        %1942 = vmatprep.subr.mxu0 %v1216
        %1943 = vmatpush2.msra.mxu0 %v1215
        %1944 = vmatprep.subr.mxu0 %v1203
        %1945 = vmatpush2.msra.mxu0 %v1202
        %1946 = vmatprep.subr.mxu0 %v1190
        %1947 = vmatpush2.msra.mxu0 %v1189
        %1948 = vmatprep.subr.mxu0 %v1177
        %1949 = vmatpush2.msra.mxu0 %v1176
        %1950 = vmatprep.subr.mxu0 %v1164
        %1951 = vmatpush2.msra.mxu0 %v1163
        %1952 = vmatprep.mubr.f32.mxu0 %v535
        %1953 = vmatmul.mubr.f32.gmra.mxu0 %v534
        %v1954 = vpop.f32.mrf.mxu0
        %v1955 = vadd.f32 %v1884, %v1954
        %v1956 = vpop.f32.mrf.mxu0
        %v1957 = vadd.f32 %v1886, %v1956
        %1958 = vdwg.mxu0
        %1959 = vmatprep.subr.mxu0 %v1567
        %1960 = vmatpush1.msra.mxu0 %v1566
        %1961 = vmatprep.subr.mxu0 %v1554
        %1962 = vmatpush1.msra.mxu0 %v1553
        %1963 = vmatprep.subr.mxu0 %v1541
        %1964 = vmatpush1.msra.mxu0 %v1540
        %1965 = vmatprep.subr.mxu0 %v1528
        %1966 = vmatpush1.msra.mxu0 %v1527
        %1967 = vmatprep.subr.mxu0 %v1515
        %1968 = vmatpush1.msra.mxu0 %v1514
        %1969 = vmatprep.subr.mxu0 %v1502
        %1970 = vmatpush1.msra.mxu0 %v1501
        %1971 = vmatprep.subr.mxu0 %v1489
        %1972 = vmatpush1.msra.mxu0 %v1488
        %1973 = vmatprep.subr.mxu0 %v1476
        %1974 = vmatpush1.msra.mxu0 %v1475
        %1975 = vmatprep.subr.mxu0 %v1463
        %1976 = vmatpush1.msra.mxu0 %v1462
        %1977 = vmatprep.subr.mxu0 %v1450
        %1978 = vmatpush1.msra.mxu0 %v1449
        %1979 = vmatprep.subr.mxu0 %v1437
        %1980 = vmatpush1.msra.mxu0 %v1436
        %1981 = vmatprep.subr.mxu0 %v1424
        %1982 = vmatpush1.msra.mxu0 %v1423
        %1983 = vmatprep.subr.mxu0 %v1411
        %1984 = vmatpush1.msra.mxu0 %v1410
        %1985 = vmatprep.subr.mxu0 %v1398
        %1986 = vmatpush1.msra.mxu0 %v1397
        %1987 = vmatprep.subr.mxu0 %v1385
        %1988 = vmatpush1.msra.mxu0 %v1384
        %1989 = vmatprep.subr.mxu0 %v1372
        %1990 = vmatpush1.msra.mxu0 %v1371
        %1991 = vmatprep.subr.mxu0 %v1775
        %1992 = vmatpush2.msra.mxu0 %v1774
        %1993 = vmatprep.subr.mxu0 %v1762
        %1994 = vmatpush2.msra.mxu0 %v1761
        %1995 = vmatprep.subr.mxu0 %v1749
        %1996 = vmatpush2.msra.mxu0 %v1748
        %1997 = vmatprep.subr.mxu0 %v1736
        %1998 = vmatpush2.msra.mxu0 %v1735
        %1999 = vmatprep.subr.mxu0 %v1723
        %2000 = vmatpush2.msra.mxu0 %v1722
        %2001 = vmatprep.subr.mxu0 %v1710
        %2002 = vmatpush2.msra.mxu0 %v1709
        %2003 = vmatprep.subr.mxu0 %v1697
        %2004 = vmatpush2.msra.mxu0 %v1696
        %2005 = vmatprep.subr.mxu0 %v1684
        %2006 = vmatpush2.msra.mxu0 %v1683
        %2007 = vmatprep.subr.mxu0 %v1671
        %2008 = vmatpush2.msra.mxu0 %v1670
        %2009 = vmatprep.subr.mxu0 %v1658
        %2010 = vmatpush2.msra.mxu0 %v1657
        %2011 = vmatprep.subr.mxu0 %v1645
        %2012 = vmatpush2.msra.mxu0 %v1644
        %2013 = vmatprep.subr.mxu0 %v1632
        %2014 = vmatpush2.msra.mxu0 %v1631
        %2015 = vmatprep.subr.mxu0 %v1619
        %2016 = vmatpush2.msra.mxu0 %v1618
        %2017 = vmatprep.subr.mxu0 %v1606
        %2018 = vmatpush2.msra.mxu0 %v1605
        %2019 = vmatprep.subr.mxu0 %v1593
        %2020 = vmatpush2.msra.mxu0 %v1592
        %2021 = vmatprep.subr.mxu0 %v1580
        %2022 = vmatpush2.msra.mxu0 %v1579
        %2023 = vmatprep.mubr.f32.mxu0 %v537
        %2024 = vmatmul.mubr.f32.gmra.mxu0 %v536
        %v2025 = vpop.f32.mrf.mxu0
        %v2026 = vadd.f32 %v1955, %v2025
        %v2027 = vpop.f32.mrf.mxu0
        %v2028 = vadd.f32 %v1957, %v2027
        %2029 = vdwg.mxu0
        %2030 = vmatprep.subr.mxu0 0.0
        %2031 = vmatpush1.msra.mxu0 0.0
        %2032 = vmatprep.subr.mxu0 0.0
        %2033 = vmatpush1.msra.mxu0 0.0
        %2034 = vmatprep.subr.mxu0 0.0
        %2035 = vmatpush1.msra.mxu0 0.0
        %2036 = vmatprep.subr.mxu0 0.0
        %2037 = vmatpush1.msra.mxu0 0.0
        %2038 = vmatprep.subr.mxu0 0.0
        %2039 = vmatpush1.msra.mxu0 0.0
        %2040 = vmatprep.subr.mxu0 0.0
        %2041 = vmatpush1.msra.mxu0 0.0
        %2042 = vmatprep.subr.mxu0 0.0
        %2043 = vmatpush1.msra.mxu0 0.0
        %2044 = vmatprep.subr.mxu0 0.0
        %2045 = vmatpush1.msra.mxu0 0.0
        %2046 = vmatprep.subr.mxu0 0.0
        %2047 = vmatpush1.msra.mxu0 0.0
        %2048 = vmatprep.subr.mxu0 0.0
        %2049 = vmatpush1.msra.mxu0 0.0
        %2050 = vmatprep.subr.mxu0 0.0
        %2051 = vmatpush1.msra.mxu0 0.0
        %2052 = vmatprep.subr.mxu0 0.0
        %2053 = vmatpush1.msra.mxu0 0.0
        %2054 = vmatprep.subr.mxu0 0.0
        %2055 = vmatpush1.msra.mxu0 0.0
        %2056 = vmatprep.subr.mxu0 0.0
        %2057 = vmatpush1.msra.mxu0 0.0
        %2058 = vmatprep.subr.mxu0 %v1801
        %2059 = vmatpush1.msra.mxu0 %v1800
        %2060 = vmatprep.subr.mxu0 %v1788
        %2061 = vmatpush1.msra.mxu0 %v1787
        %2062 = vmatprep.subr.mxu0 0.0
        %2063 = vmatpush2.msra.mxu0 0.0
        %2064 = vmatprep.subr.mxu0 0.0
        %2065 = vmatpush2.msra.mxu0 0.0
        %2066 = vmatprep.subr.mxu0 0.0
        %2067 = vmatpush2.msra.mxu0 0.0
        %2068 = vmatprep.subr.mxu0 0.0
        %2069 = vmatpush2.msra.mxu0 0.0
        %2070 = vmatprep.subr.mxu0 0.0
        %2071 = vmatpush2.msra.mxu0 0.0
        %2072 = vmatprep.subr.mxu0 0.0
        %2073 = vmatpush2.msra.mxu0 0.0
        %2074 = vmatprep.subr.mxu0 0.0
        %2075 = vmatpush2.msra.mxu0 0.0
        %2076 = vmatprep.subr.mxu0 0.0
        %2077 = vmatpush2.msra.mxu0 0.0
        %2078 = vmatprep.subr.mxu0 0.0
        %2079 = vmatpush2.msra.mxu0 0.0
        %2080 = vmatprep.subr.mxu0 0.0
        %2081 = vmatpush2.msra.mxu0 0.0
        %2082 = vmatprep.subr.mxu0 0.0
        %2083 = vmatpush2.msra.mxu0 0.0
        %2084 = vmatprep.subr.mxu0 0.0
        %2085 = vmatpush2.msra.mxu0 0.0
        %2086 = vmatprep.subr.mxu0 0.0
        %2087 = vmatpush2.msra.mxu0 0.0
        %2088 = vmatprep.subr.mxu0 0.0
        %2089 = vmatpush2.msra.mxu0 0.0
        %2090 = vmatprep.subr.mxu0 0.0
        %2091 = vmatpush2.msra.mxu0 0.0
        %2092 = vmatprep.subr.mxu0 0.0
        %2093 = vmatpush2.msra.mxu0 0.0
        %2094 = vmatprep.mubr.f32.mxu0 0.0
        %2095 = vmatmul.mubr.f32.gmra.mxu0 %v1815
        %v2096 = vpop.f32.mrf.mxu0
        %v2097 = vadd.f32 %v2026, %v2096
        %v2098 = vpop.f32.mrf.mxu0
        %v2099 = vadd.f32 %v2028, %v2098
        %2100 = vdwg.mxu0
        %2101 = vmatprep.subr.mxu0 %v737
        %2102 = vmatpush1.msra.mxu0 %v736
        %2103 = vmatprep.subr.mxu0 %v724
        %2104 = vmatpush1.msra.mxu0 %v723
        %2105 = vmatprep.subr.mxu0 %v711
        %2106 = vmatpush1.msra.mxu0 %v710
        %2107 = vmatprep.subr.mxu0 %v698
        %2108 = vmatpush1.msra.mxu0 %v697
        %2109 = vmatprep.subr.mxu0 %v685
        %2110 = vmatpush1.msra.mxu0 %v684
        %2111 = vmatprep.subr.mxu0 %v672
        %2112 = vmatpush1.msra.mxu0 %v671
        %2113 = vmatprep.subr.mxu0 %v659
        %2114 = vmatpush1.msra.mxu0 %v658
        %2115 = vmatprep.subr.mxu0 %v646
        %2116 = vmatpush1.msra.mxu0 %v645
        %2117 = vmatprep.subr.mxu0 %v633
        %2118 = vmatpush1.msra.mxu0 %v632
        %2119 = vmatprep.subr.mxu0 %v620
        %2120 = vmatpush1.msra.mxu0 %v619
        %2121 = vmatprep.subr.mxu0 %v607
        %2122 = vmatpush1.msra.mxu0 %v606
        %2123 = vmatprep.subr.mxu0 %v594
        %2124 = vmatpush1.msra.mxu0 %v593
        %2125 = vmatprep.subr.mxu0 %v581
        %2126 = vmatpush1.msra.mxu0 %v580
        %2127 = vmatprep.subr.mxu0 %v568
        %2128 = vmatpush1.msra.mxu0 %v567
        %2129 = vmatprep.subr.mxu0 %v555
        %2130 = vmatpush1.msra.mxu0 %v554
        %2131 = vmatprep.subr.mxu0 %v542
        %2132 = vmatpush1.msra.mxu0 %v541
        %2133 = vmatprep.subr.mxu0 %v945
        %2134 = vmatpush2.msra.mxu0 %v944
        %2135 = vmatprep.subr.mxu0 %v932
        %2136 = vmatpush2.msra.mxu0 %v931
        %2137 = vmatprep.subr.mxu0 %v919
        %2138 = vmatpush2.msra.mxu0 %v918
        %2139 = vmatprep.subr.mxu0 %v906
        %2140 = vmatpush2.msra.mxu0 %v905
        %2141 = vmatprep.subr.mxu0 %v893
        %2142 = vmatpush2.msra.mxu0 %v892
        %2143 = vmatprep.subr.mxu0 %v880
        %2144 = vmatpush2.msra.mxu0 %v879
        %2145 = vmatprep.subr.mxu0 %v867
        %2146 = vmatpush2.msra.mxu0 %v866
        %2147 = vmatprep.subr.mxu0 %v854
        %2148 = vmatpush2.msra.mxu0 %v853
        %2149 = vmatprep.subr.mxu0 %v841
        %2150 = vmatpush2.msra.mxu0 %v840
        %2151 = vmatprep.subr.mxu0 %v828
        %2152 = vmatpush2.msra.mxu0 %v827
        %2153 = vmatprep.subr.mxu0 %v815
        %2154 = vmatpush2.msra.mxu0 %v814
        %2155 = vmatprep.subr.mxu0 %v802
        %2156 = vmatpush2.msra.mxu0 %v801
        %2157 = vmatprep.subr.mxu0 %v789
        %2158 = vmatpush2.msra.mxu0 %v788
        %2159 = vmatprep.subr.mxu0 %v776
        %2160 = vmatpush2.msra.mxu0 %v775
        %2161 = vmatprep.subr.mxu0 %v763
        %2162 = vmatpush2.msra.mxu0 %v762
        %2163 = vmatprep.subr.mxu0 %v750
        %2164 = vmatpush2.msra.mxu0 %v749
        %2165 = vmatprep.mubr.f32.mxu0 %v533
        %2166 = vmatmul.mubr.f32.gmra.mxu0 %v532
        %v2167 = vpop.f32.mrf.mxu0
        %v2168 = vadd.f32 0.0, %v2167
        %v2169 = vpop.f32.mrf.mxu0
        %v2170 = vadd.f32 0.0, %v2169
        %2171 = vdwg.mxu0
        %2172 = vmatprep.subr.mxu0 %v1153
        %2173 = vmatpush1.msra.mxu0 %v1152
        %2174 = vmatprep.subr.mxu0 %v1140
        %2175 = vmatpush1.msra.mxu0 %v1139
        %2176 = vmatprep.subr.mxu0 %v1127
        %2177 = vmatpush1.msra.mxu0 %v1126
        %2178 = vmatprep.subr.mxu0 %v1114
        %2179 = vmatpush1.msra.mxu0 %v1113
        %2180 = vmatprep.subr.mxu0 %v1101
        %2181 = vmatpush1.msra.mxu0 %v1100
        %2182 = vmatprep.subr.mxu0 %v1088
        %2183 = vmatpush1.msra.mxu0 %v1087
        %2184 = vmatprep.subr.mxu0 %v1075
        %2185 = vmatpush1.msra.mxu0 %v1074
        %2186 = vmatprep.subr.mxu0 %v1062
        %2187 = vmatpush1.msra.mxu0 %v1061
        %2188 = vmatprep.subr.mxu0 %v1049
        %2189 = vmatpush1.msra.mxu0 %v1048
        %2190 = vmatprep.subr.mxu0 %v1036
        %2191 = vmatpush1.msra.mxu0 %v1035
        %2192 = vmatprep.subr.mxu0 %v1023
        %2193 = vmatpush1.msra.mxu0 %v1022
        %2194 = vmatprep.subr.mxu0 %v1010
        %2195 = vmatpush1.msra.mxu0 %v1009
        %2196 = vmatprep.subr.mxu0 %v997
        %2197 = vmatpush1.msra.mxu0 %v996
        %2198 = vmatprep.subr.mxu0 %v984
        %2199 = vmatpush1.msra.mxu0 %v983
        %2200 = vmatprep.subr.mxu0 %v971
        %2201 = vmatpush1.msra.mxu0 %v970
        %2202 = vmatprep.subr.mxu0 %v958
        %2203 = vmatpush1.msra.mxu0 %v957
        %2204 = vmatprep.subr.mxu0 %v1361
        %2205 = vmatpush2.msra.mxu0 %v1360
        %2206 = vmatprep.subr.mxu0 %v1348
        %2207 = vmatpush2.msra.mxu0 %v1347
        %2208 = vmatprep.subr.mxu0 %v1335
        %2209 = vmatpush2.msra.mxu0 %v1334
        %2210 = vmatprep.subr.mxu0 %v1322
        %2211 = vmatpush2.msra.mxu0 %v1321
        %2212 = vmatprep.subr.mxu0 %v1309
        %2213 = vmatpush2.msra.mxu0 %v1308
        %2214 = vmatprep.subr.mxu0 %v1296
        %2215 = vmatpush2.msra.mxu0 %v1295
        %2216 = vmatprep.subr.mxu0 %v1283
        %2217 = vmatpush2.msra.mxu0 %v1282
        %2218 = vmatprep.subr.mxu0 %v1270
        %2219 = vmatpush2.msra.mxu0 %v1269
        %2220 = vmatprep.subr.mxu0 %v1257
        %2221 = vmatpush2.msra.mxu0 %v1256
        %2222 = vmatprep.subr.mxu0 %v1244
        %2223 = vmatpush2.msra.mxu0 %v1243
        %2224 = vmatprep.subr.mxu0 %v1231
        %2225 = vmatpush2.msra.mxu0 %v1230
        %2226 = vmatprep.subr.mxu0 %v1218
        %2227 = vmatpush2.msra.mxu0 %v1217
        %2228 = vmatprep.subr.mxu0 %v1205
        %2229 = vmatpush2.msra.mxu0 %v1204
        %2230 = vmatprep.subr.mxu0 %v1192
        %2231 = vmatpush2.msra.mxu0 %v1191
        %2232 = vmatprep.subr.mxu0 %v1179
        %2233 = vmatpush2.msra.mxu0 %v1178
        %2234 = vmatprep.subr.mxu0 %v1166
        %2235 = vmatpush2.msra.mxu0 %v1165
        %2236 = vmatprep.mubr.f32.mxu0 %v535
        %2237 = vmatmul.mubr.f32.gmra.mxu0 %v534
        %v2238 = vpop.f32.mrf.mxu0
        %v2239 = vadd.f32 %v2168, %v2238
        %v2240 = vpop.f32.mrf.mxu0
        %v2241 = vadd.f32 %v2170, %v2240
        %2242 = vdwg.mxu0
        %2243 = vmatprep.subr.mxu0 %v1569
        %2244 = vmatpush1.msra.mxu0 %v1568
        %2245 = vmatprep.subr.mxu0 %v1556
        %2246 = vmatpush1.msra.mxu0 %v1555
        %2247 = vmatprep.subr.mxu0 %v1543
        %2248 = vmatpush1.msra.mxu0 %v1542
        %2249 = vmatprep.subr.mxu0 %v1530
        %2250 = vmatpush1.msra.mxu0 %v1529
        %2251 = vmatprep.subr.mxu0 %v1517
        %2252 = vmatpush1.msra.mxu0 %v1516
        %2253 = vmatprep.subr.mxu0 %v1504
        %2254 = vmatpush1.msra.mxu0 %v1503
        %2255 = vmatprep.subr.mxu0 %v1491
        %2256 = vmatpush1.msra.mxu0 %v1490
        %2257 = vmatprep.subr.mxu0 %v1478
        %2258 = vmatpush1.msra.mxu0 %v1477
        %2259 = vmatprep.subr.mxu0 %v1465
        %2260 = vmatpush1.msra.mxu0 %v1464
        %2261 = vmatprep.subr.mxu0 %v1452
        %2262 = vmatpush1.msra.mxu0 %v1451
        %2263 = vmatprep.subr.mxu0 %v1439
        %2264 = vmatpush1.msra.mxu0 %v1438
        %2265 = vmatprep.subr.mxu0 %v1426
        %2266 = vmatpush1.msra.mxu0 %v1425
        %2267 = vmatprep.subr.mxu0 %v1413
        %2268 = vmatpush1.msra.mxu0 %v1412
        %2269 = vmatprep.subr.mxu0 %v1400
        %2270 = vmatpush1.msra.mxu0 %v1399
        %2271 = vmatprep.subr.mxu0 %v1387
        %2272 = vmatpush1.msra.mxu0 %v1386
        %2273 = vmatprep.subr.mxu0 %v1374
        %2274 = vmatpush1.msra.mxu0 %v1373
        %2275 = vmatprep.subr.mxu0 %v1777
        %2276 = vmatpush2.msra.mxu0 %v1776
        %2277 = vmatprep.subr.mxu0 %v1764
        %2278 = vmatpush2.msra.mxu0 %v1763
        %2279 = vmatprep.subr.mxu0 %v1751
        %2280 = vmatpush2.msra.mxu0 %v1750
        %2281 = vmatprep.subr.mxu0 %v1738
        %2282 = vmatpush2.msra.mxu0 %v1737
        %2283 = vmatprep.subr.mxu0 %v1725
        %2284 = vmatpush2.msra.mxu0 %v1724
        %2285 = vmatprep.subr.mxu0 %v1712
        %2286 = vmatpush2.msra.mxu0 %v1711
        %2287 = vmatprep.subr.mxu0 %v1699
        %2288 = vmatpush2.msra.mxu0 %v1698
        %2289 = vmatprep.subr.mxu0 %v1686
        %2290 = vmatpush2.msra.mxu0 %v1685
        %2291 = vmatprep.subr.mxu0 %v1673
        %2292 = vmatpush2.msra.mxu0 %v1672
        %2293 = vmatprep.subr.mxu0 %v1660
        %2294 = vmatpush2.msra.mxu0 %v1659
        %2295 = vmatprep.subr.mxu0 %v1647
        %2296 = vmatpush2.msra.mxu0 %v1646
        %2297 = vmatprep.subr.mxu0 %v1634
        %2298 = vmatpush2.msra.mxu0 %v1633
        %2299 = vmatprep.subr.mxu0 %v1621
        %2300 = vmatpush2.msra.mxu0 %v1620
        %2301 = vmatprep.subr.mxu0 %v1608
        %2302 = vmatpush2.msra.mxu0 %v1607
        %2303 = vmatprep.subr.mxu0 %v1595
        %2304 = vmatpush2.msra.mxu0 %v1594
        %2305 = vmatprep.subr.mxu0 %v1582
        %2306 = vmatpush2.msra.mxu0 %v1581
        %2307 = vmatprep.mubr.f32.mxu0 %v537
        %2308 = vmatmul.mubr.f32.gmra.mxu0 %v536
        %v2309 = vpop.f32.mrf.mxu0
        %v2310 = vadd.f32 %v2239, %v2309
        %v2311 = vpop.f32.mrf.mxu0
        %v2312 = vadd.f32 %v2241, %v2311
        %2313 = vdwg.mxu0
        %2314 = vmatprep.subr.mxu0 0.0
        %2315 = vmatpush1.msra.mxu0 0.0
        %2316 = vmatprep.subr.mxu0 0.0
        %2317 = vmatpush1.msra.mxu0 0.0
        %2318 = vmatprep.subr.mxu0 0.0
        %2319 = vmatpush1.msra.mxu0 0.0
        %2320 = vmatprep.subr.mxu0 0.0
        %2321 = vmatpush1.msra.mxu0 0.0
        %2322 = vmatprep.subr.mxu0 0.0
        %2323 = vmatpush1.msra.mxu0 0.0
        %2324 = vmatprep.subr.mxu0 0.0
        %2325 = vmatpush1.msra.mxu0 0.0
        %2326 = vmatprep.subr.mxu0 0.0
        %2327 = vmatpush1.msra.mxu0 0.0
        %2328 = vmatprep.subr.mxu0 0.0
        %2329 = vmatpush1.msra.mxu0 0.0
        %2330 = vmatprep.subr.mxu0 0.0
        %2331 = vmatpush1.msra.mxu0 0.0
        %2332 = vmatprep.subr.mxu0 0.0
        %2333 = vmatpush1.msra.mxu0 0.0
        %2334 = vmatprep.subr.mxu0 0.0
        %2335 = vmatpush1.msra.mxu0 0.0
        %2336 = vmatprep.subr.mxu0 0.0
        %2337 = vmatpush1.msra.mxu0 0.0
        %2338 = vmatprep.subr.mxu0 0.0
        %2339 = vmatpush1.msra.mxu0 0.0
        %2340 = vmatprep.subr.mxu0 0.0
        %2341 = vmatpush1.msra.mxu0 0.0
        %2342 = vmatprep.subr.mxu0 %v1803
        %2343 = vmatpush1.msra.mxu0 %v1802
        %2344 = vmatprep.subr.mxu0 %v1790
        %2345 = vmatpush1.msra.mxu0 %v1789
        %2346 = vmatprep.subr.mxu0 0.0
        %2347 = vmatpush2.msra.mxu0 0.0
        %2348 = vmatprep.subr.mxu0 0.0
        %2349 = vmatpush2.msra.mxu0 0.0
        %2350 = vmatprep.subr.mxu0 0.0
        %2351 = vmatpush2.msra.mxu0 0.0
        %2352 = vmatprep.subr.mxu0 0.0
        %2353 = vmatpush2.msra.mxu0 0.0
        %2354 = vmatprep.subr.mxu0 0.0
        %2355 = vmatpush2.msra.mxu0 0.0
        %2356 = vmatprep.subr.mxu0 0.0
        %2357 = vmatpush2.msra.mxu0 0.0
        %2358 = vmatprep.subr.mxu0 0.0
        %2359 = vmatpush2.msra.mxu0 0.0
        %2360 = vmatprep.subr.mxu0 0.0
        %2361 = vmatpush2.msra.mxu0 0.0
        %2362 = vmatprep.subr.mxu0 0.0
        %2363 = vmatpush2.msra.mxu0 0.0
        %2364 = vmatprep.subr.mxu0 0.0
        %2365 = vmatpush2.msra.mxu0 0.0
        %2366 = vmatprep.subr.mxu0 0.0
        %2367 = vmatpush2.msra.mxu0 0.0
        %2368 = vmatprep.subr.mxu0 0.0
        %2369 = vmatpush2.msra.mxu0 0.0
        %2370 = vmatprep.subr.mxu0 0.0
        %2371 = vmatpush2.msra.mxu0 0.0
        %2372 = vmatprep.subr.mxu0 0.0
        %2373 = vmatpush2.msra.mxu0 0.0
        %2374 = vmatprep.subr.mxu0 0.0
        %2375 = vmatpush2.msra.mxu0 0.0
        %2376 = vmatprep.subr.mxu0 0.0
        %2377 = vmatpush2.msra.mxu0 0.0
        %2378 = vmatprep.mubr.f32.mxu0 0.0
        %2379 = vmatmul.mubr.f32.gmra.mxu0 %v1815
        %v2380 = vpop.f32.mrf.mxu0
        %v2381 = vadd.f32 %v2310, %v2380
        %v2382 = vpop.f32.mrf.mxu0
        %v2383 = vadd.f32 %v2312, %v2382
        %2384 = vdwg.mxu0
        %2385 = vmatprep.subr.mxu0 %v739
        %2386 = vmatpush1.msra.mxu0 %v738
        %2387 = vmatprep.subr.mxu0 %v726
        %2388 = vmatpush1.msra.mxu0 %v725
        %2389 = vmatprep.subr.mxu0 %v713
        %2390 = vmatpush1.msra.mxu0 %v712
        %2391 = vmatprep.subr.mxu0 %v700
        %2392 = vmatpush1.msra.mxu0 %v699
        %2393 = vmatprep.subr.mxu0 %v687
        %2394 = vmatpush1.msra.mxu0 %v686
        %2395 = vmatprep.subr.mxu0 %v674
        %2396 = vmatpush1.msra.mxu0 %v673
        %2397 = vmatprep.subr.mxu0 %v661
        %2398 = vmatpush1.msra.mxu0 %v660
        %2399 = vmatprep.subr.mxu0 %v648
        %2400 = vmatpush1.msra.mxu0 %v647
        %2401 = vmatprep.subr.mxu0 %v635
        %2402 = vmatpush1.msra.mxu0 %v634
        %2403 = vmatprep.subr.mxu0 %v622
        %2404 = vmatpush1.msra.mxu0 %v621
        %2405 = vmatprep.subr.mxu0 %v609
        %2406 = vmatpush1.msra.mxu0 %v608
        %2407 = vmatprep.subr.mxu0 %v596
        %2408 = vmatpush1.msra.mxu0 %v595
        %2409 = vmatprep.subr.mxu0 %v583
        %2410 = vmatpush1.msra.mxu0 %v582
        %2411 = vmatprep.subr.mxu0 %v570
        %2412 = vmatpush1.msra.mxu0 %v569
        %2413 = vmatprep.subr.mxu0 %v557
        %2414 = vmatpush1.msra.mxu0 %v556
        %2415 = vmatprep.subr.mxu0 %v544
        %2416 = vmatpush1.msra.mxu0 %v543
        %2417 = vmatprep.subr.mxu0 %v947
        %2418 = vmatpush2.msra.mxu0 %v946
        %2419 = vmatprep.subr.mxu0 %v934
        %2420 = vmatpush2.msra.mxu0 %v933
        %2421 = vmatprep.subr.mxu0 %v921
        %2422 = vmatpush2.msra.mxu0 %v920
        %2423 = vmatprep.subr.mxu0 %v908
        %2424 = vmatpush2.msra.mxu0 %v907
        %2425 = vmatprep.subr.mxu0 %v895
        %2426 = vmatpush2.msra.mxu0 %v894
        %2427 = vmatprep.subr.mxu0 %v882
        %2428 = vmatpush2.msra.mxu0 %v881
        %2429 = vmatprep.subr.mxu0 %v869
        %2430 = vmatpush2.msra.mxu0 %v868
        %2431 = vmatprep.subr.mxu0 %v856
        %2432 = vmatpush2.msra.mxu0 %v855
        %2433 = vmatprep.subr.mxu0 %v843
        %2434 = vmatpush2.msra.mxu0 %v842
        %2435 = vmatprep.subr.mxu0 %v830
        %2436 = vmatpush2.msra.mxu0 %v829
        %2437 = vmatprep.subr.mxu0 %v817
        %2438 = vmatpush2.msra.mxu0 %v816
        %2439 = vmatprep.subr.mxu0 %v804
        %2440 = vmatpush2.msra.mxu0 %v803
        %2441 = vmatprep.subr.mxu0 %v791
        %2442 = vmatpush2.msra.mxu0 %v790
        %2443 = vmatprep.subr.mxu0 %v778
        %2444 = vmatpush2.msra.mxu0 %v777
        %2445 = vmatprep.subr.mxu0 %v765
        %2446 = vmatpush2.msra.mxu0 %v764
        %2447 = vmatprep.subr.mxu0 %v752
        %2448 = vmatpush2.msra.mxu0 %v751
        %2449 = vmatprep.mubr.f32.mxu0 %v533
        %2450 = vmatmul.mubr.f32.gmra.mxu0 %v532
        %v2451 = vpop.f32.mrf.mxu0
        %v2452 = vadd.f32 0.0, %v2451
        %v2453 = vpop.f32.mrf.mxu0
        %v2454 = vadd.f32 0.0, %v2453
        %2455 = vdwg.mxu0
        %2456 = vmatprep.subr.mxu0 %v1155
        %2457 = vmatpush1.msra.mxu0 %v1154
        %2458 = vmatprep.subr.mxu0 %v1142
        %2459 = vmatpush1.msra.mxu0 %v1141
        %2460 = vmatprep.subr.mxu0 %v1129
        %2461 = vmatpush1.msra.mxu0 %v1128
        %2462 = vmatprep.subr.mxu0 %v1116
        %2463 = vmatpush1.msra.mxu0 %v1115
        %2464 = vmatprep.subr.mxu0 %v1103
        %2465 = vmatpush1.msra.mxu0 %v1102
        %2466 = vmatprep.subr.mxu0 %v1090
        %2467 = vmatpush1.msra.mxu0 %v1089
        %2468 = vmatprep.subr.mxu0 %v1077
        %2469 = vmatpush1.msra.mxu0 %v1076
        %2470 = vmatprep.subr.mxu0 %v1064
        %2471 = vmatpush1.msra.mxu0 %v1063
        %2472 = vmatprep.subr.mxu0 %v1051
        %2473 = vmatpush1.msra.mxu0 %v1050
        %2474 = vmatprep.subr.mxu0 %v1038
        %2475 = vmatpush1.msra.mxu0 %v1037
        %2476 = vmatprep.subr.mxu0 %v1025
        %2477 = vmatpush1.msra.mxu0 %v1024
        %2478 = vmatprep.subr.mxu0 %v1012
        %2479 = vmatpush1.msra.mxu0 %v1011
        %2480 = vmatprep.subr.mxu0 %v999
        %2481 = vmatpush1.msra.mxu0 %v998
        %2482 = vmatprep.subr.mxu0 %v986
        %2483 = vmatpush1.msra.mxu0 %v985
        %2484 = vmatprep.subr.mxu0 %v973
        %2485 = vmatpush1.msra.mxu0 %v972
        %2486 = vmatprep.subr.mxu0 %v960
        %2487 = vmatpush1.msra.mxu0 %v959
        %2488 = vmatprep.subr.mxu0 %v1363
        %2489 = vmatpush2.msra.mxu0 %v1362
        %2490 = vmatprep.subr.mxu0 %v1350
        %2491 = vmatpush2.msra.mxu0 %v1349
        %2492 = vmatprep.subr.mxu0 %v1337
        %2493 = vmatpush2.msra.mxu0 %v1336
        %2494 = vmatprep.subr.mxu0 %v1324
        %2495 = vmatpush2.msra.mxu0 %v1323
        %2496 = vmatprep.subr.mxu0 %v1311
        %2497 = vmatpush2.msra.mxu0 %v1310
        %2498 = vmatprep.subr.mxu0 %v1298
        %2499 = vmatpush2.msra.mxu0 %v1297
        %2500 = vmatprep.subr.mxu0 %v1285
        %2501 = vmatpush2.msra.mxu0 %v1284
        %2502 = vmatprep.subr.mxu0 %v1272
        %2503 = vmatpush2.msra.mxu0 %v1271
        %2504 = vmatprep.subr.mxu0 %v1259
        %2505 = vmatpush2.msra.mxu0 %v1258
        %2506 = vmatprep.subr.mxu0 %v1246
        %2507 = vmatpush2.msra.mxu0 %v1245
        %2508 = vmatprep.subr.mxu0 %v1233
        %2509 = vmatpush2.msra.mxu0 %v1232
        %2510 = vmatprep.subr.mxu0 %v1220
        %2511 = vmatpush2.msra.mxu0 %v1219
        %2512 = vmatprep.subr.mxu0 %v1207
        %2513 = vmatpush2.msra.mxu0 %v1206
        %2514 = vmatprep.subr.mxu0 %v1194
        %2515 = vmatpush2.msra.mxu0 %v1193
        %2516 = vmatprep.subr.mxu0 %v1181
        %2517 = vmatpush2.msra.mxu0 %v1180
        %2518 = vmatprep.subr.mxu0 %v1168
        %2519 = vmatpush2.msra.mxu0 %v1167
        %2520 = vmatprep.mubr.f32.mxu0 %v535
        %2521 = vmatmul.mubr.f32.gmra.mxu0 %v534
        %v2522 = vpop.f32.mrf.mxu0
        %v2523 = vadd.f32 %v2452, %v2522
        %v2524 = vpop.f32.mrf.mxu0
        %v2525 = vadd.f32 %v2454, %v2524
        %2526 = vdwg.mxu0
        %2527 = vmatprep.subr.mxu0 %v1571
        %2528 = vmatpush1.msra.mxu0 %v1570
        %2529 = vmatprep.subr.mxu0 %v1558
        %2530 = vmatpush1.msra.mxu0 %v1557
        %2531 = vmatprep.subr.mxu0 %v1545
        %2532 = vmatpush1.msra.mxu0 %v1544
        %2533 = vmatprep.subr.mxu0 %v1532
        %2534 = vmatpush1.msra.mxu0 %v1531
        %2535 = vmatprep.subr.mxu0 %v1519
        %2536 = vmatpush1.msra.mxu0 %v1518
        %2537 = vmatprep.subr.mxu0 %v1506
        %2538 = vmatpush1.msra.mxu0 %v1505
        %2539 = vmatprep.subr.mxu0 %v1493
        %2540 = vmatpush1.msra.mxu0 %v1492
        %2541 = vmatprep.subr.mxu0 %v1480
        %2542 = vmatpush1.msra.mxu0 %v1479
        %2543 = vmatprep.subr.mxu0 %v1467
        %2544 = vmatpush1.msra.mxu0 %v1466
        %2545 = vmatprep.subr.mxu0 %v1454
        %2546 = vmatpush1.msra.mxu0 %v1453
        %2547 = vmatprep.subr.mxu0 %v1441
        %2548 = vmatpush1.msra.mxu0 %v1440
        %2549 = vmatprep.subr.mxu0 %v1428
        %2550 = vmatpush1.msra.mxu0 %v1427
        %2551 = vmatprep.subr.mxu0 %v1415
        %2552 = vmatpush1.msra.mxu0 %v1414
        %2553 = vmatprep.subr.mxu0 %v1402
        %2554 = vmatpush1.msra.mxu0 %v1401
        %2555 = vmatprep.subr.mxu0 %v1389
        %2556 = vmatpush1.msra.mxu0 %v1388
        %2557 = vmatprep.subr.mxu0 %v1376
        %2558 = vmatpush1.msra.mxu0 %v1375
        %2559 = vmatprep.subr.mxu0 %v1779
        %2560 = vmatpush2.msra.mxu0 %v1778
        %2561 = vmatprep.subr.mxu0 %v1766
        %2562 = vmatpush2.msra.mxu0 %v1765
        %2563 = vmatprep.subr.mxu0 %v1753
        %2564 = vmatpush2.msra.mxu0 %v1752
        %2565 = vmatprep.subr.mxu0 %v1740
        %2566 = vmatpush2.msra.mxu0 %v1739
        %2567 = vmatprep.subr.mxu0 %v1727
        %2568 = vmatpush2.msra.mxu0 %v1726
        %2569 = vmatprep.subr.mxu0 %v1714
        %2570 = vmatpush2.msra.mxu0 %v1713
        %2571 = vmatprep.subr.mxu0 %v1701
        %2572 = vmatpush2.msra.mxu0 %v1700
        %2573 = vmatprep.subr.mxu0 %v1688
        %2574 = vmatpush2.msra.mxu0 %v1687
        %2575 = vmatprep.subr.mxu0 %v1675
        %2576 = vmatpush2.msra.mxu0 %v1674
        %2577 = vmatprep.subr.mxu0 %v1662
        %2578 = vmatpush2.msra.mxu0 %v1661
        %2579 = vmatprep.subr.mxu0 %v1649
        %2580 = vmatpush2.msra.mxu0 %v1648
        %2581 = vmatprep.subr.mxu0 %v1636
        %2582 = vmatpush2.msra.mxu0 %v1635
        %2583 = vmatprep.subr.mxu0 %v1623
        %2584 = vmatpush2.msra.mxu0 %v1622
        %2585 = vmatprep.subr.mxu0 %v1610
        %2586 = vmatpush2.msra.mxu0 %v1609
        %2587 = vmatprep.subr.mxu0 %v1597
        %2588 = vmatpush2.msra.mxu0 %v1596
        %2589 = vmatprep.subr.mxu0 %v1584
        %2590 = vmatpush2.msra.mxu0 %v1583
        %2591 = vmatprep.mubr.f32.mxu0 %v537
        %2592 = vmatmul.mubr.f32.gmra.mxu0 %v536
        %v2593 = vpop.f32.mrf.mxu0
        %v2594 = vadd.f32 %v2523, %v2593
        %v2595 = vpop.f32.mrf.mxu0
        %v2596 = vadd.f32 %v2525, %v2595
        %2597 = vdwg.mxu0
        %2598 = vmatprep.subr.mxu0 0.0
        %2599 = vmatpush1.msra.mxu0 0.0
        %2600 = vmatprep.subr.mxu0 0.0
        %2601 = vmatpush1.msra.mxu0 0.0
        %2602 = vmatprep.subr.mxu0 0.0
        %2603 = vmatpush1.msra.mxu0 0.0
        %2604 = vmatprep.subr.mxu0 0.0
        %2605 = vmatpush1.msra.mxu0 0.0
        %2606 = vmatprep.subr.mxu0 0.0
        %2607 = vmatpush1.msra.mxu0 0.0
        %2608 = vmatprep.subr.mxu0 0.0
        %2609 = vmatpush1.msra.mxu0 0.0
        %2610 = vmatprep.subr.mxu0 0.0
        %2611 = vmatpush1.msra.mxu0 0.0
        %2612 = vmatprep.subr.mxu0 0.0
        %2613 = vmatpush1.msra.mxu0 0.0
        %2614 = vmatprep.subr.mxu0 0.0
        %2615 = vmatpush1.msra.mxu0 0.0
        %2616 = vmatprep.subr.mxu0 0.0
        %2617 = vmatpush1.msra.mxu0 0.0
        %2618 = vmatprep.subr.mxu0 0.0
        %2619 = vmatpush1.msra.mxu0 0.0
        %2620 = vmatprep.subr.mxu0 0.0
        %2621 = vmatpush1.msra.mxu0 0.0
        %2622 = vmatprep.subr.mxu0 0.0
        %2623 = vmatpush1.msra.mxu0 0.0
        %2624 = vmatprep.subr.mxu0 0.0
        %2625 = vmatpush1.msra.mxu0 0.0
        %2626 = vmatprep.subr.mxu0 %v1805
        %2627 = vmatpush1.msra.mxu0 %v1804
        %2628 = vmatprep.subr.mxu0 %v1792
        %2629 = vmatpush1.msra.mxu0 %v1791
        %2630 = vmatprep.subr.mxu0 0.0
        %2631 = vmatpush2.msra.mxu0 0.0
        %2632 = vmatprep.subr.mxu0 0.0
        %2633 = vmatpush2.msra.mxu0 0.0
        %2634 = vmatprep.subr.mxu0 0.0
        %2635 = vmatpush2.msra.mxu0 0.0
        %2636 = vmatprep.subr.mxu0 0.0
        %2637 = vmatpush2.msra.mxu0 0.0
        %2638 = vmatprep.subr.mxu0 0.0
        %2639 = vmatpush2.msra.mxu0 0.0
        %2640 = vmatprep.subr.mxu0 0.0
        %2641 = vmatpush2.msra.mxu0 0.0
        %2642 = vmatprep.subr.mxu0 0.0
        %2643 = vmatpush2.msra.mxu0 0.0
        %2644 = vmatprep.subr.mxu0 0.0
        %2645 = vmatpush2.msra.mxu0 0.0
        %2646 = vmatprep.subr.mxu0 0.0
        %2647 = vmatpush2.msra.mxu0 0.0
        %2648 = vmatprep.subr.mxu0 0.0
        %2649 = vmatpush2.msra.mxu0 0.0
        %2650 = vmatprep.subr.mxu0 0.0
        %2651 = vmatpush2.msra.mxu0 0.0
        %2652 = vmatprep.subr.mxu0 0.0
        %2653 = vmatpush2.msra.mxu0 0.0
        %2654 = vmatprep.subr.mxu0 0.0
        %2655 = vmatpush2.msra.mxu0 0.0
        %2656 = vmatprep.subr.mxu0 0.0
        %2657 = vmatpush2.msra.mxu0 0.0
        %2658 = vmatprep.subr.mxu0 0.0
        %2659 = vmatpush2.msra.mxu0 0.0
        %2660 = vmatprep.subr.mxu0 0.0
        %2661 = vmatpush2.msra.mxu0 0.0
        %2662 = vmatprep.mubr.f32.mxu0 0.0
        %2663 = vmatmul.mubr.f32.gmra.mxu0 %v1815
        %v2664 = vpop.f32.mrf.mxu0
        %v2665 = vadd.f32 %v2594, %v2664
        %v2666 = vpop.f32.mrf.mxu0
        %v2667 = vadd.f32 %v2596, %v2666
        %2668 = vdwg.mxu0
        %2669 = vmatprep.subr.mxu0 %v741
        %2670 = vmatpush1.msra.mxu0 %v740
        %2671 = vmatprep.subr.mxu0 %v728
        %2672 = vmatpush1.msra.mxu0 %v727
        %2673 = vmatprep.subr.mxu0 %v715
        %2674 = vmatpush1.msra.mxu0 %v714
        %2675 = vmatprep.subr.mxu0 %v702
        %2676 = vmatpush1.msra.mxu0 %v701
        %2677 = vmatprep.subr.mxu0 %v689
        %2678 = vmatpush1.msra.mxu0 %v688
        %2679 = vmatprep.subr.mxu0 %v676
        %2680 = vmatpush1.msra.mxu0 %v675
        %2681 = vmatprep.subr.mxu0 %v663
        %2682 = vmatpush1.msra.mxu0 %v662
        %2683 = vmatprep.subr.mxu0 %v650
        %2684 = vmatpush1.msra.mxu0 %v649
        %2685 = vmatprep.subr.mxu0 %v637
        %2686 = vmatpush1.msra.mxu0 %v636
        %2687 = vmatprep.subr.mxu0 %v624
        %2688 = vmatpush1.msra.mxu0 %v623
        %2689 = vmatprep.subr.mxu0 %v611
        %2690 = vmatpush1.msra.mxu0 %v610
        %2691 = vmatprep.subr.mxu0 %v598
        %2692 = vmatpush1.msra.mxu0 %v597
        %2693 = vmatprep.subr.mxu0 %v585
        %2694 = vmatpush1.msra.mxu0 %v584
        %2695 = vmatprep.subr.mxu0 %v572
        %2696 = vmatpush1.msra.mxu0 %v571
        %2697 = vmatprep.subr.mxu0 %v559
        %2698 = vmatpush1.msra.mxu0 %v558
        %2699 = vmatprep.subr.mxu0 %v546
        %2700 = vmatpush1.msra.mxu0 %v545
        %2701 = vmatprep.subr.mxu0 %v949
        %2702 = vmatpush2.msra.mxu0 %v948
        %2703 = vmatprep.subr.mxu0 %v936
        %2704 = vmatpush2.msra.mxu0 %v935
        %2705 = vmatprep.subr.mxu0 %v923
        %2706 = vmatpush2.msra.mxu0 %v922
        %2707 = vmatprep.subr.mxu0 %v910
        %2708 = vmatpush2.msra.mxu0 %v909
        %2709 = vmatprep.subr.mxu0 %v897
        %2710 = vmatpush2.msra.mxu0 %v896
        %2711 = vmatprep.subr.mxu0 %v884
        %2712 = vmatpush2.msra.mxu0 %v883
        %2713 = vmatprep.subr.mxu0 %v871
        %2714 = vmatpush2.msra.mxu0 %v870
        %2715 = vmatprep.subr.mxu0 %v858
        %2716 = vmatpush2.msra.mxu0 %v857
        %2717 = vmatprep.subr.mxu0 %v845
        %2718 = vmatpush2.msra.mxu0 %v844
        %2719 = vmatprep.subr.mxu0 %v832
        %2720 = vmatpush2.msra.mxu0 %v831
        %2721 = vmatprep.subr.mxu0 %v819
        %2722 = vmatpush2.msra.mxu0 %v818
        %2723 = vmatprep.subr.mxu0 %v806
        %2724 = vmatpush2.msra.mxu0 %v805
        %2725 = vmatprep.subr.mxu0 %v793
        %2726 = vmatpush2.msra.mxu0 %v792
        %2727 = vmatprep.subr.mxu0 %v780
        %2728 = vmatpush2.msra.mxu0 %v779
        %2729 = vmatprep.subr.mxu0 %v767
        %2730 = vmatpush2.msra.mxu0 %v766
        %2731 = vmatprep.subr.mxu0 %v754
        %2732 = vmatpush2.msra.mxu0 %v753
        %2733 = vmatprep.mubr.f32.mxu0 %v533
        %2734 = vmatmul.mubr.f32.gmra.mxu0 %v532
        %v2735 = vpop.f32.mrf.mxu0
        %v2736 = vadd.f32 0.0, %v2735
        %v2737 = vpop.f32.mrf.mxu0
        %v2738 = vadd.f32 0.0, %v2737
        %2739 = vdwg.mxu0
        %2740 = vmatprep.subr.mxu0 %v1157
        %2741 = vmatpush1.msra.mxu0 %v1156
        %2742 = vmatprep.subr.mxu0 %v1144
        %2743 = vmatpush1.msra.mxu0 %v1143
        %2744 = vmatprep.subr.mxu0 %v1131
        %2745 = vmatpush1.msra.mxu0 %v1130
        %2746 = vmatprep.subr.mxu0 %v1118
        %2747 = vmatpush1.msra.mxu0 %v1117
        %2748 = vmatprep.subr.mxu0 %v1105
        %2749 = vmatpush1.msra.mxu0 %v1104
        %2750 = vmatprep.subr.mxu0 %v1092
        %2751 = vmatpush1.msra.mxu0 %v1091
        %2752 = vmatprep.subr.mxu0 %v1079
        %2753 = vmatpush1.msra.mxu0 %v1078
        %2754 = vmatprep.subr.mxu0 %v1066
        %2755 = vmatpush1.msra.mxu0 %v1065
        %2756 = vmatprep.subr.mxu0 %v1053
        %2757 = vmatpush1.msra.mxu0 %v1052
        %2758 = vmatprep.subr.mxu0 %v1040
        %2759 = vmatpush1.msra.mxu0 %v1039
        %2760 = vmatprep.subr.mxu0 %v1027
        %2761 = vmatpush1.msra.mxu0 %v1026
        %2762 = vmatprep.subr.mxu0 %v1014
        %2763 = vmatpush1.msra.mxu0 %v1013
        %2764 = vmatprep.subr.mxu0 %v1001
        %2765 = vmatpush1.msra.mxu0 %v1000
        %2766 = vmatprep.subr.mxu0 %v988
        %2767 = vmatpush1.msra.mxu0 %v987
        %2768 = vmatprep.subr.mxu0 %v975
        %2769 = vmatpush1.msra.mxu0 %v974
        %2770 = vmatprep.subr.mxu0 %v962
        %2771 = vmatpush1.msra.mxu0 %v961
        %2772 = vmatprep.subr.mxu0 %v1365
        %2773 = vmatpush2.msra.mxu0 %v1364
        %2774 = vmatprep.subr.mxu0 %v1352
        %2775 = vmatpush2.msra.mxu0 %v1351
        %2776 = vmatprep.subr.mxu0 %v1339
        %2777 = vmatpush2.msra.mxu0 %v1338
        %2778 = vmatprep.subr.mxu0 %v1326
        %2779 = vmatpush2.msra.mxu0 %v1325
        %2780 = vmatprep.subr.mxu0 %v1313
        %2781 = vmatpush2.msra.mxu0 %v1312
        %2782 = vmatprep.subr.mxu0 %v1300
        %2783 = vmatpush2.msra.mxu0 %v1299
        %2784 = vmatprep.subr.mxu0 %v1287
        %2785 = vmatpush2.msra.mxu0 %v1286
        %2786 = vmatprep.subr.mxu0 %v1274
        %2787 = vmatpush2.msra.mxu0 %v1273
        %2788 = vmatprep.subr.mxu0 %v1261
        %2789 = vmatpush2.msra.mxu0 %v1260
        %2790 = vmatprep.subr.mxu0 %v1248
        %2791 = vmatpush2.msra.mxu0 %v1247
        %2792 = vmatprep.subr.mxu0 %v1235
        %2793 = vmatpush2.msra.mxu0 %v1234
        %2794 = vmatprep.subr.mxu0 %v1222
        %2795 = vmatpush2.msra.mxu0 %v1221
        %2796 = vmatprep.subr.mxu0 %v1209
        %2797 = vmatpush2.msra.mxu0 %v1208
        %2798 = vmatprep.subr.mxu0 %v1196
        %2799 = vmatpush2.msra.mxu0 %v1195
        %2800 = vmatprep.subr.mxu0 %v1183
        %2801 = vmatpush2.msra.mxu0 %v1182
        %2802 = vmatprep.subr.mxu0 %v1170
        %2803 = vmatpush2.msra.mxu0 %v1169
        %2804 = vmatprep.mubr.f32.mxu0 %v535
        %2805 = vmatmul.mubr.f32.gmra.mxu0 %v534
        %v2806 = vpop.f32.mrf.mxu0
        %v2807 = vadd.f32 %v2736, %v2806
        %v2808 = vpop.f32.mrf.mxu0
        %v2809 = vadd.f32 %v2738, %v2808
        %2810 = vdwg.mxu0
        %2811 = vmatprep.subr.mxu0 %v1573
        %2812 = vmatpush1.msra.mxu0 %v1572
        %2813 = vmatprep.subr.mxu0 %v1560
        %2814 = vmatpush1.msra.mxu0 %v1559
        %2815 = vmatprep.subr.mxu0 %v1547
        %2816 = vmatpush1.msra.mxu0 %v1546
        %2817 = vmatprep.subr.mxu0 %v1534
        %2818 = vmatpush1.msra.mxu0 %v1533
        %2819 = vmatprep.subr.mxu0 %v1521
        %2820 = vmatpush1.msra.mxu0 %v1520
        %2821 = vmatprep.subr.mxu0 %v1508
        %2822 = vmatpush1.msra.mxu0 %v1507
        %2823 = vmatprep.subr.mxu0 %v1495
        %2824 = vmatpush1.msra.mxu0 %v1494
        %2825 = vmatprep.subr.mxu0 %v1482
        %2826 = vmatpush1.msra.mxu0 %v1481
        %2827 = vmatprep.subr.mxu0 %v1469
        %2828 = vmatpush1.msra.mxu0 %v1468
        %2829 = vmatprep.subr.mxu0 %v1456
        %2830 = vmatpush1.msra.mxu0 %v1455
        %2831 = vmatprep.subr.mxu0 %v1443
        %2832 = vmatpush1.msra.mxu0 %v1442
        %2833 = vmatprep.subr.mxu0 %v1430
        %2834 = vmatpush1.msra.mxu0 %v1429
        %2835 = vmatprep.subr.mxu0 %v1417
        %2836 = vmatpush1.msra.mxu0 %v1416
        %2837 = vmatprep.subr.mxu0 %v1404
        %2838 = vmatpush1.msra.mxu0 %v1403
        %2839 = vmatprep.subr.mxu0 %v1391
        %2840 = vmatpush1.msra.mxu0 %v1390
        %2841 = vmatprep.subr.mxu0 %v1378
        %2842 = vmatpush1.msra.mxu0 %v1377
        %2843 = vmatprep.subr.mxu0 %v1781
        %2844 = vmatpush2.msra.mxu0 %v1780
        %2845 = vmatprep.subr.mxu0 %v1768
        %2846 = vmatpush2.msra.mxu0 %v1767
        %2847 = vmatprep.subr.mxu0 %v1755
        %2848 = vmatpush2.msra.mxu0 %v1754
        %2849 = vmatprep.subr.mxu0 %v1742
        %2850 = vmatpush2.msra.mxu0 %v1741
        %2851 = vmatprep.subr.mxu0 %v1729
        %2852 = vmatpush2.msra.mxu0 %v1728
        %2853 = vmatprep.subr.mxu0 %v1716
        %2854 = vmatpush2.msra.mxu0 %v1715
        %2855 = vmatprep.subr.mxu0 %v1703
        %2856 = vmatpush2.msra.mxu0 %v1702
        %2857 = vmatprep.subr.mxu0 %v1690
        %2858 = vmatpush2.msra.mxu0 %v1689
        %2859 = vmatprep.subr.mxu0 %v1677
        %2860 = vmatpush2.msra.mxu0 %v1676
        %2861 = vmatprep.subr.mxu0 %v1664
        %2862 = vmatpush2.msra.mxu0 %v1663
        %2863 = vmatprep.subr.mxu0 %v1651
        %2864 = vmatpush2.msra.mxu0 %v1650
        %2865 = vmatprep.subr.mxu0 %v1638
        %2866 = vmatpush2.msra.mxu0 %v1637
        %2867 = vmatprep.subr.mxu0 %v1625
        %2868 = vmatpush2.msra.mxu0 %v1624
        %2869 = vmatprep.subr.mxu0 %v1612
        %2870 = vmatpush2.msra.mxu0 %v1611
        %2871 = vmatprep.subr.mxu0 %v1599
        %2872 = vmatpush2.msra.mxu0 %v1598
        %2873 = vmatprep.subr.mxu0 %v1586
        %2874 = vmatpush2.msra.mxu0 %v1585
        %2875 = vmatprep.mubr.f32.mxu0 %v537
        %2876 = vmatmul.mubr.f32.gmra.mxu0 %v536
        %v2877 = vpop.f32.mrf.mxu0
        %v2878 = vadd.f32 %v2807, %v2877
        %v2879 = vpop.f32.mrf.mxu0
        %v2880 = vadd.f32 %v2809, %v2879
        %2881 = vdwg.mxu0
        %2882 = vmatprep.subr.mxu0 0.0
        %2883 = vmatpush1.msra.mxu0 0.0
        %2884 = vmatprep.subr.mxu0 0.0
        %2885 = vmatpush1.msra.mxu0 0.0
        %2886 = vmatprep.subr.mxu0 0.0
        %2887 = vmatpush1.msra.mxu0 0.0
        %2888 = vmatprep.subr.mxu0 0.0
        %2889 = vmatpush1.msra.mxu0 0.0
        %2890 = vmatprep.subr.mxu0 0.0
        %2891 = vmatpush1.msra.mxu0 0.0
        %2892 = vmatprep.subr.mxu0 0.0
        %2893 = vmatpush1.msra.mxu0 0.0
        %2894 = vmatprep.subr.mxu0 0.0
        %2895 = vmatpush1.msra.mxu0 0.0
        %2896 = vmatprep.subr.mxu0 0.0
        %2897 = vmatpush1.msra.mxu0 0.0
        %2898 = vmatprep.subr.mxu0 0.0
        %2899 = vmatpush1.msra.mxu0 0.0
        %2900 = vmatprep.subr.mxu0 0.0
        %2901 = vmatpush1.msra.mxu0 0.0
        %2902 = vmatprep.subr.mxu0 0.0
        %2903 = vmatpush1.msra.mxu0 0.0
        %2904 = vmatprep.subr.mxu0 0.0
        %2905 = vmatpush1.msra.mxu0 0.0
        %2906 = vmatprep.subr.mxu0 0.0
        %2907 = vmatpush1.msra.mxu0 0.0
        %2908 = vmatprep.subr.mxu0 0.0
        %2909 = vmatpush1.msra.mxu0 0.0
        %2910 = vmatprep.subr.mxu0 %v1807
        %2911 = vmatpush1.msra.mxu0 %v1806
        %2912 = vmatprep.subr.mxu0 %v1794
        %2913 = vmatpush1.msra.mxu0 %v1793
        %2914 = vmatprep.subr.mxu0 0.0
        %2915 = vmatpush2.msra.mxu0 0.0
        %2916 = vmatprep.subr.mxu0 0.0
        %2917 = vmatpush2.msra.mxu0 0.0
        %2918 = vmatprep.subr.mxu0 0.0
        %2919 = vmatpush2.msra.mxu0 0.0
        %2920 = vmatprep.subr.mxu0 0.0
        %2921 = vmatpush2.msra.mxu0 0.0
        %2922 = vmatprep.subr.mxu0 0.0
        %2923 = vmatpush2.msra.mxu0 0.0
        %2924 = vmatprep.subr.mxu0 0.0
        %2925 = vmatpush2.msra.mxu0 0.0
        %2926 = vmatprep.subr.mxu0 0.0
        %2927 = vmatpush2.msra.mxu0 0.0
        %2928 = vmatprep.subr.mxu0 0.0
        %2929 = vmatpush2.msra.mxu0 0.0
        %2930 = vmatprep.subr.mxu0 0.0
        %2931 = vmatpush2.msra.mxu0 0.0
        %2932 = vmatprep.subr.mxu0 0.0
        %2933 = vmatpush2.msra.mxu0 0.0
        %2934 = vmatprep.subr.mxu0 0.0
        %2935 = vmatpush2.msra.mxu0 0.0
        %2936 = vmatprep.subr.mxu0 0.0
        %2937 = vmatpush2.msra.mxu0 0.0
        %2938 = vmatprep.subr.mxu0 0.0
        %2939 = vmatpush2.msra.mxu0 0.0
        %2940 = vmatprep.subr.mxu0 0.0
        %2941 = vmatpush2.msra.mxu0 0.0
        %2942 = vmatprep.subr.mxu0 0.0
        %2943 = vmatpush2.msra.mxu0 0.0
        %2944 = vmatprep.subr.mxu0 0.0
        %2945 = vmatpush2.msra.mxu0 0.0
        %2946 = vmatprep.mubr.f32.mxu0 0.0
        %2947 = vmatmul.mubr.f32.gmra.mxu0 %v1815
        %v2948 = vpop.f32.mrf.mxu0
        %v2949 = vadd.f32 %v2878, %v2948
        %v2950 = vpop.f32.mrf.mxu0
        %v2951 = vadd.f32 %v2880, %v2950
        %2952 = vdwg.mxu0
        %2953 = vmatprep.subr.mxu0 %v743
        %2954 = vmatpush1.msra.mxu0 %v742
        %2955 = vmatprep.subr.mxu0 %v730
        %2956 = vmatpush1.msra.mxu0 %v729
        %2957 = vmatprep.subr.mxu0 %v717
        %2958 = vmatpush1.msra.mxu0 %v716
        %2959 = vmatprep.subr.mxu0 %v704
        %2960 = vmatpush1.msra.mxu0 %v703
        %2961 = vmatprep.subr.mxu0 %v691
        %2962 = vmatpush1.msra.mxu0 %v690
        %2963 = vmatprep.subr.mxu0 %v678
        %2964 = vmatpush1.msra.mxu0 %v677
        %2965 = vmatprep.subr.mxu0 %v665
        %2966 = vmatpush1.msra.mxu0 %v664
        %2967 = vmatprep.subr.mxu0 %v652
        %2968 = vmatpush1.msra.mxu0 %v651
        %2969 = vmatprep.subr.mxu0 %v639
        %2970 = vmatpush1.msra.mxu0 %v638
        %2971 = vmatprep.subr.mxu0 %v626
        %2972 = vmatpush1.msra.mxu0 %v625
        %2973 = vmatprep.subr.mxu0 %v613
        %2974 = vmatpush1.msra.mxu0 %v612
        %2975 = vmatprep.subr.mxu0 %v600
        %2976 = vmatpush1.msra.mxu0 %v599
        %2977 = vmatprep.subr.mxu0 %v587
        %2978 = vmatpush1.msra.mxu0 %v586
        %2979 = vmatprep.subr.mxu0 %v574
        %2980 = vmatpush1.msra.mxu0 %v573
        %2981 = vmatprep.subr.mxu0 %v561
        %2982 = vmatpush1.msra.mxu0 %v560
        %2983 = vmatprep.subr.mxu0 %v548
        %2984 = vmatpush1.msra.mxu0 %v547
        %2985 = vmatprep.subr.mxu0 %v951
        %2986 = vmatpush2.msra.mxu0 %v950
        %2987 = vmatprep.subr.mxu0 %v938
        %2988 = vmatpush2.msra.mxu0 %v937
        %2989 = vmatprep.subr.mxu0 %v925
        %2990 = vmatpush2.msra.mxu0 %v924
        %2991 = vmatprep.subr.mxu0 %v912
        %2992 = vmatpush2.msra.mxu0 %v911
        %2993 = vmatprep.subr.mxu0 %v899
        %2994 = vmatpush2.msra.mxu0 %v898
        %2995 = vmatprep.subr.mxu0 %v886
        %2996 = vmatpush2.msra.mxu0 %v885
        %2997 = vmatprep.subr.mxu0 %v873
        %2998 = vmatpush2.msra.mxu0 %v872
        %2999 = vmatprep.subr.mxu0 %v860
        %3000 = vmatpush2.msra.mxu0 %v859
        %3001 = vmatprep.subr.mxu0 %v847
        %3002 = vmatpush2.msra.mxu0 %v846
        %3003 = vmatprep.subr.mxu0 %v834
        %3004 = vmatpush2.msra.mxu0 %v833
        %3005 = vmatprep.subr.mxu0 %v821
        %3006 = vmatpush2.msra.mxu0 %v820
        %3007 = vmatprep.subr.mxu0 %v808
        %3008 = vmatpush2.msra.mxu0 %v807
        %3009 = vmatprep.subr.mxu0 %v795
        %3010 = vmatpush2.msra.mxu0 %v794
        %3011 = vmatprep.subr.mxu0 %v782
        %3012 = vmatpush2.msra.mxu0 %v781
        %3013 = vmatprep.subr.mxu0 %v769
        %3014 = vmatpush2.msra.mxu0 %v768
        %3015 = vmatprep.subr.mxu0 %v756
        %3016 = vmatpush2.msra.mxu0 %v755
        %3017 = vmatprep.mubr.f32.mxu0 %v533
        %3018 = vmatmul.mubr.f32.gmra.mxu0 %v532
        %v3019 = vpop.f32.mrf.mxu0
        %v3020 = vadd.f32 0.0, %v3019
        %v3021 = vpop.f32.mrf.mxu0
        %v3022 = vadd.f32 0.0, %v3021
        %3023 = vdwg.mxu0
        %3024 = vmatprep.subr.mxu0 %v1159
        %3025 = vmatpush1.msra.mxu0 %v1158
        %3026 = vmatprep.subr.mxu0 %v1146
        %3027 = vmatpush1.msra.mxu0 %v1145
        %3028 = vmatprep.subr.mxu0 %v1133
        %3029 = vmatpush1.msra.mxu0 %v1132
        %3030 = vmatprep.subr.mxu0 %v1120
        %3031 = vmatpush1.msra.mxu0 %v1119
        %3032 = vmatprep.subr.mxu0 %v1107
        %3033 = vmatpush1.msra.mxu0 %v1106
        %3034 = vmatprep.subr.mxu0 %v1094
        %3035 = vmatpush1.msra.mxu0 %v1093
        %3036 = vmatprep.subr.mxu0 %v1081
        %3037 = vmatpush1.msra.mxu0 %v1080
        %3038 = vmatprep.subr.mxu0 %v1068
        %3039 = vmatpush1.msra.mxu0 %v1067
        %3040 = vmatprep.subr.mxu0 %v1055
        %3041 = vmatpush1.msra.mxu0 %v1054
        %3042 = vmatprep.subr.mxu0 %v1042
        %3043 = vmatpush1.msra.mxu0 %v1041
        %3044 = vmatprep.subr.mxu0 %v1029
        %3045 = vmatpush1.msra.mxu0 %v1028
        %3046 = vmatprep.subr.mxu0 %v1016
        %3047 = vmatpush1.msra.mxu0 %v1015
        %3048 = vmatprep.subr.mxu0 %v1003
        %3049 = vmatpush1.msra.mxu0 %v1002
        %3050 = vmatprep.subr.mxu0 %v990
        %3051 = vmatpush1.msra.mxu0 %v989
        %3052 = vmatprep.subr.mxu0 %v977
        %3053 = vmatpush1.msra.mxu0 %v976
        %3054 = vmatprep.subr.mxu0 %v964
        %3055 = vmatpush1.msra.mxu0 %v963
        %3056 = vmatprep.subr.mxu0 %v1367
        %3057 = vmatpush2.msra.mxu0 %v1366
        %3058 = vmatprep.subr.mxu0 %v1354
        %3059 = vmatpush2.msra.mxu0 %v1353
        %3060 = vmatprep.subr.mxu0 %v1341
        %3061 = vmatpush2.msra.mxu0 %v1340
        %3062 = vmatprep.subr.mxu0 %v1328
        %3063 = vmatpush2.msra.mxu0 %v1327
        %3064 = vmatprep.subr.mxu0 %v1315
        %3065 = vmatpush2.msra.mxu0 %v1314
        %3066 = vmatprep.subr.mxu0 %v1302
        %3067 = vmatpush2.msra.mxu0 %v1301
        %3068 = vmatprep.subr.mxu0 %v1289
        %3069 = vmatpush2.msra.mxu0 %v1288
        %3070 = vmatprep.subr.mxu0 %v1276
        %3071 = vmatpush2.msra.mxu0 %v1275
        %3072 = vmatprep.subr.mxu0 %v1263
        %3073 = vmatpush2.msra.mxu0 %v1262
        %3074 = vmatprep.subr.mxu0 %v1250
        %3075 = vmatpush2.msra.mxu0 %v1249
        %3076 = vmatprep.subr.mxu0 %v1237
        %3077 = vmatpush2.msra.mxu0 %v1236
        %3078 = vmatprep.subr.mxu0 %v1224
        %3079 = vmatpush2.msra.mxu0 %v1223
        %3080 = vmatprep.subr.mxu0 %v1211
        %3081 = vmatpush2.msra.mxu0 %v1210
        %3082 = vmatprep.subr.mxu0 %v1198
        %3083 = vmatpush2.msra.mxu0 %v1197
        %3084 = vmatprep.subr.mxu0 %v1185
        %3085 = vmatpush2.msra.mxu0 %v1184
        %3086 = vmatprep.subr.mxu0 %v1172
        %3087 = vmatpush2.msra.mxu0 %v1171
        %3088 = vmatprep.mubr.f32.mxu0 %v535
        %3089 = vmatmul.mubr.f32.gmra.mxu0 %v534
        %v3090 = vpop.f32.mrf.mxu0
        %v3091 = vadd.f32 %v3020, %v3090
        %v3092 = vpop.f32.mrf.mxu0
        %v3093 = vadd.f32 %v3022, %v3092
        %3094 = vdwg.mxu0
        %3095 = vmatprep.subr.mxu0 %v1575
        %3096 = vmatpush1.msra.mxu0 %v1574
        %3097 = vmatprep.subr.mxu0 %v1562
        %3098 = vmatpush1.msra.mxu0 %v1561
        %3099 = vmatprep.subr.mxu0 %v1549
        %3100 = vmatpush1.msra.mxu0 %v1548
        %3101 = vmatprep.subr.mxu0 %v1536
        %3102 = vmatpush1.msra.mxu0 %v1535
        %3103 = vmatprep.subr.mxu0 %v1523
        %3104 = vmatpush1.msra.mxu0 %v1522
        %3105 = vmatprep.subr.mxu0 %v1510
        %3106 = vmatpush1.msra.mxu0 %v1509
        %3107 = vmatprep.subr.mxu0 %v1497
        %3108 = vmatpush1.msra.mxu0 %v1496
        %3109 = vmatprep.subr.mxu0 %v1484
        %3110 = vmatpush1.msra.mxu0 %v1483
        %3111 = vmatprep.subr.mxu0 %v1471
        %3112 = vmatpush1.msra.mxu0 %v1470
        %3113 = vmatprep.subr.mxu0 %v1458
        %3114 = vmatpush1.msra.mxu0 %v1457
        %3115 = vmatprep.subr.mxu0 %v1445
        %3116 = vmatpush1.msra.mxu0 %v1444
        %3117 = vmatprep.subr.mxu0 %v1432
        %3118 = vmatpush1.msra.mxu0 %v1431
        %3119 = vmatprep.subr.mxu0 %v1419
        %3120 = vmatpush1.msra.mxu0 %v1418
        %3121 = vmatprep.subr.mxu0 %v1406
        %3122 = vmatpush1.msra.mxu0 %v1405
        %3123 = vmatprep.subr.mxu0 %v1393
        %3124 = vmatpush1.msra.mxu0 %v1392
        %3125 = vmatprep.subr.mxu0 %v1380
        %3126 = vmatpush1.msra.mxu0 %v1379
        %3127 = vmatprep.subr.mxu0 %v1783
        %3128 = vmatpush2.msra.mxu0 %v1782
        %3129 = vmatprep.subr.mxu0 %v1770
        %3130 = vmatpush2.msra.mxu0 %v1769
        %3131 = vmatprep.subr.mxu0 %v1757
        %3132 = vmatpush2.msra.mxu0 %v1756
        %3133 = vmatprep.subr.mxu0 %v1744
        %3134 = vmatpush2.msra.mxu0 %v1743
        %3135 = vmatprep.subr.mxu0 %v1731
        %3136 = vmatpush2.msra.mxu0 %v1730
        %3137 = vmatprep.subr.mxu0 %v1718
        %3138 = vmatpush2.msra.mxu0 %v1717
        %3139 = vmatprep.subr.mxu0 %v1705
        %3140 = vmatpush2.msra.mxu0 %v1704
        %3141 = vmatprep.subr.mxu0 %v1692
        %3142 = vmatpush2.msra.mxu0 %v1691
        %3143 = vmatprep.subr.mxu0 %v1679
        %3144 = vmatpush2.msra.mxu0 %v1678
        %3145 = vmatprep.subr.mxu0 %v1666
        %3146 = vmatpush2.msra.mxu0 %v1665
        %3147 = vmatprep.subr.mxu0 %v1653
        %3148 = vmatpush2.msra.mxu0 %v1652
        %3149 = vmatprep.subr.mxu0 %v1640
        %3150 = vmatpush2.msra.mxu0 %v1639
        %3151 = vmatprep.subr.mxu0 %v1627
        %3152 = vmatpush2.msra.mxu0 %v1626
        %3153 = vmatprep.subr.mxu0 %v1614
        %3154 = vmatpush2.msra.mxu0 %v1613
        %3155 = vmatprep.subr.mxu0 %v1601
        %3156 = vmatpush2.msra.mxu0 %v1600
        %3157 = vmatprep.subr.mxu0 %v1588
        %3158 = vmatpush2.msra.mxu0 %v1587
        %3159 = vmatprep.mubr.f32.mxu0 %v537
        %3160 = vmatmul.mubr.f32.gmra.mxu0 %v536
        %v3161 = vpop.f32.mrf.mxu0
        %v3162 = vadd.f32 %v3091, %v3161
        %v3163 = vpop.f32.mrf.mxu0
        %v3164 = vadd.f32 %v3093, %v3163
        %3165 = vdwg.mxu0
        %3166 = vmatprep.subr.mxu0 0.0
        %3167 = vmatpush1.msra.mxu0 0.0
        %3168 = vmatprep.subr.mxu0 0.0
        %3169 = vmatpush1.msra.mxu0 0.0
        %3170 = vmatprep.subr.mxu0 0.0
        %3171 = vmatpush1.msra.mxu0 0.0
        %3172 = vmatprep.subr.mxu0 0.0
        %3173 = vmatpush1.msra.mxu0 0.0
        %3174 = vmatprep.subr.mxu0 0.0
        %3175 = vmatpush1.msra.mxu0 0.0
        %3176 = vmatprep.subr.mxu0 0.0
        %3177 = vmatpush1.msra.mxu0 0.0
        %3178 = vmatprep.subr.mxu0 0.0
        %3179 = vmatpush1.msra.mxu0 0.0
        %3180 = vmatprep.subr.mxu0 0.0
        %3181 = vmatpush1.msra.mxu0 0.0
        %3182 = vmatprep.subr.mxu0 0.0
        %3183 = vmatpush1.msra.mxu0 0.0
        %3184 = vmatprep.subr.mxu0 0.0
        %3185 = vmatpush1.msra.mxu0 0.0
        %3186 = vmatprep.subr.mxu0 0.0
        %3187 = vmatpush1.msra.mxu0 0.0
        %3188 = vmatprep.subr.mxu0 0.0
        %3189 = vmatpush1.msra.mxu0 0.0
        %3190 = vmatprep.subr.mxu0 0.0
        %3191 = vmatpush1.msra.mxu0 0.0
        %3192 = vmatprep.subr.mxu0 0.0
        %3193 = vmatpush1.msra.mxu0 0.0
        %3194 = vmatprep.subr.mxu0 %v1809
        %3195 = vmatpush1.msra.mxu0 %v1808
        %3196 = vmatprep.subr.mxu0 %v1796
        %3197 = vmatpush1.msra.mxu0 %v1795
        %3198 = vmatprep.subr.mxu0 0.0
        %3199 = vmatpush2.msra.mxu0 0.0
        %3200 = vmatprep.subr.mxu0 0.0
        %3201 = vmatpush2.msra.mxu0 0.0
        %3202 = vmatprep.subr.mxu0 0.0
        %3203 = vmatpush2.msra.mxu0 0.0
        %3204 = vmatprep.subr.mxu0 0.0
        %3205 = vmatpush2.msra.mxu0 0.0
        %3206 = vmatprep.subr.mxu0 0.0
        %3207 = vmatpush2.msra.mxu0 0.0
        %3208 = vmatprep.subr.mxu0 0.0
        %3209 = vmatpush2.msra.mxu0 0.0
        %3210 = vmatprep.subr.mxu0 0.0
        %3211 = vmatpush2.msra.mxu0 0.0
        %3212 = vmatprep.subr.mxu0 0.0
        %3213 = vmatpush2.msra.mxu0 0.0
        %3214 = vmatprep.subr.mxu0 0.0
        %3215 = vmatpush2.msra.mxu0 0.0
        %3216 = vmatprep.subr.mxu0 0.0
        %3217 = vmatpush2.msra.mxu0 0.0
        %3218 = vmatprep.subr.mxu0 0.0
        %3219 = vmatpush2.msra.mxu0 0.0
        %3220 = vmatprep.subr.mxu0 0.0
        %3221 = vmatpush2.msra.mxu0 0.0
        %3222 = vmatprep.subr.mxu0 0.0
        %3223 = vmatpush2.msra.mxu0 0.0
        %3224 = vmatprep.subr.mxu0 0.0
        %3225 = vmatpush2.msra.mxu0 0.0
        %3226 = vmatprep.subr.mxu0 0.0
        %3227 = vmatpush2.msra.mxu0 0.0
        %3228 = vmatprep.subr.mxu0 0.0
        %3229 = vmatpush2.msra.mxu0 0.0
        %3230 = vmatprep.mubr.f32.mxu0 0.0
        %3231 = vmatmul.mubr.f32.gmra.mxu0 %v1815
        %v3232 = vpop.f32.mrf.mxu0
        %v3233 = vadd.f32 %v3162, %v3232
        %v3234 = vpop.f32.mrf.mxu0
        %v3235 = vadd.f32 %v3164, %v3234
        %3236 = vdwg.mxu0
        %3237 = vmatprep.subr.mxu0 %v745
        %3238 = vmatpush1.msra.mxu0 %v744
        %3239 = vmatprep.subr.mxu0 %v732
        %3240 = vmatpush1.msra.mxu0 %v731
        %3241 = vmatprep.subr.mxu0 %v719
        %3242 = vmatpush1.msra.mxu0 %v718
        %3243 = vmatprep.subr.mxu0 %v706
        %3244 = vmatpush1.msra.mxu0 %v705
        %3245 = vmatprep.subr.mxu0 %v693
        %3246 = vmatpush1.msra.mxu0 %v692
        %3247 = vmatprep.subr.mxu0 %v680
        %3248 = vmatpush1.msra.mxu0 %v679
        %3249 = vmatprep.subr.mxu0 %v667
        %3250 = vmatpush1.msra.mxu0 %v666
        %3251 = vmatprep.subr.mxu0 %v654
        %3252 = vmatpush1.msra.mxu0 %v653
        %3253 = vmatprep.subr.mxu0 %v641
        %3254 = vmatpush1.msra.mxu0 %v640
        %3255 = vmatprep.subr.mxu0 %v628
        %3256 = vmatpush1.msra.mxu0 %v627
        %3257 = vmatprep.subr.mxu0 %v615
        %3258 = vmatpush1.msra.mxu0 %v614
        %3259 = vmatprep.subr.mxu0 %v602
        %3260 = vmatpush1.msra.mxu0 %v601
        %3261 = vmatprep.subr.mxu0 %v589
        %3262 = vmatpush1.msra.mxu0 %v588
        %3263 = vmatprep.subr.mxu0 %v576
        %3264 = vmatpush1.msra.mxu0 %v575
        %3265 = vmatprep.subr.mxu0 %v563
        %3266 = vmatpush1.msra.mxu0 %v562
        %3267 = vmatprep.subr.mxu0 %v550
        %3268 = vmatpush1.msra.mxu0 %v549
        %3269 = vmatprep.subr.mxu0 %v953
        %3270 = vmatpush2.msra.mxu0 %v952
        %3271 = vmatprep.subr.mxu0 %v940
        %3272 = vmatpush2.msra.mxu0 %v939
        %3273 = vmatprep.subr.mxu0 %v927
        %3274 = vmatpush2.msra.mxu0 %v926
        %3275 = vmatprep.subr.mxu0 %v914
        %3276 = vmatpush2.msra.mxu0 %v913
        %3277 = vmatprep.subr.mxu0 %v901
        %3278 = vmatpush2.msra.mxu0 %v900
        %3279 = vmatprep.subr.mxu0 %v888
        %3280 = vmatpush2.msra.mxu0 %v887
        %3281 = vmatprep.subr.mxu0 %v875
        %3282 = vmatpush2.msra.mxu0 %v874
        %3283 = vmatprep.subr.mxu0 %v862
        %3284 = vmatpush2.msra.mxu0 %v861
        %3285 = vmatprep.subr.mxu0 %v849
        %3286 = vmatpush2.msra.mxu0 %v848
        %3287 = vmatprep.subr.mxu0 %v836
        %3288 = vmatpush2.msra.mxu0 %v835
        %3289 = vmatprep.subr.mxu0 %v823
        %3290 = vmatpush2.msra.mxu0 %v822
        %3291 = vmatprep.subr.mxu0 %v810
        %3292 = vmatpush2.msra.mxu0 %v809
        %3293 = vmatprep.subr.mxu0 %v797
        %3294 = vmatpush2.msra.mxu0 %v796
        %3295 = vmatprep.subr.mxu0 %v784
        %3296 = vmatpush2.msra.mxu0 %v783
        %3297 = vmatprep.subr.mxu0 %v771
        %3298 = vmatpush2.msra.mxu0 %v770
        %3299 = vmatprep.subr.mxu0 %v758
        %3300 = vmatpush2.msra.mxu0 %v757
        %3301 = vmatprep.mubr.f32.mxu0 %v533
        %3302 = vmatmul.mubr.f32.gmra.mxu0 %v532
        %v3303 = vpop.f32.mrf.mxu0
        %v3304 = vadd.f32 0.0, %v3303
        %v3305 = vpop.f32.mrf.mxu0
        %v3306 = vadd.f32 0.0, %v3305
        %3307 = vdwg.mxu0
        %3308 = vmatprep.subr.mxu0 %v1161
        %3309 = vmatpush1.msra.mxu0 %v1160
        %3310 = vmatprep.subr.mxu0 %v1148
        %3311 = vmatpush1.msra.mxu0 %v1147
        %3312 = vmatprep.subr.mxu0 %v1135
        %3313 = vmatpush1.msra.mxu0 %v1134
        %3314 = vmatprep.subr.mxu0 %v1122
        %3315 = vmatpush1.msra.mxu0 %v1121
        %3316 = vmatprep.subr.mxu0 %v1109
        %3317 = vmatpush1.msra.mxu0 %v1108
        %3318 = vmatprep.subr.mxu0 %v1096
        %3319 = vmatpush1.msra.mxu0 %v1095
        %3320 = vmatprep.subr.mxu0 %v1083
        %3321 = vmatpush1.msra.mxu0 %v1082
        %3322 = vmatprep.subr.mxu0 %v1070
        %3323 = vmatpush1.msra.mxu0 %v1069
        %3324 = vmatprep.subr.mxu0 %v1057
        %3325 = vmatpush1.msra.mxu0 %v1056
        %3326 = vmatprep.subr.mxu0 %v1044
        %3327 = vmatpush1.msra.mxu0 %v1043
        %3328 = vmatprep.subr.mxu0 %v1031
        %3329 = vmatpush1.msra.mxu0 %v1030
        %3330 = vmatprep.subr.mxu0 %v1018
        %3331 = vmatpush1.msra.mxu0 %v1017
        %3332 = vmatprep.subr.mxu0 %v1005
        %3333 = vmatpush1.msra.mxu0 %v1004
        %3334 = vmatprep.subr.mxu0 %v992
        %3335 = vmatpush1.msra.mxu0 %v991
        %3336 = vmatprep.subr.mxu0 %v979
        %3337 = vmatpush1.msra.mxu0 %v978
        %3338 = vmatprep.subr.mxu0 %v966
        %3339 = vmatpush1.msra.mxu0 %v965
        %3340 = vmatprep.subr.mxu0 %v1369
        %3341 = vmatpush2.msra.mxu0 %v1368
        %3342 = vmatprep.subr.mxu0 %v1356
        %3343 = vmatpush2.msra.mxu0 %v1355
        %3344 = vmatprep.subr.mxu0 %v1343
        %3345 = vmatpush2.msra.mxu0 %v1342
        %3346 = vmatprep.subr.mxu0 %v1330
        %3347 = vmatpush2.msra.mxu0 %v1329
        %3348 = vmatprep.subr.mxu0 %v1317
        %3349 = vmatpush2.msra.mxu0 %v1316
        %3350 = vmatprep.subr.mxu0 %v1304
        %3351 = vmatpush2.msra.mxu0 %v1303
        %3352 = vmatprep.subr.mxu0 %v1291
        %3353 = vmatpush2.msra.mxu0 %v1290
        %3354 = vmatprep.subr.mxu0 %v1278
        %3355 = vmatpush2.msra.mxu0 %v1277
        %3356 = vmatprep.subr.mxu0 %v1265
        %3357 = vmatpush2.msra.mxu0 %v1264
        %3358 = vmatprep.subr.mxu0 %v1252
        %3359 = vmatpush2.msra.mxu0 %v1251
        %3360 = vmatprep.subr.mxu0 %v1239
        %3361 = vmatpush2.msra.mxu0 %v1238
        %3362 = vmatprep.subr.mxu0 %v1226
        %3363 = vmatpush2.msra.mxu0 %v1225
        %3364 = vmatprep.subr.mxu0 %v1213
        %3365 = vmatpush2.msra.mxu0 %v1212
        %3366 = vmatprep.subr.mxu0 %v1200
        %3367 = vmatpush2.msra.mxu0 %v1199
        %3368 = vmatprep.subr.mxu0 %v1187
        %3369 = vmatpush2.msra.mxu0 %v1186
        %3370 = vmatprep.subr.mxu0 %v1174
        %3371 = vmatpush2.msra.mxu0 %v1173
        %3372 = vmatprep.mubr.f32.mxu0 %v535
        %3373 = vmatmul.mubr.f32.gmra.mxu0 %v534
        %v3374 = vpop.f32.mrf.mxu0
        %v3375 = vadd.f32 %v3304, %v3374
        %v3376 = vpop.f32.mrf.mxu0
        %v3377 = vadd.f32 %v3306, %v3376
        %3378 = vdwg.mxu0
        %3379 = vmatprep.subr.mxu0 %v1577
        %3380 = vmatpush1.msra.mxu0 %v1576
        %3381 = vmatprep.subr.mxu0 %v1564
        %3382 = vmatpush1.msra.mxu0 %v1563
        %3383 = vmatprep.subr.mxu0 %v1551
        %3384 = vmatpush1.msra.mxu0 %v1550
        %3385 = vmatprep.subr.mxu0 %v1538
        %3386 = vmatpush1.msra.mxu0 %v1537
        %3387 = vmatprep.subr.mxu0 %v1525
        %3388 = vmatpush1.msra.mxu0 %v1524
        %3389 = vmatprep.subr.mxu0 %v1512
        %3390 = vmatpush1.msra.mxu0 %v1511
        %3391 = vmatprep.subr.mxu0 %v1499
        %3392 = vmatpush1.msra.mxu0 %v1498
        %3393 = vmatprep.subr.mxu0 %v1486
        %3394 = vmatpush1.msra.mxu0 %v1485
        %3395 = vmatprep.subr.mxu0 %v1473
        %3396 = vmatpush1.msra.mxu0 %v1472
        %3397 = vmatprep.subr.mxu0 %v1460
        %3398 = vmatpush1.msra.mxu0 %v1459
        %3399 = vmatprep.subr.mxu0 %v1447
        %3400 = vmatpush1.msra.mxu0 %v1446
        %3401 = vmatprep.subr.mxu0 %v1434
        %3402 = vmatpush1.msra.mxu0 %v1433
        %3403 = vmatprep.subr.mxu0 %v1421
        %3404 = vmatpush1.msra.mxu0 %v1420
        %3405 = vmatprep.subr.mxu0 %v1408
        %3406 = vmatpush1.msra.mxu0 %v1407
        %3407 = vmatprep.subr.mxu0 %v1395
        %3408 = vmatpush1.msra.mxu0 %v1394
        %3409 = vmatprep.subr.mxu0 %v1382
        %3410 = vmatpush1.msra.mxu0 %v1381
        %3411 = vmatprep.subr.mxu0 %v1785
        %3412 = vmatpush2.msra.mxu0 %v1784
        %3413 = vmatprep.subr.mxu0 %v1772
        %3414 = vmatpush2.msra.mxu0 %v1771
        %3415 = vmatprep.subr.mxu0 %v1759
        %3416 = vmatpush2.msra.mxu0 %v1758
        %3417 = vmatprep.subr.mxu0 %v1746
        %3418 = vmatpush2.msra.mxu0 %v1745
        %3419 = vmatprep.subr.mxu0 %v1733
        %3420 = vmatpush2.msra.mxu0 %v1732
        %3421 = vmatprep.subr.mxu0 %v1720
        %3422 = vmatpush2.msra.mxu0 %v1719
        %3423 = vmatprep.subr.mxu0 %v1707
        %3424 = vmatpush2.msra.mxu0 %v1706
        %3425 = vmatprep.subr.mxu0 %v1694
        %3426 = vmatpush2.msra.mxu0 %v1693
        %3427 = vmatprep.subr.mxu0 %v1681
        %3428 = vmatpush2.msra.mxu0 %v1680
        %3429 = vmatprep.subr.mxu0 %v1668
        %3430 = vmatpush2.msra.mxu0 %v1667
        %3431 = vmatprep.subr.mxu0 %v1655
        %3432 = vmatpush2.msra.mxu0 %v1654
        %3433 = vmatprep.subr.mxu0 %v1642
        %3434 = vmatpush2.msra.mxu0 %v1641
        %3435 = vmatprep.subr.mxu0 %v1629
        %3436 = vmatpush2.msra.mxu0 %v1628
        %3437 = vmatprep.subr.mxu0 %v1616
        %3438 = vmatpush2.msra.mxu0 %v1615
        %3439 = vmatprep.subr.mxu0 %v1603
        %3440 = vmatpush2.msra.mxu0 %v1602
        %3441 = vmatprep.subr.mxu0 %v1590
        %3442 = vmatpush2.msra.mxu0 %v1589
        %3443 = vmatprep.mubr.f32.mxu0 %v537
        %3444 = vmatmul.mubr.f32.gmra.mxu0 %v536
        %v3445 = vpop.f32.mrf.mxu0
        %v3446 = vadd.f32 %v3375, %v3445
        %v3447 = vpop.f32.mrf.mxu0
        %v3448 = vadd.f32 %v3377, %v3447
        %3449 = vdwg.mxu0
        %3450 = vmatprep.subr.mxu0 0.0
        %3451 = vmatpush1.msra.mxu0 0.0
        %3452 = vmatprep.subr.mxu0 0.0
        %3453 = vmatpush1.msra.mxu0 0.0
        %3454 = vmatprep.subr.mxu0 0.0
        %3455 = vmatpush1.msra.mxu0 0.0
        %3456 = vmatprep.subr.mxu0 0.0
        %3457 = vmatpush1.msra.mxu0 0.0
        %3458 = vmatprep.subr.mxu0 0.0
        %3459 = vmatpush1.msra.mxu0 0.0
        %3460 = vmatprep.subr.mxu0 0.0
        %3461 = vmatpush1.msra.mxu0 0.0
        %3462 = vmatprep.subr.mxu0 0.0
        %3463 = vmatpush1.msra.mxu0 0.0
        %3464 = vmatprep.subr.mxu0 0.0
        %3465 = vmatpush1.msra.mxu0 0.0
        %3466 = vmatprep.subr.mxu0 0.0
        %3467 = vmatpush1.msra.mxu0 0.0
        %3468 = vmatprep.subr.mxu0 0.0
        %3469 = vmatpush1.msra.mxu0 0.0
        %3470 = vmatprep.subr.mxu0 0.0
        %3471 = vmatpush1.msra.mxu0 0.0
        %3472 = vmatprep.subr.mxu0 0.0
        %3473 = vmatpush1.msra.mxu0 0.0
        %3474 = vmatprep.subr.mxu0 0.0
        %3475 = vmatpush1.msra.mxu0 0.0
        %3476 = vmatprep.subr.mxu0 0.0
        %3477 = vmatpush1.msra.mxu0 0.0
        %3478 = vmatprep.subr.mxu0 %v1811
        %3479 = vmatpush1.msra.mxu0 %v1810
        %3480 = vmatprep.subr.mxu0 %v1798
        %3481 = vmatpush1.msra.mxu0 %v1797
        %3482 = vmatprep.subr.mxu0 0.0
        %3483 = vmatpush2.msra.mxu0 0.0
        %3484 = vmatprep.subr.mxu0 0.0
        %3485 = vmatpush2.msra.mxu0 0.0
        %3486 = vmatprep.subr.mxu0 0.0
        %3487 = vmatpush2.msra.mxu0 0.0
        %3488 = vmatprep.subr.mxu0 0.0
        %3489 = vmatpush2.msra.mxu0 0.0
        %3490 = vmatprep.subr.mxu0 0.0
        %3491 = vmatpush2.msra.mxu0 0.0
        %3492 = vmatprep.subr.mxu0 0.0
        %3493 = vmatpush2.msra.mxu0 0.0
        %3494 = vmatprep.subr.mxu0 0.0
        %3495 = vmatpush2.msra.mxu0 0.0
        %3496 = vmatprep.subr.mxu0 0.0
        %3497 = vmatpush2.msra.mxu0 0.0
        %3498 = vmatprep.subr.mxu0 0.0
        %3499 = vmatpush2.msra.mxu0 0.0
        %3500 = vmatprep.subr.mxu0 0.0
        %3501 = vmatpush2.msra.mxu0 0.0
        %3502 = vmatprep.subr.mxu0 0.0
        %3503 = vmatpush2.msra.mxu0 0.0
        %3504 = vmatprep.subr.mxu0 0.0
        %3505 = vmatpush2.msra.mxu0 0.0
        %3506 = vmatprep.subr.mxu0 0.0
        %3507 = vmatpush2.msra.mxu0 0.0
        %3508 = vmatprep.subr.mxu0 0.0
        %3509 = vmatpush2.msra.mxu0 0.0
        %3510 = vmatprep.subr.mxu0 0.0
        %3511 = vmatpush2.msra.mxu0 0.0
        %3512 = vmatprep.subr.mxu0 0.0
        %3513 = vmatpush2.msra.mxu0 0.0
        %3514 = vmatprep.mubr.f32.mxu0 0.0
        %3515 = vmatmul.mubr.f32.gmra.mxu0 %v1815
        %v3516 = vpop.f32.mrf.mxu0
        %v3517 = vadd.f32 %v3446, %v3516
        %v3518 = vpop.f32.mrf.mxu0
        %v3519 = vadd.f32 %v3448, %v3518
        %3520 = vdwg.mxu0
        %3521 = vmatprep.subr.mxu0 0.0
        %3522 = vmatpush1.msra.mxu0 %v746
        %3523 = vmatprep.subr.mxu0 0.0
        %3524 = vmatpush1.msra.mxu0 %v733
        %3525 = vmatprep.subr.mxu0 0.0
        %3526 = vmatpush1.msra.mxu0 %v720
        %3527 = vmatprep.subr.mxu0 0.0
        %3528 = vmatpush1.msra.mxu0 %v707
        %3529 = vmatprep.subr.mxu0 0.0
        %3530 = vmatpush1.msra.mxu0 %v694
        %3531 = vmatprep.subr.mxu0 0.0
        %3532 = vmatpush1.msra.mxu0 %v681
        %3533 = vmatprep.subr.mxu0 0.0
        %3534 = vmatpush1.msra.mxu0 %v668
        %3535 = vmatprep.subr.mxu0 0.0
        %3536 = vmatpush1.msra.mxu0 %v655
        %3537 = vmatprep.subr.mxu0 0.0
        %3538 = vmatpush1.msra.mxu0 %v642
        %3539 = vmatprep.subr.mxu0 0.0
        %3540 = vmatpush1.msra.mxu0 %v629
        %3541 = vmatprep.subr.mxu0 0.0
        %3542 = vmatpush1.msra.mxu0 %v616
        %3543 = vmatprep.subr.mxu0 0.0
        %3544 = vmatpush1.msra.mxu0 %v603
        %3545 = vmatprep.subr.mxu0 0.0
        %3546 = vmatpush1.msra.mxu0 %v590
        %3547 = vmatprep.subr.mxu0 0.0
        %3548 = vmatpush1.msra.mxu0 %v577
        %3549 = vmatprep.subr.mxu0 0.0
        %3550 = vmatpush1.msra.mxu0 %v564
        %3551 = vmatprep.subr.mxu0 0.0
        %3552 = vmatpush1.msra.mxu0 %v551
        %3553 = vmatprep.subr.mxu0 0.0
        %3554 = vmatpush2.msra.mxu0 %v954
        %3555 = vmatprep.subr.mxu0 0.0
        %3556 = vmatpush2.msra.mxu0 %v941
        %3557 = vmatprep.subr.mxu0 0.0
        %3558 = vmatpush2.msra.mxu0 %v928
        %3559 = vmatprep.subr.mxu0 0.0
        %3560 = vmatpush2.msra.mxu0 %v915
        %3561 = vmatprep.subr.mxu0 0.0
        %3562 = vmatpush2.msra.mxu0 %v902
        %3563 = vmatprep.subr.mxu0 0.0
        %3564 = vmatpush2.msra.mxu0 %v889
        %3565 = vmatprep.subr.mxu0 0.0
        %3566 = vmatpush2.msra.mxu0 %v876
        %3567 = vmatprep.subr.mxu0 0.0
        %3568 = vmatpush2.msra.mxu0 %v863
        %3569 = vmatprep.subr.mxu0 0.0
        %3570 = vmatpush2.msra.mxu0 %v850
        %3571 = vmatprep.subr.mxu0 0.0
        %3572 = vmatpush2.msra.mxu0 %v837
        %3573 = vmatprep.subr.mxu0 0.0
        %3574 = vmatpush2.msra.mxu0 %v824
        %3575 = vmatprep.subr.mxu0 0.0
        %3576 = vmatpush2.msra.mxu0 %v811
        %3577 = vmatprep.subr.mxu0 0.0
        %3578 = vmatpush2.msra.mxu0 %v798
        %3579 = vmatprep.subr.mxu0 0.0
        %3580 = vmatpush2.msra.mxu0 %v785
        %3581 = vmatprep.subr.mxu0 0.0
        %3582 = vmatpush2.msra.mxu0 %v772
        %3583 = vmatprep.subr.mxu0 0.0
        %3584 = vmatpush2.msra.mxu0 %v759
        %3585 = vmatprep.mubr.f32.mxu0 %v533
        %3586 = vmatmul.mubr.f32.gmra.mxu0 %v532
        %v3587 = vpop.f32.mrf.mxu0
        %v3588 = vadd.f32 0.0, %v3587
        %v3589 = vpop.f32.mrf.mxu0
        %3590 = vdwg.mxu0
        %3591 = vmatprep.subr.mxu0 0.0
        %3592 = vmatpush1.msra.mxu0 %v1162
        %3593 = vmatprep.subr.mxu0 0.0
        %3594 = vmatpush1.msra.mxu0 %v1149
        %3595 = vmatprep.subr.mxu0 0.0
        %3596 = vmatpush1.msra.mxu0 %v1136
        %3597 = vmatprep.subr.mxu0 0.0
        %3598 = vmatpush1.msra.mxu0 %v1123
        %3599 = vmatprep.subr.mxu0 0.0
        %3600 = vmatpush1.msra.mxu0 %v1110
        %3601 = vmatprep.subr.mxu0 0.0
        %3602 = vmatpush1.msra.mxu0 %v1097
        %3603 = vmatprep.subr.mxu0 0.0
        %3604 = vmatpush1.msra.mxu0 %v1084
        %3605 = vmatprep.subr.mxu0 0.0
        %3606 = vmatpush1.msra.mxu0 %v1071
        %3607 = vmatprep.subr.mxu0 0.0
        %3608 = vmatpush1.msra.mxu0 %v1058
        %3609 = vmatprep.subr.mxu0 0.0
        %3610 = vmatpush1.msra.mxu0 %v1045
        %3611 = vmatprep.subr.mxu0 0.0
        %3612 = vmatpush1.msra.mxu0 %v1032
        %3613 = vmatprep.subr.mxu0 0.0
        %3614 = vmatpush1.msra.mxu0 %v1019
        %3615 = vmatprep.subr.mxu0 0.0
        %3616 = vmatpush1.msra.mxu0 %v1006
        %3617 = vmatprep.subr.mxu0 0.0
        %3618 = vmatpush1.msra.mxu0 %v993
        %3619 = vmatprep.subr.mxu0 0.0
        %3620 = vmatpush1.msra.mxu0 %v980
        %3621 = vmatprep.subr.mxu0 0.0
        %3622 = vmatpush1.msra.mxu0 %v967
        %3623 = vmatprep.subr.mxu0 0.0
        %3624 = vmatpush2.msra.mxu0 %v1370
        %3625 = vmatprep.subr.mxu0 0.0
        %3626 = vmatpush2.msra.mxu0 %v1357
        %3627 = vmatprep.subr.mxu0 0.0
        %3628 = vmatpush2.msra.mxu0 %v1344
        %3629 = vmatprep.subr.mxu0 0.0
        %3630 = vmatpush2.msra.mxu0 %v1331
        %3631 = vmatprep.subr.mxu0 0.0
        %3632 = vmatpush2.msra.mxu0 %v1318
        %3633 = vmatprep.subr.mxu0 0.0
        %3634 = vmatpush2.msra.mxu0 %v1305
        %3635 = vmatprep.subr.mxu0 0.0
        %3636 = vmatpush2.msra.mxu0 %v1292
        %3637 = vmatprep.subr.mxu0 0.0
        %3638 = vmatpush2.msra.mxu0 %v1279
        %3639 = vmatprep.subr.mxu0 0.0
        %3640 = vmatpush2.msra.mxu0 %v1266
        %3641 = vmatprep.subr.mxu0 0.0
        %3642 = vmatpush2.msra.mxu0 %v1253
        %3643 = vmatprep.subr.mxu0 0.0
        %3644 = vmatpush2.msra.mxu0 %v1240
        %3645 = vmatprep.subr.mxu0 0.0
        %3646 = vmatpush2.msra.mxu0 %v1227
        %3647 = vmatprep.subr.mxu0 0.0
        %3648 = vmatpush2.msra.mxu0 %v1214
        %3649 = vmatprep.subr.mxu0 0.0
        %3650 = vmatpush2.msra.mxu0 %v1201
        %3651 = vmatprep.subr.mxu0 0.0
        %3652 = vmatpush2.msra.mxu0 %v1188
        %3653 = vmatprep.subr.mxu0 0.0
        %3654 = vmatpush2.msra.mxu0 %v1175
        %3655 = vmatprep.mubr.f32.mxu0 %v535
        %3656 = vmatmul.mubr.f32.gmra.mxu0 %v534
        %v3657 = vpop.f32.mrf.mxu0
        %v3658 = vadd.f32 %v3588, %v3657
        %v3659 = vpop.f32.mrf.mxu0
        %3660 = vdwg.mxu0
        %3661 = vmatprep.subr.mxu0 0.0
        %3662 = vmatpush1.msra.mxu0 %v1578
        %3663 = vmatprep.subr.mxu0 0.0
        %3664 = vmatpush1.msra.mxu0 %v1565
        %3665 = vmatprep.subr.mxu0 0.0
        %3666 = vmatpush1.msra.mxu0 %v1552
        %3667 = vmatprep.subr.mxu0 0.0
        %3668 = vmatpush1.msra.mxu0 %v1539
        %3669 = vmatprep.subr.mxu0 0.0
        %3670 = vmatpush1.msra.mxu0 %v1526
        %3671 = vmatprep.subr.mxu0 0.0
        %3672 = vmatpush1.msra.mxu0 %v1513
        %3673 = vmatprep.subr.mxu0 0.0
        %3674 = vmatpush1.msra.mxu0 %v1500
        %3675 = vmatprep.subr.mxu0 0.0
        %3676 = vmatpush1.msra.mxu0 %v1487
        %3677 = vmatprep.subr.mxu0 0.0
        %3678 = vmatpush1.msra.mxu0 %v1474
        %3679 = vmatprep.subr.mxu0 0.0
        %3680 = vmatpush1.msra.mxu0 %v1461
        %3681 = vmatprep.subr.mxu0 0.0
        %3682 = vmatpush1.msra.mxu0 %v1448
        %3683 = vmatprep.subr.mxu0 0.0
        %3684 = vmatpush1.msra.mxu0 %v1435
        %3685 = vmatprep.subr.mxu0 0.0
        %3686 = vmatpush1.msra.mxu0 %v1422
        %3687 = vmatprep.subr.mxu0 0.0
        %3688 = vmatpush1.msra.mxu0 %v1409
        %3689 = vmatprep.subr.mxu0 0.0
        %3690 = vmatpush1.msra.mxu0 %v1396
        %3691 = vmatprep.subr.mxu0 0.0
        %3692 = vmatpush1.msra.mxu0 %v1383
        %3693 = vmatprep.subr.mxu0 0.0
        %3694 = vmatpush2.msra.mxu0 %v1786
        %3695 = vmatprep.subr.mxu0 0.0
        %3696 = vmatpush2.msra.mxu0 %v1773
        %3697 = vmatprep.subr.mxu0 0.0
        %3698 = vmatpush2.msra.mxu0 %v1760
        %3699 = vmatprep.subr.mxu0 0.0
        %3700 = vmatpush2.msra.mxu0 %v1747
        %3701 = vmatprep.subr.mxu0 0.0
        %3702 = vmatpush2.msra.mxu0 %v1734
        %3703 = vmatprep.subr.mxu0 0.0
        %3704 = vmatpush2.msra.mxu0 %v1721
        %3705 = vmatprep.subr.mxu0 0.0
        %3706 = vmatpush2.msra.mxu0 %v1708
        %3707 = vmatprep.subr.mxu0 0.0
        %3708 = vmatpush2.msra.mxu0 %v1695
        %3709 = vmatprep.subr.mxu0 0.0
        %3710 = vmatpush2.msra.mxu0 %v1682
        %3711 = vmatprep.subr.mxu0 0.0
        %3712 = vmatpush2.msra.mxu0 %v1669
        %3713 = vmatprep.subr.mxu0 0.0
        %3714 = vmatpush2.msra.mxu0 %v1656
        %3715 = vmatprep.subr.mxu0 0.0
        %3716 = vmatpush2.msra.mxu0 %v1643
        %3717 = vmatprep.subr.mxu0 0.0
        %3718 = vmatpush2.msra.mxu0 %v1630
        %3719 = vmatprep.subr.mxu0 0.0
        %3720 = vmatpush2.msra.mxu0 %v1617
        %3721 = vmatprep.subr.mxu0 0.0
        %3722 = vmatpush2.msra.mxu0 %v1604
        %3723 = vmatprep.subr.mxu0 0.0
        %3724 = vmatpush2.msra.mxu0 %v1591
        %3725 = vmatprep.mubr.f32.mxu0 %v537
        %3726 = vmatmul.mubr.f32.gmra.mxu0 %v536
        %v3727 = vpop.f32.mrf.mxu0
        %v3728 = vadd.f32 %v3658, %v3727
        %v3729 = vpop.f32.mrf.mxu0
        %3730 = vdwg.mxu0
        %3731 = vmatprep.subr.mxu0 0.0
        %3732 = vmatpush1.msra.mxu0 0.0
        %3733 = vmatprep.subr.mxu0 0.0
        %3734 = vmatpush1.msra.mxu0 0.0
        %3735 = vmatprep.subr.mxu0 0.0
        %3736 = vmatpush1.msra.mxu0 0.0
        %3737 = vmatprep.subr.mxu0 0.0
        %3738 = vmatpush1.msra.mxu0 0.0
        %3739 = vmatprep.subr.mxu0 0.0
        %3740 = vmatpush1.msra.mxu0 0.0
        %3741 = vmatprep.subr.mxu0 0.0
        %3742 = vmatpush1.msra.mxu0 0.0
        %3743 = vmatprep.subr.mxu0 0.0
        %3744 = vmatpush1.msra.mxu0 0.0
        %3745 = vmatprep.subr.mxu0 0.0
        %3746 = vmatpush1.msra.mxu0 0.0
        %3747 = vmatprep.subr.mxu0 0.0
        %3748 = vmatpush1.msra.mxu0 0.0
        %3749 = vmatprep.subr.mxu0 0.0
        %3750 = vmatpush1.msra.mxu0 0.0
        %3751 = vmatprep.subr.mxu0 0.0
        %3752 = vmatpush1.msra.mxu0 0.0
        %3753 = vmatprep.subr.mxu0 0.0
        %3754 = vmatpush1.msra.mxu0 0.0
        %3755 = vmatprep.subr.mxu0 0.0
        %3756 = vmatpush1.msra.mxu0 0.0
        %3757 = vmatprep.subr.mxu0 0.0
        %3758 = vmatpush1.msra.mxu0 0.0
        %3759 = vmatprep.subr.mxu0 0.0
        %3760 = vmatpush1.msra.mxu0 %v1812
        %3761 = vmatprep.subr.mxu0 0.0
        %3762 = vmatpush1.msra.mxu0 %v1799
        %3763 = vmatprep.subr.mxu0 0.0
        %3764 = vmatpush2.msra.mxu0 0.0
        %3765 = vmatprep.subr.mxu0 0.0
        %3766 = vmatpush2.msra.mxu0 0.0
        %3767 = vmatprep.subr.mxu0 0.0
        %3768 = vmatpush2.msra.mxu0 0.0
        %3769 = vmatprep.subr.mxu0 0.0
        %3770 = vmatpush2.msra.mxu0 0.0
        %3771 = vmatprep.subr.mxu0 0.0
        %3772 = vmatpush2.msra.mxu0 0.0
        %3773 = vmatprep.subr.mxu0 0.0
        %3774 = vmatpush2.msra.mxu0 0.0
        %3775 = vmatprep.subr.mxu0 0.0
        %3776 = vmatpush2.msra.mxu0 0.0
        %3777 = vmatprep.subr.mxu0 0.0
        %3778 = vmatpush2.msra.mxu0 0.0
        %3779 = vmatprep.subr.mxu0 0.0
        %3780 = vmatpush2.msra.mxu0 0.0
        %3781 = vmatprep.subr.mxu0 0.0
        %3782 = vmatpush2.msra.mxu0 0.0
        %3783 = vmatprep.subr.mxu0 0.0
        %3784 = vmatpush2.msra.mxu0 0.0
        %3785 = vmatprep.subr.mxu0 0.0
        %3786 = vmatpush2.msra.mxu0 0.0
        %3787 = vmatprep.subr.mxu0 0.0
        %3788 = vmatpush2.msra.mxu0 0.0
        %3789 = vmatprep.subr.mxu0 0.0
        %3790 = vmatpush2.msra.mxu0 0.0
        %3791 = vmatprep.subr.mxu0 0.0
        %3792 = vmatpush2.msra.mxu0 0.0
        %3793 = vmatprep.subr.mxu0 0.0
        %3794 = vmatpush2.msra.mxu0 0.0
        %3795 = vmatprep.mubr.f32.mxu0 0.0
        %3796 = vmatmul.mubr.f32.gmra.mxu0 %v1815
        %v3797 = vpop.f32.mrf.mxu0
        %v3798 = vadd.f32 %v3728, %v3797
        %v3799 = vpop.f32.mrf.mxu0
        %3800 = vdwg.mxu0
        %v3801 = vmax.f32 %v2097, 0.0
        %v3802 = vmax.f32 %v2099, 0.0
        %v3803 = vmax.f32 %v2381, 0.0
        %v3804 = vmax.f32 %v2383, 0.0
        %v3805 = vmax.f32 %v2665, 0.0
        %v3806 = vmax.f32 %v2667, 0.0
        %v3807 = vmax.f32 %v2949, 0.0
        %v3808 = vmax.f32 %v2951, 0.0
        %v3809 = vmax.f32 %v3233, 0.0
        %v3810 = vmax.f32 %v3235, 0.0
        %v3811 = vmax.f32 %v3517, 0.0
        %v3812 = vmax.f32 %v3519, 0.0
        %v3813 = vmax.f32 %v3798, 0.0
        %v3814 = vld [vmem:[#allocation6] sm:$0xff]
        %v3815 = vld [vmem:[#allocation6 + $0x8] sm:$0xff]
        %v3816 = vld [vmem:[#allocation6 + $0x10] sm:$0xff]
        %v3817 = vld [vmem:[#allocation6 + $0x18] sm:$0xff]
        %v3818 = vld [vmem:[#allocation6 + $0x20] sm:$0xff]
        %v3819 = vld [vmem:[#allocation6 + $0x28] sm:$0xff]
        %v3820 = vld [vmem:[#allocation6 + $0x30] sm:$0xff]
        %v3821 = vld [vmem:[#allocation6 + $0x38] sm:$0xff]
        %v3822 = vld [vmem:[#allocation6 + $0x40] sm:$0xff]
        %v3823 = vld [vmem:[#allocation6 + $0x48] sm:$0xff]
        %v3824 = vld [vmem:[#allocation6 + $0x50] sm:$0xff]
        %v3825 = vld [vmem:[#allocation6 + $0x58] sm:$0xff]
        %v3826 = vld [vmem:[#allocation6 + $0x60] sm:$0xff]
        %v3827 = vld [vmem:[#allocation6 + $0x68] sm:$0xff]
        %v3828 = vld [vmem:[#allocation6 + $0x70] sm:$0xff]
        %v3829 = vld [vmem:[#allocation6 + $0x78] sm:$0xff]
        %v3830 = vld [vmem:[#allocation6 + $0x80] sm:$0xff]
        %v3831 = vld [vmem:[#allocation6 + $0x88] sm:$0xff]
        %v3832 = vld [vmem:[#allocation6 + $0x90] sm:$0xff]
        %v3833 = vld [vmem:[#allocation6 + $0x98] sm:$0xff]
        %v3834 = vld [vmem:[#allocation6 + $0xa0] sm:$0xff]
        %v3835 = vld [vmem:[#allocation6 + $0xa8] sm:$0xff]
        %v3836 = vld [vmem:[#allocation6 + $0xb0] sm:$0xff]
        %v3837 = vld [vmem:[#allocation6 + $0xb8] sm:$0xff]
        %v3838 = vld [vmem:[#allocation6 + $0xc0] sm:$0xff]
        %v3839 = vld [vmem:[#allocation6 + $0xc8] sm:$0xff]
        %v3840 = vld [vmem:[#allocation6 + $0xd0] sm:$0xff]
        %v3841 = vld [vmem:[#allocation6 + $0xd8] sm:$0xff]
        %v3842 = vld [vmem:[#allocation6 + $0xe0] sm:$0xff]
        %v3843 = vld [vmem:[#allocation6 + $0xe8] sm:$0xff]
        %v3844 = vld [vmem:[#allocation6 + $0xf0] sm:$0xff]
        %v3845 = vld [vmem:[#allocation6 + $0xf8] sm:$0xff]
        %v3846 = vld [vmem:[#allocation6 + $0x100] sm:$0xff]
        %v3847 = vld [vmem:[#allocation6 + $0x108] sm:$0xff]
        %v3848 = vld [vmem:[#allocation6 + $0x110] sm:$0xff]
        %v3849 = vld [vmem:[#allocation6 + $0x118] sm:$0xff]
        %v3850 = vld [vmem:[#allocation6 + $0x120] sm:$0xff]
        %v3851 = vld [vmem:[#allocation6 + $0x128] sm:$0xff]
        %v3852 = vld [vmem:[#allocation6 + $0x130] sm:$0xff]
        %v3853 = vld [vmem:[#allocation6 + $0x138] sm:$0xff]
        %v3854 = vld [vmem:[#allocation6 + $0x140] sm:$0xff]
        %v3855 = vld [vmem:[#allocation6 + $0x148] sm:$0xff]
        %v3856 = vld [vmem:[#allocation6 + $0x150] sm:$0xff]
        %v3857 = vld [vmem:[#allocation6 + $0x158] sm:$0xff]
        %v3858 = vld [vmem:[#allocation6 + $0x160] sm:$0xff]
        %v3859 = vld [vmem:[#allocation6 + $0x168] sm:$0xff]
        %v3860 = vld [vmem:[#allocation6 + $0x170] sm:$0xff]
        %v3861 = vld [vmem:[#allocation6 + $0x178] sm:$0xff]
        %v3862 = vld [vmem:[#allocation6 + $0x180] sm:$0xff]
        %v3863 = vld [vmem:[#allocation6 + $0x188] sm:$0xff]
        %v3864 = vld [vmem:[#allocation6 + $0x190] sm:$0xff]
        %v3865 = vld [vmem:[#allocation6 + $0x198] sm:$0xff]
        %v3866 = vld [vmem:[#allocation6 + $0x1a0] sm:$0xff]
        %v3867 = vld [vmem:[#allocation6 + $0x1a8] sm:$0xff]
        %v3868 = vld [vmem:[#allocation6 + $0x1b0] sm:$0xff]
        %v3869 = vld [vmem:[#allocation6 + $0x1b8] sm:$0xff]
        %v3870 = vld [vmem:[#allocation6 + $0x1c0] sm:$0xff]
        %v3871 = vld [vmem:[#allocation6 + $0x1c8] sm:$0xff]
        %v3872 = vld [vmem:[#allocation6 + $0x1d0] sm:$0xff]
        %v3873 = vld [vmem:[#allocation6 + $0x1d8] sm:$0xff]
        %v3874 = vld [vmem:[#allocation6 + $0x1e0] sm:$0xff]
        %v3875 = vld [vmem:[#allocation6 + $0x1e8] sm:$0xff]
        %v3876 = vld [vmem:[#allocation6 + $0x1f0] sm:$0xff]
        %v3877 = vld [vmem:[#allocation6 + $0x1f8] sm:$0xff]
        %v3878 = vld [vmem:[#allocation6 + $0x200] sm:$0xff]
        %v3879 = vld [vmem:[#allocation6 + $0x208] sm:$0xff]
        %v3880 = vld [vmem:[#allocation6 + $0x210] sm:$0xff]
        %v3881 = vld [vmem:[#allocation6 + $0x218] sm:$0xff]
        %v3882 = vld [vmem:[#allocation6 + $0x220] sm:$0xff]
        %v3883 = vld [vmem:[#allocation6 + $0x228] sm:$0xff]
        %v3884 = vld [vmem:[#allocation6 + $0x230] sm:$0xff]
        %v3885 = vld [vmem:[#allocation6 + $0x238] sm:$0xff]
        %v3886 = vld [vmem:[#allocation6 + $0x240] sm:$0xff]
        %v3887 = vld [vmem:[#allocation6 + $0x248] sm:$0xff]
        %v3888 = vld [vmem:[#allocation6 + $0x250] sm:$0xff]
        %v3889 = vld [vmem:[#allocation6 + $0x258] sm:$0xff]
        %v3890 = vld [vmem:[#allocation6 + $0x260] sm:$0xff]
        %v3891 = vld [vmem:[#allocation6 + $0x268] sm:$0xff]
        %v3892 = vld [vmem:[#allocation6 + $0x270] sm:$0xff]
        %v3893 = vld [vmem:[#allocation6 + $0x278] sm:$0xff]
        %v3894 = vld [vmem:[#allocation6 + $0x280] sm:$0xff]
        %v3895 = vld [vmem:[#allocation6 + $0x288] sm:$0xff]
        %v3896 = vld [vmem:[#allocation6 + $0x290] sm:$0xff]
        %v3897 = vld [vmem:[#allocation6 + $0x298] sm:$0xff]
        %v3898 = vld [vmem:[#allocation6 + $0x2a0] sm:$0xff]
        %v3899 = vld [vmem:[#allocation6 + $0x2a8] sm:$0xff]
        %v3900 = vld [vmem:[#allocation6 + $0x2b0] sm:$0xff]
        %v3901 = vld [vmem:[#allocation6 + $0x2b8] sm:$0xff]
        %v3902 = vld [vmem:[#allocation6 + $0x2c0] sm:$0xff]
        %v3903 = vld [vmem:[#allocation6 + $0x2c8] sm:$0xff]
        %v3904 = vld [vmem:[#allocation6 + $0x2d0] sm:$0xff]
        %v3905 = vld [vmem:[#allocation6 + $0x2d8] sm:$0xff]
        %v3906 = vld [vmem:[#allocation6 + $0x2e0] sm:$0xff]
        %v3907 = vld [vmem:[#allocation6 + $0x2e8] sm:$0xff]
        %v3908 = vld [vmem:[#allocation6 + $0x2f0] sm:$0xff]
        %v3909 = vld [vmem:[#allocation6 + $0x2f8] sm:$0xff]
        %v3910 = vld [vmem:[#allocation6 + $0x300] sm:$0xff]
        %v3911 = vld [vmem:[#allocation6 + $0x308] sm:$0xff]
        %v3912 = vld [vmem:[#allocation6 + $0x310] sm:$0xff]
        %v3913 = vld [vmem:[#allocation6 + $0x318] sm:$0xff]
        %v3914 = vld [vmem:[#allocation6 + $0x320] sm:$0xff]
        %v3915 = vld [vmem:[#allocation6 + $0x328] sm:$0xff]
        %v3916 = vld [vmem:[#allocation6 + $0x330] sm:$0xff]
        %v3917 = vld [vmem:[#allocation6 + $0x338] sm:$0xff]
        %v3918 = vld [vmem:[#allocation6 + $0x340] sm:$0xff]
        %v3919 = vld [vmem:[#allocation6 + $0x348] sm:$0xff]
        %v3920 = vld [vmem:[#allocation6 + $0x350] sm:$0xff]
        %v3921 = vld [vmem:[#allocation6 + $0x358] sm:$0xff]
        %v3922 = vld [vmem:[#allocation6 + $0x360] sm:$0xff]
        %v3923 = vld [vmem:[#allocation6 + $0x368] sm:$0xff]
        %v3924 = vld [vmem:[#allocation6 + $0x370] sm:$0xff]
        %v3925 = vld [vmem:[#allocation6 + $0x378] sm:$0xff]
        %v3926 = vld [vmem:[#allocation6 + $0x380] sm:$0xff]
        %v3927 = vld [vmem:[#allocation6 + $0x388] sm:$0xff]
        %v3928 = vld [vmem:[#allocation6 + $0x390] sm:$0xff]
        %v3929 = vld [vmem:[#allocation6 + $0x398] sm:$0xff]
        %v3930 = vld [vmem:[#allocation6 + $0x3a0] sm:$0xff]
        %v3931 = vld [vmem:[#allocation6 + $0x3a8] sm:$0xff]
        %v3932 = vld [vmem:[#allocation6 + $0x3b0] sm:$0xff]
        %v3933 = vld [vmem:[#allocation6 + $0x3b8] sm:$0xff]
        %v3934 = vld [vmem:[#allocation6 + $0x3c0] sm:$0xff]
        %v3935 = vld [vmem:[#allocation6 + $0x3c8] sm:$0xff]
        %v3936 = vld [vmem:[#allocation6 + $0x3d0] sm:$0xff]
        %v3937 = vld [vmem:[#allocation6 + $0x3d8] sm:$0xff]
        %v3938 = vld [vmem:[#allocation6 + $0x3e0] sm:$0xff]
        %v3939 = vld [vmem:[#allocation6 + $0x3e8] sm:$0xff]
        %v3940 = vld [vmem:[#allocation6 + $0x3f0] sm:$0xff]
        %v3941 = vld [vmem:[#allocation6 + $0x3f8] sm:$0xff]
        %v3942 = vld [vmem:[#allocation6 + $0x400] sm:$0xff]
        %v3943 = vld [vmem:[#allocation6 + $0x408] sm:$0xff]
        %v3944 = vld [vmem:[#allocation6 + $0x410] sm:$0xff]
        %v3945 = vld [vmem:[#allocation6 + $0x418] sm:$0xff]
        %v3946 = vld [vmem:[#allocation6 + $0x420] sm:$0xff]
        %v3947 = vld [vmem:[#allocation6 + $0x428] sm:$0xff]
        %v3948 = vld [vmem:[#allocation6 + $0x430] sm:$0xff]
        %v3949 = vld [vmem:[#allocation6 + $0x438] sm:$0xff]
        %v3950 = vld [vmem:[#allocation6 + $0x440] sm:$0xff]
        %v3951 = vld [vmem:[#allocation6 + $0x448] sm:$0xff]
        %v3952 = vld [vmem:[#allocation6 + $0x450] sm:$0xff]
        %v3953 = vld [vmem:[#allocation6 + $0x458] sm:$0xff]
        %v3954 = vld [vmem:[#allocation6 + $0x460] sm:$0xff]
        %v3955 = vld [vmem:[#allocation6 + $0x468] sm:$0xff]
        %v3956 = vld [vmem:[#allocation6 + $0x470] sm:$0xff]
        %v3957 = vld [vmem:[#allocation6 + $0x478] sm:$0xff]
        %v3958 = vld [vmem:[#allocation6 + $0x480] sm:$0xff]
        %v3959 = vld [vmem:[#allocation6 + $0x488] sm:$0xff]
        %v3960 = vld [vmem:[#allocation6 + $0x490] sm:$0xff]
        %v3961 = vld [vmem:[#allocation6 + $0x498] sm:$0xff]
        %v3962 = vld [vmem:[#allocation6 + $0x4a0] sm:$0xff]
        %v3963 = vld [vmem:[#allocation6 + $0x4a8] sm:$0xff]
        %v3964 = vld [vmem:[#allocation6 + $0x4b0] sm:$0xff]
        %v3965 = vld [vmem:[#allocation6 + $0x4b8] sm:$0xff]
        %v3966 = vld [vmem:[#allocation6 + $0x4c0] sm:$0xff]
        %v3967 = vld [vmem:[#allocation6 + $0x4c8] sm:$0xff]
        %v3968 = vld [vmem:[#allocation6 + $0x4d0] sm:$0xff]
        %v3969 = vld [vmem:[#allocation6 + $0x4d8] sm:$0xff]
        %v3970 = vld [vmem:[#allocation6 + $0x4e0] sm:$0xff]
        %v3971 = vld [vmem:[#allocation6 + $0x4e8] sm:$0xff]
        %v3972 = vld [vmem:[#allocation6 + $0x4f0] sm:$0xff]
        %v3973 = vld [vmem:[#allocation6 + $0x4f8] sm:$0xff]
        %v3974 = vld [vmem:[#allocation6 + $0x500] sm:$0xff]
        %v3975 = vld [vmem:[#allocation6 + $0x508] sm:$0xff]
        %v3976 = vld [vmem:[#allocation6 + $0x510] sm:$0xff]
        %v3977 = vld [vmem:[#allocation6 + $0x518] sm:$0xff]
        %v3978 = vld [vmem:[#allocation6 + $0x520] sm:$0xff]
        %v3979 = vld [vmem:[#allocation6 + $0x528] sm:$0xff]
        %v3980 = vld [vmem:[#allocation6 + $0x530] sm:$0xff]
        %v3981 = vld [vmem:[#allocation6 + $0x538] sm:$0xff]
        %v3982 = vld [vmem:[#allocation6 + $0x540] sm:$0xff]
        %v3983 = vld [vmem:[#allocation6 + $0x548] sm:$0xff]
        %v3984 = vld [vmem:[#allocation6 + $0x550] sm:$0xff]
        %v3985 = vld [vmem:[#allocation6 + $0x558] sm:$0xff]
        %v3986 = vld [vmem:[#allocation6 + $0x560] sm:$0xff]
        %v3987 = vld [vmem:[#allocation6 + $0x568] sm:$0xff]
        %v3988 = vld [vmem:[#allocation6 + $0x570] sm:$0xff]
        %v3989 = vld [vmem:[#allocation6 + $0x578] sm:$0xff]
        %v3990 = vld [vmem:[#allocation6 + $0x580] sm:$0xff]
        %v3991 = vld [vmem:[#allocation6 + $0x588] sm:$0xff]
        %v3992 = vld [vmem:[#allocation6 + $0x590] sm:$0xff]
        %v3993 = vld [vmem:[#allocation6 + $0x598] sm:$0xff]
        %v3994 = vld [vmem:[#allocation6 + $0x5a0] sm:$0xff]
        %v3995 = vld [vmem:[#allocation6 + $0x5a8] sm:$0xff]
        %v3996 = vld [vmem:[#allocation6 + $0x5b0] sm:$0xff]
        %v3997 = vld [vmem:[#allocation6 + $0x5b8] sm:$0xff]
        %v3998 = vld [vmem:[#allocation6 + $0x5c0] sm:$0xff]
        %v3999 = vld [vmem:[#allocation6 + $0x5c8] sm:$0xff]
        %v4000 = vld [vmem:[#allocation6 + $0x5d0] sm:$0xff]
        %v4001 = vld [vmem:[#allocation6 + $0x5d8] sm:$0xff]
        %v4002 = vld [vmem:[#allocation6 + $0x5e0] sm:$0xff]
        %v4003 = vld [vmem:[#allocation6 + $0x5e8] sm:$0xff]
        %v4004 = vld [vmem:[#allocation6 + $0x5f0] sm:$0xff]
        %v4005 = vld [vmem:[#allocation6 + $0x5f8] sm:$0xff]
        %v4006 = vld [vmem:[#allocation6 + $0x600] sm:$0xff]
        %v4007 = vld [vmem:[#allocation6 + $0x608] sm:$0xff]
        %v4008 = vld [vmem:[#allocation6 + $0x610] sm:$0xff]
        %v4009 = vld [vmem:[#allocation6 + $0x618] sm:$0xff]
        %v4010 = vld [vmem:[#allocation6 + $0x620] sm:$0xff]
        %v4011 = vld [vmem:[#allocation6 + $0x628] sm:$0xff]
        %v4012 = vld [vmem:[#allocation6 + $0x630] sm:$0xff]
        %v4013 = vld [vmem:[#allocation6 + $0x638] sm:$0xff]
        %v4014 = vld [vmem:[#allocation6 + $0x640] sm:$0xff]
        %v4015 = vld [vmem:[#allocation6 + $0x648] sm:$0xff]
        %v4016 = vld [vmem:[#allocation6 + $0x650] sm:$0xff]
        %v4017 = vld [vmem:[#allocation6 + $0x658] sm:$0xff]
        %v4018 = vld [vmem:[#allocation6 + $0x660] sm:$0xff]
        %v4019 = vld [vmem:[#allocation6 + $0x668] sm:$0xff]
        %v4020 = vld [vmem:[#allocation6 + $0x670] sm:$0xff]
        %v4021 = vld [vmem:[#allocation6 + $0x678] sm:$0xff]
        %v4022 = vld [vmem:[#allocation6 + $0x680] sm:$0xff]
        %v4023 = vld [vmem:[#allocation6 + $0x688] sm:$0xff]
        %v4024 = vld [vmem:[#allocation6 + $0x690] sm:$0xff]
        %v4025 = vld [vmem:[#allocation6 + $0x698] sm:$0xff]
        %v4026 = vld [vmem:[#allocation6 + $0x6a0] sm:$0xff]
        %v4027 = vld [vmem:[#allocation6 + $0x6a8] sm:$0xff]
        %v4028 = vld [vmem:[#allocation6 + $0x6b0] sm:$0xff]
        %v4029 = vld [vmem:[#allocation6 + $0x6b8] sm:$0xff]
        %v4030 = vld [vmem:[#allocation6 + $0x6c0] sm:$0xff]
        %v4031 = vld [vmem:[#allocation6 + $0x6c8] sm:$0xff]
        %v4032 = vld [vmem:[#allocation6 + $0x6d0] sm:$0xff]
        %v4033 = vld [vmem:[#allocation6 + $0x6d8] sm:$0xff]
        %v4034 = vld [vmem:[#allocation6 + $0x6e0] sm:$0xff]
        %v4035 = vld [vmem:[#allocation6 + $0x6e8] sm:$0xff]
        %v4036 = vld [vmem:[#allocation6 + $0x6f0] sm:$0xff]
        %v4037 = vld [vmem:[#allocation6 + $0x6f8] sm:$0xff]
        %v4038 = vld [vmem:[#allocation6 + $0x700] sm:$0xff]
        %v4039 = vld [vmem:[#allocation6 + $0x708] sm:$0xff]
        %v4040 = vld [vmem:[#allocation6 + $0x710] sm:$0xff]
        %v4041 = vld [vmem:[#allocation6 + $0x718] sm:$0xff]
        %v4042 = vld [vmem:[#allocation6 + $0x720] sm:$0xff]
        %v4043 = vld [vmem:[#allocation6 + $0x728] sm:$0xff]
        %v4044 = vld [vmem:[#allocation6 + $0x730] sm:$0xff]
        %v4045 = vld [vmem:[#allocation6 + $0x738] sm:$0xff]
        %v4046 = vld [vmem:[#allocation6 + $0x740] sm:$0xff]
        %v4047 = vld [vmem:[#allocation6 + $0x748] sm:$0xff]
        %v4048 = vld [vmem:[#allocation6 + $0x750] sm:$0xff]
        %v4049 = vld [vmem:[#allocation6 + $0x758] sm:$0xff]
        %v4050 = vld [vmem:[#allocation6 + $0x760] sm:$0xff]
        %v4051 = vld [vmem:[#allocation6 + $0x768] sm:$0xff]
        %v4052 = vld [vmem:[#allocation6 + $0x770] sm:$0xff]
        %v4053 = vld [vmem:[#allocation6 + $0x778] sm:$0xff]
        %v4054 = vld [vmem:[#allocation6 + $0x780] sm:$0xff]
        %v4055 = vld [vmem:[#allocation6 + $0x788] sm:$0xff]
        %v4056 = vld [vmem:[#allocation6 + $0x790] sm:$0xff]
        %v4057 = vld [vmem:[#allocation6 + $0x798] sm:$0xff]
        %v4058 = vld [vmem:[#allocation6 + $0x7a0] sm:$0xff]
        %v4059 = vld [vmem:[#allocation6 + $0x7a8] sm:$0xff]
        %v4060 = vld [vmem:[#allocation6 + $0x7b0] sm:$0xff]
        %v4061 = vld [vmem:[#allocation6 + $0x7b8] sm:$0xff]
        %v4062 = vld [vmem:[#allocation6 + $0x7c0] sm:$0xff]
        %v4063 = vld [vmem:[#allocation6 + $0x7c8] sm:$0xff]
        %v4064 = vld [vmem:[#allocation6 + $0x7d0] sm:$0xff]
        %v4065 = vld [vmem:[#allocation6 + $0x7d8] sm:$0xff]
        %v4066 = vld [vmem:[#allocation6 + $0x7e0] sm:$0xff]
        %v4067 = vld [vmem:[#allocation6 + $0x7e8] sm:$0xff]
        %v4068 = vld [vmem:[#allocation6 + $0x7f0] sm:$0xff]
        %v4069 = vld [vmem:[#allocation6 + $0x7f8] sm:$0xff]
        %v4070 = vld [vmem:[#allocation6 + $0x800] sm:$0xff]
        %v4071 = vld [vmem:[#allocation6 + $0x808] sm:$0xff]
        %v4072 = vld [vmem:[#allocation6 + $0x810] sm:$0xff]
        %v4073 = vld [vmem:[#allocation6 + $0x818] sm:$0xff]
        %v4074 = vld [vmem:[#allocation6 + $0x820] sm:$0xff]
        %v4075 = vld [vmem:[#allocation6 + $0x828] sm:$0xff]
        %v4076 = vld [vmem:[#allocation6 + $0x830] sm:$0xff]
        %v4077 = vld [vmem:[#allocation6 + $0x838] sm:$0xff]
        %v4078 = vld [vmem:[#allocation6 + $0x840] sm:$0xff]
        %v4079 = vld [vmem:[#allocation6 + $0x848] sm:$0xff]
        %v4080 = vld [vmem:[#allocation6 + $0x850] sm:$0xff]
        %v4081 = vld [vmem:[#allocation6 + $0x858] sm:$0xff]
        %v4082 = vld [vmem:[#allocation6 + $0x860] sm:$0xff]
        %v4083 = vld [vmem:[#allocation6 + $0x868] sm:$0xff]
        %v4084 = vld [vmem:[#allocation6 + $0x870] sm:$0xff]
        %v4085 = vld [vmem:[#allocation6 + $0x878] sm:$0xff]
        %v4086 = vld [vmem:[#allocation6 + $0x880] sm:$0xff]
        %v4087 = vld [vmem:[#allocation6 + $0x888] sm:$0xff]
        %v4088 = vld [vmem:[#allocation6 + $0x890] sm:$0xff]
        %v4089 = vld [vmem:[#allocation6 + $0x898] sm:$0xff]
        %v4090 = vld [vmem:[#allocation6 + $0x8a0] sm:$0xff]
        %v4091 = vld [vmem:[#allocation6 + $0x8a8] sm:$0xff]
        %v4092 = vld [vmem:[#allocation6 + $0x8b0] sm:$0xff]
        %v4093 = vld [vmem:[#allocation6 + $0x8b8] sm:$0xff]
        %v4094 = vld [vmem:[#allocation6 + $0x8c0] sm:$0xff]
        %v4095 = vld [vmem:[#allocation6 + $0x8c8] sm:$0xff]
        %v4096 = vld [vmem:[#allocation6 + $0x8d0] sm:$0xff]
        %v4097 = vld [vmem:[#allocation6 + $0x8d8] sm:$0xff]
        %v4098 = vld [vmem:[#allocation6 + $0x8e0] sm:$0xff]
        %v4099 = vld [vmem:[#allocation6 + $0x8e8] sm:$0xff]
        %v4100 = vld [vmem:[#allocation6 + $0x8f0] sm:$0xff]
        %v4101 = vld [vmem:[#allocation6 + $0x8f8] sm:$0xff]
        %v4102 = vld [vmem:[#allocation6 + $0x900] sm:$0xff]
        %v4103 = vld [vmem:[#allocation6 + $0x908] sm:$0xff]
        %v4104 = vld [vmem:[#allocation6 + $0x910] sm:$0xff]
        %v4105 = vld [vmem:[#allocation6 + $0x918] sm:$0xff]
        %v4106 = vld [vmem:[#allocation6 + $0x920] sm:$0xff]
        %v4107 = vld [vmem:[#allocation6 + $0x928] sm:$0xff]
        %v4108 = vld [vmem:[#allocation6 + $0x930] sm:$0xff]
        %v4109 = vld [vmem:[#allocation6 + $0x938] sm:$0xff]
        %v4110 = vld [vmem:[#allocation6 + $0x940] sm:$0xff]
        %v4111 = vld [vmem:[#allocation6 + $0x948] sm:$0xff]
        %v4112 = vld [vmem:[#allocation6 + $0x950] sm:$0xff]
        %v4113 = vld [vmem:[#allocation6 + $0x958] sm:$0xff]
        %v4114 = vld [vmem:[#allocation6 + $0x960] sm:$0xff]
        %v4115 = vld [vmem:[#allocation6 + $0x968] sm:$0xff]
        %v4116 = vld [vmem:[#allocation6 + $0x970] sm:$0xff]
        %v4117 = vld [vmem:[#allocation6 + $0x978] sm:$0xff]
        %v4118 = vld [vmem:[#allocation6 + $0x980] sm:$0xff]
        %v4119 = vld [vmem:[#allocation6 + $0x988] sm:$0xff]
        %v4120 = vld [vmem:[#allocation6 + $0x990] sm:$0xff]
        %v4121 = vld [vmem:[#allocation6 + $0x998] sm:$0xff]
        %v4122 = vld [vmem:[#allocation6 + $0x9a0] sm:$0xff]
        %v4123 = vld [vmem:[#allocation6 + $0x9a8] sm:$0xff]
        %v4124 = vld [vmem:[#allocation6 + $0x9b0] sm:$0xff]
        %v4125 = vld [vmem:[#allocation6 + $0x9b8] sm:$0xff]
        %v4126 = vld [vmem:[#allocation6 + $0x9c0] sm:$0xff]
        %v4127 = vld [vmem:[#allocation6 + $0x9c8] sm:$0xff]
        %v4128 = vld [vmem:[#allocation6 + $0x9d0] sm:$0xff]
        %v4129 = vld [vmem:[#allocation6 + $0x9d8] sm:$0xff]
        %v4130 = vld [vmem:[#allocation6 + $0x9e0] sm:$0xff]
        %v4131 = vld [vmem:[#allocation6 + $0x9e8] sm:$0xff]
        %v4132 = vld [vmem:[#allocation6 + $0x9f0] sm:$0xff]
        %v4133 = vld [vmem:[#allocation6 + $0x9f8] sm:$0xff]
        %v4134 = vld [vmem:[#allocation6 + $0xa00] sm:$0xff]
        %v4135 = vld [vmem:[#allocation6 + $0xa08] sm:$0xff]
        %v4136 = vld [vmem:[#allocation6 + $0xa10] sm:$0xff]
        %v4137 = vld [vmem:[#allocation6 + $0xa18] sm:$0xff]
        %v4138 = vld [vmem:[#allocation6 + $0xa20] sm:$0xff]
        %v4139 = vld [vmem:[#allocation6 + $0xa28] sm:$0xff]
        %v4140 = vld [vmem:[#allocation6 + $0xa30] sm:$0xff]
        %v4141 = vld [vmem:[#allocation6 + $0xa38] sm:$0xff]
        %v4142 = vld [vmem:[#allocation6 + $0xa40] sm:$0xff]
        %v4143 = vld [vmem:[#allocation6 + $0xa48] sm:$0xff]
        %v4144 = vld [vmem:[#allocation6 + $0xa50] sm:$0xff]
        %v4145 = vld [vmem:[#allocation6 + $0xa58] sm:$0xff]
        %v4146 = vld [vmem:[#allocation6 + $0xa60] sm:$0xff]
        %v4147 = vld [vmem:[#allocation6 + $0xa68] sm:$0xff]
        %v4148 = vld [vmem:[#allocation6 + $0xa70] sm:$0xff]
        %v4149 = vld [vmem:[#allocation6 + $0xa78] sm:$0xff]
        %v4150 = vld [vmem:[#allocation6 + $0xa80] sm:$0xff]
        %v4151 = vld [vmem:[#allocation6 + $0xa88] sm:$0xff]
        %v4152 = vld [vmem:[#allocation6 + $0xa90] sm:$0xff]
        %v4153 = vld [vmem:[#allocation6 + $0xa98] sm:$0xff]
        %v4154 = vld [vmem:[#allocation6 + $0xaa0] sm:$0xff]
        %v4155 = vld [vmem:[#allocation6 + $0xaa8] sm:$0xff]
        %v4156 = vld [vmem:[#allocation6 + $0xab0] sm:$0xff]
        %v4157 = vld [vmem:[#allocation6 + $0xab8] sm:$0xff]
        %v4158 = vld [vmem:[#allocation6 + $0xac0] sm:$0xff]
        %v4159 = vld [vmem:[#allocation6 + $0xac8] sm:$0xff]
        %v4160 = vld [vmem:[#allocation6 + $0xad0] sm:$0xff]
        %v4161 = vld [vmem:[#allocation6 + $0xad8] sm:$0xff]
        %v4162 = vld [vmem:[#allocation6 + $0xae0] sm:$0xff]
        %v4163 = vld [vmem:[#allocation6 + $0xae8] sm:$0xff]
        %v4164 = vld [vmem:[#allocation6 + $0xaf0] sm:$0xff]
        %v4165 = vld [vmem:[#allocation6 + $0xaf8] sm:$0xff]
        %v4166 = vld [vmem:[#allocation6 + $0xb00] sm:$0xff]
        %v4167 = vld [vmem:[#allocation6 + $0xb08] sm:$0xff]
        %v4168 = vld [vmem:[#allocation6 + $0xb10] sm:$0xff]
        %v4169 = vld [vmem:[#allocation6 + $0xb18] sm:$0xff]
        %v4170 = vld [vmem:[#allocation6 + $0xb20] sm:$0xff]
        %v4171 = vld [vmem:[#allocation6 + $0xb28] sm:$0xff]
        %v4172 = vld [vmem:[#allocation6 + $0xb30] sm:$0xff]
        %v4173 = vld [vmem:[#allocation6 + $0xb38] sm:$0xff]
        %v4174 = vld [vmem:[#allocation6 + $0xb40] sm:$0xff]
        %v4175 = vld [vmem:[#allocation6 + $0xb48] sm:$0xff]
        %v4176 = vld [vmem:[#allocation6 + $0xb50] sm:$0xff]
        %v4177 = vld [vmem:[#allocation6 + $0xb58] sm:$0xff]
        %v4178 = vld [vmem:[#allocation6 + $0xb60] sm:$0xff]
        %v4179 = vld [vmem:[#allocation6 + $0xb68] sm:$0xff]
        %v4180 = vld [vmem:[#allocation6 + $0xb70] sm:$0xff]
        %v4181 = vld [vmem:[#allocation6 + $0xb78] sm:$0xff]
        %v4182 = vld [vmem:[#allocation6 + $0xb80] sm:$0xff]
        %v4183 = vld [vmem:[#allocation6 + $0xb88] sm:$0xff]
        %v4184 = vld [vmem:[#allocation6 + $0xb90] sm:$0xff]
        %v4185 = vld [vmem:[#allocation6 + $0xb98] sm:$0xff]
        %v4186 = vld [vmem:[#allocation6 + $0xba0] sm:$0xff]
        %v4187 = vld [vmem:[#allocation6 + $0xba8] sm:$0xff]
        %v4188 = vld [vmem:[#allocation6 + $0xbb0] sm:$0xff]
        %v4189 = vld [vmem:[#allocation6 + $0xbb8] sm:$0xff]
        %v4190 = vld [vmem:[#allocation6 + $0xbc0] sm:$0xff]
        %v4191 = vld [vmem:[#allocation6 + $0xbc8] sm:$0xff]
        %v4192 = vld [vmem:[#allocation6 + $0xbd0] sm:$0xff]
        %v4193 = vld [vmem:[#allocation6 + $0xbd8] sm:$0xff]
        %v4194 = vld [vmem:[#allocation6 + $0xbe0] sm:$0xff]
        %v4195 = vld [vmem:[#allocation6 + $0xbe8] sm:$0xff]
        %v4196 = vld [vmem:[#allocation6 + $0xbf0] sm:$0xff]
        %v4197 = vld [vmem:[#allocation6 + $0xbf8] sm:$0xff]
        %v4198 = vld [vmem:[#allocation6 + $0xc00] sm:$0xff]
        %v4199 = vld [vmem:[#allocation6 + $0xc08] sm:$0xff]
        %v4200 = vld [vmem:[#allocation6 + $0xc10] sm:$0xff]
        %v4201 = vld [vmem:[#allocation6 + $0xc18] sm:$0xff]
        %v4202 = vld [vmem:[#allocation6 + $0xc20] sm:$0xff]
        %v4203 = vld [vmem:[#allocation6 + $0xc28] sm:$0xff]
        %v4204 = vld [vmem:[#allocation6 + $0xc30] sm:$0xff]
        %v4205 = vld [vmem:[#allocation6 + $0xc38] sm:$0xff]
        %v4206 = vld [vmem:[#allocation6 + $0xc40] sm:$0xff]
        %v4207 = vld [vmem:[#allocation6 + $0xc48] sm:$0xff]
        %v4208 = vld [vmem:[#allocation6 + $0xc50] sm:$0xff]
        %v4209 = vld [vmem:[#allocation6 + $0xc58] sm:$0xff]
        %v4210 = vld [vmem:[#allocation6 + $0xc60] sm:$0xff]
        %v4211 = vld [vmem:[#allocation6 + $0xc68] sm:$0xff]
        %v4212 = vld [vmem:[#allocation6 + $0xc70] sm:$0xff]
        %v4213 = vld [vmem:[#allocation6 + $0xc78] sm:$0xff]
        %v4214 = vld [vmem:[#allocation6 + $0xc80] sm:$0xff]
        %v4215 = vld [vmem:[#allocation6 + $0xc88] sm:$0xff]
        %v4216 = vld [vmem:[#allocation6 + $0xc90] sm:$0xff]
        %v4217 = vld [vmem:[#allocation6 + $0xc98] sm:$0xff]
        %v4218 = vld [vmem:[#allocation6 + $0xca0] sm:$0xff]
        %v4219 = vld [vmem:[#allocation6 + $0xca8] sm:$0xff]
        %v4220 = vld [vmem:[#allocation6 + $0xcb0] sm:$0xff]
        %v4221 = vld [vmem:[#allocation6 + $0xcb8] sm:$0xff]
        %v4222 = vld [vmem:[#allocation6 + $0xcc0] sm:$0xff]
        %v4223 = vld [vmem:[#allocation6 + $0xcc8] sm:$0xff]
        %v4224 = vld [vmem:[#allocation6 + $0xcd0] sm:$0xff]
        %v4225 = vld [vmem:[#allocation6 + $0xcd8] sm:$0xff]
        %v4226 = vld [vmem:[#allocation6 + $0xce0] sm:$0xff]
        %v4227 = vld [vmem:[#allocation6 + $0xce8] sm:$0xff]
        %v4228 = vld [vmem:[#allocation6 + $0xcf0] sm:$0xff]
        %v4229 = vld [vmem:[#allocation6 + $0xcf8] sm:$0xff]
        %v4230 = vld [vmem:[#allocation6 + $0xd00] sm:$0xff]
        %v4231 = vld [vmem:[#allocation6 + $0xd08] sm:$0xff]
        %v4232 = vld [vmem:[#allocation6 + $0xd10] sm:$0xff]
        %v4233 = vld [vmem:[#allocation6 + $0xd18] sm:$0xff]
        %v4234 = vld [vmem:[#allocation6 + $0xd20] sm:$0xff]
        %v4235 = vld [vmem:[#allocation6 + $0xd28] sm:$0xff]
        %v4236 = vld [vmem:[#allocation6 + $0xd30] sm:$0xff]
        %v4237 = vld [vmem:[#allocation6 + $0xd38] sm:$0xff]
        %v4238 = vld [vmem:[#allocation6 + $0xd40] sm:$0xff]
        %v4239 = vld [vmem:[#allocation6 + $0xd48] sm:$0xff]
        %v4240 = vld [vmem:[#allocation6 + $0xd50] sm:$0xff]
        %v4241 = vld [vmem:[#allocation6 + $0xd58] sm:$0xff]
        %v4242 = vld [vmem:[#allocation6 + $0xd60] sm:$0xff]
        %v4243 = vld [vmem:[#allocation6 + $0xd68] sm:$0xff]
        %v4244 = vld [vmem:[#allocation6 + $0xd70] sm:$0xff]
        %v4245 = vld [vmem:[#allocation6 + $0xd78] sm:$0xff]
        %v4246 = vld [vmem:[#allocation6 + $0xd80] sm:$0xff]
        %v4247 = vld [vmem:[#allocation6 + $0xd88] sm:$0xff]
        %v4248 = vld [vmem:[#allocation6 + $0xd90] sm:$0xff]
        %v4249 = vld [vmem:[#allocation6 + $0xd98] sm:$0xff]
        %v4250 = vld [vmem:[#allocation6 + $0xda0] sm:$0xff]
        %v4251 = vld [vmem:[#allocation6 + $0xda8] sm:$0xff]
        %v4252 = vld [vmem:[#allocation6 + $0xdb0] sm:$0xff]
        %v4253 = vld [vmem:[#allocation6 + $0xdb8] sm:$0xff]
        %v4254 = vld [vmem:[#allocation6 + $0xdc0] sm:$0xff]
        %v4255 = vld [vmem:[#allocation6 + $0xdc8] sm:$0xff]
        %v4256 = vld [vmem:[#allocation6 + $0xdd0] sm:$0xff]
        %v4257 = vld [vmem:[#allocation6 + $0xdd8] sm:$0xff]
        %v4258 = vld [vmem:[#allocation6 + $0xde0] sm:$0xff]
        %v4259 = vld [vmem:[#allocation6 + $0xde8] sm:$0xff]
        %v4260 = vld [vmem:[#allocation6 + $0xdf0] sm:$0xff]
        %v4261 = vld [vmem:[#allocation6 + $0xdf8] sm:$0xff]
        %v4262 = vld [vmem:[#allocation6 + $0xe00] sm:$0xff]
        %v4263 = vld [vmem:[#allocation6 + $0xe08] sm:$0xff]
        %v4264 = vld [vmem:[#allocation6 + $0xe10] sm:$0xff]
        %v4265 = vld [vmem:[#allocation6 + $0xe18] sm:$0xff]
        %v4266 = vld [vmem:[#allocation6 + $0xe20] sm:$0xff]
        %v4267 = vld [vmem:[#allocation6 + $0xe28] sm:$0xff]
        %v4268 = vld [vmem:[#allocation6 + $0xe30] sm:$0xff]
        %v4269 = vld [vmem:[#allocation6 + $0xe38] sm:$0xff]
        %v4270 = vld [vmem:[#allocation6 + $0xe40] sm:$0xff]
        %v4271 = vld [vmem:[#allocation6 + $0xe48] sm:$0xff]
        %v4272 = vld [vmem:[#allocation6 + $0xe50] sm:$0xff]
        %v4273 = vld [vmem:[#allocation6 + $0xe58] sm:$0xff]
        %v4274 = vld [vmem:[#allocation6 + $0xe60] sm:$0xff]
        %v4275 = vld [vmem:[#allocation6 + $0xe68] sm:$0xff]
        %v4276 = vld [vmem:[#allocation6 + $0xe70] sm:$0xff]
        %v4277 = vld [vmem:[#allocation6 + $0xe78] sm:$0xff]
        %v4278 = vld [vmem:[#allocation6 + $0xe80] sm:$0xff]
        %v4279 = vld [vmem:[#allocation6 + $0xe88] sm:$0xff]
        %v4280 = vld [vmem:[#allocation6 + $0xe90] sm:$0xff]
        %v4281 = vld [vmem:[#allocation6 + $0xe98] sm:$0xff]
        %v4282 = vld [vmem:[#allocation6 + $0xea0] sm:$0xff]
        %v4283 = vld [vmem:[#allocation6 + $0xea8] sm:$0xff]
        %v4284 = vld [vmem:[#allocation6 + $0xeb0] sm:$0xff]
        %v4285 = vld [vmem:[#allocation6 + $0xeb8] sm:$0xff]
        %v4286 = vld [vmem:[#allocation6 + $0xec0] sm:$0xff]
        %v4287 = vld [vmem:[#allocation6 + $0xec8] sm:$0xff]
        %v4288 = vld [vmem:[#allocation6 + $0xed0] sm:$0xff]
        %v4289 = vld [vmem:[#allocation6 + $0xed8] sm:$0xff]
        %v4290 = vld [vmem:[#allocation6 + $0xee0] sm:$0xff]
        %v4291 = vld [vmem:[#allocation6 + $0xee8] sm:$0xff]
        %v4292 = vld [vmem:[#allocation6 + $0xef0] sm:$0xff]
        %v4293 = vld [vmem:[#allocation6 + $0xef8] sm:$0xff]
        %v4294 = vld [vmem:[#allocation6 + $0xf00] sm:$0xff]
        %v4295 = vld [vmem:[#allocation6 + $0xf08] sm:$0xff]
        %v4296 = vld [vmem:[#allocation6 + $0xf10] sm:$0xff]
        %v4297 = vld [vmem:[#allocation6 + $0xf18] sm:$0xff]
        %v4298 = vld [vmem:[#allocation6 + $0xf20] sm:$0xff]
        %v4299 = vld [vmem:[#allocation6 + $0xf28] sm:$0xff]
        %v4300 = vld [vmem:[#allocation6 + $0xf30] sm:$0xff]
        %v4301 = vld [vmem:[#allocation6 + $0xf38] sm:$0xff]
        %v4302 = vld [vmem:[#allocation6 + $0xf40] sm:$0xff]
        %v4303 = vld [vmem:[#allocation6 + $0xf48] sm:$0xff]
        %v4304 = vld [vmem:[#allocation6 + $0xf50] sm:$0xff]
        %v4305 = vld [vmem:[#allocation6 + $0xf58] sm:$0xff]
        %v4306 = vld [vmem:[#allocation6 + $0xf60] sm:$0xff]
        %v4307 = vld [vmem:[#allocation6 + $0xf68] sm:$0xff]
        %v4308 = vld [vmem:[#allocation6 + $0xf70] sm:$0xff]
        %v4309 = vld [vmem:[#allocation6 + $0xf78] sm:$0xff]
        %v4310 = vld [vmem:[#allocation6 + $0xf80] sm:$0xff]
        %v4311 = vld [vmem:[#allocation6 + $0xf88] sm:$0xff]
        %v4312 = vld [vmem:[#allocation6 + $0xf90] sm:$0xff]
        %v4313 = vld [vmem:[#allocation6 + $0xf98] sm:$0xff]
        %v4314 = vld [vmem:[#allocation6 + $0xfa0] sm:$0xff]
        %v4315 = vld [vmem:[#allocation6 + $0xfa8] sm:$0xff]
        %v4316 = vld [vmem:[#allocation6 + $0xfb0] sm:$0xff]
        %v4317 = vld [vmem:[#allocation6 + $0xfb8] sm:$0xff]
        %v4318 = vld [vmem:[#allocation6 + $0xfc0] sm:$0xff]
        %v4319 = vld [vmem:[#allocation6 + $0xfc8] sm:$0xff]
        %v4320 = vld [vmem:[#allocation6 + $0xfd0] sm:$0xff]
        %v4321 = vld [vmem:[#allocation6 + $0xfd8] sm:$0xff]
        %v4322 = vld [vmem:[#allocation6 + $0xfe0] sm:$0xff]
        %v4323 = vld [vmem:[#allocation6 + $0xfe8] sm:$0xff]
        %v4324 = vld [vmem:[#allocation6 + $0xff0] sm:$0xff]
        %v4325 = vld [vmem:[#allocation6 + $0xff8] sm:$0xff]
        %v4326 = vld [vmem:[#allocation6 + $0x1000] sm:$0xff]
        %v4327 = vld [vmem:[#allocation6 + $0x1008] sm:$0xff]
        %v4328 = vld [vmem:[#allocation6 + $0x1010] sm:$0xff]
        %v4329 = vld [vmem:[#allocation6 + $0x1018] sm:$0xff]
        %v4330 = vld [vmem:[#allocation6 + $0x1020] sm:$0xff]
        %v4331 = vld [vmem:[#allocation6 + $0x1028] sm:$0xff]
        %v4332 = vld [vmem:[#allocation6 + $0x1030] sm:$0xff]
        %v4333 = vld [vmem:[#allocation6 + $0x1038] sm:$0xff]
        %v4334 = vld [vmem:[#allocation6 + $0x1040] sm:$0xff]
        %v4335 = vld [vmem:[#allocation6 + $0x1048] sm:$0xff]
        %v4336 = vld [vmem:[#allocation6 + $0x1050] sm:$0xff]
        %v4337 = vld [vmem:[#allocation6 + $0x1058] sm:$0xff]
        %v4338 = vld [vmem:[#allocation6 + $0x1060] sm:$0xff]
        %v4339 = vld [vmem:[#allocation6 + $0x1068] sm:$0xff]
        %v4340 = vld [vmem:[#allocation6 + $0x1070] sm:$0xff]
        %v4341 = vld [vmem:[#allocation6 + $0x1078] sm:$0xff]
        %v4342 = vld [vmem:[#allocation6 + $0x1080] sm:$0xff]
        %v4343 = vld [vmem:[#allocation6 + $0x1088] sm:$0xff]
        %v4344 = vld [vmem:[#allocation6 + $0x1090] sm:$0xff]
        %v4345 = vld [vmem:[#allocation6 + $0x1098] sm:$0xff]
        %v4346 = vld [vmem:[#allocation6 + $0x10a0] sm:$0xff]
        %v4347 = vld [vmem:[#allocation6 + $0x10a8] sm:$0xff]
        %v4348 = vld [vmem:[#allocation6 + $0x10b0] sm:$0xff]
        %v4349 = vld [vmem:[#allocation6 + $0x10b8] sm:$0xff]
        %v4350 = vld [vmem:[#allocation6 + $0x10c0] sm:$0xff]
        %v4351 = vld [vmem:[#allocation6 + $0x10c8] sm:$0xff]
        %v4352 = vld [vmem:[#allocation6 + $0x10d0] sm:$0xff]
        %v4353 = vld [vmem:[#allocation6 + $0x10d8] sm:$0xff]
        %v4354 = vld [vmem:[#allocation6 + $0x10e0] sm:$0xff]
        %v4355 = vld [vmem:[#allocation6 + $0x10e8] sm:$0xff]
        %v4356 = vld [vmem:[#allocation6 + $0x10f0] sm:$0xff]
        %v4357 = vld [vmem:[#allocation6 + $0x10f8] sm:$0xff]
        %v4358 = vld [vmem:[#allocation6 + $0x1100] sm:$0xff]
        %v4359 = vld [vmem:[#allocation6 + $0x1108] sm:$0xff]
        %v4360 = vld [vmem:[#allocation6 + $0x1110] sm:$0xff]
        %v4361 = vld [vmem:[#allocation6 + $0x1118] sm:$0xff]
        %v4362 = vld [vmem:[#allocation6 + $0x1120] sm:$0xff]
        %v4363 = vld [vmem:[#allocation6 + $0x1128] sm:$0xff]
        %v4364 = vld [vmem:[#allocation6 + $0x1130] sm:$0xff]
        %v4365 = vld [vmem:[#allocation6 + $0x1138] sm:$0xff]
        %v4366 = vld [vmem:[#allocation6 + $0x1140] sm:$0xff]
        %v4367 = vld [vmem:[#allocation6 + $0x1148] sm:$0xff]
        %v4368 = vld [vmem:[#allocation6 + $0x1150] sm:$0xff]
        %v4369 = vld [vmem:[#allocation6 + $0x1158] sm:$0xff]
        %v4370 = vld [vmem:[#allocation6 + $0x1160] sm:$0xff]
        %v4371 = vld [vmem:[#allocation6 + $0x1168] sm:$0xff]
        %v4372 = vld [vmem:[#allocation6 + $0x1170] sm:$0xff]
        %v4373 = vld [vmem:[#allocation6 + $0x1178] sm:$0xff]
        %v4374 = vld [vmem:[#allocation6 + $0x1180] sm:$0xff]
        %v4375 = vld [vmem:[#allocation6 + $0x1188] sm:$0xff]
        %v4376 = vld [vmem:[#allocation6 + $0x1190] sm:$0xff]
        %v4377 = vld [vmem:[#allocation6 + $0x1198] sm:$0xff]
        %v4378 = vld [vmem:[#allocation6 + $0x11a0] sm:$0xff]
        %v4379 = vld [vmem:[#allocation6 + $0x11a8] sm:$0xff]
        %v4380 = vld [vmem:[#allocation6 + $0x11b0] sm:$0xff]
        %v4381 = vld [vmem:[#allocation6 + $0x11b8] sm:$0xff]
        %v4382 = vld [vmem:[#allocation6 + $0x11c0] sm:$0xff]
        %v4383 = vld [vmem:[#allocation6 + $0x11c8] sm:$0xff]
        %v4384 = vld [vmem:[#allocation6 + $0x11d0] sm:$0xff]
        %v4385 = vld [vmem:[#allocation6 + $0x11d8] sm:$0xff]
        %v4386 = vld [vmem:[#allocation6 + $0x11e0] sm:$0xff]
        %v4387 = vld [vmem:[#allocation6 + $0x11e8] sm:$0xff]
        %v4388 = vld [vmem:[#allocation6 + $0x11f0] sm:$0xff]
        %v4389 = vld [vmem:[#allocation6 + $0x11f8] sm:$0xff]
        %v4390 = vld [vmem:[#allocation6 + $0x1200] sm:$0xff]
        %v4391 = vld [vmem:[#allocation6 + $0x1208] sm:$0xff]
        %v4392 = vld [vmem:[#allocation6 + $0x1210] sm:$0xff]
        %v4393 = vld [vmem:[#allocation6 + $0x1218] sm:$0xff]
        %v4394 = vld [vmem:[#allocation6 + $0x1220] sm:$0xff]
        %v4395 = vld [vmem:[#allocation6 + $0x1228] sm:$0xff]
        %v4396 = vld [vmem:[#allocation6 + $0x1230] sm:$0xff]
        %v4397 = vld [vmem:[#allocation6 + $0x1238] sm:$0xff]
        %v4398 = vld [vmem:[#allocation6 + $0x1240] sm:$0xff]
        %v4399 = vld [vmem:[#allocation6 + $0x1248] sm:$0xff]
        %v4400 = vld [vmem:[#allocation6 + $0x1250] sm:$0xff]
        %v4401 = vld [vmem:[#allocation6 + $0x1258] sm:$0xff]
        %v4402 = vld [vmem:[#allocation6 + $0x1260] sm:$0xff]
        %v4403 = vld [vmem:[#allocation6 + $0x1268] sm:$0xff]
        %v4404 = vld [vmem:[#allocation6 + $0x1270] sm:$0xff]
        %v4405 = vld [vmem:[#allocation6 + $0x1278] sm:$0xff]
        %v4406 = vld [vmem:[#allocation6 + $0x1280] sm:$0xff]
        %v4407 = vld [vmem:[#allocation6 + $0x1288] sm:$0xff]
        %v4408 = vld [vmem:[#allocation6 + $0x1290] sm:$0xff]
        %v4409 = vld [vmem:[#allocation6 + $0x1298] sm:$0xff]
        %v4410 = vld [vmem:[#allocation6 + $0x12a0] sm:$0xff]
        %v4411 = vld [vmem:[#allocation6 + $0x12a8] sm:$0xff]
        %v4412 = vld [vmem:[#allocation6 + $0x12b0] sm:$0xff]
        %v4413 = vld [vmem:[#allocation6 + $0x12b8] sm:$0xff]
        %v4414 = vld [vmem:[#allocation6 + $0x12c0] sm:$0xff]
        %v4415 = vld [vmem:[#allocation6 + $0x12c8] sm:$0xff]
        %v4416 = vld [vmem:[#allocation6 + $0x12d0] sm:$0xff]
        %v4417 = vld [vmem:[#allocation6 + $0x12d8] sm:$0xff]
        %v4418 = vld [vmem:[#allocation6 + $0x12e0] sm:$0xff]
        %v4419 = vld [vmem:[#allocation6 + $0x12e8] sm:$0xff]
        %v4420 = vld [vmem:[#allocation6 + $0x12f0] sm:$0xff]
        %v4421 = vld [vmem:[#allocation6 + $0x12f8] sm:$0xff]
        %v4422 = vld [vmem:[#allocation6 + $0x1300] sm:$0xff]
        %v4423 = vld [vmem:[#allocation6 + $0x1308] sm:$0xff]
        %v4424 = vld [vmem:[#allocation6 + $0x1310] sm:$0xff]
        %v4425 = vld [vmem:[#allocation6 + $0x1318] sm:$0xff]
        %v4426 = vld [vmem:[#allocation6 + $0x1320] sm:$0xff]
        %v4427 = vld [vmem:[#allocation6 + $0x1328] sm:$0xff]
        %v4428 = vld [vmem:[#allocation6 + $0x1330] sm:$0xff]
        %v4429 = vld [vmem:[#allocation6 + $0x1338] sm:$0xff]
        %v4430 = vld [vmem:[#allocation6 + $0x1340] sm:$0xff]
        %v4431 = vld [vmem:[#allocation6 + $0x1348] sm:$0xff]
        %v4432 = vld [vmem:[#allocation6 + $0x1350] sm:$0xff]
        %v4433 = vld [vmem:[#allocation6 + $0x1358] sm:$0xff]
        %v4434 = vld [vmem:[#allocation6 + $0x1360] sm:$0xff]
        %v4435 = vld [vmem:[#allocation6 + $0x1368] sm:$0xff]
        %v4436 = vld [vmem:[#allocation6 + $0x1370] sm:$0xff]
        %v4437 = vld [vmem:[#allocation6 + $0x1378] sm:$0xff]
        %v4438 = vld [vmem:[#allocation6 + $0x1380] sm:$0xff]
        %v4439 = vld [vmem:[#allocation6 + $0x1388] sm:$0xff]
        %v4440 = vld [vmem:[#allocation6 + $0x1390] sm:$0xff]
        %v4441 = vld [vmem:[#allocation6 + $0x1398] sm:$0xff]
        %v4442 = vld [vmem:[#allocation6 + $0x13a0] sm:$0xff]
        %v4443 = vld [vmem:[#allocation6 + $0x13a8] sm:$0xff]
        %v4444 = vld [vmem:[#allocation6 + $0x13b0] sm:$0xff]
        %v4445 = vld [vmem:[#allocation6 + $0x13b8] sm:$0xff]
        %v4446 = vld [vmem:[#allocation6 + $0x13c0] sm:$0xff]
        %v4447 = vld [vmem:[#allocation6 + $0x13c8] sm:$0xff]
        %v4448 = vld [vmem:[#allocation6 + $0x13d0] sm:$0xff]
        %v4449 = vld [vmem:[#allocation6 + $0x13d8] sm:$0xff]
        %v4450 = vld [vmem:[#allocation6 + $0x13e0] sm:$0xff]
        %v4451 = vld [vmem:[#allocation6 + $0x13e8] sm:$0xff]
        %v4452 = vld [vmem:[#allocation6 + $0x13f0] sm:$0xff]
        %v4453 = vld [vmem:[#allocation6 + $0x13f8] sm:$0xff]
        %v4454 = vld [vmem:[#allocation6 + $0x1400] sm:$0xff]
        %v4455 = vld [vmem:[#allocation6 + $0x1408] sm:$0xff]
        %v4456 = vld [vmem:[#allocation6 + $0x1410] sm:$0xff]
        %v4457 = vld [vmem:[#allocation6 + $0x1418] sm:$0xff]
        %v4458 = vld [vmem:[#allocation6 + $0x1420] sm:$0xff]
        %v4459 = vld [vmem:[#allocation6 + $0x1428] sm:$0xff]
        %v4460 = vld [vmem:[#allocation6 + $0x1430] sm:$0xff]
        %v4461 = vld [vmem:[#allocation6 + $0x1438] sm:$0xff]
        %v4462 = vld [vmem:[#allocation6 + $0x1440] sm:$0xff]
        %v4463 = vld [vmem:[#allocation6 + $0x1448] sm:$0xff]
        %v4464 = vld [vmem:[#allocation6 + $0x1450] sm:$0xff]
        %v4465 = vld [vmem:[#allocation6 + $0x1458] sm:$0xff]
        %v4466 = vld [vmem:[#allocation6 + $0x1460] sm:$0xff]
        %v4467 = vld [vmem:[#allocation6 + $0x1468] sm:$0xff]
        %v4468 = vld [vmem:[#allocation6 + $0x1470] sm:$0xff]
        %v4469 = vld [vmem:[#allocation6 + $0x1478] sm:$0xff]
        %v4470 = vld [vmem:[#allocation6 + $0x1480] sm:$0xff]
        %v4471 = vld [vmem:[#allocation6 + $0x1488] sm:$0xff]
        %v4472 = vld [vmem:[#allocation6 + $0x1490] sm:$0xff]
        %v4473 = vld [vmem:[#allocation6 + $0x1498] sm:$0xff]
        %v4474 = vld [vmem:[#allocation6 + $0x14a0] sm:$0xff]
        %v4475 = vld [vmem:[#allocation6 + $0x14a8] sm:$0xff]
        %v4476 = vld [vmem:[#allocation6 + $0x14b0] sm:$0xff]
        %v4477 = vld [vmem:[#allocation6 + $0x14b8] sm:$0xff]
        %v4478 = vld [vmem:[#allocation6 + $0x14c0] sm:$0xff]
        %v4479 = vld [vmem:[#allocation6 + $0x14c8] sm:$0xff]
        %v4480 = vld [vmem:[#allocation6 + $0x14d0] sm:$0xff]
        %v4481 = vld [vmem:[#allocation6 + $0x14d8] sm:$0xff]
        %v4482 = vld [vmem:[#allocation6 + $0x14e0] sm:$0xff]
        %v4483 = vld [vmem:[#allocation6 + $0x14e8] sm:$0xff]
        %v4484 = vld [vmem:[#allocation6 + $0x14f0] sm:$0xff]
        %v4485 = vld [vmem:[#allocation6 + $0x14f8] sm:$0xff]
        %v4486 = vld [vmem:[#allocation6 + $0x1500] sm:$0xff]
        %v4487 = vld [vmem:[#allocation6 + $0x1508] sm:$0xff]
        %v4488 = vld [vmem:[#allocation6 + $0x1510] sm:$0xff]
        %v4489 = vld [vmem:[#allocation6 + $0x1518] sm:$0xff]
        %v4490 = vld [vmem:[#allocation6 + $0x1520] sm:$0xff]
        %v4491 = vld [vmem:[#allocation6 + $0x1528] sm:$0xff]
        %v4492 = vld [vmem:[#allocation6 + $0x1530] sm:$0xff]
        %v4493 = vld [vmem:[#allocation6 + $0x1538] sm:$0xff]
        %v4494 = vld [vmem:[#allocation6 + $0x1540] sm:$0xff]
        %v4495 = vld [vmem:[#allocation6 + $0x1548] sm:$0xff]
        %v4496 = vld [vmem:[#allocation6 + $0x1550] sm:$0xff]
        %v4497 = vld [vmem:[#allocation6 + $0x1558] sm:$0xff]
        %v4498 = vld [vmem:[#allocation6 + $0x1560] sm:$0xff]
        %v4499 = vld [vmem:[#allocation6 + $0x1568] sm:$0xff]
        %v4500 = vld [vmem:[#allocation6 + $0x1570] sm:$0xff]
        %v4501 = vld [vmem:[#allocation6 + $0x1578] sm:$0xff]
        %v4502 = vld [vmem:[#allocation6 + $0x1580] sm:$0xff]
        %v4503 = vld [vmem:[#allocation6 + $0x1588] sm:$0xff]
        %v4504 = vld [vmem:[#allocation6 + $0x1590] sm:$0xff]
        %v4505 = vld [vmem:[#allocation6 + $0x1598] sm:$0xff]
        %v4506 = vld [vmem:[#allocation6 + $0x15a0] sm:$0xff]
        %v4507 = vld [vmem:[#allocation6 + $0x15a8] sm:$0xff]
        %v4508 = vld [vmem:[#allocation6 + $0x15b0] sm:$0xff]
        %v4509 = vld [vmem:[#allocation6 + $0x15b8] sm:$0xff]
        %v4510 = vld [vmem:[#allocation6 + $0x15c0] sm:$0xff]
        %v4511 = vld [vmem:[#allocation6 + $0x15c8] sm:$0xff]
        %v4512 = vld [vmem:[#allocation6 + $0x15d0] sm:$0xff]
        %v4513 = vld [vmem:[#allocation6 + $0x15d8] sm:$0xff]
        %v4514 = vld [vmem:[#allocation6 + $0x15e0] sm:$0xff]
        %v4515 = vld [vmem:[#allocation6 + $0x15e8] sm:$0xff]
        %v4516 = vld [vmem:[#allocation6 + $0x15f0] sm:$0xff]
        %v4517 = vld [vmem:[#allocation6 + $0x15f8] sm:$0xff]
        %v4518 = vld [vmem:[#allocation6 + $0x1600] sm:$0xff]
        %v4519 = vld [vmem:[#allocation6 + $0x1608] sm:$0xff]
        %v4520 = vld [vmem:[#allocation6 + $0x1610] sm:$0xff]
        %v4521 = vld [vmem:[#allocation6 + $0x1618] sm:$0xff]
        %v4522 = vld [vmem:[#allocation6 + $0x1620] sm:$0xff]
        %v4523 = vld [vmem:[#allocation6 + $0x1628] sm:$0xff]
        %v4524 = vld [vmem:[#allocation6 + $0x1630] sm:$0xff]
        %v4525 = vld [vmem:[#allocation6 + $0x1638] sm:$0xff]
        %v4526 = vld [vmem:[#allocation6 + $0x1640] sm:$0xff]
        %v4527 = vld [vmem:[#allocation6 + $0x1648] sm:$0xff]
        %v4528 = vld [vmem:[#allocation6 + $0x1650] sm:$0xff]
        %v4529 = vld [vmem:[#allocation6 + $0x1658] sm:$0xff]
        %v4530 = vld [vmem:[#allocation6 + $0x1660] sm:$0xff]
        %v4531 = vld [vmem:[#allocation6 + $0x1668] sm:$0xff]
        %v4532 = vld [vmem:[#allocation6 + $0x1670] sm:$0xff]
        %v4533 = vld [vmem:[#allocation6 + $0x1678] sm:$0xff]
        %v4534 = vld [vmem:[#allocation6 + $0x1680] sm:$0xff]
        %v4535 = vld [vmem:[#allocation6 + $0x1688] sm:$0xff]
        %v4536 = vld [vmem:[#allocation6 + $0x1690] sm:$0xff]
        %v4537 = vld [vmem:[#allocation6 + $0x1698] sm:$0xff]
        %v4538 = vld [vmem:[#allocation6 + $0x16a0] sm:$0xff]
        %v4539 = vld [vmem:[#allocation6 + $0x16a8] sm:$0xff]
        %v4540 = vld [vmem:[#allocation6 + $0x16b0] sm:$0xff]
        %v4541 = vld [vmem:[#allocation6 + $0x16b8] sm:$0xff]
        %v4542 = vld [vmem:[#allocation6 + $0x16c0] sm:$0xff]
        %v4543 = vld [vmem:[#allocation6 + $0x16c8] sm:$0xff]
        %v4544 = vld [vmem:[#allocation6 + $0x16d0] sm:$0xff]
        %v4545 = vld [vmem:[#allocation6 + $0x16d8] sm:$0xff]
        %v4546 = vld [vmem:[#allocation6 + $0x16e0] sm:$0xff]
        %v4547 = vld [vmem:[#allocation6 + $0x16e8] sm:$0xff]
        %v4548 = vld [vmem:[#allocation6 + $0x16f0] sm:$0xff]
        %v4549 = vld [vmem:[#allocation6 + $0x16f8] sm:$0xff]
        %v4550 = vld [vmem:[#allocation6 + $0x1700] sm:$0xff]
        %v4551 = vld [vmem:[#allocation6 + $0x1708] sm:$0xff]
        %v4552 = vld [vmem:[#allocation6 + $0x1710] sm:$0xff]
        %v4553 = vld [vmem:[#allocation6 + $0x1718] sm:$0xff]
        %v4554 = vld [vmem:[#allocation6 + $0x1720] sm:$0xff]
        %v4555 = vld [vmem:[#allocation6 + $0x1728] sm:$0xff]
        %v4556 = vld [vmem:[#allocation6 + $0x1730] sm:$0xff]
        %v4557 = vld [vmem:[#allocation6 + $0x1738] sm:$0xff]
        %v4558 = vld [vmem:[#allocation6 + $0x1740] sm:$0xff]
        %v4559 = vld [vmem:[#allocation6 + $0x1748] sm:$0xff]
        %v4560 = vld [vmem:[#allocation6 + $0x1750] sm:$0xff]
        %v4561 = vld [vmem:[#allocation6 + $0x1758] sm:$0xff]
        %v4562 = vld [vmem:[#allocation6 + $0x1760] sm:$0xff]
        %v4563 = vld [vmem:[#allocation6 + $0x1768] sm:$0xff]
        %v4564 = vld [vmem:[#allocation6 + $0x1770] sm:$0xff]
        %v4565 = vld [vmem:[#allocation6 + $0x1778] sm:$0xff]
        %v4566 = vld [vmem:[#allocation6 + $0x1780] sm:$0xff]
        %v4567 = vld [vmem:[#allocation6 + $0x1788] sm:$0xff]
        %v4568 = vld [vmem:[#allocation6 + $0x1790] sm:$0xff]
        %v4569 = vld [vmem:[#allocation6 + $0x1798] sm:$0xff]
        %v4570 = vld [vmem:[#allocation6 + $0x17a0] sm:$0xff]
        %v4571 = vld [vmem:[#allocation6 + $0x17a8] sm:$0xff]
        %v4572 = vld [vmem:[#allocation6 + $0x17b0] sm:$0xff]
        %v4573 = vld [vmem:[#allocation6 + $0x17b8] sm:$0xff]
        %v4574 = vld [vmem:[#allocation6 + $0x17c0] sm:$0xff]
        %v4575 = vld [vmem:[#allocation6 + $0x17c8] sm:$0xff]
        %v4576 = vld [vmem:[#allocation6 + $0x17d0] sm:$0xff]
        %v4577 = vld [vmem:[#allocation6 + $0x17d8] sm:$0xff]
        %v4578 = vld [vmem:[#allocation6 + $0x17e0] sm:$0xff]
        %v4579 = vld [vmem:[#allocation6 + $0x17e8] sm:$0xff]
        %v4580 = vld [vmem:[#allocation6 + $0x17f0] sm:$0xff]
        %v4581 = vld [vmem:[#allocation6 + $0x17f8] sm:$0xff]
        %v4582 = vld [vmem:[#allocation6 + $0x1800] sm:$0xff]
        %v4583 = vld [vmem:[#allocation6 + $0x1808] sm:$0xff]
        %v4584 = vld [vmem:[#allocation6 + $0x1810] sm:$0xff]
        %v4585 = vld [vmem:[#allocation6 + $0x1818] sm:$0xff]
        %v4586 = vld [vmem:[#allocation6 + $0x1820] sm:$0xff]
        %v4587 = vld [vmem:[#allocation6 + $0x1828] sm:$0xff]
        %v4588 = vld [vmem:[#allocation6 + $0x1830] sm:$0xff]
        %v4589 = vld [vmem:[#allocation6 + $0x1838] sm:$0xff]
        %v4590 = vld [vmem:[#allocation6 + $0x1840] sm:$0xff]
        %v4591 = vld [vmem:[#allocation6 + $0x1848] sm:$0xff]
        %v4592 = vld [vmem:[#allocation6 + $0x1850] sm:$0xff]
        %v4593 = vld [vmem:[#allocation6 + $0x1858] sm:$0xff]
        %v4594 = vld [vmem:[#allocation6 + $0x1860] sm:$0xff]
        %v4595 = vld [vmem:[#allocation6 + $0x1868] sm:$0xff]
        %v4596 = vld [vmem:[#allocation6 + $0x1870] sm:$0xff]
        %v4597 = vld [vmem:[#allocation6 + $0x1878] sm:$0xff]
        %v4598 = vld [vmem:[#allocation6 + $0x1880] sm:$0xff]
        %v4599 = vld [vmem:[#allocation6 + $0x1888] sm:$0xff]
        %v4600 = vld [vmem:[#allocation6 + $0x1890] sm:$0xff]
        %v4601 = vld [vmem:[#allocation6 + $0x1898] sm:$0xff]
        %v4602 = vld [vmem:[#allocation6 + $0x18a0] sm:$0xff]
        %v4603 = vld [vmem:[#allocation6 + $0x18a8] sm:$0xff]
        %v4604 = vld [vmem:[#allocation6 + $0x18b0] sm:$0xff]
        %v4605 = vld [vmem:[#allocation6 + $0x18b8] sm:$0xff]
        %v4606 = vld [vmem:[#allocation6 + $0x18c0] sm:$0xff]
        %v4607 = vld [vmem:[#allocation6 + $0x18c8] sm:$0xff]
        %v4608 = vld [vmem:[#allocation6 + $0x18d0] sm:$0xff]
        %v4609 = vld [vmem:[#allocation6 + $0x18d8] sm:$0xff]
        %v4610 = vld [vmem:[#allocation6 + $0x18e0] sm:$0xff]
        %v4611 = vld [vmem:[#allocation6 + $0x18e8] sm:$0xff]
        %v4612 = vld [vmem:[#allocation6 + $0x18f0] sm:$0xff]
        %v4613 = vld [vmem:[#allocation6 + $0x18f8] sm:$0xff]
        %v4614 = vld [vmem:[#allocation6 + $0x1900] sm:$0xff]
        %v4615 = vld [vmem:[#allocation6 + $0x1908] sm:$0xff]
        %v4616 = vld [vmem:[#allocation6 + $0x1910] sm:$0xff]
        %v4617 = vld [vmem:[#allocation6 + $0x1918] sm:$0xff]
        %v4618 = vld [vmem:[#allocation6 + $0x1920] sm:$0xff]
        %v4619 = vld [vmem:[#allocation6 + $0x1928] sm:$0xff]
        %v4620 = vld [vmem:[#allocation6 + $0x1930] sm:$0xff]
        %v4621 = vld [vmem:[#allocation6 + $0x1938] sm:$0xff]
        %v4622 = vld [vmem:[#allocation6 + $0x1940] sm:$0xff]
        %v4623 = vld [vmem:[#allocation6 + $0x1948] sm:$0xff]
        %v4624 = vld [vmem:[#allocation6 + $0x1950] sm:$0xff]
        %v4625 = vld [vmem:[#allocation6 + $0x1958] sm:$0xff]
        %v4626 = vld [vmem:[#allocation6 + $0x1960] sm:$0xff]
        %v4627 = vld [vmem:[#allocation6 + $0x1968] sm:$0xff]
        %v4628 = vld [vmem:[#allocation6 + $0x1970] sm:$0xff]
        %v4629 = vld [vmem:[#allocation6 + $0x1978] sm:$0xff]
        %v4630 = vld [vmem:[#allocation6 + $0x1980] sm:$0xff]
        %v4631 = vld [vmem:[#allocation6 + $0x1988] sm:$0xff]
        %v4632 = vld [vmem:[#allocation6 + $0x1990] sm:$0xff]
        %v4633 = vld [vmem:[#allocation6 + $0x1998] sm:$0xff]
        %v4634 = vld [vmem:[#allocation6 + $0x19a0] sm:$0xff]
        %v4635 = vld [vmem:[#allocation6 + $0x19a8] sm:$0xff]
        %v4636 = vld [vmem:[#allocation6 + $0x19b0] sm:$0xff]
        %v4637 = vld [vmem:[#allocation6 + $0x19b8] sm:$0xff]
        %v4638 = vld [vmem:[#allocation6 + $0x19c0] sm:$0xff]
        %v4639 = vld [vmem:[#allocation6 + $0x19c8] sm:$0xff]
        %v4640 = vld [vmem:[#allocation6 + $0x19d0] sm:$0xff]
        %v4641 = vld [vmem:[#allocation6 + $0x19d8] sm:$0xff]
        %v4642 = vld [vmem:[#allocation6 + $0x19e0] sm:$0xff]
        %v4643 = vld [vmem:[#allocation6 + $0x19e8] sm:$0xff]
        %v4644 = vld [vmem:[#allocation6 + $0x19f0] sm:$0xff]
        %v4645 = vld [vmem:[#allocation6 + $0x19f8] sm:$0xff]
        %v4646 = vld [vmem:[#allocation6 + $0x1a00] sm:$0xff]
        %v4647 = vld [vmem:[#allocation6 + $0x1a08] sm:$0xff]
        %v4648 = vld [vmem:[#allocation6 + $0x1a10] sm:$0xff]
        %v4649 = vld [vmem:[#allocation6 + $0x1a18] sm:$0xff]
        %v4650 = vld [vmem:[#allocation6 + $0x1a20] sm:$0xff]
        %v4651 = vld [vmem:[#allocation6 + $0x1a28] sm:$0xff]
        %v4652 = vld [vmem:[#allocation6 + $0x1a30] sm:$0xff]
        %v4653 = vld [vmem:[#allocation6 + $0x1a38] sm:$0xff]
        %v4654 = vld [vmem:[#allocation6 + $0x1a40] sm:$0xff]
        %v4655 = vld [vmem:[#allocation6 + $0x1a48] sm:$0xff]
        %v4656 = vld [vmem:[#allocation6 + $0x1a50] sm:$0xff]
        %v4657 = vld [vmem:[#allocation6 + $0x1a58] sm:$0xff]
        %v4658 = vld [vmem:[#allocation6 + $0x1a60] sm:$0xff]
        %v4659 = vld [vmem:[#allocation6 + $0x1a68] sm:$0xff]
        %v4660 = vld [vmem:[#allocation6 + $0x1a70] sm:$0xff]
        %v4661 = vld [vmem:[#allocation6 + $0x1a78] sm:$0xff]
        %v4662 = vld [vmem:[#allocation6 + $0x1a80] sm:$0xff]
        %v4663 = vld [vmem:[#allocation6 + $0x1a88] sm:$0xff]
        %v4664 = vld [vmem:[#allocation6 + $0x1a90] sm:$0xff]
        %v4665 = vld [vmem:[#allocation6 + $0x1a98] sm:$0xff]
        %v4666 = vld [vmem:[#allocation6 + $0x1aa0] sm:$0xff]
        %v4667 = vld [vmem:[#allocation6 + $0x1aa8] sm:$0xff]
        %v4668 = vld [vmem:[#allocation6 + $0x1ab0] sm:$0xff]
        %v4669 = vld [vmem:[#allocation6 + $0x1ab8] sm:$0xff]
        %v4670 = vld [vmem:[#allocation6 + $0x1ac0] sm:$0xff]
        %v4671 = vld [vmem:[#allocation6 + $0x1ac8] sm:$0xff]
        %v4672 = vld [vmem:[#allocation6 + $0x1ad0] sm:$0xff]
        %v4673 = vld [vmem:[#allocation6 + $0x1ad8] sm:$0xff]
        %v4674 = vld [vmem:[#allocation6 + $0x1ae0] sm:$0xff]
        %v4675 = vld [vmem:[#allocation6 + $0x1ae8] sm:$0xff]
        %v4676 = vld [vmem:[#allocation6 + $0x1af0] sm:$0xff]
        %v4677 = vld [vmem:[#allocation6 + $0x1af8] sm:$0xff]
        %v4678 = vld [vmem:[#allocation6 + $0x1b00] sm:$0xff]
        %v4679 = vld [vmem:[#allocation6 + $0x1b08] sm:$0xff]
        %v4680 = vld [vmem:[#allocation6 + $0x1b10] sm:$0xff]
        %v4681 = vld [vmem:[#allocation6 + $0x1b18] sm:$0xff]
        %v4682 = vld [vmem:[#allocation6 + $0x1b20] sm:$0xff]
        %v4683 = vld [vmem:[#allocation6 + $0x1b28] sm:$0xff]
        %v4684 = vld [vmem:[#allocation6 + $0x1b30] sm:$0xff]
        %v4685 = vld [vmem:[#allocation6 + $0x1b38] sm:$0xff]
        %v4686 = vld [vmem:[#allocation6 + $0x1b40] sm:$0xff]
        %v4687 = vld [vmem:[#allocation6 + $0x1b48] sm:$0xff]
        %v4688 = vld [vmem:[#allocation6 + $0x1b50] sm:$0xff]
        %v4689 = vld [vmem:[#allocation6 + $0x1b58] sm:$0xff]
        %v4690 = vld [vmem:[#allocation6 + $0x1b60] sm:$0xff]
        %v4691 = vld [vmem:[#allocation6 + $0x1b68] sm:$0xff]
        %v4692 = vld [vmem:[#allocation6 + $0x1b70] sm:$0xff]
        %v4693 = vld [vmem:[#allocation6 + $0x1b78] sm:$0xff]
        %v4694 = vld [vmem:[#allocation6 + $0x1b80] sm:$0xff]
        %v4695 = vld [vmem:[#allocation6 + $0x1b88] sm:$0xff]
        %v4696 = vld [vmem:[#allocation6 + $0x1b90] sm:$0xff]
        %v4697 = vld [vmem:[#allocation6 + $0x1b98] sm:$0xff]
        %v4698 = vld [vmem:[#allocation6 + $0x1ba0] sm:$0xff]
        %v4699 = vld [vmem:[#allocation6 + $0x1ba8] sm:$0xff]
        %v4700 = vld [vmem:[#allocation6 + $0x1bb0] sm:$0xff]
        %v4701 = vld [vmem:[#allocation6 + $0x1bb8] sm:$0xff]
        %v4702 = vld [vmem:[#allocation6 + $0x1bc0] sm:$0xff]
        %v4703 = vld [vmem:[#allocation6 + $0x1bc8] sm:$0xff]
        %v4704 = vld [vmem:[#allocation6 + $0x1bd0] sm:$0xff]
        %v4705 = vld [vmem:[#allocation6 + $0x1bd8] sm:$0xff]
        %v4706 = vld [vmem:[#allocation6 + $0x1be0] sm:$0xff]
        %v4707 = vld [vmem:[#allocation6 + $0x1be8] sm:$0xff]
        %v4708 = vld [vmem:[#allocation6 + $0x1bf0] sm:$0xff]
        %v4709 = vld [vmem:[#allocation6 + $0x1bf8] sm:$0xff]
        %v4710 = vld [vmem:[#allocation6 + $0x1c00] sm:$0xff]
        %v4711 = vld [vmem:[#allocation6 + $0x1c08] sm:$0xff]
        %v4712 = vld [vmem:[#allocation6 + $0x1c10] sm:$0xff]
        %v4713 = vld [vmem:[#allocation6 + $0x1c18] sm:$0xff]
        %v4714 = vld [vmem:[#allocation6 + $0x1c20] sm:$0xff]
        %v4715 = vld [vmem:[#allocation6 + $0x1c28] sm:$0xff]
        %v4716 = vld [vmem:[#allocation6 + $0x1c30] sm:$0xff]
        %v4717 = vld [vmem:[#allocation6 + $0x1c38] sm:$0xff]
        %v4718 = vld [vmem:[#allocation6 + $0x1c40] sm:$0xff]
        %v4719 = vld [vmem:[#allocation6 + $0x1c48] sm:$0xff]
        %v4720 = vld [vmem:[#allocation6 + $0x1c50] sm:$0xff]
        %v4721 = vld [vmem:[#allocation6 + $0x1c58] sm:$0xff]
        %v4722 = vld [vmem:[#allocation6 + $0x1c60] sm:$0xff]
        %v4723 = vld [vmem:[#allocation6 + $0x1c68] sm:$0xff]
        %v4724 = vld [vmem:[#allocation6 + $0x1c70] sm:$0xff]
        %v4725 = vld [vmem:[#allocation6 + $0x1c78] sm:$0xff]
        %v4726 = vld [vmem:[#allocation6 + $0x1c80] sm:$0xff]
        %v4727 = vld [vmem:[#allocation6 + $0x1c88] sm:$0xff]
        %v4728 = vld [vmem:[#allocation6 + $0x1c90] sm:$0xff]
        %v4729 = vld [vmem:[#allocation6 + $0x1c98] sm:$0xff]
        %v4730 = vld [vmem:[#allocation6 + $0x1ca0] sm:$0xff]
        %v4731 = vld [vmem:[#allocation6 + $0x1ca8] sm:$0xff]
        %v4732 = vld [vmem:[#allocation6 + $0x1cb0] sm:$0xff]
        %v4733 = vld [vmem:[#allocation6 + $0x1cb8] sm:$0xff]
        %v4734 = vld [vmem:[#allocation6 + $0x1cc0] sm:$0xff]
        %v4735 = vld [vmem:[#allocation6 + $0x1cc8] sm:$0xff]
        %v4736 = vld [vmem:[#allocation6 + $0x1cd0] sm:$0xff]
        %v4737 = vld [vmem:[#allocation6 + $0x1cd8] sm:$0xff]
        %v4738 = vld [vmem:[#allocation6 + $0x1ce0] sm:$0xff]
        %v4739 = vld [vmem:[#allocation6 + $0x1ce8] sm:$0xff]
        %v4740 = vld [vmem:[#allocation6 + $0x1cf0] sm:$0xff]
        %v4741 = vld [vmem:[#allocation6 + $0x1cf8] sm:$0xff]
        %v4742 = vld [vmem:[#allocation6 + $0x1d00] sm:$0xff]
        %v4743 = vld [vmem:[#allocation6 + $0x1d08] sm:$0xff]
        %v4744 = vld [vmem:[#allocation6 + $0x1d10] sm:$0xff]
        %v4745 = vld [vmem:[#allocation6 + $0x1d18] sm:$0xff]
        %v4746 = vld [vmem:[#allocation6 + $0x1d20] sm:$0xff]
        %v4747 = vld [vmem:[#allocation6 + $0x1d28] sm:$0xff]
        %v4748 = vld [vmem:[#allocation6 + $0x1d30] sm:$0xff]
        %v4749 = vld [vmem:[#allocation6 + $0x1d38] sm:$0xff]
        %v4750 = vld [vmem:[#allocation6 + $0x1d40] sm:$0xff]
        %v4751 = vld [vmem:[#allocation6 + $0x1d48] sm:$0xff]
        %v4752 = vld [vmem:[#allocation6 + $0x1d50] sm:$0xff]
        %v4753 = vld [vmem:[#allocation6 + $0x1d58] sm:$0xff]
        %v4754 = vld [vmem:[#allocation6 + $0x1d60] sm:$0xff]
        %v4755 = vld [vmem:[#allocation6 + $0x1d68] sm:$0xff]
        %v4756 = vld [vmem:[#allocation6 + $0x1d70] sm:$0xff]
        %v4757 = vld [vmem:[#allocation6 + $0x1d78] sm:$0xff]
        %v4758 = vld [vmem:[#allocation6 + $0x1d80] sm:$0xff]
        %v4759 = vld [vmem:[#allocation6 + $0x1d88] sm:$0xff]
        %v4760 = vld [vmem:[#allocation6 + $0x1d90] sm:$0xff]
        %v4761 = vld [vmem:[#allocation6 + $0x1d98] sm:$0xff]
        %v4762 = vld [vmem:[#allocation6 + $0x1da0] sm:$0xff]
        %v4763 = vld [vmem:[#allocation6 + $0x1da8] sm:$0xff]
        %v4764 = vld [vmem:[#allocation6 + $0x1db0] sm:$0xff]
        %v4765 = vld [vmem:[#allocation6 + $0x1db8] sm:$0xff]
        %v4766 = vld [vmem:[#allocation6 + $0x1dc0] sm:$0xff]
        %v4767 = vld [vmem:[#allocation6 + $0x1dc8] sm:$0xff]
        %v4768 = vld [vmem:[#allocation6 + $0x1dd0] sm:$0xff]
        %v4769 = vld [vmem:[#allocation6 + $0x1dd8] sm:$0xff]
        %v4770 = vld [vmem:[#allocation6 + $0x1de0] sm:$0xff]
        %v4771 = vld [vmem:[#allocation6 + $0x1de8] sm:$0xff]
        %v4772 = vld [vmem:[#allocation6 + $0x1df0] sm:$0xff]
        %v4773 = vld [vmem:[#allocation6 + $0x1df8] sm:$0xff]
        %v4774 = vld [vmem:[#allocation6 + $0x1e00] sm:$0xff]
        %v4775 = vld [vmem:[#allocation6 + $0x1e08] sm:$0xff]
        %v4776 = vld [vmem:[#allocation6 + $0x1e10] sm:$0xff]
        %v4777 = vld [vmem:[#allocation6 + $0x1e18] sm:$0xff]
        %v4778 = vld [vmem:[#allocation6 + $0x1e20] sm:$0xff]
        %v4779 = vld [vmem:[#allocation6 + $0x1e28] sm:$0xff]
        %v4780 = vld [vmem:[#allocation6 + $0x1e30] sm:$0xff]
        %v4781 = vld [vmem:[#allocation6 + $0x1e38] sm:$0xff]
        %v4782 = vld [vmem:[#allocation6 + $0x1e40] sm:$0xff]
        %v4783 = vld [vmem:[#allocation6 + $0x1e48] sm:$0xff]
        %v4784 = vld [vmem:[#allocation6 + $0x1e50] sm:$0xff]
        %v4785 = vld [vmem:[#allocation6 + $0x1e58] sm:$0xff]
        %v4786 = vld [vmem:[#allocation6 + $0x1e60] sm:$0xff]
        %v4787 = vld [vmem:[#allocation6 + $0x1e68] sm:$0xff]
        %v4788 = vld [vmem:[#allocation6 + $0x1e70] sm:$0xff]
        %v4789 = vld [vmem:[#allocation6 + $0x1e78] sm:$0xff]
        %v4790 = vld [vmem:[#allocation6 + $0x1e80] sm:$0xff]
        %v4791 = vld [vmem:[#allocation6 + $0x1e88] sm:$0xff]
        %v4792 = vld [vmem:[#allocation6 + $0x1e90] sm:$0xff]
        %v4793 = vld [vmem:[#allocation6 + $0x1e98] sm:$0xff]
        %v4794 = vld [vmem:[#allocation6 + $0x1ea0] sm:$0xff]
        %v4795 = vld [vmem:[#allocation6 + $0x1ea8] sm:$0xff]
        %v4796 = vld [vmem:[#allocation6 + $0x1eb0] sm:$0xff]
        %v4797 = vld [vmem:[#allocation6 + $0x1eb8] sm:$0xff]
        %v4798 = vld [vmem:[#allocation6 + $0x1ec0] sm:$0xff]
        %v4799 = vld [vmem:[#allocation6 + $0x1ec8] sm:$0xff]
        %v4800 = vld [vmem:[#allocation6 + $0x1ed0] sm:$0xff]
        %v4801 = vld [vmem:[#allocation6 + $0x1ed8] sm:$0xff]
        %v4802 = vld [vmem:[#allocation6 + $0x1ee0] sm:$0xff]
        %v4803 = vld [vmem:[#allocation6 + $0x1ee8] sm:$0xff]
        %v4804 = vld [vmem:[#allocation6 + $0x1ef0] sm:$0xff]
        %v4805 = vld [vmem:[#allocation6 + $0x1ef8] sm:$0xff]
        %v4806 = vld [vmem:[#allocation6 + $0x1f00] sm:$0xff]
        %v4807 = vld [vmem:[#allocation6 + $0x1f08] sm:$0xff]
        %v4808 = vld [vmem:[#allocation6 + $0x1f10] sm:$0xff]
        %v4809 = vld [vmem:[#allocation6 + $0x1f18] sm:$0xff]
        %v4810 = vld [vmem:[#allocation6 + $0x1f20] sm:$0xff]
        %v4811 = vld [vmem:[#allocation6 + $0x1f28] sm:$0xff]
        %v4812 = vld [vmem:[#allocation6 + $0x1f30] sm:$0xff]
        %v4813 = vld [vmem:[#allocation6 + $0x1f38] sm:$0xff]
        %v4814 = vld [vmem:[#allocation6 + $0x1f40] sm:$0xff]
        %v4815 = vld [vmem:[#allocation6 + $0x1f48] sm:$0xff]
        %v4816 = vld [vmem:[#allocation6 + $0x1f50] sm:$0xff]
        %v4817 = vld [vmem:[#allocation6 + $0x1f58] sm:$0xff]
        %v4818 = vld [vmem:[#allocation6 + $0x1f60] sm:$0xff]
        %v4819 = vld [vmem:[#allocation6 + $0x1f68] sm:$0xff]
        %v4820 = vld [vmem:[#allocation6 + $0x1f70] sm:$0xff]
        %v4821 = vld [vmem:[#allocation6 + $0x1f78] sm:$0xff]
        %v4822 = vld [vmem:[#allocation6 + $0x1f80] sm:$0xff]
        %v4823 = vld [vmem:[#allocation6 + $0x1f88] sm:$0xff]
        %v4824 = vld [vmem:[#allocation6 + $0x1f90] sm:$0xff]
        %v4825 = vld [vmem:[#allocation6 + $0x1f98] sm:$0xff]
        %v4826 = vld [vmem:[#allocation6 + $0x1fa0] sm:$0xff]
        %v4827 = vld [vmem:[#allocation6 + $0x1fa8] sm:$0xff]
        %v4828 = vld [vmem:[#allocation6 + $0x1fb0] sm:$0xff]
        %v4829 = vld [vmem:[#allocation6 + $0x1fb8] sm:$0xff]
        %v4830 = vld [vmem:[#allocation6 + $0x1fc0] sm:$0xff]
        %v4831 = vld [vmem:[#allocation6 + $0x1fc8] sm:$0xff]
        %v4832 = vld [vmem:[#allocation6 + $0x1fd0] sm:$0xff]
        %v4833 = vld [vmem:[#allocation6 + $0x1fd8] sm:$0xff]
        %v4834 = vld [vmem:[#allocation6 + $0x1fe0] sm:$0xff]
        %v4835 = vld [vmem:[#allocation6 + $0x1fe8] sm:$0xff]
        %v4836 = vld [vmem:[#allocation6 + $0x1ff0] sm:$0xff]
        %v4837 = vld [vmem:[#allocation6 + $0x1ff8] sm:$0xff]
        %v4838 = vld [vmem:[#allocation6 + $0x2000] sm:$0xff]
        %v4839 = vld [vmem:[#allocation6 + $0x2008] sm:$0xff]
        %v4840 = vld [vmem:[#allocation6 + $0x2010] sm:$0xff]
        %v4841 = vld [vmem:[#allocation6 + $0x2018] sm:$0xff]
        %v4842 = vld [vmem:[#allocation6 + $0x2020] sm:$0xff]
        %v4843 = vld [vmem:[#allocation6 + $0x2028] sm:$0xff]
        %v4844 = vld [vmem:[#allocation6 + $0x2030] sm:$0xff]
        %v4845 = vld [vmem:[#allocation6 + $0x2038] sm:$0xff]
        %v4846 = vld [vmem:[#allocation6 + $0x2040] sm:$0xff]
        %v4847 = vld [vmem:[#allocation6 + $0x2048] sm:$0xff]
        %v4848 = vld [vmem:[#allocation6 + $0x2050] sm:$0xff]
        %v4849 = vld [vmem:[#allocation6 + $0x2058] sm:$0xff]
        %v4850 = vld [vmem:[#allocation6 + $0x2060] sm:$0xff]
        %v4851 = vld [vmem:[#allocation6 + $0x2068] sm:$0xff]
        %v4852 = vld [vmem:[#allocation6 + $0x2070] sm:$0xff]
        %v4853 = vld [vmem:[#allocation6 + $0x2078] sm:$0xff]
        %v4854 = vld [vmem:[#allocation6 + $0x2080] sm:$0xff]
        %v4855 = vld [vmem:[#allocation6 + $0x2088] sm:$0xff]
        %v4856 = vld [vmem:[#allocation6 + $0x2090] sm:$0xff]
        %v4857 = vld [vmem:[#allocation6 + $0x2098] sm:$0xff]
        %v4858 = vld [vmem:[#allocation6 + $0x20a0] sm:$0xff]
        %v4859 = vld [vmem:[#allocation6 + $0x20a8] sm:$0xff]
        %v4860 = vld [vmem:[#allocation6 + $0x20b0] sm:$0xff]
        %v4861 = vld [vmem:[#allocation6 + $0x20b8] sm:$0xff]
        %v4862 = vld [vmem:[#allocation6 + $0x20c0] sm:$0xff]
        %v4863 = vld [vmem:[#allocation6 + $0x20c8] sm:$0xff]
        %v4864 = vld [vmem:[#allocation6 + $0x20d0] sm:$0xff]
        %v4865 = vld [vmem:[#allocation6 + $0x20d8] sm:$0xff]
        %v4866 = vld [vmem:[#allocation6 + $0x20e0] sm:$0xff]
        %v4867 = vld [vmem:[#allocation6 + $0x20e8] sm:$0xff]
        %v4868 = vld [vmem:[#allocation6 + $0x20f0] sm:$0xff]
        %v4869 = vld [vmem:[#allocation6 + $0x20f8] sm:$0xff]
        %v4870 = vld [vmem:[#allocation6 + $0x2100] sm:$0xff]
        %v4871 = vld [vmem:[#allocation6 + $0x2108] sm:$0xff]
        %v4872 = vld [vmem:[#allocation6 + $0x2110] sm:$0xff]
        %v4873 = vld [vmem:[#allocation6 + $0x2118] sm:$0xff]
        %v4874 = vld [vmem:[#allocation6 + $0x2120] sm:$0xff]
        %v4875 = vld [vmem:[#allocation6 + $0x2128] sm:$0xff]
        %v4876 = vld [vmem:[#allocation6 + $0x2130] sm:$0xff]
        %v4877 = vld [vmem:[#allocation6 + $0x2138] sm:$0xff]
        %v4878 = vld [vmem:[#allocation6 + $0x2140] sm:$0xff]
        %v4879 = vld [vmem:[#allocation6 + $0x2148] sm:$0xff]
        %v4880 = vld [vmem:[#allocation6 + $0x2150] sm:$0xff]
        %v4881 = vld [vmem:[#allocation6 + $0x2158] sm:$0xff]
        %v4882 = vld [vmem:[#allocation6 + $0x2160] sm:$0xff]
        %v4883 = vld [vmem:[#allocation6 + $0x2168] sm:$0xff]
        %v4884 = vld [vmem:[#allocation6 + $0x2170] sm:$0xff]
        %v4885 = vld [vmem:[#allocation6 + $0x2178] sm:$0xff]
        %v4886 = vld [vmem:[#allocation6 + $0x2180] sm:$0xff]
        %v4887 = vld [vmem:[#allocation6 + $0x2188] sm:$0xff]
        %v4888 = vld [vmem:[#allocation6 + $0x2190] sm:$0xff]
        %v4889 = vld [vmem:[#allocation6 + $0x2198] sm:$0xff]
        %v4890 = vld [vmem:[#allocation6 + $0x21a0] sm:$0xff]
        %v4891 = vld [vmem:[#allocation6 + $0x21a8] sm:$0xff]
        %v4892 = vld [vmem:[#allocation6 + $0x21b0] sm:$0xff]
        %v4893 = vld [vmem:[#allocation6 + $0x21b8] sm:$0xff]
        %v4894 = vld [vmem:[#allocation6 + $0x21c0] sm:$0xff]
        %v4895 = vld [vmem:[#allocation6 + $0x21c8] sm:$0xff]
        %v4896 = vld [vmem:[#allocation6 + $0x21d0] sm:$0xff]
        %v4897 = vld [vmem:[#allocation6 + $0x21d8] sm:$0xff]
        %v4898 = vld [vmem:[#allocation6 + $0x21e0] sm:$0xff]
        %v4899 = vld [vmem:[#allocation6 + $0x21e8] sm:$0xff]
        %v4900 = vld [vmem:[#allocation6 + $0x21f0] sm:$0xff]
        %v4901 = vld [vmem:[#allocation6 + $0x21f8] sm:$0xff]
        %v4902 = vld [vmem:[#allocation6 + $0x2200] sm:$0xff]
        %v4903 = vld [vmem:[#allocation6 + $0x2208] sm:$0xff]
        %v4904 = vld [vmem:[#allocation6 + $0x2210] sm:$0xff]
        %v4905 = vld [vmem:[#allocation6 + $0x2218] sm:$0xff]
        %v4906 = vld [vmem:[#allocation6 + $0x2220] sm:$0xff]
        %v4907 = vld [vmem:[#allocation6 + $0x2228] sm:$0xff]
        %v4908 = vld [vmem:[#allocation6 + $0x2230] sm:$0xff]
        %v4909 = vld [vmem:[#allocation6 + $0x2238] sm:$0xff]
        %v4910 = vld [vmem:[#allocation6 + $0x2240] sm:$0xff]
        %v4911 = vld [vmem:[#allocation6 + $0x2248] sm:$0xff]
        %v4912 = vld [vmem:[#allocation6 + $0x2250] sm:$0xff]
        %v4913 = vld [vmem:[#allocation6 + $0x2258] sm:$0xff]
        %v4914 = vld [vmem:[#allocation6 + $0x2260] sm:$0xff]
        %v4915 = vld [vmem:[#allocation6 + $0x2268] sm:$0xff]
        %v4916 = vld [vmem:[#allocation6 + $0x2270] sm:$0xff]
        %v4917 = vld [vmem:[#allocation6 + $0x2278] sm:$0xff]
        %v4918 = vld [vmem:[#allocation6 + $0x2280] sm:$0xff]
        %v4919 = vld [vmem:[#allocation6 + $0x2288] sm:$0xff]
        %v4920 = vld [vmem:[#allocation6 + $0x2290] sm:$0xff]
        %v4921 = vld [vmem:[#allocation6 + $0x2298] sm:$0xff]
        %v4922 = vld [vmem:[#allocation6 + $0x22a0] sm:$0xff]
        %v4923 = vld [vmem:[#allocation6 + $0x22a8] sm:$0xff]
        %v4924 = vld [vmem:[#allocation6 + $0x22b0] sm:$0xff]
        %v4925 = vld [vmem:[#allocation6 + $0x22b8] sm:$0xff]
        %v4926 = vld [vmem:[#allocation6 + $0x22c0] sm:$0xff]
        %v4927 = vld [vmem:[#allocation6 + $0x22c8] sm:$0xff]
        %v4928 = vld [vmem:[#allocation6 + $0x22d0] sm:$0xff]
        %v4929 = vld [vmem:[#allocation6 + $0x22d8] sm:$0xff]
        %v4930 = vld [vmem:[#allocation6 + $0x22e0] sm:$0xff]
        %v4931 = vld [vmem:[#allocation6 + $0x22e8] sm:$0xff]
        %v4932 = vld [vmem:[#allocation6 + $0x22f0] sm:$0xff]
        %v4933 = vld [vmem:[#allocation6 + $0x22f8] sm:$0xff]
        %v4934 = vld [vmem:[#allocation6 + $0x2300] sm:$0xff]
        %v4935 = vld [vmem:[#allocation6 + $0x2308] sm:$0xff]
        %v4936 = vld [vmem:[#allocation6 + $0x2310] sm:$0xff]
        %v4937 = vld [vmem:[#allocation6 + $0x2318] sm:$0xff]
        %v4938 = vld [vmem:[#allocation6 + $0x2320] sm:$0xff]
        %v4939 = vld [vmem:[#allocation6 + $0x2328] sm:$0xff]
        %v4940 = vld [vmem:[#allocation6 + $0x2330] sm:$0xff]
        %v4941 = vld [vmem:[#allocation6 + $0x2338] sm:$0xff]
        %v4942 = vld [vmem:[#allocation6 + $0x2340] sm:$0xff]
        %v4943 = vld [vmem:[#allocation6 + $0x2348] sm:$0xff]
        %v4944 = vld [vmem:[#allocation6 + $0x2350] sm:$0xff]
        %v4945 = vld [vmem:[#allocation6 + $0x2358] sm:$0xff]
        %v4946 = vld [vmem:[#allocation6 + $0x2360] sm:$0xff]
        %v4947 = vld [vmem:[#allocation6 + $0x2368] sm:$0xff]
        %v4948 = vld [vmem:[#allocation6 + $0x2370] sm:$0xff]
        %v4949 = vld [vmem:[#allocation6 + $0x2378] sm:$0xff]
        %v4950 = vld [vmem:[#allocation6 + $0x2380] sm:$0xff]
        %v4951 = vld [vmem:[#allocation6 + $0x2388] sm:$0xff]
        %v4952 = vld [vmem:[#allocation6 + $0x2390] sm:$0xff]
        %v4953 = vld [vmem:[#allocation6 + $0x2398] sm:$0xff]
        %v4954 = vld [vmem:[#allocation6 + $0x23a0] sm:$0xff]
        %v4955 = vld [vmem:[#allocation6 + $0x23a8] sm:$0xff]
        %v4956 = vld [vmem:[#allocation6 + $0x23b0] sm:$0xff]
        %v4957 = vld [vmem:[#allocation6 + $0x23b8] sm:$0xff]
        %v4958 = vld [vmem:[#allocation6 + $0x23c0] sm:$0xff]
        %v4959 = vld [vmem:[#allocation6 + $0x23c8] sm:$0xff]
        %v4960 = vld [vmem:[#allocation6 + $0x23d0] sm:$0xff]
        %v4961 = vld [vmem:[#allocation6 + $0x23d8] sm:$0xff]
        %v4962 = vld [vmem:[#allocation6 + $0x23e0] sm:$0xff]
        %v4963 = vld [vmem:[#allocation6 + $0x23e8] sm:$0xff]
        %v4964 = vld [vmem:[#allocation6 + $0x23f0] sm:$0xff]
        %v4965 = vld [vmem:[#allocation6 + $0x23f8] sm:$0xff]
        %v4966 = vld [vmem:[#allocation6 + $0x2400] sm:$0xff]
        %v4967 = vld [vmem:[#allocation6 + $0x2408] sm:$0xff]
        %v4968 = vld [vmem:[#allocation6 + $0x2410] sm:$0xff]
        %v4969 = vld [vmem:[#allocation6 + $0x2418] sm:$0xff]
        %v4970 = vld [vmem:[#allocation6 + $0x2420] sm:$0xff]
        %v4971 = vld [vmem:[#allocation6 + $0x2428] sm:$0xff]
        %v4972 = vld [vmem:[#allocation6 + $0x2430] sm:$0xff]
        %v4973 = vld [vmem:[#allocation6 + $0x2438] sm:$0xff]
        %v4974 = vld [vmem:[#allocation6 + $0x2440] sm:$0xff]
        %v4975 = vld [vmem:[#allocation6 + $0x2448] sm:$0xff]
        %v4976 = vld [vmem:[#allocation6 + $0x2450] sm:$0xff]
        %v4977 = vld [vmem:[#allocation6 + $0x2458] sm:$0xff]
        %v4978 = vld [vmem:[#allocation6 + $0x2460] sm:$0xff]
        %v4979 = vld [vmem:[#allocation6 + $0x2468] sm:$0xff]
        %v4980 = vld [vmem:[#allocation6 + $0x2470] sm:$0xff]
        %v4981 = vld [vmem:[#allocation6 + $0x2478] sm:$0xff]
        %v4982 = vld [vmem:[#allocation6 + $0x2480] sm:$0xff]
        %v4983 = vld [vmem:[#allocation6 + $0x2488] sm:$0xff]
        %v4984 = vld [vmem:[#allocation6 + $0x2490] sm:$0xff]
        %v4985 = vld [vmem:[#allocation6 + $0x2498] sm:$0xff]
        %v4986 = vld [vmem:[#allocation6 + $0x24a0] sm:$0xff]
        %v4987 = vld [vmem:[#allocation6 + $0x24a8] sm:$0xff]
        %v4988 = vld [vmem:[#allocation6 + $0x24b0] sm:$0xff]
        %v4989 = vld [vmem:[#allocation6 + $0x24b8] sm:$0xff]
        %v4990 = vld [vmem:[#allocation6 + $0x24c0] sm:$0xff]
        %v4991 = vld [vmem:[#allocation6 + $0x24c8] sm:$0xff]
        %v4992 = vld [vmem:[#allocation6 + $0x24d0] sm:$0xff]
        %v4993 = vld [vmem:[#allocation6 + $0x24d8] sm:$0xff]
        %v4994 = vld [vmem:[#allocation6 + $0x24e0] sm:$0xff]
        %v4995 = vld [vmem:[#allocation6 + $0x24e8] sm:$0xff]
        %v4996 = vld [vmem:[#allocation6 + $0x24f0] sm:$0xff]
        %v4997 = vld [vmem:[#allocation6 + $0x24f8] sm:$0xff]
        %v4998 = vld [vmem:[#allocation6 + $0x2500] sm:$0xff]
        %v4999 = vld [vmem:[#allocation6 + $0x2508] sm:$0xff]
        %v5000 = vld [vmem:[#allocation6 + $0x2510] sm:$0xff]
        %v5001 = vld [vmem:[#allocation6 + $0x2518] sm:$0xff]
        %v5002 = vld [vmem:[#allocation6 + $0x2520] sm:$0xff]
        %v5003 = vld [vmem:[#allocation6 + $0x2528] sm:$0xff]
        %v5004 = vld [vmem:[#allocation6 + $0x2530] sm:$0xff]
        %v5005 = vld [vmem:[#allocation6 + $0x2538] sm:$0xff]
        %v5006 = vld [vmem:[#allocation6 + $0x2540] sm:$0xff]
        %v5007 = vld [vmem:[#allocation6 + $0x2548] sm:$0xff]
        %v5008 = vld [vmem:[#allocation6 + $0x2550] sm:$0xff]
        %v5009 = vld [vmem:[#allocation6 + $0x2558] sm:$0xff]
        %v5010 = vld [vmem:[#allocation6 + $0x2560] sm:$0xff]
        %v5011 = vld [vmem:[#allocation6 + $0x2568] sm:$0xff]
        %v5012 = vld [vmem:[#allocation6 + $0x2570] sm:$0xff]
        %v5013 = vld [vmem:[#allocation6 + $0x2578] sm:$0xff]
        %v5014 = vld [vmem:[#allocation6 + $0x2580] sm:$0xff]
        %v5015 = vld [vmem:[#allocation6 + $0x2588] sm:$0xff]
        %v5016 = vld [vmem:[#allocation6 + $0x2590] sm:$0xff]
        %v5017 = vld [vmem:[#allocation6 + $0x2598] sm:$0xff]
        %v5018 = vld [vmem:[#allocation6 + $0x25a0] sm:$0xff]
        %v5019 = vld [vmem:[#allocation6 + $0x25a8] sm:$0xff]
        %v5020 = vld [vmem:[#allocation6 + $0x25b0] sm:$0xff]
        %v5021 = vld [vmem:[#allocation6 + $0x25b8] sm:$0xff]
        %v5022 = vld [vmem:[#allocation6 + $0x25c0] sm:$0xff]
        %v5023 = vld [vmem:[#allocation6 + $0x25c8] sm:$0xff]
        %v5024 = vld [vmem:[#allocation6 + $0x25d0] sm:$0xff]
        %v5025 = vld [vmem:[#allocation6 + $0x25d8] sm:$0xff]
        %v5026 = vld [vmem:[#allocation6 + $0x25e0] sm:$0xff]
        %v5027 = vld [vmem:[#allocation6 + $0x25e8] sm:$0xff]
        %v5028 = vld [vmem:[#allocation6 + $0x25f0] sm:$0xff]
        %v5029 = vld [vmem:[#allocation6 + $0x25f8] sm:$0xff]
        %v5030 = vld [vmem:[#allocation6 + $0x2600] sm:$0xff]
        %v5031 = vld [vmem:[#allocation6 + $0x2608] sm:$0xff]
        %v5032 = vld [vmem:[#allocation6 + $0x2610] sm:$0xff]
        %v5033 = vld [vmem:[#allocation6 + $0x2618] sm:$0xff]
        %v5034 = vld [vmem:[#allocation6 + $0x2620] sm:$0xff]
        %v5035 = vld [vmem:[#allocation6 + $0x2628] sm:$0xff]
        %v5036 = vld [vmem:[#allocation6 + $0x2630] sm:$0xff]
        %v5037 = vld [vmem:[#allocation6 + $0x2638] sm:$0xff]
        %v5038 = vld [vmem:[#allocation6 + $0x2640] sm:$0xff]
        %v5039 = vld [vmem:[#allocation6 + $0x2648] sm:$0xff]
        %v5040 = vld [vmem:[#allocation6 + $0x2650] sm:$0xff]
        %v5041 = vld [vmem:[#allocation6 + $0x2658] sm:$0xff]
        %v5042 = vld [vmem:[#allocation6 + $0x2660] sm:$0xff]
        %v5043 = vld [vmem:[#allocation6 + $0x2668] sm:$0xff]
        %v5044 = vld [vmem:[#allocation6 + $0x2670] sm:$0xff]
        %v5045 = vld [vmem:[#allocation6 + $0x2678] sm:$0xff]
        %v5046 = vld [vmem:[#allocation6 + $0x2680] sm:$0xff]
        %v5047 = vld [vmem:[#allocation6 + $0x2688] sm:$0xff]
        %v5048 = vld [vmem:[#allocation6 + $0x2690] sm:$0xff]
        %v5049 = vld [vmem:[#allocation6 + $0x2698] sm:$0xff]
        %v5050 = vld [vmem:[#allocation6 + $0x26a0] sm:$0xff]
        %v5051 = vld [vmem:[#allocation6 + $0x26a8] sm:$0xff]
        %v5052 = vld [vmem:[#allocation6 + $0x26b0] sm:$0xff]
        %v5053 = vld [vmem:[#allocation6 + $0x26b8] sm:$0xff]
        %v5054 = vld [vmem:[#allocation6 + $0x26c0] sm:$0xff]
        %v5055 = vld [vmem:[#allocation6 + $0x26c8] sm:$0xff]
        %v5056 = vld [vmem:[#allocation6 + $0x26d0] sm:$0xff]
        %v5057 = vld [vmem:[#allocation6 + $0x26d8] sm:$0xff]
        %v5058 = vld [vmem:[#allocation6 + $0x26e0] sm:$0xff]
        %v5059 = vld [vmem:[#allocation6 + $0x26e8] sm:$0xff]
        %v5060 = vld [vmem:[#allocation6 + $0x26f0] sm:$0xff]
        %v5061 = vld [vmem:[#allocation6 + $0x26f8] sm:$0xff]
        %v5062 = vld [vmem:[#allocation6 + $0x2700] sm:$0xff]
        %v5063 = vld [vmem:[#allocation6 + $0x2708] sm:$0xff]
        %v5064 = vld [vmem:[#allocation6 + $0x2710] sm:$0xff]
        %v5065 = vld [vmem:[#allocation6 + $0x2718] sm:$0xff]
        %v5066 = vld [vmem:[#allocation6 + $0x2720] sm:$0xff]
        %v5067 = vld [vmem:[#allocation6 + $0x2728] sm:$0xff]
        %v5068 = vld [vmem:[#allocation6 + $0x2730] sm:$0xff]
        %v5069 = vld [vmem:[#allocation6 + $0x2738] sm:$0xff]
        %v5070 = vld [vmem:[#allocation6 + $0x2740] sm:$0xff]
        %v5071 = vld [vmem:[#allocation6 + $0x2748] sm:$0xff]
        %v5072 = vld [vmem:[#allocation6 + $0x2750] sm:$0xff]
        %v5073 = vld [vmem:[#allocation6 + $0x2758] sm:$0xff]
        %v5074 = vld [vmem:[#allocation6 + $0x2760] sm:$0xff]
        %v5075 = vld [vmem:[#allocation6 + $0x2768] sm:$0xff]
        %v5076 = vld [vmem:[#allocation6 + $0x2770] sm:$0xff]
        %v5077 = vld [vmem:[#allocation6 + $0x2778] sm:$0xff]
        %v5078 = vld [vmem:[#allocation6 + $0x2780] sm:$0xff]
        %v5079 = vld [vmem:[#allocation6 + $0x2788] sm:$0xff]
        %v5080 = vld [vmem:[#allocation6 + $0x2790] sm:$0xff]
        %v5081 = vld [vmem:[#allocation6 + $0x2798] sm:$0xff]
        %v5082 = vld [vmem:[#allocation6 + $0x27a0] sm:$0xff]
        %v5083 = vld [vmem:[#allocation6 + $0x27a8] sm:$0xff]
        %v5084 = vld [vmem:[#allocation6 + $0x27b0] sm:$0xff]
        %v5085 = vld [vmem:[#allocation6 + $0x27b8] sm:$0xff]
        %v5086 = vld [vmem:[#allocation6 + $0x27c0] sm:$0xff]
        %v5087 = vld [vmem:[#allocation6 + $0x27c8] sm:$0xff]
        %v5088 = vld [vmem:[#allocation6 + $0x27d0] sm:$0xff]
        %v5089 = vld [vmem:[#allocation6 + $0x27d8] sm:$0xff]
        %v5090 = vld [vmem:[#allocation6 + $0x27e0] sm:$0xff]
        %v5091 = vld [vmem:[#allocation6 + $0x27e8] sm:$0xff]
        %v5092 = vld [vmem:[#allocation6 + $0x27f0] sm:$0xff]
        %v5093 = vld [vmem:[#allocation6 + $0x27f8] sm:$0xff]
        %v5094 = vld [vmem:[#allocation6 + $0x2800] sm:$0xff]
        %v5095 = vld [vmem:[#allocation6 + $0x2808] sm:$0xff]
        %v5096 = vld [vmem:[#allocation6 + $0x2810] sm:$0xff]
        %v5097 = vld [vmem:[#allocation6 + $0x2818] sm:$0xff]
        %v5098 = vld [vmem:[#allocation6 + $0x2820] sm:$0xff]
        %v5099 = vld [vmem:[#allocation6 + $0x2828] sm:$0xff]
        %v5100 = vld [vmem:[#allocation6 + $0x2830] sm:$0xff]
        %v5101 = vld [vmem:[#allocation6 + $0x2838] sm:$0xff]
        %v5102 = vld [vmem:[#allocation6 + $0x2840] sm:$0xff]
        %v5103 = vld [vmem:[#allocation6 + $0x2848] sm:$0xff]
        %v5104 = vld [vmem:[#allocation6 + $0x2850] sm:$0xff]
        %v5105 = vld [vmem:[#allocation6 + $0x2858] sm:$0xff]
        %v5106 = vld [vmem:[#allocation6 + $0x2860] sm:$0xff]
        %v5107 = vld [vmem:[#allocation6 + $0x2868] sm:$0xff]
        %v5108 = vld [vmem:[#allocation6 + $0x2870] sm:$0xff]
        %v5109 = vld [vmem:[#allocation6 + $0x2878] sm:$0xff]
        %v5110 = vld [vmem:[#allocation6 + $0x2880] sm:$0xff]
        %v5111 = vld [vmem:[#allocation6 + $0x2888] sm:$0xff]
        %v5112 = vld [vmem:[#allocation6 + $0x2890] sm:$0xff]
        %v5113 = vld [vmem:[#allocation6 + $0x2898] sm:$0xff]
        %v5114 = vld [vmem:[#allocation6 + $0x28a0] sm:$0xff]
        %v5115 = vld [vmem:[#allocation6 + $0x28a8] sm:$0xff]
        %v5116 = vld [vmem:[#allocation6 + $0x28b0] sm:$0xff]
        %v5117 = vld [vmem:[#allocation6 + $0x28b8] sm:$0xff]
        %v5118 = vld [vmem:[#allocation6 + $0x28c0] sm:$0xff]
        %v5119 = vld [vmem:[#allocation6 + $0x28c8] sm:$0xff]
        %v5120 = vld [vmem:[#allocation6 + $0x28d0] sm:$0xff]
        %v5121 = vld [vmem:[#allocation6 + $0x28d8] sm:$0xff]
        %v5122 = vld [vmem:[#allocation6 + $0x28e0] sm:$0xff]
        %v5123 = vld [vmem:[#allocation6 + $0x28e8] sm:$0xff]
        %v5124 = vld [vmem:[#allocation6 + $0x28f0] sm:$0xff]
        %v5125 = vld [vmem:[#allocation6 + $0x28f8] sm:$0xff]
        %v5126 = vld [vmem:[#allocation6 + $0x2900] sm:$0xff]
        %v5127 = vld [vmem:[#allocation6 + $0x2908] sm:$0xff]
        %v5128 = vld [vmem:[#allocation6 + $0x2910] sm:$0xff]
        %v5129 = vld [vmem:[#allocation6 + $0x2918] sm:$0xff]
        %v5130 = vld [vmem:[#allocation6 + $0x2920] sm:$0xff]
        %v5131 = vld [vmem:[#allocation6 + $0x2928] sm:$0xff]
        %v5132 = vld [vmem:[#allocation6 + $0x2930] sm:$0xff]
        %v5133 = vld [vmem:[#allocation6 + $0x2938] sm:$0xff]
        %v5134 = vld [vmem:[#allocation6 + $0x2940] sm:$0xff]
        %v5135 = vld [vmem:[#allocation6 + $0x2948] sm:$0xff]
        %v5136 = vld [vmem:[#allocation6 + $0x2950] sm:$0xff]
        %v5137 = vld [vmem:[#allocation6 + $0x2958] sm:$0xff]
        %v5138 = vld [vmem:[#allocation6 + $0x2960] sm:$0xff]
        %v5139 = vld [vmem:[#allocation6 + $0x2968] sm:$0xff]
        %v5140 = vld [vmem:[#allocation6 + $0x2970] sm:$0xff]
        %v5141 = vld [vmem:[#allocation6 + $0x2978] sm:$0xff]
        %v5142 = vld [vmem:[#allocation6 + $0x2980] sm:$0xff]
        %v5143 = vld [vmem:[#allocation6 + $0x2988] sm:$0xff]
        %v5144 = vld [vmem:[#allocation6 + $0x2990] sm:$0xff]
        %v5145 = vld [vmem:[#allocation6 + $0x2998] sm:$0xff]
        %v5146 = vld [vmem:[#allocation6 + $0x29a0] sm:$0xff]
        %v5147 = vld [vmem:[#allocation6 + $0x29a8] sm:$0xff]
        %v5148 = vld [vmem:[#allocation6 + $0x29b0] sm:$0xff]
        %v5149 = vld [vmem:[#allocation6 + $0x29b8] sm:$0xff]
        %v5150 = vld [vmem:[#allocation6 + $0x29c0] sm:$0xff]
        %v5151 = vld [vmem:[#allocation6 + $0x29c8] sm:$0xff]
        %v5152 = vld [vmem:[#allocation6 + $0x29d0] sm:$0xff]
        %v5153 = vld [vmem:[#allocation6 + $0x29d8] sm:$0xff]
        %v5154 = vld [vmem:[#allocation6 + $0x29e0] sm:$0xff]
        %v5155 = vld [vmem:[#allocation6 + $0x29e8] sm:$0xff]
        %v5156 = vld [vmem:[#allocation6 + $0x29f0] sm:$0xff]
        %v5157 = vld [vmem:[#allocation6 + $0x29f8] sm:$0xff]
        %v5158 = vld [vmem:[#allocation6 + $0x2a00] sm:$0xff]
        %v5159 = vld [vmem:[#allocation6 + $0x2a08] sm:$0xff]
        %v5160 = vld [vmem:[#allocation6 + $0x2a10] sm:$0xff]
        %v5161 = vld [vmem:[#allocation6 + $0x2a18] sm:$0xff]
        %v5162 = vld [vmem:[#allocation6 + $0x2a20] sm:$0xff]
        %v5163 = vld [vmem:[#allocation6 + $0x2a28] sm:$0xff]
        %v5164 = vld [vmem:[#allocation6 + $0x2a30] sm:$0xff]
        %v5165 = vld [vmem:[#allocation6 + $0x2a38] sm:$0xff]
        %v5166 = vld [vmem:[#allocation6 + $0x2a40] sm:$0xff]
        %v5167 = vld [vmem:[#allocation6 + $0x2a48] sm:$0xff]
        %v5168 = vld [vmem:[#allocation6 + $0x2a50] sm:$0xff]
        %v5169 = vld [vmem:[#allocation6 + $0x2a58] sm:$0xff]
        %v5170 = vld [vmem:[#allocation6 + $0x2a60] sm:$0xff]
        %v5171 = vld [vmem:[#allocation6 + $0x2a68] sm:$0xff]
        %v5172 = vld [vmem:[#allocation6 + $0x2a70] sm:$0xff]
        %v5173 = vld [vmem:[#allocation6 + $0x2a78] sm:$0xff]
        %v5174 = vld [vmem:[#allocation6 + $0x2a80] sm:$0xff]
        %v5175 = vld [vmem:[#allocation6 + $0x2a88] sm:$0xff]
        %v5176 = vld [vmem:[#allocation6 + $0x2a90] sm:$0xff]
        %v5177 = vld [vmem:[#allocation6 + $0x2a98] sm:$0xff]
        %v5178 = vld [vmem:[#allocation6 + $0x2aa0] sm:$0xff]
        %v5179 = vld [vmem:[#allocation6 + $0x2aa8] sm:$0xff]
        %v5180 = vld [vmem:[#allocation6 + $0x2ab0] sm:$0xff]
        %v5181 = vld [vmem:[#allocation6 + $0x2ab8] sm:$0xff]
        %v5182 = vld [vmem:[#allocation6 + $0x2ac0] sm:$0xff]
        %v5183 = vld [vmem:[#allocation6 + $0x2ac8] sm:$0xff]
        %v5184 = vld [vmem:[#allocation6 + $0x2ad0] sm:$0xff]
        %v5185 = vld [vmem:[#allocation6 + $0x2ad8] sm:$0xff]
        %vm5186 = vcmask 261120
        %v5188 = vsel %vm5186, %v3813, 0
        %5190 = vmatprep.subr.mxu0 %v3920
        %5191 = vmatpush1.msra.mxu0 %v3919
        %5192 = vmatprep.subr.mxu0 %v3913
        %5193 = vmatpush1.msra.mxu0 %v3912
        %5194 = vmatprep.subr.mxu0 %v3906
        %5195 = vmatpush1.msra.mxu0 %v3905
        %5196 = vmatprep.subr.mxu0 %v3899
        %5197 = vmatpush1.msra.mxu0 %v3898
        %5198 = vmatprep.subr.mxu0 %v3892
        %5199 = vmatpush1.msra.mxu0 %v3891
        %5200 = vmatprep.subr.mxu0 %v3885
        %5201 = vmatpush1.msra.mxu0 %v3884
        %5202 = vmatprep.subr.mxu0 %v3878
        %5203 = vmatpush1.msra.mxu0 %v3877
        %5204 = vmatprep.subr.mxu0 %v3871
        %5205 = vmatpush1.msra.mxu0 %v3870
        %5206 = vmatprep.subr.mxu0 %v3864
        %5207 = vmatpush1.msra.mxu0 %v3863
        %5208 = vmatprep.subr.mxu0 %v3857
        %5209 = vmatpush1.msra.mxu0 %v3856
        %5210 = vmatprep.subr.mxu0 %v3850
        %5211 = vmatpush1.msra.mxu0 %v3849
        %5212 = vmatprep.subr.mxu0 %v3843
        %5213 = vmatpush1.msra.mxu0 %v3842
        %5214 = vmatprep.subr.mxu0 %v3836
        %5215 = vmatpush1.msra.mxu0 %v3835
        %5216 = vmatprep.subr.mxu0 %v3829
        %5217 = vmatpush1.msra.mxu0 %v3828
        %5218 = vmatprep.subr.mxu0 %v3822
        %5219 = vmatpush1.msra.mxu0 %v3821
        %5220 = vmatprep.subr.mxu0 %v3815
        %5221 = vmatpush1.msra.mxu0 %v3814
        %5222 = vmatprep.subr.mxu0 %v4032
        %5223 = vmatpush2.msra.mxu0 %v4031
        %5224 = vmatprep.subr.mxu0 %v4025
        %5225 = vmatpush2.msra.mxu0 %v4024
        %5226 = vmatprep.subr.mxu0 %v4018
        %5227 = vmatpush2.msra.mxu0 %v4017
        %5228 = vmatprep.subr.mxu0 %v4011
        %5229 = vmatpush2.msra.mxu0 %v4010
        %5230 = vmatprep.subr.mxu0 %v4004
        %5231 = vmatpush2.msra.mxu0 %v4003
        %5232 = vmatprep.subr.mxu0 %v3997
        %5233 = vmatpush2.msra.mxu0 %v3996
        %5234 = vmatprep.subr.mxu0 %v3990
        %5235 = vmatpush2.msra.mxu0 %v3989
        %5236 = vmatprep.subr.mxu0 %v3983
        %5237 = vmatpush2.msra.mxu0 %v3982
        %5238 = vmatprep.subr.mxu0 %v3976
        %5239 = vmatpush2.msra.mxu0 %v3975
        %5240 = vmatprep.subr.mxu0 %v3969
        %5241 = vmatpush2.msra.mxu0 %v3968
        %5242 = vmatprep.subr.mxu0 %v3962
        %5243 = vmatpush2.msra.mxu0 %v3961
        %5244 = vmatprep.subr.mxu0 %v3955
        %5245 = vmatpush2.msra.mxu0 %v3954
        %5246 = vmatprep.subr.mxu0 %v3948
        %5247 = vmatpush2.msra.mxu0 %v3947
        %5248 = vmatprep.subr.mxu0 %v3941
        %5249 = vmatpush2.msra.mxu0 %v3940
        %5250 = vmatprep.subr.mxu0 %v3934
        %5251 = vmatpush2.msra.mxu0 %v3933
        %5252 = vmatprep.subr.mxu0 %v3927
        %5253 = vmatpush2.msra.mxu0 %v3926
        %5254 = vmatprep.mubr.f32.mxu0 %v3802
        %5255 = vmatmul.mubr.f32.gmra.mxu0 %v3801
        %v5256 = vpop.f32.mrf.mxu0
        %v5257 = vadd.f32 0.0, %v5256
        %v5258 = vpop.f32.mrf.mxu0
        %v5259 = vadd.f32 0.0, %v5258
        %5260 = vdwg.mxu0
        %5261 = vmatprep.subr.mxu0 %v4144
        %5262 = vmatpush1.msra.mxu0 %v4143
        %5263 = vmatprep.subr.mxu0 %v4137
        %5264 = vmatpush1.msra.mxu0 %v4136
        %5265 = vmatprep.subr.mxu0 %v4130
        %5266 = vmatpush1.msra.mxu0 %v4129
        %5267 = vmatprep.subr.mxu0 %v4123
        %5268 = vmatpush1.msra.mxu0 %v4122
        %5269 = vmatprep.subr.mxu0 %v4116
        %5270 = vmatpush1.msra.mxu0 %v4115
        %5271 = vmatprep.subr.mxu0 %v4109
        %5272 = vmatpush1.msra.mxu0 %v4108
        %5273 = vmatprep.subr.mxu0 %v4102
        %5274 = vmatpush1.msra.mxu0 %v4101
        %5275 = vmatprep.subr.mxu0 %v4095
        %5276 = vmatpush1.msra.mxu0 %v4094
        %5277 = vmatprep.subr.mxu0 %v4088
        %5278 = vmatpush1.msra.mxu0 %v4087
        %5279 = vmatprep.subr.mxu0 %v4081
        %5280 = vmatpush1.msra.mxu0 %v4080
        %5281 = vmatprep.subr.mxu0 %v4074
        %5282 = vmatpush1.msra.mxu0 %v4073
        %5283 = vmatprep.subr.mxu0 %v4067
        %5284 = vmatpush1.msra.mxu0 %v4066
        %5285 = vmatprep.subr.mxu0 %v4060
        %5286 = vmatpush1.msra.mxu0 %v4059
        %5287 = vmatprep.subr.mxu0 %v4053
        %5288 = vmatpush1.msra.mxu0 %v4052
        %5289 = vmatprep.subr.mxu0 %v4046
        %5290 = vmatpush1.msra.mxu0 %v4045
        %5291 = vmatprep.subr.mxu0 %v4039
        %5292 = vmatpush1.msra.mxu0 %v4038
        %5293 = vmatprep.subr.mxu0 %v4256
        %5294 = vmatpush2.msra.mxu0 %v4255
        %5295 = vmatprep.subr.mxu0 %v4249
        %5296 = vmatpush2.msra.mxu0 %v4248
        %5297 = vmatprep.subr.mxu0 %v4242
        %5298 = vmatpush2.msra.mxu0 %v4241
        %5299 = vmatprep.subr.mxu0 %v4235
        %5300 = vmatpush2.msra.mxu0 %v4234
        %5301 = vmatprep.subr.mxu0 %v4228
        %5302 = vmatpush2.msra.mxu0 %v4227
        %5303 = vmatprep.subr.mxu0 %v4221
        %5304 = vmatpush2.msra.mxu0 %v4220
        %5305 = vmatprep.subr.mxu0 %v4214
        %5306 = vmatpush2.msra.mxu0 %v4213
        %5307 = vmatprep.subr.mxu0 %v4207
        %5308 = vmatpush2.msra.mxu0 %v4206
        %5309 = vmatprep.subr.mxu0 %v4200
        %5310 = vmatpush2.msra.mxu0 %v4199
        %5311 = vmatprep.subr.mxu0 %v4193
        %5312 = vmatpush2.msra.mxu0 %v4192
        %5313 = vmatprep.subr.mxu0 %v4186
        %5314 = vmatpush2.msra.mxu0 %v4185
        %5315 = vmatprep.subr.mxu0 %v4179
        %5316 = vmatpush2.msra.mxu0 %v4178
        %5317 = vmatprep.subr.mxu0 %v4172
        %5318 = vmatpush2.msra.mxu0 %v4171
        %5319 = vmatprep.subr.mxu0 %v4165
        %5320 = vmatpush2.msra.mxu0 %v4164
        %5321 = vmatprep.subr.mxu0 %v4158
        %5322 = vmatpush2.msra.mxu0 %v4157
        %5323 = vmatprep.subr.mxu0 %v4151
        %5324 = vmatpush2.msra.mxu0 %v4150
        %5325 = vmatprep.mubr.f32.mxu0 %v3804
        %5326 = vmatmul.mubr.f32.gmra.mxu0 %v3803
        %v5327 = vpop.f32.mrf.mxu0
        %v5328 = vadd.f32 %v5257, %v5327
        %v5329 = vpop.f32.mrf.mxu0
        %v5330 = vadd.f32 %v5259, %v5329
        %5331 = vdwg.mxu0
        %5332 = vmatprep.subr.mxu0 %v4368
        %5333 = vmatpush1.msra.mxu0 %v4367
        %5334 = vmatprep.subr.mxu0 %v4361
        %5335 = vmatpush1.msra.mxu0 %v4360
        %5336 = vmatprep.subr.mxu0 %v4354
        %5337 = vmatpush1.msra.mxu0 %v4353
        %5338 = vmatprep.subr.mxu0 %v4347
        %5339 = vmatpush1.msra.mxu0 %v4346
        %5340 = vmatprep.subr.mxu0 %v4340
        %5341 = vmatpush1.msra.mxu0 %v4339
        %5342 = vmatprep.subr.mxu0 %v4333
        %5343 = vmatpush1.msra.mxu0 %v4332
        %5344 = vmatprep.subr.mxu0 %v4326
        %5345 = vmatpush1.msra.mxu0 %v4325
        %5346 = vmatprep.subr.mxu0 %v4319
        %5347 = vmatpush1.msra.mxu0 %v4318
        %5348 = vmatprep.subr.mxu0 %v4312
        %5349 = vmatpush1.msra.mxu0 %v4311
        %5350 = vmatprep.subr.mxu0 %v4305
        %5351 = vmatpush1.msra.mxu0 %v4304
        %5352 = vmatprep.subr.mxu0 %v4298
        %5353 = vmatpush1.msra.mxu0 %v4297
        %5354 = vmatprep.subr.mxu0 %v4291
        %5355 = vmatpush1.msra.mxu0 %v4290
        %5356 = vmatprep.subr.mxu0 %v4284
        %5357 = vmatpush1.msra.mxu0 %v4283
        %5358 = vmatprep.subr.mxu0 %v4277
        %5359 = vmatpush1.msra.mxu0 %v4276
        %5360 = vmatprep.subr.mxu0 %v4270
        %5361 = vmatpush1.msra.mxu0 %v4269
        %5362 = vmatprep.subr.mxu0 %v4263
        %5363 = vmatpush1.msra.mxu0 %v4262
        %5364 = vmatprep.subr.mxu0 %v4480
        %5365 = vmatpush2.msra.mxu0 %v4479
        %5366 = vmatprep.subr.mxu0 %v4473
        %5367 = vmatpush2.msra.mxu0 %v4472
        %5368 = vmatprep.subr.mxu0 %v4466
        %5369 = vmatpush2.msra.mxu0 %v4465
        %5370 = vmatprep.subr.mxu0 %v4459
        %5371 = vmatpush2.msra.mxu0 %v4458
        %5372 = vmatprep.subr.mxu0 %v4452
        %5373 = vmatpush2.msra.mxu0 %v4451
        %5374 = vmatprep.subr.mxu0 %v4445
        %5375 = vmatpush2.msra.mxu0 %v4444
        %5376 = vmatprep.subr.mxu0 %v4438
        %5377 = vmatpush2.msra.mxu0 %v4437
        %5378 = vmatprep.subr.mxu0 %v4431
        %5379 = vmatpush2.msra.mxu0 %v4430
        %5380 = vmatprep.subr.mxu0 %v4424
        %5381 = vmatpush2.msra.mxu0 %v4423
        %5382 = vmatprep.subr.mxu0 %v4417
        %5383 = vmatpush2.msra.mxu0 %v4416
        %5384 = vmatprep.subr.mxu0 %v4410
        %5385 = vmatpush2.msra.mxu0 %v4409
        %5386 = vmatprep.subr.mxu0 %v4403
        %5387 = vmatpush2.msra.mxu0 %v4402
        %5388 = vmatprep.subr.mxu0 %v4396
        %5389 = vmatpush2.msra.mxu0 %v4395
        %5390 = vmatprep.subr.mxu0 %v4389
        %5391 = vmatpush2.msra.mxu0 %v4388
        %5392 = vmatprep.subr.mxu0 %v4382
        %5393 = vmatpush2.msra.mxu0 %v4381
        %5394 = vmatprep.subr.mxu0 %v4375
        %5395 = vmatpush2.msra.mxu0 %v4374
        %5396 = vmatprep.mubr.f32.mxu0 %v3806
        %5397 = vmatmul.mubr.f32.gmra.mxu0 %v3805
        %v5398 = vpop.f32.mrf.mxu0
        %v5399 = vadd.f32 %v5328, %v5398
        %v5400 = vpop.f32.mrf.mxu0
        %v5401 = vadd.f32 %v5330, %v5400
        %5402 = vdwg.mxu0
        %5403 = vmatprep.subr.mxu0 %v4592
        %5404 = vmatpush1.msra.mxu0 %v4591
        %5405 = vmatprep.subr.mxu0 %v4585
        %5406 = vmatpush1.msra.mxu0 %v4584
        %5407 = vmatprep.subr.mxu0 %v4578
        %5408 = vmatpush1.msra.mxu0 %v4577
        %5409 = vmatprep.subr.mxu0 %v4571
        %5410 = vmatpush1.msra.mxu0 %v4570
        %5411 = vmatprep.subr.mxu0 %v4564
        %5412 = vmatpush1.msra.mxu0 %v4563
        %5413 = vmatprep.subr.mxu0 %v4557
        %5414 = vmatpush1.msra.mxu0 %v4556
        %5415 = vmatprep.subr.mxu0 %v4550
        %5416 = vmatpush1.msra.mxu0 %v4549
        %5417 = vmatprep.subr.mxu0 %v4543
        %5418 = vmatpush1.msra.mxu0 %v4542
        %5419 = vmatprep.subr.mxu0 %v4536
        %5420 = vmatpush1.msra.mxu0 %v4535
        %5421 = vmatprep.subr.mxu0 %v4529
        %5422 = vmatpush1.msra.mxu0 %v4528
        %5423 = vmatprep.subr.mxu0 %v4522
        %5424 = vmatpush1.msra.mxu0 %v4521
        %5425 = vmatprep.subr.mxu0 %v4515
        %5426 = vmatpush1.msra.mxu0 %v4514
        %5427 = vmatprep.subr.mxu0 %v4508
        %5428 = vmatpush1.msra.mxu0 %v4507
        %5429 = vmatprep.subr.mxu0 %v4501
        %5430 = vmatpush1.msra.mxu0 %v4500
        %5431 = vmatprep.subr.mxu0 %v4494
        %5432 = vmatpush1.msra.mxu0 %v4493
        %5433 = vmatprep.subr.mxu0 %v4487
        %5434 = vmatpush1.msra.mxu0 %v4486
        %5435 = vmatprep.subr.mxu0 %v4704
        %5436 = vmatpush2.msra.mxu0 %v4703
        %5437 = vmatprep.subr.mxu0 %v4697
        %5438 = vmatpush2.msra.mxu0 %v4696
        %5439 = vmatprep.subr.mxu0 %v4690
        %5440 = vmatpush2.msra.mxu0 %v4689
        %5441 = vmatprep.subr.mxu0 %v4683
        %5442 = vmatpush2.msra.mxu0 %v4682
        %5443 = vmatprep.subr.mxu0 %v4676
        %5444 = vmatpush2.msra.mxu0 %v4675
        %5445 = vmatprep.subr.mxu0 %v4669
        %5446 = vmatpush2.msra.mxu0 %v4668
        %5447 = vmatprep.subr.mxu0 %v4662
        %5448 = vmatpush2.msra.mxu0 %v4661
        %5449 = vmatprep.subr.mxu0 %v4655
        %5450 = vmatpush2.msra.mxu0 %v4654
        %5451 = vmatprep.subr.mxu0 %v4648
        %5452 = vmatpush2.msra.mxu0 %v4647
        %5453 = vmatprep.subr.mxu0 %v4641
        %5454 = vmatpush2.msra.mxu0 %v4640
        %5455 = vmatprep.subr.mxu0 %v4634
        %5456 = vmatpush2.msra.mxu0 %v4633
        %5457 = vmatprep.subr.mxu0 %v4627
        %5458 = vmatpush2.msra.mxu0 %v4626
        %5459 = vmatprep.subr.mxu0 %v4620
        %5460 = vmatpush2.msra.mxu0 %v4619
        %5461 = vmatprep.subr.mxu0 %v4613
        %5462 = vmatpush2.msra.mxu0 %v4612
        %5463 = vmatprep.subr.mxu0 %v4606
        %5464 = vmatpush2.msra.mxu0 %v4605
        %5465 = vmatprep.subr.mxu0 %v4599
        %5466 = vmatpush2.msra.mxu0 %v4598
        %5467 = vmatprep.mubr.f32.mxu0 %v3808
        %5468 = vmatmul.mubr.f32.gmra.mxu0 %v3807
        %v5469 = vpop.f32.mrf.mxu0
        %v5470 = vadd.f32 %v5399, %v5469
        %v5471 = vpop.f32.mrf.mxu0
        %v5472 = vadd.f32 %v5401, %v5471
        %5473 = vdwg.mxu0
        %5474 = vmatprep.subr.mxu0 %v4816
        %5475 = vmatpush1.msra.mxu0 %v4815
        %5476 = vmatprep.subr.mxu0 %v4809
        %5477 = vmatpush1.msra.mxu0 %v4808
        %5478 = vmatprep.subr.mxu0 %v4802
        %5479 = vmatpush1.msra.mxu0 %v4801
        %5480 = vmatprep.subr.mxu0 %v4795
        %5481 = vmatpush1.msra.mxu0 %v4794
        %5482 = vmatprep.subr.mxu0 %v4788
        %5483 = vmatpush1.msra.mxu0 %v4787
        %5484 = vmatprep.subr.mxu0 %v4781
        %5485 = vmatpush1.msra.mxu0 %v4780
        %5486 = vmatprep.subr.mxu0 %v4774
        %5487 = vmatpush1.msra.mxu0 %v4773
        %5488 = vmatprep.subr.mxu0 %v4767
        %5489 = vmatpush1.msra.mxu0 %v4766
        %5490 = vmatprep.subr.mxu0 %v4760
        %5491 = vmatpush1.msra.mxu0 %v4759
        %5492 = vmatprep.subr.mxu0 %v4753
        %5493 = vmatpush1.msra.mxu0 %v4752
        %5494 = vmatprep.subr.mxu0 %v4746
        %5495 = vmatpush1.msra.mxu0 %v4745
        %5496 = vmatprep.subr.mxu0 %v4739
        %5497 = vmatpush1.msra.mxu0 %v4738
        %5498 = vmatprep.subr.mxu0 %v4732
        %5499 = vmatpush1.msra.mxu0 %v4731
        %5500 = vmatprep.subr.mxu0 %v4725
        %5501 = vmatpush1.msra.mxu0 %v4724
        %5502 = vmatprep.subr.mxu0 %v4718
        %5503 = vmatpush1.msra.mxu0 %v4717
        %5504 = vmatprep.subr.mxu0 %v4711
        %5505 = vmatpush1.msra.mxu0 %v4710
        %5506 = vmatprep.subr.mxu0 %v4928
        %5507 = vmatpush2.msra.mxu0 %v4927
        %5508 = vmatprep.subr.mxu0 %v4921
        %5509 = vmatpush2.msra.mxu0 %v4920
        %5510 = vmatprep.subr.mxu0 %v4914
        %5511 = vmatpush2.msra.mxu0 %v4913
        %5512 = vmatprep.subr.mxu0 %v4907
        %5513 = vmatpush2.msra.mxu0 %v4906
        %5514 = vmatprep.subr.mxu0 %v4900
        %5515 = vmatpush2.msra.mxu0 %v4899
        %5516 = vmatprep.subr.mxu0 %v4893
        %5517 = vmatpush2.msra.mxu0 %v4892
        %5518 = vmatprep.subr.mxu0 %v4886
        %5519 = vmatpush2.msra.mxu0 %v4885
        %5520 = vmatprep.subr.mxu0 %v4879
        %5521 = vmatpush2.msra.mxu0 %v4878
        %5522 = vmatprep.subr.mxu0 %v4872
        %5523 = vmatpush2.msra.mxu0 %v4871
        %5524 = vmatprep.subr.mxu0 %v4865
        %5525 = vmatpush2.msra.mxu0 %v4864
        %5526 = vmatprep.subr.mxu0 %v4858
        %5527 = vmatpush2.msra.mxu0 %v4857
        %5528 = vmatprep.subr.mxu0 %v4851
        %5529 = vmatpush2.msra.mxu0 %v4850
        %5530 = vmatprep.subr.mxu0 %v4844
        %5531 = vmatpush2.msra.mxu0 %v4843
        %5532 = vmatprep.subr.mxu0 %v4837
        %5533 = vmatpush2.msra.mxu0 %v4836
        %5534 = vmatprep.subr.mxu0 %v4830
        %5535 = vmatpush2.msra.mxu0 %v4829
        %5536 = vmatprep.subr.mxu0 %v4823
        %5537 = vmatpush2.msra.mxu0 %v4822
        %5538 = vmatprep.mubr.f32.mxu0 %v3810
        %5539 = vmatmul.mubr.f32.gmra.mxu0 %v3809
        %v5540 = vpop.f32.mrf.mxu0
        %v5541 = vadd.f32 %v5470, %v5540
        %v5542 = vpop.f32.mrf.mxu0
        %v5543 = vadd.f32 %v5472, %v5542
        %5544 = vdwg.mxu0
        %5545 = vmatprep.subr.mxu0 %v5040
        %5546 = vmatpush1.msra.mxu0 %v5039
        %5547 = vmatprep.subr.mxu0 %v5033
        %5548 = vmatpush1.msra.mxu0 %v5032
        %5549 = vmatprep.subr.mxu0 %v5026
        %5550 = vmatpush1.msra.mxu0 %v5025
        %5551 = vmatprep.subr.mxu0 %v5019
        %5552 = vmatpush1.msra.mxu0 %v5018
        %5553 = vmatprep.subr.mxu0 %v5012
        %5554 = vmatpush1.msra.mxu0 %v5011
        %5555 = vmatprep.subr.mxu0 %v5005
        %5556 = vmatpush1.msra.mxu0 %v5004
        %5557 = vmatprep.subr.mxu0 %v4998
        %5558 = vmatpush1.msra.mxu0 %v4997
        %5559 = vmatprep.subr.mxu0 %v4991
        %5560 = vmatpush1.msra.mxu0 %v4990
        %5561 = vmatprep.subr.mxu0 %v4984
        %5562 = vmatpush1.msra.mxu0 %v4983
        %5563 = vmatprep.subr.mxu0 %v4977
        %5564 = vmatpush1.msra.mxu0 %v4976
        %5565 = vmatprep.subr.mxu0 %v4970
        %5566 = vmatpush1.msra.mxu0 %v4969
        %5567 = vmatprep.subr.mxu0 %v4963
        %5568 = vmatpush1.msra.mxu0 %v4962
        %5569 = vmatprep.subr.mxu0 %v4956
        %5570 = vmatpush1.msra.mxu0 %v4955
        %5571 = vmatprep.subr.mxu0 %v4949
        %5572 = vmatpush1.msra.mxu0 %v4948
        %5573 = vmatprep.subr.mxu0 %v4942
        %5574 = vmatpush1.msra.mxu0 %v4941
        %5575 = vmatprep.subr.mxu0 %v4935
        %5576 = vmatpush1.msra.mxu0 %v4934
        %5577 = vmatprep.subr.mxu0 %v5152
        %5578 = vmatpush2.msra.mxu0 %v5151
        %5579 = vmatprep.subr.mxu0 %v5145
        %5580 = vmatpush2.msra.mxu0 %v5144
        %5581 = vmatprep.subr.mxu0 %v5138
        %5582 = vmatpush2.msra.mxu0 %v5137
        %5583 = vmatprep.subr.mxu0 %v5131
        %5584 = vmatpush2.msra.mxu0 %v5130
        %5585 = vmatprep.subr.mxu0 %v5124
        %5586 = vmatpush2.msra.mxu0 %v5123
        %5587 = vmatprep.subr.mxu0 %v5117
        %5588 = vmatpush2.msra.mxu0 %v5116
        %5589 = vmatprep.subr.mxu0 %v5110
        %5590 = vmatpush2.msra.mxu0 %v5109
        %5591 = vmatprep.subr.mxu0 %v5103
        %5592 = vmatpush2.msra.mxu0 %v5102
        %5593 = vmatprep.subr.mxu0 %v5096
        %5594 = vmatpush2.msra.mxu0 %v5095
        %5595 = vmatprep.subr.mxu0 %v5089
        %5596 = vmatpush2.msra.mxu0 %v5088
        %5597 = vmatprep.subr.mxu0 %v5082
        %5598 = vmatpush2.msra.mxu0 %v5081
        %5599 = vmatprep.subr.mxu0 %v5075
        %5600 = vmatpush2.msra.mxu0 %v5074
        %5601 = vmatprep.subr.mxu0 %v5068
        %5602 = vmatpush2.msra.mxu0 %v5067
        %5603 = vmatprep.subr.mxu0 %v5061
        %5604 = vmatpush2.msra.mxu0 %v5060
        %5605 = vmatprep.subr.mxu0 %v5054
        %5606 = vmatpush2.msra.mxu0 %v5053
        %5607 = vmatprep.subr.mxu0 %v5047
        %5608 = vmatpush2.msra.mxu0 %v5046
        %5609 = vmatprep.mubr.f32.mxu0 %v3812
        %5610 = vmatmul.mubr.f32.gmra.mxu0 %v3811
        %v5611 = vpop.f32.mrf.mxu0
        %v5612 = vadd.f32 %v5541, %v5611
        %v5613 = vpop.f32.mrf.mxu0
        %v5614 = vadd.f32 %v5543, %v5613
        %5615 = vdwg.mxu0
        %5616 = vmatprep.subr.mxu0 0.0
        %5617 = vmatpush1.msra.mxu0 0.0
        %5618 = vmatprep.subr.mxu0 0.0
        %5619 = vmatpush1.msra.mxu0 0.0
        %5620 = vmatprep.subr.mxu0 0.0
        %5621 = vmatpush1.msra.mxu0 0.0
        %5622 = vmatprep.subr.mxu0 0.0
        %5623 = vmatpush1.msra.mxu0 0.0
        %5624 = vmatprep.subr.mxu0 0.0
        %5625 = vmatpush1.msra.mxu0 0.0
        %5626 = vmatprep.subr.mxu0 0.0
        %5627 = vmatpush1.msra.mxu0 0.0
        %5628 = vmatprep.subr.mxu0 0.0
        %5629 = vmatpush1.msra.mxu0 0.0
        %5630 = vmatprep.subr.mxu0 0.0
        %5631 = vmatpush1.msra.mxu0 0.0
        %5632 = vmatprep.subr.mxu0 0.0
        %5633 = vmatpush1.msra.mxu0 0.0
        %5634 = vmatprep.subr.mxu0 0.0
        %5635 = vmatpush1.msra.mxu0 0.0
        %5636 = vmatprep.subr.mxu0 0.0
        %5637 = vmatpush1.msra.mxu0 0.0
        %5638 = vmatprep.subr.mxu0 0.0
        %5639 = vmatpush1.msra.mxu0 0.0
        %5640 = vmatprep.subr.mxu0 %v5180
        %5641 = vmatpush1.msra.mxu0 %v5179
        %5642 = vmatprep.subr.mxu0 %v5173
        %5643 = vmatpush1.msra.mxu0 %v5172
        %5644 = vmatprep.subr.mxu0 %v5166
        %5645 = vmatpush1.msra.mxu0 %v5165
        %5646 = vmatprep.subr.mxu0 %v5159
        %5647 = vmatpush1.msra.mxu0 %v5158
        %5648 = vmatprep.subr.mxu0 0.0
        %5649 = vmatpush2.msra.mxu0 0.0
        %5650 = vmatprep.subr.mxu0 0.0
        %5651 = vmatpush2.msra.mxu0 0.0
        %5652 = vmatprep.subr.mxu0 0.0
        %5653 = vmatpush2.msra.mxu0 0.0
        %5654 = vmatprep.subr.mxu0 0.0
        %5655 = vmatpush2.msra.mxu0 0.0
        %5656 = vmatprep.subr.mxu0 0.0
        %5657 = vmatpush2.msra.mxu0 0.0
        %5658 = vmatprep.subr.mxu0 0.0
        %5659 = vmatpush2.msra.mxu0 0.0
        %5660 = vmatprep.subr.mxu0 0.0
        %5661 = vmatpush2.msra.mxu0 0.0
        %5662 = vmatprep.subr.mxu0 0.0
        %5663 = vmatpush2.msra.mxu0 0.0
        %5664 = vmatprep.subr.mxu0 0.0
        %5665 = vmatpush2.msra.mxu0 0.0
        %5666 = vmatprep.subr.mxu0 0.0
        %5667 = vmatpush2.msra.mxu0 0.0
        %5668 = vmatprep.subr.mxu0 0.0
        %5669 = vmatpush2.msra.mxu0 0.0
        %5670 = vmatprep.subr.mxu0 0.0
        %5671 = vmatpush2.msra.mxu0 0.0
        %5672 = vmatprep.subr.mxu0 0.0
        %5673 = vmatpush2.msra.mxu0 0.0
        %5674 = vmatprep.subr.mxu0 0.0
        %5675 = vmatpush2.msra.mxu0 0.0
        %5676 = vmatprep.subr.mxu0 0.0
        %5677 = vmatpush2.msra.mxu0 0.0
        %5678 = vmatprep.subr.mxu0 0.0
        %5679 = vmatpush2.msra.mxu0 0.0
        %5680 = vmatprep.mubr.f32.mxu0 0.0
        %5681 = vmatmul.mubr.f32.gmra.mxu0 %v5188
        %v5682 = vpop.f32.mrf.mxu0
        %v5683 = vadd.f32 %v5612, %v5682
        %v5684 = vpop.f32.mrf.mxu0
        %v5685 = vadd.f32 %v5614, %v5684
        %5686 = vdwg.mxu0
        %5687 = vmatprep.subr.mxu0 %v3922
        %5688 = vmatpush1.msra.mxu0 %v3921
        %5689 = vmatprep.subr.mxu0 %v3915
        %5690 = vmatpush1.msra.mxu0 %v3914
        %5691 = vmatprep.subr.mxu0 %v3908
        %5692 = vmatpush1.msra.mxu0 %v3907
        %5693 = vmatprep.subr.mxu0 %v3901
        %5694 = vmatpush1.msra.mxu0 %v3900
        %5695 = vmatprep.subr.mxu0 %v3894
        %5696 = vmatpush1.msra.mxu0 %v3893
        %5697 = vmatprep.subr.mxu0 %v3887
        %5698 = vmatpush1.msra.mxu0 %v3886
        %5699 = vmatprep.subr.mxu0 %v3880
        %5700 = vmatpush1.msra.mxu0 %v3879
        %5701 = vmatprep.subr.mxu0 %v3873
        %5702 = vmatpush1.msra.mxu0 %v3872
        %5703 = vmatprep.subr.mxu0 %v3866
        %5704 = vmatpush1.msra.mxu0 %v3865
        %5705 = vmatprep.subr.mxu0 %v3859
        %5706 = vmatpush1.msra.mxu0 %v3858
        %5707 = vmatprep.subr.mxu0 %v3852
        %5708 = vmatpush1.msra.mxu0 %v3851
        %5709 = vmatprep.subr.mxu0 %v3845
        %5710 = vmatpush1.msra.mxu0 %v3844
        %5711 = vmatprep.subr.mxu0 %v3838
        %5712 = vmatpush1.msra.mxu0 %v3837
        %5713 = vmatprep.subr.mxu0 %v3831
        %5714 = vmatpush1.msra.mxu0 %v3830
        %5715 = vmatprep.subr.mxu0 %v3824
        %5716 = vmatpush1.msra.mxu0 %v3823
        %5717 = vmatprep.subr.mxu0 %v3817
        %5718 = vmatpush1.msra.mxu0 %v3816
        %5719 = vmatprep.subr.mxu0 %v4034
        %5720 = vmatpush2.msra.mxu0 %v4033
        %5721 = vmatprep.subr.mxu0 %v4027
        %5722 = vmatpush2.msra.mxu0 %v4026
        %5723 = vmatprep.subr.mxu0 %v4020
        %5724 = vmatpush2.msra.mxu0 %v4019
        %5725 = vmatprep.subr.mxu0 %v4013
        %5726 = vmatpush2.msra.mxu0 %v4012
        %5727 = vmatprep.subr.mxu0 %v4006
        %5728 = vmatpush2.msra.mxu0 %v4005
        %5729 = vmatprep.subr.mxu0 %v3999
        %5730 = vmatpush2.msra.mxu0 %v3998
        %5731 = vmatprep.subr.mxu0 %v3992
        %5732 = vmatpush2.msra.mxu0 %v3991
        %5733 = vmatprep.subr.mxu0 %v3985
        %5734 = vmatpush2.msra.mxu0 %v3984
        %5735 = vmatprep.subr.mxu0 %v3978
        %5736 = vmatpush2.msra.mxu0 %v3977
        %5737 = vmatprep.subr.mxu0 %v3971
        %5738 = vmatpush2.msra.mxu0 %v3970
        %5739 = vmatprep.subr.mxu0 %v3964
        %5740 = vmatpush2.msra.mxu0 %v3963
        %5741 = vmatprep.subr.mxu0 %v3957
        %5742 = vmatpush2.msra.mxu0 %v3956
        %5743 = vmatprep.subr.mxu0 %v3950
        %5744 = vmatpush2.msra.mxu0 %v3949
        %5745 = vmatprep.subr.mxu0 %v3943
        %5746 = vmatpush2.msra.mxu0 %v3942
        %5747 = vmatprep.subr.mxu0 %v3936
        %5748 = vmatpush2.msra.mxu0 %v3935
        %5749 = vmatprep.subr.mxu0 %v3929
        %5750 = vmatpush2.msra.mxu0 %v3928
        %5751 = vmatprep.mubr.f32.mxu0 %v3802
        %5752 = vmatmul.mubr.f32.gmra.mxu0 %v3801
        %v5753 = vpop.f32.mrf.mxu0
        %v5754 = vadd.f32 0.0, %v5753
        %v5755 = vpop.f32.mrf.mxu0
        %v5756 = vadd.f32 0.0, %v5755
        %5757 = vdwg.mxu0
        %5758 = vmatprep.subr.mxu0 %v4146
        %5759 = vmatpush1.msra.mxu0 %v4145
        %5760 = vmatprep.subr.mxu0 %v4139
        %5761 = vmatpush1.msra.mxu0 %v4138
        %5762 = vmatprep.subr.mxu0 %v4132
        %5763 = vmatpush1.msra.mxu0 %v4131
        %5764 = vmatprep.subr.mxu0 %v4125
        %5765 = vmatpush1.msra.mxu0 %v4124
        %5766 = vmatprep.subr.mxu0 %v4118
        %5767 = vmatpush1.msra.mxu0 %v4117
        %5768 = vmatprep.subr.mxu0 %v4111
        %5769 = vmatpush1.msra.mxu0 %v4110
        %5770 = vmatprep.subr.mxu0 %v4104
        %5771 = vmatpush1.msra.mxu0 %v4103
        %5772 = vmatprep.subr.mxu0 %v4097
        %5773 = vmatpush1.msra.mxu0 %v4096
        %5774 = vmatprep.subr.mxu0 %v4090
        %5775 = vmatpush1.msra.mxu0 %v4089
        %5776 = vmatprep.subr.mxu0 %v4083
        %5777 = vmatpush1.msra.mxu0 %v4082
        %5778 = vmatprep.subr.mxu0 %v4076
        %5779 = vmatpush1.msra.mxu0 %v4075
        %5780 = vmatprep.subr.mxu0 %v4069
        %5781 = vmatpush1.msra.mxu0 %v4068
        %5782 = vmatprep.subr.mxu0 %v4062
        %5783 = vmatpush1.msra.mxu0 %v4061
        %5784 = vmatprep.subr.mxu0 %v4055
        %5785 = vmatpush1.msra.mxu0 %v4054
        %5786 = vmatprep.subr.mxu0 %v4048
        %5787 = vmatpush1.msra.mxu0 %v4047
        %5788 = vmatprep.subr.mxu0 %v4041
        %5789 = vmatpush1.msra.mxu0 %v4040
        %5790 = vmatprep.subr.mxu0 %v4258
        %5791 = vmatpush2.msra.mxu0 %v4257
        %5792 = vmatprep.subr.mxu0 %v4251
        %5793 = vmatpush2.msra.mxu0 %v4250
        %5794 = vmatprep.subr.mxu0 %v4244
        %5795 = vmatpush2.msra.mxu0 %v4243
        %5796 = vmatprep.subr.mxu0 %v4237
        %5797 = vmatpush2.msra.mxu0 %v4236
        %5798 = vmatprep.subr.mxu0 %v4230
        %5799 = vmatpush2.msra.mxu0 %v4229
        %5800 = vmatprep.subr.mxu0 %v4223
        %5801 = vmatpush2.msra.mxu0 %v4222
        %5802 = vmatprep.subr.mxu0 %v4216
        %5803 = vmatpush2.msra.mxu0 %v4215
        %5804 = vmatprep.subr.mxu0 %v4209
        %5805 = vmatpush2.msra.mxu0 %v4208
        %5806 = vmatprep.subr.mxu0 %v4202
        %5807 = vmatpush2.msra.mxu0 %v4201
        %5808 = vmatprep.subr.mxu0 %v4195
        %5809 = vmatpush2.msra.mxu0 %v4194
        %5810 = vmatprep.subr.mxu0 %v4188
        %5811 = vmatpush2.msra.mxu0 %v4187
        %5812 = vmatprep.subr.mxu0 %v4181
        %5813 = vmatpush2.msra.mxu0 %v4180
        %5814 = vmatprep.subr.mxu0 %v4174
        %5815 = vmatpush2.msra.mxu0 %v4173
        %5816 = vmatprep.subr.mxu0 %v4167
        %5817 = vmatpush2.msra.mxu0 %v4166
        %5818 = vmatprep.subr.mxu0 %v4160
        %5819 = vmatpush2.msra.mxu0 %v4159
        %5820 = vmatprep.subr.mxu0 %v4153
        %5821 = vmatpush2.msra.mxu0 %v4152
        %5822 = vmatprep.mubr.f32.mxu0 %v3804
        %5823 = vmatmul.mubr.f32.gmra.mxu0 %v3803
        %v5824 = vpop.f32.mrf.mxu0
        %v5825 = vadd.f32 %v5754, %v5824
        %v5826 = vpop.f32.mrf.mxu0
        %v5827 = vadd.f32 %v5756, %v5826
        %5828 = vdwg.mxu0
        %5829 = vmatprep.subr.mxu0 %v4370
        %5830 = vmatpush1.msra.mxu0 %v4369
        %5831 = vmatprep.subr.mxu0 %v4363
        %5832 = vmatpush1.msra.mxu0 %v4362
        %5833 = vmatprep.subr.mxu0 %v4356
        %5834 = vmatpush1.msra.mxu0 %v4355
        %5835 = vmatprep.subr.mxu0 %v4349
        %5836 = vmatpush1.msra.mxu0 %v4348
        %5837 = vmatprep.subr.mxu0 %v4342
        %5838 = vmatpush1.msra.mxu0 %v4341
        %5839 = vmatprep.subr.mxu0 %v4335
        %5840 = vmatpush1.msra.mxu0 %v4334
        %5841 = vmatprep.subr.mxu0 %v4328
        %5842 = vmatpush1.msra.mxu0 %v4327
        %5843 = vmatprep.subr.mxu0 %v4321
        %5844 = vmatpush1.msra.mxu0 %v4320
        %5845 = vmatprep.subr.mxu0 %v4314
        %5846 = vmatpush1.msra.mxu0 %v4313
        %5847 = vmatprep.subr.mxu0 %v4307
        %5848 = vmatpush1.msra.mxu0 %v4306
        %5849 = vmatprep.subr.mxu0 %v4300
        %5850 = vmatpush1.msra.mxu0 %v4299
        %5851 = vmatprep.subr.mxu0 %v4293
        %5852 = vmatpush1.msra.mxu0 %v4292
        %5853 = vmatprep.subr.mxu0 %v4286
        %5854 = vmatpush1.msra.mxu0 %v4285
        %5855 = vmatprep.subr.mxu0 %v4279
        %5856 = vmatpush1.msra.mxu0 %v4278
        %5857 = vmatprep.subr.mxu0 %v4272
        %5858 = vmatpush1.msra.mxu0 %v4271
        %5859 = vmatprep.subr.mxu0 %v4265
        %5860 = vmatpush1.msra.mxu0 %v4264
        %5861 = vmatprep.subr.mxu0 %v4482
        %5862 = vmatpush2.msra.mxu0 %v4481
        %5863 = vmatprep.subr.mxu0 %v4475
        %5864 = vmatpush2.msra.mxu0 %v4474
        %5865 = vmatprep.subr.mxu0 %v4468
        %5866 = vmatpush2.msra.mxu0 %v4467
        %5867 = vmatprep.subr.mxu0 %v4461
        %5868 = vmatpush2.msra.mxu0 %v4460
        %5869 = vmatprep.subr.mxu0 %v4454
        %5870 = vmatpush2.msra.mxu0 %v4453
        %5871 = vmatprep.subr.mxu0 %v4447
        %5872 = vmatpush2.msra.mxu0 %v4446
        %5873 = vmatprep.subr.mxu0 %v4440
        %5874 = vmatpush2.msra.mxu0 %v4439
        %5875 = vmatprep.subr.mxu0 %v4433
        %5876 = vmatpush2.msra.mxu0 %v4432
        %5877 = vmatprep.subr.mxu0 %v4426
        %5878 = vmatpush2.msra.mxu0 %v4425
        %5879 = vmatprep.subr.mxu0 %v4419
        %5880 = vmatpush2.msra.mxu0 %v4418
        %5881 = vmatprep.subr.mxu0 %v4412
        %5882 = vmatpush2.msra.mxu0 %v4411
        %5883 = vmatprep.subr.mxu0 %v4405
        %5884 = vmatpush2.msra.mxu0 %v4404
        %5885 = vmatprep.subr.mxu0 %v4398
        %5886 = vmatpush2.msra.mxu0 %v4397
        %5887 = vmatprep.subr.mxu0 %v4391
        %5888 = vmatpush2.msra.mxu0 %v4390
        %5889 = vmatprep.subr.mxu0 %v4384
        %5890 = vmatpush2.msra.mxu0 %v4383
        %5891 = vmatprep.subr.mxu0 %v4377
        %5892 = vmatpush2.msra.mxu0 %v4376
        %5893 = vmatprep.mubr.f32.mxu0 %v3806
        %5894 = vmatmul.mubr.f32.gmra.mxu0 %v3805
        %v5895 = vpop.f32.mrf.mxu0
        %v5896 = vadd.f32 %v5825, %v5895
        %v5897 = vpop.f32.mrf.mxu0
        %v5898 = vadd.f32 %v5827, %v5897
        %5899 = vdwg.mxu0
        %5900 = vmatprep.subr.mxu0 %v4594
        %5901 = vmatpush1.msra.mxu0 %v4593
        %5902 = vmatprep.subr.mxu0 %v4587
        %5903 = vmatpush1.msra.mxu0 %v4586
        %5904 = vmatprep.subr.mxu0 %v4580
        %5905 = vmatpush1.msra.mxu0 %v4579
        %5906 = vmatprep.subr.mxu0 %v4573
        %5907 = vmatpush1.msra.mxu0 %v4572
        %5908 = vmatprep.subr.mxu0 %v4566
        %5909 = vmatpush1.msra.mxu0 %v4565
        %5910 = vmatprep.subr.mxu0 %v4559
        %5911 = vmatpush1.msra.mxu0 %v4558
        %5912 = vmatprep.subr.mxu0 %v4552
        %5913 = vmatpush1.msra.mxu0 %v4551
        %5914 = vmatprep.subr.mxu0 %v4545
        %5915 = vmatpush1.msra.mxu0 %v4544
        %5916 = vmatprep.subr.mxu0 %v4538
        %5917 = vmatpush1.msra.mxu0 %v4537
        %5918 = vmatprep.subr.mxu0 %v4531
        %5919 = vmatpush1.msra.mxu0 %v4530
        %5920 = vmatprep.subr.mxu0 %v4524
        %5921 = vmatpush1.msra.mxu0 %v4523
        %5922 = vmatprep.subr.mxu0 %v4517
        %5923 = vmatpush1.msra.mxu0 %v4516
        %5924 = vmatprep.subr.mxu0 %v4510
        %5925 = vmatpush1.msra.mxu0 %v4509
        %5926 = vmatprep.subr.mxu0 %v4503
        %5927 = vmatpush1.msra.mxu0 %v4502
        %5928 = vmatprep.subr.mxu0 %v4496
        %5929 = vmatpush1.msra.mxu0 %v4495
        %5930 = vmatprep.subr.mxu0 %v4489
        %5931 = vmatpush1.msra.mxu0 %v4488
        %5932 = vmatprep.subr.mxu0 %v4706
        %5933 = vmatpush2.msra.mxu0 %v4705
        %5934 = vmatprep.subr.mxu0 %v4699
        %5935 = vmatpush2.msra.mxu0 %v4698
        %5936 = vmatprep.subr.mxu0 %v4692
        %5937 = vmatpush2.msra.mxu0 %v4691
        %5938 = vmatprep.subr.mxu0 %v4685
        %5939 = vmatpush2.msra.mxu0 %v4684
        %5940 = vmatprep.subr.mxu0 %v4678
        %5941 = vmatpush2.msra.mxu0 %v4677
        %5942 = vmatprep.subr.mxu0 %v4671
        %5943 = vmatpush2.msra.mxu0 %v4670
        %5944 = vmatprep.subr.mxu0 %v4664
        %5945 = vmatpush2.msra.mxu0 %v4663
        %5946 = vmatprep.subr.mxu0 %v4657
        %5947 = vmatpush2.msra.mxu0 %v4656
        %5948 = vmatprep.subr.mxu0 %v4650
        %5949 = vmatpush2.msra.mxu0 %v4649
        %5950 = vmatprep.subr.mxu0 %v4643
        %5951 = vmatpush2.msra.mxu0 %v4642
        %5952 = vmatprep.subr.mxu0 %v4636
        %5953 = vmatpush2.msra.mxu0 %v4635
        %5954 = vmatprep.subr.mxu0 %v4629
        %5955 = vmatpush2.msra.mxu0 %v4628
        %5956 = vmatprep.subr.mxu0 %v4622
        %5957 = vmatpush2.msra.mxu0 %v4621
        %5958 = vmatprep.subr.mxu0 %v4615
        %5959 = vmatpush2.msra.mxu0 %v4614
        %5960 = vmatprep.subr.mxu0 %v4608
        %5961 = vmatpush2.msra.mxu0 %v4607
        %5962 = vmatprep.subr.mxu0 %v4601
        %5963 = vmatpush2.msra.mxu0 %v4600
        %5964 = vmatprep.mubr.f32.mxu0 %v3808
        %5965 = vmatmul.mubr.f32.gmra.mxu0 %v3807
        %v5966 = vpop.f32.mrf.mxu0
        %v5967 = vadd.f32 %v5896, %v5966
        %v5968 = vpop.f32.mrf.mxu0
        %v5969 = vadd.f32 %v5898, %v5968
        %5970 = vdwg.mxu0
        %5971 = vmatprep.subr.mxu0 %v4818
        %5972 = vmatpush1.msra.mxu0 %v4817
        %5973 = vmatprep.subr.mxu0 %v4811
        %5974 = vmatpush1.msra.mxu0 %v4810
        %5975 = vmatprep.subr.mxu0 %v4804
        %5976 = vmatpush1.msra.mxu0 %v4803
        %5977 = vmatprep.subr.mxu0 %v4797
        %5978 = vmatpush1.msra.mxu0 %v4796
        %5979 = vmatprep.subr.mxu0 %v4790
        %5980 = vmatpush1.msra.mxu0 %v4789
        %5981 = vmatprep.subr.mxu0 %v4783
        %5982 = vmatpush1.msra.mxu0 %v4782
        %5983 = vmatprep.subr.mxu0 %v4776
        %5984 = vmatpush1.msra.mxu0 %v4775
        %5985 = vmatprep.subr.mxu0 %v4769
        %5986 = vmatpush1.msra.mxu0 %v4768
        %5987 = vmatprep.subr.mxu0 %v4762
        %5988 = vmatpush1.msra.mxu0 %v4761
        %5989 = vmatprep.subr.mxu0 %v4755
        %5990 = vmatpush1.msra.mxu0 %v4754
        %5991 = vmatprep.subr.mxu0 %v4748
        %5992 = vmatpush1.msra.mxu0 %v4747
        %5993 = vmatprep.subr.mxu0 %v4741
        %5994 = vmatpush1.msra.mxu0 %v4740
        %5995 = vmatprep.subr.mxu0 %v4734
        %5996 = vmatpush1.msra.mxu0 %v4733
        %5997 = vmatprep.subr.mxu0 %v4727
        %5998 = vmatpush1.msra.mxu0 %v4726
        %5999 = vmatprep.subr.mxu0 %v4720
        %6000 = vmatpush1.msra.mxu0 %v4719
        %6001 = vmatprep.subr.mxu0 %v4713
        %6002 = vmatpush1.msra.mxu0 %v4712
        %6003 = vmatprep.subr.mxu0 %v4930
        %6004 = vmatpush2.msra.mxu0 %v4929
        %6005 = vmatprep.subr.mxu0 %v4923
        %6006 = vmatpush2.msra.mxu0 %v4922
        %6007 = vmatprep.subr.mxu0 %v4916
        %6008 = vmatpush2.msra.mxu0 %v4915
        %6009 = vmatprep.subr.mxu0 %v4909
        %6010 = vmatpush2.msra.mxu0 %v4908
        %6011 = vmatprep.subr.mxu0 %v4902
        %6012 = vmatpush2.msra.mxu0 %v4901
        %6013 = vmatprep.subr.mxu0 %v4895
        %6014 = vmatpush2.msra.mxu0 %v4894
        %6015 = vmatprep.subr.mxu0 %v4888
        %6016 = vmatpush2.msra.mxu0 %v4887
        %6017 = vmatprep.subr.mxu0 %v4881
        %6018 = vmatpush2.msra.mxu0 %v4880
        %6019 = vmatprep.subr.mxu0 %v4874
        %6020 = vmatpush2.msra.mxu0 %v4873
        %6021 = vmatprep.subr.mxu0 %v4867
        %6022 = vmatpush2.msra.mxu0 %v4866
        %6023 = vmatprep.subr.mxu0 %v4860
        %6024 = vmatpush2.msra.mxu0 %v4859
        %6025 = vmatprep.subr.mxu0 %v4853
        %6026 = vmatpush2.msra.mxu0 %v4852
        %6027 = vmatprep.subr.mxu0 %v4846
        %6028 = vmatpush2.msra.mxu0 %v4845
        %6029 = vmatprep.subr.mxu0 %v4839
        %6030 = vmatpush2.msra.mxu0 %v4838
        %6031 = vmatprep.subr.mxu0 %v4832
        %6032 = vmatpush2.msra.mxu0 %v4831
        %6033 = vmatprep.subr.mxu0 %v4825
        %6034 = vmatpush2.msra.mxu0 %v4824
        %6035 = vmatprep.mubr.f32.mxu0 %v3810
        %6036 = vmatmul.mubr.f32.gmra.mxu0 %v3809
        %v6037 = vpop.f32.mrf.mxu0
        %v6038 = vadd.f32 %v5967, %v6037
        %v6039 = vpop.f32.mrf.mxu0
        %v6040 = vadd.f32 %v5969, %v6039
        %6041 = vdwg.mxu0
        %6042 = vmatprep.subr.mxu0 %v5042
        %6043 = vmatpush1.msra.mxu0 %v5041
        %6044 = vmatprep.subr.mxu0 %v5035
        %6045 = vmatpush1.msra.mxu0 %v5034
        %6046 = vmatprep.subr.mxu0 %v5028
        %6047 = vmatpush1.msra.mxu0 %v5027
        %6048 = vmatprep.subr.mxu0 %v5021
        %6049 = vmatpush1.msra.mxu0 %v5020
        %6050 = vmatprep.subr.mxu0 %v5014
        %6051 = vmatpush1.msra.mxu0 %v5013
        %6052 = vmatprep.subr.mxu0 %v5007
        %6053 = vmatpush1.msra.mxu0 %v5006
        %6054 = vmatprep.subr.mxu0 %v5000
        %6055 = vmatpush1.msra.mxu0 %v4999
        %6056 = vmatprep.subr.mxu0 %v4993
        %6057 = vmatpush1.msra.mxu0 %v4992
        %6058 = vmatprep.subr.mxu0 %v4986
        %6059 = vmatpush1.msra.mxu0 %v4985
        %6060 = vmatprep.subr.mxu0 %v4979
        %6061 = vmatpush1.msra.mxu0 %v4978
        %6062 = vmatprep.subr.mxu0 %v4972
        %6063 = vmatpush1.msra.mxu0 %v4971
        %6064 = vmatprep.subr.mxu0 %v4965
        %6065 = vmatpush1.msra.mxu0 %v4964
        %6066 = vmatprep.subr.mxu0 %v4958
        %6067 = vmatpush1.msra.mxu0 %v4957
        %6068 = vmatprep.subr.mxu0 %v4951
        %6069 = vmatpush1.msra.mxu0 %v4950
        %6070 = vmatprep.subr.mxu0 %v4944
        %6071 = vmatpush1.msra.mxu0 %v4943
        %6072 = vmatprep.subr.mxu0 %v4937
        %6073 = vmatpush1.msra.mxu0 %v4936
        %6074 = vmatprep.subr.mxu0 %v5154
        %6075 = vmatpush2.msra.mxu0 %v5153
        %6076 = vmatprep.subr.mxu0 %v5147
        %6077 = vmatpush2.msra.mxu0 %v5146
        %6078 = vmatprep.subr.mxu0 %v5140
        %6079 = vmatpush2.msra.mxu0 %v5139
        %6080 = vmatprep.subr.mxu0 %v5133
        %6081 = vmatpush2.msra.mxu0 %v5132
        %6082 = vmatprep.subr.mxu0 %v5126
        %6083 = vmatpush2.msra.mxu0 %v5125
        %6084 = vmatprep.subr.mxu0 %v5119
        %6085 = vmatpush2.msra.mxu0 %v5118
        %6086 = vmatprep.subr.mxu0 %v5112
        %6087 = vmatpush2.msra.mxu0 %v5111
        %6088 = vmatprep.subr.mxu0 %v5105
        %6089 = vmatpush2.msra.mxu0 %v5104
        %6090 = vmatprep.subr.mxu0 %v5098
        %6091 = vmatpush2.msra.mxu0 %v5097
        %6092 = vmatprep.subr.mxu0 %v5091
        %6093 = vmatpush2.msra.mxu0 %v5090
        %6094 = vmatprep.subr.mxu0 %v5084
        %6095 = vmatpush2.msra.mxu0 %v5083
        %6096 = vmatprep.subr.mxu0 %v5077
        %6097 = vmatpush2.msra.mxu0 %v5076
        %6098 = vmatprep.subr.mxu0 %v5070
        %6099 = vmatpush2.msra.mxu0 %v5069
        %6100 = vmatprep.subr.mxu0 %v5063
        %6101 = vmatpush2.msra.mxu0 %v5062
        %6102 = vmatprep.subr.mxu0 %v5056
        %6103 = vmatpush2.msra.mxu0 %v5055
        %6104 = vmatprep.subr.mxu0 %v5049
        %6105 = vmatpush2.msra.mxu0 %v5048
        %6106 = vmatprep.mubr.f32.mxu0 %v3812
        %6107 = vmatmul.mubr.f32.gmra.mxu0 %v3811
        %v6108 = vpop.f32.mrf.mxu0
        %v6109 = vadd.f32 %v6038, %v6108
        %v6110 = vpop.f32.mrf.mxu0
        %v6111 = vadd.f32 %v6040, %v6110
        %6112 = vdwg.mxu0
        %6113 = vmatprep.subr.mxu0 0.0
        %6114 = vmatpush1.msra.mxu0 0.0
        %6115 = vmatprep.subr.mxu0 0.0
        %6116 = vmatpush1.msra.mxu0 0.0
        %6117 = vmatprep.subr.mxu0 0.0
        %6118 = vmatpush1.msra.mxu0 0.0
        %6119 = vmatprep.subr.mxu0 0.0
        %6120 = vmatpush1.msra.mxu0 0.0
        %6121 = vmatprep.subr.mxu0 0.0
        %6122 = vmatpush1.msra.mxu0 0.0
        %6123 = vmatprep.subr.mxu0 0.0
        %6124 = vmatpush1.msra.mxu0 0.0
        %6125 = vmatprep.subr.mxu0 0.0
        %6126 = vmatpush1.msra.mxu0 0.0
        %6127 = vmatprep.subr.mxu0 0.0
        %6128 = vmatpush1.msra.mxu0 0.0
        %6129 = vmatprep.subr.mxu0 0.0
        %6130 = vmatpush1.msra.mxu0 0.0
        %6131 = vmatprep.subr.mxu0 0.0
        %6132 = vmatpush1.msra.mxu0 0.0
        %6133 = vmatprep.subr.mxu0 0.0
        %6134 = vmatpush1.msra.mxu0 0.0
        %6135 = vmatprep.subr.mxu0 0.0
        %6136 = vmatpush1.msra.mxu0 0.0
        %6137 = vmatprep.subr.mxu0 %v5182
        %6138 = vmatpush1.msra.mxu0 %v5181
        %6139 = vmatprep.subr.mxu0 %v5175
        %6140 = vmatpush1.msra.mxu0 %v5174
        %6141 = vmatprep.subr.mxu0 %v5168
        %6142 = vmatpush1.msra.mxu0 %v5167
        %6143 = vmatprep.subr.mxu0 %v5161
        %6144 = vmatpush1.msra.mxu0 %v5160
        %6145 = vmatprep.subr.mxu0 0.0
        %6146 = vmatpush2.msra.mxu0 0.0
        %6147 = vmatprep.subr.mxu0 0.0
        %6148 = vmatpush2.msra.mxu0 0.0
        %6149 = vmatprep.subr.mxu0 0.0
        %6150 = vmatpush2.msra.mxu0 0.0
        %6151 = vmatprep.subr.mxu0 0.0
        %6152 = vmatpush2.msra.mxu0 0.0
        %6153 = vmatprep.subr.mxu0 0.0
        %6154 = vmatpush2.msra.mxu0 0.0
        %6155 = vmatprep.subr.mxu0 0.0
        %6156 = vmatpush2.msra.mxu0 0.0
        %6157 = vmatprep.subr.mxu0 0.0
        %6158 = vmatpush2.msra.mxu0 0.0
        %6159 = vmatprep.subr.mxu0 0.0
        %6160 = vmatpush2.msra.mxu0 0.0
        %6161 = vmatprep.subr.mxu0 0.0
        %6162 = vmatpush2.msra.mxu0 0.0
        %6163 = vmatprep.subr.mxu0 0.0
        %6164 = vmatpush2.msra.mxu0 0.0
        %6165 = vmatprep.subr.mxu0 0.0
        %6166 = vmatpush2.msra.mxu0 0.0
        %6167 = vmatprep.subr.mxu0 0.0
        %6168 = vmatpush2.msra.mxu0 0.0
        %6169 = vmatprep.subr.mxu0 0.0
        %6170 = vmatpush2.msra.mxu0 0.0
        %6171 = vmatprep.subr.mxu0 0.0
        %6172 = vmatpush2.msra.mxu0 0.0
        %6173 = vmatprep.subr.mxu0 0.0
        %6174 = vmatpush2.msra.mxu0 0.0
        %6175 = vmatprep.subr.mxu0 0.0
        %6176 = vmatpush2.msra.mxu0 0.0
        %6177 = vmatprep.mubr.f32.mxu0 0.0
        %6178 = vmatmul.mubr.f32.gmra.mxu0 %v5188
        %v6179 = vpop.f32.mrf.mxu0
        %v6180 = vadd.f32 %v6109, %v6179
        %v6181 = vpop.f32.mrf.mxu0
        %v6182 = vadd.f32 %v6111, %v6181
        %6183 = vdwg.mxu0
        %6184 = vmatprep.subr.mxu0 %v3924
        %6185 = vmatpush1.msra.mxu0 %v3923
        %6186 = vmatprep.subr.mxu0 %v3917
        %6187 = vmatpush1.msra.mxu0 %v3916
        %6188 = vmatprep.subr.mxu0 %v3910
        %6189 = vmatpush1.msra.mxu0 %v3909
        %6190 = vmatprep.subr.mxu0 %v3903
        %6191 = vmatpush1.msra.mxu0 %v3902
        %6192 = vmatprep.subr.mxu0 %v3896
        %6193 = vmatpush1.msra.mxu0 %v3895
        %6194 = vmatprep.subr.mxu0 %v3889
        %6195 = vmatpush1.msra.mxu0 %v3888
        %6196 = vmatprep.subr.mxu0 %v3882
        %6197 = vmatpush1.msra.mxu0 %v3881
        %6198 = vmatprep.subr.mxu0 %v3875
        %6199 = vmatpush1.msra.mxu0 %v3874
        %6200 = vmatprep.subr.mxu0 %v3868
        %6201 = vmatpush1.msra.mxu0 %v3867
        %6202 = vmatprep.subr.mxu0 %v3861
        %6203 = vmatpush1.msra.mxu0 %v3860
        %6204 = vmatprep.subr.mxu0 %v3854
        %6205 = vmatpush1.msra.mxu0 %v3853
        %6206 = vmatprep.subr.mxu0 %v3847
        %6207 = vmatpush1.msra.mxu0 %v3846
        %6208 = vmatprep.subr.mxu0 %v3840
        %6209 = vmatpush1.msra.mxu0 %v3839
        %6210 = vmatprep.subr.mxu0 %v3833
        %6211 = vmatpush1.msra.mxu0 %v3832
        %6212 = vmatprep.subr.mxu0 %v3826
        %6213 = vmatpush1.msra.mxu0 %v3825
        %6214 = vmatprep.subr.mxu0 %v3819
        %6215 = vmatpush1.msra.mxu0 %v3818
        %6216 = vmatprep.subr.mxu0 %v4036
        %6217 = vmatpush2.msra.mxu0 %v4035
        %6218 = vmatprep.subr.mxu0 %v4029
        %6219 = vmatpush2.msra.mxu0 %v4028
        %6220 = vmatprep.subr.mxu0 %v4022
        %6221 = vmatpush2.msra.mxu0 %v4021
        %6222 = vmatprep.subr.mxu0 %v4015
        %6223 = vmatpush2.msra.mxu0 %v4014
        %6224 = vmatprep.subr.mxu0 %v4008
        %6225 = vmatpush2.msra.mxu0 %v4007
        %6226 = vmatprep.subr.mxu0 %v4001
        %6227 = vmatpush2.msra.mxu0 %v4000
        %6228 = vmatprep.subr.mxu0 %v3994
        %6229 = vmatpush2.msra.mxu0 %v3993
        %6230 = vmatprep.subr.mxu0 %v3987
        %6231 = vmatpush2.msra.mxu0 %v3986
        %6232 = vmatprep.subr.mxu0 %v3980
        %6233 = vmatpush2.msra.mxu0 %v3979
        %6234 = vmatprep.subr.mxu0 %v3973
        %6235 = vmatpush2.msra.mxu0 %v3972
        %6236 = vmatprep.subr.mxu0 %v3966
        %6237 = vmatpush2.msra.mxu0 %v3965
        %6238 = vmatprep.subr.mxu0 %v3959
        %6239 = vmatpush2.msra.mxu0 %v3958
        %6240 = vmatprep.subr.mxu0 %v3952
        %6241 = vmatpush2.msra.mxu0 %v3951
        %6242 = vmatprep.subr.mxu0 %v3945
        %6243 = vmatpush2.msra.mxu0 %v3944
        %6244 = vmatprep.subr.mxu0 %v3938
        %6245 = vmatpush2.msra.mxu0 %v3937
        %6246 = vmatprep.subr.mxu0 %v3931
        %6247 = vmatpush2.msra.mxu0 %v3930
        %6248 = vmatprep.mubr.f32.mxu0 %v3802
        %6249 = vmatmul.mubr.f32.gmra.mxu0 %v3801
        %v6250 = vpop.f32.mrf.mxu0
        %v6251 = vadd.f32 0.0, %v6250
        %v6252 = vpop.f32.mrf.mxu0
        %v6253 = vadd.f32 0.0, %v6252
        %6254 = vdwg.mxu0
        %6255 = vmatprep.subr.mxu0 %v4148
        %6256 = vmatpush1.msra.mxu0 %v4147
        %6257 = vmatprep.subr.mxu0 %v4141
        %6258 = vmatpush1.msra.mxu0 %v4140
        %6259 = vmatprep.subr.mxu0 %v4134
        %6260 = vmatpush1.msra.mxu0 %v4133
        %6261 = vmatprep.subr.mxu0 %v4127
        %6262 = vmatpush1.msra.mxu0 %v4126
        %6263 = vmatprep.subr.mxu0 %v4120
        %6264 = vmatpush1.msra.mxu0 %v4119
        %6265 = vmatprep.subr.mxu0 %v4113
        %6266 = vmatpush1.msra.mxu0 %v4112
        %6267 = vmatprep.subr.mxu0 %v4106
        %6268 = vmatpush1.msra.mxu0 %v4105
        %6269 = vmatprep.subr.mxu0 %v4099
        %6270 = vmatpush1.msra.mxu0 %v4098
        %6271 = vmatprep.subr.mxu0 %v4092
        %6272 = vmatpush1.msra.mxu0 %v4091
        %6273 = vmatprep.subr.mxu0 %v4085
        %6274 = vmatpush1.msra.mxu0 %v4084
        %6275 = vmatprep.subr.mxu0 %v4078
        %6276 = vmatpush1.msra.mxu0 %v4077
        %6277 = vmatprep.subr.mxu0 %v4071
        %6278 = vmatpush1.msra.mxu0 %v4070
        %6279 = vmatprep.subr.mxu0 %v4064
        %6280 = vmatpush1.msra.mxu0 %v4063
        %6281 = vmatprep.subr.mxu0 %v4057
        %6282 = vmatpush1.msra.mxu0 %v4056
        %6283 = vmatprep.subr.mxu0 %v4050
        %6284 = vmatpush1.msra.mxu0 %v4049
        %6285 = vmatprep.subr.mxu0 %v4043
        %6286 = vmatpush1.msra.mxu0 %v4042
        %6287 = vmatprep.subr.mxu0 %v4260
        %6288 = vmatpush2.msra.mxu0 %v4259
        %6289 = vmatprep.subr.mxu0 %v4253
        %6290 = vmatpush2.msra.mxu0 %v4252
        %6291 = vmatprep.subr.mxu0 %v4246
        %6292 = vmatpush2.msra.mxu0 %v4245
        %6293 = vmatprep.subr.mxu0 %v4239
        %6294 = vmatpush2.msra.mxu0 %v4238
        %6295 = vmatprep.subr.mxu0 %v4232
        %6296 = vmatpush2.msra.mxu0 %v4231
        %6297 = vmatprep.subr.mxu0 %v4225
        %6298 = vmatpush2.msra.mxu0 %v4224
        %6299 = vmatprep.subr.mxu0 %v4218
        %6300 = vmatpush2.msra.mxu0 %v4217
        %6301 = vmatprep.subr.mxu0 %v4211
        %6302 = vmatpush2.msra.mxu0 %v4210
        %6303 = vmatprep.subr.mxu0 %v4204
        %6304 = vmatpush2.msra.mxu0 %v4203
        %6305 = vmatprep.subr.mxu0 %v4197
        %6306 = vmatpush2.msra.mxu0 %v4196
        %6307 = vmatprep.subr.mxu0 %v4190
        %6308 = vmatpush2.msra.mxu0 %v4189
        %6309 = vmatprep.subr.mxu0 %v4183
        %6310 = vmatpush2.msra.mxu0 %v4182
        %6311 = vmatprep.subr.mxu0 %v4176
        %6312 = vmatpush2.msra.mxu0 %v4175
        %6313 = vmatprep.subr.mxu0 %v4169
        %6314 = vmatpush2.msra.mxu0 %v4168
        %6315 = vmatprep.subr.mxu0 %v4162
        %6316 = vmatpush2.msra.mxu0 %v4161
        %6317 = vmatprep.subr.mxu0 %v4155
        %6318 = vmatpush2.msra.mxu0 %v4154
        %6319 = vmatprep.mubr.f32.mxu0 %v3804
        %6320 = vmatmul.mubr.f32.gmra.mxu0 %v3803
        %v6321 = vpop.f32.mrf.mxu0
        %v6322 = vadd.f32 %v6251, %v6321
        %v6323 = vpop.f32.mrf.mxu0
        %v6324 = vadd.f32 %v6253, %v6323
        %6325 = vdwg.mxu0
        %6326 = vmatprep.subr.mxu0 %v4372
        %6327 = vmatpush1.msra.mxu0 %v4371
        %6328 = vmatprep.subr.mxu0 %v4365
        %6329 = vmatpush1.msra.mxu0 %v4364
        %6330 = vmatprep.subr.mxu0 %v4358
        %6331 = vmatpush1.msra.mxu0 %v4357
        %6332 = vmatprep.subr.mxu0 %v4351
        %6333 = vmatpush1.msra.mxu0 %v4350
        %6334 = vmatprep.subr.mxu0 %v4344
        %6335 = vmatpush1.msra.mxu0 %v4343
        %6336 = vmatprep.subr.mxu0 %v4337
        %6337 = vmatpush1.msra.mxu0 %v4336
        %6338 = vmatprep.subr.mxu0 %v4330
        %6339 = vmatpush1.msra.mxu0 %v4329
        %6340 = vmatprep.subr.mxu0 %v4323
        %6341 = vmatpush1.msra.mxu0 %v4322
        %6342 = vmatprep.subr.mxu0 %v4316
        %6343 = vmatpush1.msra.mxu0 %v4315
        %6344 = vmatprep.subr.mxu0 %v4309
        %6345 = vmatpush1.msra.mxu0 %v4308
        %6346 = vmatprep.subr.mxu0 %v4302
        %6347 = vmatpush1.msra.mxu0 %v4301
        %6348 = vmatprep.subr.mxu0 %v4295
        %6349 = vmatpush1.msra.mxu0 %v4294
        %6350 = vmatprep.subr.mxu0 %v4288
        %6351 = vmatpush1.msra.mxu0 %v4287
        %6352 = vmatprep.subr.mxu0 %v4281
        %6353 = vmatpush1.msra.mxu0 %v4280
        %6354 = vmatprep.subr.mxu0 %v4274
        %6355 = vmatpush1.msra.mxu0 %v4273
        %6356 = vmatprep.subr.mxu0 %v4267
        %6357 = vmatpush1.msra.mxu0 %v4266
        %6358 = vmatprep.subr.mxu0 %v4484
        %6359 = vmatpush2.msra.mxu0 %v4483
        %6360 = vmatprep.subr.mxu0 %v4477
        %6361 = vmatpush2.msra.mxu0 %v4476
        %6362 = vmatprep.subr.mxu0 %v4470
        %6363 = vmatpush2.msra.mxu0 %v4469
        %6364 = vmatprep.subr.mxu0 %v4463
        %6365 = vmatpush2.msra.mxu0 %v4462
        %6366 = vmatprep.subr.mxu0 %v4456
        %6367 = vmatpush2.msra.mxu0 %v4455
        %6368 = vmatprep.subr.mxu0 %v4449
        %6369 = vmatpush2.msra.mxu0 %v4448
        %6370 = vmatprep.subr.mxu0 %v4442
        %6371 = vmatpush2.msra.mxu0 %v4441
        %6372 = vmatprep.subr.mxu0 %v4435
        %6373 = vmatpush2.msra.mxu0 %v4434
        %6374 = vmatprep.subr.mxu0 %v4428
        %6375 = vmatpush2.msra.mxu0 %v4427
        %6376 = vmatprep.subr.mxu0 %v4421
        %6377 = vmatpush2.msra.mxu0 %v4420
        %6378 = vmatprep.subr.mxu0 %v4414
        %6379 = vmatpush2.msra.mxu0 %v4413
        %6380 = vmatprep.subr.mxu0 %v4407
        %6381 = vmatpush2.msra.mxu0 %v4406
        %6382 = vmatprep.subr.mxu0 %v4400
        %6383 = vmatpush2.msra.mxu0 %v4399
        %6384 = vmatprep.subr.mxu0 %v4393
        %6385 = vmatpush2.msra.mxu0 %v4392
        %6386 = vmatprep.subr.mxu0 %v4386
        %6387 = vmatpush2.msra.mxu0 %v4385
        %6388 = vmatprep.subr.mxu0 %v4379
        %6389 = vmatpush2.msra.mxu0 %v4378
        %6390 = vmatprep.mubr.f32.mxu0 %v3806
        %6391 = vmatmul.mubr.f32.gmra.mxu0 %v3805
        %v6392 = vpop.f32.mrf.mxu0
        %v6393 = vadd.f32 %v6322, %v6392
        %v6394 = vpop.f32.mrf.mxu0
        %v6395 = vadd.f32 %v6324, %v6394
        %6396 = vdwg.mxu0
        %6397 = vmatprep.subr.mxu0 %v4596
        %6398 = vmatpush1.msra.mxu0 %v4595
        %6399 = vmatprep.subr.mxu0 %v4589
        %6400 = vmatpush1.msra.mxu0 %v4588
        %6401 = vmatprep.subr.mxu0 %v4582
        %6402 = vmatpush1.msra.mxu0 %v4581
        %6403 = vmatprep.subr.mxu0 %v4575
        %6404 = vmatpush1.msra.mxu0 %v4574
        %6405 = vmatprep.subr.mxu0 %v4568
        %6406 = vmatpush1.msra.mxu0 %v4567
        %6407 = vmatprep.subr.mxu0 %v4561
        %6408 = vmatpush1.msra.mxu0 %v4560
        %6409 = vmatprep.subr.mxu0 %v4554
        %6410 = vmatpush1.msra.mxu0 %v4553
        %6411 = vmatprep.subr.mxu0 %v4547
        %6412 = vmatpush1.msra.mxu0 %v4546
        %6413 = vmatprep.subr.mxu0 %v4540
        %6414 = vmatpush1.msra.mxu0 %v4539
        %6415 = vmatprep.subr.mxu0 %v4533
        %6416 = vmatpush1.msra.mxu0 %v4532
        %6417 = vmatprep.subr.mxu0 %v4526
        %6418 = vmatpush1.msra.mxu0 %v4525
        %6419 = vmatprep.subr.mxu0 %v4519
        %6420 = vmatpush1.msra.mxu0 %v4518
        %6421 = vmatprep.subr.mxu0 %v4512
        %6422 = vmatpush1.msra.mxu0 %v4511
        %6423 = vmatprep.subr.mxu0 %v4505
        %6424 = vmatpush1.msra.mxu0 %v4504
        %6425 = vmatprep.subr.mxu0 %v4498
        %6426 = vmatpush1.msra.mxu0 %v4497
        %6427 = vmatprep.subr.mxu0 %v4491
        %6428 = vmatpush1.msra.mxu0 %v4490
        %6429 = vmatprep.subr.mxu0 %v4708
        %6430 = vmatpush2.msra.mxu0 %v4707
        %6431 = vmatprep.subr.mxu0 %v4701
        %6432 = vmatpush2.msra.mxu0 %v4700
        %6433 = vmatprep.subr.mxu0 %v4694
        %6434 = vmatpush2.msra.mxu0 %v4693
        %6435 = vmatprep.subr.mxu0 %v4687
        %6436 = vmatpush2.msra.mxu0 %v4686
        %6437 = vmatprep.subr.mxu0 %v4680
        %6438 = vmatpush2.msra.mxu0 %v4679
        %6439 = vmatprep.subr.mxu0 %v4673
        %6440 = vmatpush2.msra.mxu0 %v4672
        %6441 = vmatprep.subr.mxu0 %v4666
        %6442 = vmatpush2.msra.mxu0 %v4665
        %6443 = vmatprep.subr.mxu0 %v4659
        %6444 = vmatpush2.msra.mxu0 %v4658
        %6445 = vmatprep.subr.mxu0 %v4652
        %6446 = vmatpush2.msra.mxu0 %v4651
        %6447 = vmatprep.subr.mxu0 %v4645
        %6448 = vmatpush2.msra.mxu0 %v4644
        %6449 = vmatprep.subr.mxu0 %v4638
        %6450 = vmatpush2.msra.mxu0 %v4637
        %6451 = vmatprep.subr.mxu0 %v4631
        %6452 = vmatpush2.msra.mxu0 %v4630
        %6453 = vmatprep.subr.mxu0 %v4624
        %6454 = vmatpush2.msra.mxu0 %v4623
        %6455 = vmatprep.subr.mxu0 %v4617
        %6456 = vmatpush2.msra.mxu0 %v4616
        %6457 = vmatprep.subr.mxu0 %v4610
        %6458 = vmatpush2.msra.mxu0 %v4609
        %6459 = vmatprep.subr.mxu0 %v4603
        %6460 = vmatpush2.msra.mxu0 %v4602
        %6461 = vmatprep.mubr.f32.mxu0 %v3808
        %6462 = vmatmul.mubr.f32.gmra.mxu0 %v3807
        %v6463 = vpop.f32.mrf.mxu0
        %v6464 = vadd.f32 %v6393, %v6463
        %v6465 = vpop.f32.mrf.mxu0
        %v6466 = vadd.f32 %v6395, %v6465
        %6467 = vdwg.mxu0
        %6468 = vmatprep.subr.mxu0 %v4820
        %6469 = vmatpush1.msra.mxu0 %v4819
        %6470 = vmatprep.subr.mxu0 %v4813
        %6471 = vmatpush1.msra.mxu0 %v4812
        %6472 = vmatprep.subr.mxu0 %v4806
        %6473 = vmatpush1.msra.mxu0 %v4805
        %6474 = vmatprep.subr.mxu0 %v4799
        %6475 = vmatpush1.msra.mxu0 %v4798
        %6476 = vmatprep.subr.mxu0 %v4792
        %6477 = vmatpush1.msra.mxu0 %v4791
        %6478 = vmatprep.subr.mxu0 %v4785
        %6479 = vmatpush1.msra.mxu0 %v4784
        %6480 = vmatprep.subr.mxu0 %v4778
        %6481 = vmatpush1.msra.mxu0 %v4777
        %6482 = vmatprep.subr.mxu0 %v4771
        %6483 = vmatpush1.msra.mxu0 %v4770
        %6484 = vmatprep.subr.mxu0 %v4764
        %6485 = vmatpush1.msra.mxu0 %v4763
        %6486 = vmatprep.subr.mxu0 %v4757
        %6487 = vmatpush1.msra.mxu0 %v4756
        %6488 = vmatprep.subr.mxu0 %v4750
        %6489 = vmatpush1.msra.mxu0 %v4749
        %6490 = vmatprep.subr.mxu0 %v4743
        %6491 = vmatpush1.msra.mxu0 %v4742
        %6492 = vmatprep.subr.mxu0 %v4736
        %6493 = vmatpush1.msra.mxu0 %v4735
        %6494 = vmatprep.subr.mxu0 %v4729
        %6495 = vmatpush1.msra.mxu0 %v4728
        %6496 = vmatprep.subr.mxu0 %v4722
        %6497 = vmatpush1.msra.mxu0 %v4721
        %6498 = vmatprep.subr.mxu0 %v4715
        %6499 = vmatpush1.msra.mxu0 %v4714
        %6500 = vmatprep.subr.mxu0 %v4932
        %6501 = vmatpush2.msra.mxu0 %v4931
        %6502 = vmatprep.subr.mxu0 %v4925
        %6503 = vmatpush2.msra.mxu0 %v4924
        %6504 = vmatprep.subr.mxu0 %v4918
        %6505 = vmatpush2.msra.mxu0 %v4917
        %6506 = vmatprep.subr.mxu0 %v4911
        %6507 = vmatpush2.msra.mxu0 %v4910
        %6508 = vmatprep.subr.mxu0 %v4904
        %6509 = vmatpush2.msra.mxu0 %v4903
        %6510 = vmatprep.subr.mxu0 %v4897
        %6511 = vmatpush2.msra.mxu0 %v4896
        %6512 = vmatprep.subr.mxu0 %v4890
        %6513 = vmatpush2.msra.mxu0 %v4889
        %6514 = vmatprep.subr.mxu0 %v4883
        %6515 = vmatpush2.msra.mxu0 %v4882
        %6516 = vmatprep.subr.mxu0 %v4876
        %6517 = vmatpush2.msra.mxu0 %v4875
        %6518 = vmatprep.subr.mxu0 %v4869
        %6519 = vmatpush2.msra.mxu0 %v4868
        %6520 = vmatprep.subr.mxu0 %v4862
        %6521 = vmatpush2.msra.mxu0 %v4861
        %6522 = vmatprep.subr.mxu0 %v4855
        %6523 = vmatpush2.msra.mxu0 %v4854
        %6524 = vmatprep.subr.mxu0 %v4848
        %6525 = vmatpush2.msra.mxu0 %v4847
        %6526 = vmatprep.subr.mxu0 %v4841
        %6527 = vmatpush2.msra.mxu0 %v4840
        %6528 = vmatprep.subr.mxu0 %v4834
        %6529 = vmatpush2.msra.mxu0 %v4833
        %6530 = vmatprep.subr.mxu0 %v4827
        %6531 = vmatpush2.msra.mxu0 %v4826
        %6532 = vmatprep.mubr.f32.mxu0 %v3810
        %6533 = vmatmul.mubr.f32.gmra.mxu0 %v3809
        %v6534 = vpop.f32.mrf.mxu0
        %v6535 = vadd.f32 %v6464, %v6534
        %v6536 = vpop.f32.mrf.mxu0
        %v6537 = vadd.f32 %v6466, %v6536
        %6538 = vdwg.mxu0
        %6539 = vmatprep.subr.mxu0 %v5044
        %6540 = vmatpush1.msra.mxu0 %v5043
        %6541 = vmatprep.subr.mxu0 %v5037
        %6542 = vmatpush1.msra.mxu0 %v5036
        %6543 = vmatprep.subr.mxu0 %v5030
        %6544 = vmatpush1.msra.mxu0 %v5029
        %6545 = vmatprep.subr.mxu0 %v5023
        %6546 = vmatpush1.msra.mxu0 %v5022
        %6547 = vmatprep.subr.mxu0 %v5016
        %6548 = vmatpush1.msra.mxu0 %v5015
        %6549 = vmatprep.subr.mxu0 %v5009
        %6550 = vmatpush1.msra.mxu0 %v5008
        %6551 = vmatprep.subr.mxu0 %v5002
        %6552 = vmatpush1.msra.mxu0 %v5001
        %6553 = vmatprep.subr.mxu0 %v4995
        %6554 = vmatpush1.msra.mxu0 %v4994
        %6555 = vmatprep.subr.mxu0 %v4988
        %6556 = vmatpush1.msra.mxu0 %v4987
        %6557 = vmatprep.subr.mxu0 %v4981
        %6558 = vmatpush1.msra.mxu0 %v4980
        %6559 = vmatprep.subr.mxu0 %v4974
        %6560 = vmatpush1.msra.mxu0 %v4973
        %6561 = vmatprep.subr.mxu0 %v4967
        %6562 = vmatpush1.msra.mxu0 %v4966
        %6563 = vmatprep.subr.mxu0 %v4960
        %6564 = vmatpush1.msra.mxu0 %v4959
        %6565 = vmatprep.subr.mxu0 %v4953
        %6566 = vmatpush1.msra.mxu0 %v4952
        %6567 = vmatprep.subr.mxu0 %v4946
        %6568 = vmatpush1.msra.mxu0 %v4945
        %6569 = vmatprep.subr.mxu0 %v4939
        %6570 = vmatpush1.msra.mxu0 %v4938
        %6571 = vmatprep.subr.mxu0 %v5156
        %6572 = vmatpush2.msra.mxu0 %v5155
        %6573 = vmatprep.subr.mxu0 %v5149
        %6574 = vmatpush2.msra.mxu0 %v5148
        %6575 = vmatprep.subr.mxu0 %v5142
        %6576 = vmatpush2.msra.mxu0 %v5141
        %6577 = vmatprep.subr.mxu0 %v5135
        %6578 = vmatpush2.msra.mxu0 %v5134
        %6579 = vmatprep.subr.mxu0 %v5128
        %6580 = vmatpush2.msra.mxu0 %v5127
        %6581 = vmatprep.subr.mxu0 %v5121
        %6582 = vmatpush2.msra.mxu0 %v5120
        %6583 = vmatprep.subr.mxu0 %v5114
        %6584 = vmatpush2.msra.mxu0 %v5113
        %6585 = vmatprep.subr.mxu0 %v5107
        %6586 = vmatpush2.msra.mxu0 %v5106
        %6587 = vmatprep.subr.mxu0 %v5100
        %6588 = vmatpush2.msra.mxu0 %v5099
        %6589 = vmatprep.subr.mxu0 %v5093
        %6590 = vmatpush2.msra.mxu0 %v5092
        %6591 = vmatprep.subr.mxu0 %v5086
        %6592 = vmatpush2.msra.mxu0 %v5085
        %6593 = vmatprep.subr.mxu0 %v5079
        %6594 = vmatpush2.msra.mxu0 %v5078
        %6595 = vmatprep.subr.mxu0 %v5072
        %6596 = vmatpush2.msra.mxu0 %v5071
        %6597 = vmatprep.subr.mxu0 %v5065
        %6598 = vmatpush2.msra.mxu0 %v5064
        %6599 = vmatprep.subr.mxu0 %v5058
        %6600 = vmatpush2.msra.mxu0 %v5057
        %6601 = vmatprep.subr.mxu0 %v5051
        %6602 = vmatpush2.msra.mxu0 %v5050
        %6603 = vmatprep.mubr.f32.mxu0 %v3812
        %6604 = vmatmul.mubr.f32.gmra.mxu0 %v3811
        %v6605 = vpop.f32.mrf.mxu0
        %v6606 = vadd.f32 %v6535, %v6605
        %v6607 = vpop.f32.mrf.mxu0
        %v6608 = vadd.f32 %v6537, %v6607
        %6609 = vdwg.mxu0
        %6610 = vmatprep.subr.mxu0 0.0
        %6611 = vmatpush1.msra.mxu0 0.0
        %6612 = vmatprep.subr.mxu0 0.0
        %6613 = vmatpush1.msra.mxu0 0.0
        %6614 = vmatprep.subr.mxu0 0.0
        %6615 = vmatpush1.msra.mxu0 0.0
        %6616 = vmatprep.subr.mxu0 0.0
        %6617 = vmatpush1.msra.mxu0 0.0
        %6618 = vmatprep.subr.mxu0 0.0
        %6619 = vmatpush1.msra.mxu0 0.0
        %6620 = vmatprep.subr.mxu0 0.0
        %6621 = vmatpush1.msra.mxu0 0.0
        %6622 = vmatprep.subr.mxu0 0.0
        %6623 = vmatpush1.msra.mxu0 0.0
        %6624 = vmatprep.subr.mxu0 0.0
        %6625 = vmatpush1.msra.mxu0 0.0
        %6626 = vmatprep.subr.mxu0 0.0
        %6627 = vmatpush1.msra.mxu0 0.0
        %6628 = vmatprep.subr.mxu0 0.0
        %6629 = vmatpush1.msra.mxu0 0.0
        %6630 = vmatprep.subr.mxu0 0.0
        %6631 = vmatpush1.msra.mxu0 0.0
        %6632 = vmatprep.subr.mxu0 0.0
        %6633 = vmatpush1.msra.mxu0 0.0
        %6634 = vmatprep.subr.mxu0 %v5184
        %6635 = vmatpush1.msra.mxu0 %v5183
        %6636 = vmatprep.subr.mxu0 %v5177
        %6637 = vmatpush1.msra.mxu0 %v5176
        %6638 = vmatprep.subr.mxu0 %v5170
        %6639 = vmatpush1.msra.mxu0 %v5169
        %6640 = vmatprep.subr.mxu0 %v5163
        %6641 = vmatpush1.msra.mxu0 %v5162
        %6642 = vmatprep.subr.mxu0 0.0
        %6643 = vmatpush2.msra.mxu0 0.0
        %6644 = vmatprep.subr.mxu0 0.0
        %6645 = vmatpush2.msra.mxu0 0.0
        %6646 = vmatprep.subr.mxu0 0.0
        %6647 = vmatpush2.msra.mxu0 0.0
        %6648 = vmatprep.subr.mxu0 0.0
        %6649 = vmatpush2.msra.mxu0 0.0
        %6650 = vmatprep.subr.mxu0 0.0
        %6651 = vmatpush2.msra.mxu0 0.0
        %6652 = vmatprep.subr.mxu0 0.0
        %6653 = vmatpush2.msra.mxu0 0.0
        %6654 = vmatprep.subr.mxu0 0.0
        %6655 = vmatpush2.msra.mxu0 0.0
        %6656 = vmatprep.subr.mxu0 0.0
        %6657 = vmatpush2.msra.mxu0 0.0
        %6658 = vmatprep.subr.mxu0 0.0
        %6659 = vmatpush2.msra.mxu0 0.0
        %6660 = vmatprep.subr.mxu0 0.0
        %6661 = vmatpush2.msra.mxu0 0.0
        %6662 = vmatprep.subr.mxu0 0.0
        %6663 = vmatpush2.msra.mxu0 0.0
        %6664 = vmatprep.subr.mxu0 0.0
        %6665 = vmatpush2.msra.mxu0 0.0
        %6666 = vmatprep.subr.mxu0 0.0
        %6667 = vmatpush2.msra.mxu0 0.0
        %6668 = vmatprep.subr.mxu0 0.0
        %6669 = vmatpush2.msra.mxu0 0.0
        %6670 = vmatprep.subr.mxu0 0.0
        %6671 = vmatpush2.msra.mxu0 0.0
        %6672 = vmatprep.subr.mxu0 0.0
        %6673 = vmatpush2.msra.mxu0 0.0
        %6674 = vmatprep.mubr.f32.mxu0 0.0
        %6675 = vmatmul.mubr.f32.gmra.mxu0 %v5188
        %v6676 = vpop.f32.mrf.mxu0
        %v6677 = vadd.f32 %v6606, %v6676
        %v6678 = vpop.f32.mrf.mxu0
        %v6679 = vadd.f32 %v6608, %v6678
        %6680 = vdwg.mxu0
        %6681 = vmatprep.subr.mxu0 0.0
        %6682 = vmatpush1.msra.mxu0 %v3925
        %6683 = vmatprep.subr.mxu0 0.0
        %6684 = vmatpush1.msra.mxu0 %v3918
        %6685 = vmatprep.subr.mxu0 0.0
        %6686 = vmatpush1.msra.mxu0 %v3911
        %6687 = vmatprep.subr.mxu0 0.0
        %6688 = vmatpush1.msra.mxu0 %v3904
        %6689 = vmatprep.subr.mxu0 0.0
        %6690 = vmatpush1.msra.mxu0 %v3897
        %6691 = vmatprep.subr.mxu0 0.0
        %6692 = vmatpush1.msra.mxu0 %v3890
        %6693 = vmatprep.subr.mxu0 0.0
        %6694 = vmatpush1.msra.mxu0 %v3883
        %6695 = vmatprep.subr.mxu0 0.0
        %6696 = vmatpush1.msra.mxu0 %v3876
        %6697 = vmatprep.subr.mxu0 0.0
        %6698 = vmatpush1.msra.mxu0 %v3869
        %6699 = vmatprep.subr.mxu0 0.0
        %6700 = vmatpush1.msra.mxu0 %v3862
        %6701 = vmatprep.subr.mxu0 0.0
        %6702 = vmatpush1.msra.mxu0 %v3855
        %6703 = vmatprep.subr.mxu0 0.0
        %6704 = vmatpush1.msra.mxu0 %v3848
        %6705 = vmatprep.subr.mxu0 0.0
        %6706 = vmatpush1.msra.mxu0 %v3841
        %6707 = vmatprep.subr.mxu0 0.0
        %6708 = vmatpush1.msra.mxu0 %v3834
        %6709 = vmatprep.subr.mxu0 0.0
        %6710 = vmatpush1.msra.mxu0 %v3827
        %6711 = vmatprep.subr.mxu0 0.0
        %6712 = vmatpush1.msra.mxu0 %v3820
        %6713 = vmatprep.subr.mxu0 0.0
        %6714 = vmatpush2.msra.mxu0 %v4037
        %6715 = vmatprep.subr.mxu0 0.0
        %6716 = vmatpush2.msra.mxu0 %v4030
        %6717 = vmatprep.subr.mxu0 0.0
        %6718 = vmatpush2.msra.mxu0 %v4023
        %6719 = vmatprep.subr.mxu0 0.0
        %6720 = vmatpush2.msra.mxu0 %v4016
        %6721 = vmatprep.subr.mxu0 0.0
        %6722 = vmatpush2.msra.mxu0 %v4009
        %6723 = vmatprep.subr.mxu0 0.0
        %6724 = vmatpush2.msra.mxu0 %v4002
        %6725 = vmatprep.subr.mxu0 0.0
        %6726 = vmatpush2.msra.mxu0 %v3995
        %6727 = vmatprep.subr.mxu0 0.0
        %6728 = vmatpush2.msra.mxu0 %v3988
        %6729 = vmatprep.subr.mxu0 0.0
        %6730 = vmatpush2.msra.mxu0 %v3981
        %6731 = vmatprep.subr.mxu0 0.0
        %6732 = vmatpush2.msra.mxu0 %v3974
        %6733 = vmatprep.subr.mxu0 0.0
        %6734 = vmatpush2.msra.mxu0 %v3967
        %6735 = vmatprep.subr.mxu0 0.0
        %6736 = vmatpush2.msra.mxu0 %v3960
        %6737 = vmatprep.subr.mxu0 0.0
        %6738 = vmatpush2.msra.mxu0 %v3953
        %6739 = vmatprep.subr.mxu0 0.0
        %6740 = vmatpush2.msra.mxu0 %v3946
        %6741 = vmatprep.subr.mxu0 0.0
        %6742 = vmatpush2.msra.mxu0 %v3939
        %6743 = vmatprep.subr.mxu0 0.0
        %6744 = vmatpush2.msra.mxu0 %v3932
        %6745 = vmatprep.mubr.f32.mxu0 %v3802
        %6746 = vmatmul.mubr.f32.gmra.mxu0 %v3801
        %v6747 = vpop.f32.mrf.mxu0
        %v6748 = vadd.f32 0.0, %v6747
        %v6749 = vpop.f32.mrf.mxu0
        %6750 = vdwg.mxu0
        %6751 = vmatprep.subr.mxu0 0.0
        %6752 = vmatpush1.msra.mxu0 %v4149
        %6753 = vmatprep.subr.mxu0 0.0
        %6754 = vmatpush1.msra.mxu0 %v4142
        %6755 = vmatprep.subr.mxu0 0.0
        %6756 = vmatpush1.msra.mxu0 %v4135
        %6757 = vmatprep.subr.mxu0 0.0
        %6758 = vmatpush1.msra.mxu0 %v4128
        %6759 = vmatprep.subr.mxu0 0.0
        %6760 = vmatpush1.msra.mxu0 %v4121
        %6761 = vmatprep.subr.mxu0 0.0
        %6762 = vmatpush1.msra.mxu0 %v4114
        %6763 = vmatprep.subr.mxu0 0.0
        %6764 = vmatpush1.msra.mxu0 %v4107
        %6765 = vmatprep.subr.mxu0 0.0
        %6766 = vmatpush1.msra.mxu0 %v4100
        %6767 = vmatprep.subr.mxu0 0.0
        %6768 = vmatpush1.msra.mxu0 %v4093
        %6769 = vmatprep.subr.mxu0 0.0
        %6770 = vmatpush1.msra.mxu0 %v4086
        %6771 = vmatprep.subr.mxu0 0.0
        %6772 = vmatpush1.msra.mxu0 %v4079
        %6773 = vmatprep.subr.mxu0 0.0
        %6774 = vmatpush1.msra.mxu0 %v4072
        %6775 = vmatprep.subr.mxu0 0.0
        %6776 = vmatpush1.msra.mxu0 %v4065
        %6777 = vmatprep.subr.mxu0 0.0
        %6778 = vmatpush1.msra.mxu0 %v4058
        %6779 = vmatprep.subr.mxu0 0.0
        %6780 = vmatpush1.msra.mxu0 %v4051
        %6781 = vmatprep.subr.mxu0 0.0
        %6782 = vmatpush1.msra.mxu0 %v4044
        %6783 = vmatprep.subr.mxu0 0.0
        %6784 = vmatpush2.msra.mxu0 %v4261
        %6785 = vmatprep.subr.mxu0 0.0
        %6786 = vmatpush2.msra.mxu0 %v4254
        %6787 = vmatprep.subr.mxu0 0.0
        %6788 = vmatpush2.msra.mxu0 %v4247
        %6789 = vmatprep.subr.mxu0 0.0
        %6790 = vmatpush2.msra.mxu0 %v4240
        %6791 = vmatprep.subr.mxu0 0.0
        %6792 = vmatpush2.msra.mxu0 %v4233
        %6793 = vmatprep.subr.mxu0 0.0
        %6794 = vmatpush2.msra.mxu0 %v4226
        %6795 = vmatprep.subr.mxu0 0.0
        %6796 = vmatpush2.msra.mxu0 %v4219
        %6797 = vmatprep.subr.mxu0 0.0
        %6798 = vmatpush2.msra.mxu0 %v4212
        %6799 = vmatprep.subr.mxu0 0.0
        %6800 = vmatpush2.msra.mxu0 %v4205
        %6801 = vmatprep.subr.mxu0 0.0
        %6802 = vmatpush2.msra.mxu0 %v4198
        %6803 = vmatprep.subr.mxu0 0.0
        %6804 = vmatpush2.msra.mxu0 %v4191
        %6805 = vmatprep.subr.mxu0 0.0
        %6806 = vmatpush2.msra.mxu0 %v4184
        %6807 = vmatprep.subr.mxu0 0.0
        %6808 = vmatpush2.msra.mxu0 %v4177
        %6809 = vmatprep.subr.mxu0 0.0
        %6810 = vmatpush2.msra.mxu0 %v4170
        %6811 = vmatprep.subr.mxu0 0.0
        %6812 = vmatpush2.msra.mxu0 %v4163
        %6813 = vmatprep.subr.mxu0 0.0
        %6814 = vmatpush2.msra.mxu0 %v4156
        %6815 = vmatprep.mubr.f32.mxu0 %v3804
        %6816 = vmatmul.mubr.f32.gmra.mxu0 %v3803
        %v6817 = vpop.f32.mrf.mxu0
        %v6818 = vadd.f32 %v6748, %v6817
        %v6819 = vpop.f32.mrf.mxu0
        %6820 = vdwg.mxu0
        %6821 = vmatprep.subr.mxu0 0.0
        %6822 = vmatpush1.msra.mxu0 %v4373
        %6823 = vmatprep.subr.mxu0 0.0
        %6824 = vmatpush1.msra.mxu0 %v4366
        %6825 = vmatprep.subr.mxu0 0.0
        %6826 = vmatpush1.msra.mxu0 %v4359
        %6827 = vmatprep.subr.mxu0 0.0
        %6828 = vmatpush1.msra.mxu0 %v4352
        %6829 = vmatprep.subr.mxu0 0.0
        %6830 = vmatpush1.msra.mxu0 %v4345
        %6831 = vmatprep.subr.mxu0 0.0
        %6832 = vmatpush1.msra.mxu0 %v4338
        %6833 = vmatprep.subr.mxu0 0.0
        %6834 = vmatpush1.msra.mxu0 %v4331
        %6835 = vmatprep.subr.mxu0 0.0
        %6836 = vmatpush1.msra.mxu0 %v4324
        %6837 = vmatprep.subr.mxu0 0.0
        %6838 = vmatpush1.msra.mxu0 %v4317
        %6839 = vmatprep.subr.mxu0 0.0
        %6840 = vmatpush1.msra.mxu0 %v4310
        %6841 = vmatprep.subr.mxu0 0.0
        %6842 = vmatpush1.msra.mxu0 %v4303
        %6843 = vmatprep.subr.mxu0 0.0
        %6844 = vmatpush1.msra.mxu0 %v4296
        %6845 = vmatprep.subr.mxu0 0.0
        %6846 = vmatpush1.msra.mxu0 %v4289
        %6847 = vmatprep.subr.mxu0 0.0
        %6848 = vmatpush1.msra.mxu0 %v4282
        %6849 = vmatprep.subr.mxu0 0.0
        %6850 = vmatpush1.msra.mxu0 %v4275
        %6851 = vmatprep.subr.mxu0 0.0
        %6852 = vmatpush1.msra.mxu0 %v4268
        %6853 = vmatprep.subr.mxu0 0.0
        %6854 = vmatpush2.msra.mxu0 %v4485
        %6855 = vmatprep.subr.mxu0 0.0
        %6856 = vmatpush2.msra.mxu0 %v4478
        %6857 = vmatprep.subr.mxu0 0.0
        %6858 = vmatpush2.msra.mxu0 %v4471
        %6859 = vmatprep.subr.mxu0 0.0
        %6860 = vmatpush2.msra.mxu0 %v4464
        %6861 = vmatprep.subr.mxu0 0.0
        %6862 = vmatpush2.msra.mxu0 %v4457
        %6863 = vmatprep.subr.mxu0 0.0
        %6864 = vmatpush2.msra.mxu0 %v4450
        %6865 = vmatprep.subr.mxu0 0.0
        %6866 = vmatpush2.msra.mxu0 %v4443
        %6867 = vmatprep.subr.mxu0 0.0
        %6868 = vmatpush2.msra.mxu0 %v4436
        %6869 = vmatprep.subr.mxu0 0.0
        %6870 = vmatpush2.msra.mxu0 %v4429
        %6871 = vmatprep.subr.mxu0 0.0
        %6872 = vmatpush2.msra.mxu0 %v4422
        %6873 = vmatprep.subr.mxu0 0.0
        %6874 = vmatpush2.msra.mxu0 %v4415
        %6875 = vmatprep.subr.mxu0 0.0
        %6876 = vmatpush2.msra.mxu0 %v4408
        %6877 = vmatprep.subr.mxu0 0.0
        %6878 = vmatpush2.msra.mxu0 %v4401
        %6879 = vmatprep.subr.mxu0 0.0
        %6880 = vmatpush2.msra.mxu0 %v4394
        %6881 = vmatprep.subr.mxu0 0.0
        %6882 = vmatpush2.msra.mxu0 %v4387
        %6883 = vmatprep.subr.mxu0 0.0
        %6884 = vmatpush2.msra.mxu0 %v4380
        %6885 = vmatprep.mubr.f32.mxu0 %v3806
        %6886 = vmatmul.mubr.f32.gmra.mxu0 %v3805
        %v6887 = vpop.f32.mrf.mxu0
        %v6888 = vadd.f32 %v6818, %v6887
        %v6889 = vpop.f32.mrf.mxu0
        %6890 = vdwg.mxu0
        %6891 = vmatprep.subr.mxu0 0.0
        %6892 = vmatpush1.msra.mxu0 %v4597
        %6893 = vmatprep.subr.mxu0 0.0
        %6894 = vmatpush1.msra.mxu0 %v4590
        %6895 = vmatprep.subr.mxu0 0.0
        %6896 = vmatpush1.msra.mxu0 %v4583
        %6897 = vmatprep.subr.mxu0 0.0
        %6898 = vmatpush1.msra.mxu0 %v4576
        %6899 = vmatprep.subr.mxu0 0.0
        %6900 = vmatpush1.msra.mxu0 %v4569
        %6901 = vmatprep.subr.mxu0 0.0
        %6902 = vmatpush1.msra.mxu0 %v4562
        %6903 = vmatprep.subr.mxu0 0.0
        %6904 = vmatpush1.msra.mxu0 %v4555
        %6905 = vmatprep.subr.mxu0 0.0
        %6906 = vmatpush1.msra.mxu0 %v4548
        %6907 = vmatprep.subr.mxu0 0.0
        %6908 = vmatpush1.msra.mxu0 %v4541
        %6909 = vmatprep.subr.mxu0 0.0
        %6910 = vmatpush1.msra.mxu0 %v4534
        %6911 = vmatprep.subr.mxu0 0.0
        %6912 = vmatpush1.msra.mxu0 %v4527
        %6913 = vmatprep.subr.mxu0 0.0
        %6914 = vmatpush1.msra.mxu0 %v4520
        %6915 = vmatprep.subr.mxu0 0.0
        %6916 = vmatpush1.msra.mxu0 %v4513
        %6917 = vmatprep.subr.mxu0 0.0
        %6918 = vmatpush1.msra.mxu0 %v4506
        %6919 = vmatprep.subr.mxu0 0.0
        %6920 = vmatpush1.msra.mxu0 %v4499
        %6921 = vmatprep.subr.mxu0 0.0
        %6922 = vmatpush1.msra.mxu0 %v4492
        %6923 = vmatprep.subr.mxu0 0.0
        %6924 = vmatpush2.msra.mxu0 %v4709
        %6925 = vmatprep.subr.mxu0 0.0
        %6926 = vmatpush2.msra.mxu0 %v4702
        %6927 = vmatprep.subr.mxu0 0.0
        %6928 = vmatpush2.msra.mxu0 %v4695
        %6929 = vmatprep.subr.mxu0 0.0
        %6930 = vmatpush2.msra.mxu0 %v4688
        %6931 = vmatprep.subr.mxu0 0.0
        %6932 = vmatpush2.msra.mxu0 %v4681
        %6933 = vmatprep.subr.mxu0 0.0
        %6934 = vmatpush2.msra.mxu0 %v4674
        %6935 = vmatprep.subr.mxu0 0.0
        %6936 = vmatpush2.msra.mxu0 %v4667
        %6937 = vmatprep.subr.mxu0 0.0
        %6938 = vmatpush2.msra.mxu0 %v4660
        %6939 = vmatprep.subr.mxu0 0.0
        %6940 = vmatpush2.msra.mxu0 %v4653
        %6941 = vmatprep.subr.mxu0 0.0
        %6942 = vmatpush2.msra.mxu0 %v4646
        %6943 = vmatprep.subr.mxu0 0.0
        %6944 = vmatpush2.msra.mxu0 %v4639
        %6945 = vmatprep.subr.mxu0 0.0
        %6946 = vmatpush2.msra.mxu0 %v4632
        %6947 = vmatprep.subr.mxu0 0.0
        %6948 = vmatpush2.msra.mxu0 %v4625
        %6949 = vmatprep.subr.mxu0 0.0
        %6950 = vmatpush2.msra.mxu0 %v4618
        %6951 = vmatprep.subr.mxu0 0.0
        %6952 = vmatpush2.msra.mxu0 %v4611
        %6953 = vmatprep.subr.mxu0 0.0
        %6954 = vmatpush2.msra.mxu0 %v4604
        %6955 = vmatprep.mubr.f32.mxu0 %v3808
        %6956 = vmatmul.mubr.f32.gmra.mxu0 %v3807
        %v6957 = vpop.f32.mrf.mxu0
        %v6958 = vadd.f32 %v6888, %v6957
        %v6959 = vpop.f32.mrf.mxu0
        %6960 = vdwg.mxu0
        %6961 = vmatprep.subr.mxu0 0.0
        %6962 = vmatpush1.msra.mxu0 %v4821
        %6963 = vmatprep.subr.mxu0 0.0
        %6964 = vmatpush1.msra.mxu0 %v4814
        %6965 = vmatprep.subr.mxu0 0.0
        %6966 = vmatpush1.msra.mxu0 %v4807
        %6967 = vmatprep.subr.mxu0 0.0
        %6968 = vmatpush1.msra.mxu0 %v4800
        %6969 = vmatprep.subr.mxu0 0.0
        %6970 = vmatpush1.msra.mxu0 %v4793
        %6971 = vmatprep.subr.mxu0 0.0
        %6972 = vmatpush1.msra.mxu0 %v4786
        %6973 = vmatprep.subr.mxu0 0.0
        %6974 = vmatpush1.msra.mxu0 %v4779
        %6975 = vmatprep.subr.mxu0 0.0
        %6976 = vmatpush1.msra.mxu0 %v4772
        %6977 = vmatprep.subr.mxu0 0.0
        %6978 = vmatpush1.msra.mxu0 %v4765
        %6979 = vmatprep.subr.mxu0 0.0
        %6980 = vmatpush1.msra.mxu0 %v4758
        %6981 = vmatprep.subr.mxu0 0.0
        %6982 = vmatpush1.msra.mxu0 %v4751
        %6983 = vmatprep.subr.mxu0 0.0
        %6984 = vmatpush1.msra.mxu0 %v4744
        %6985 = vmatprep.subr.mxu0 0.0
        %6986 = vmatpush1.msra.mxu0 %v4737
        %6987 = vmatprep.subr.mxu0 0.0
        %6988 = vmatpush1.msra.mxu0 %v4730
        %6989 = vmatprep.subr.mxu0 0.0
        %6990 = vmatpush1.msra.mxu0 %v4723
        %6991 = vmatprep.subr.mxu0 0.0
        %6992 = vmatpush1.msra.mxu0 %v4716
        %6993 = vmatprep.subr.mxu0 0.0
        %6994 = vmatpush2.msra.mxu0 %v4933
        %6995 = vmatprep.subr.mxu0 0.0
        %6996 = vmatpush2.msra.mxu0 %v4926
        %6997 = vmatprep.subr.mxu0 0.0
        %6998 = vmatpush2.msra.mxu0 %v4919
        %6999 = vmatprep.subr.mxu0 0.0
        %7000 = vmatpush2.msra.mxu0 %v4912
        %7001 = vmatprep.subr.mxu0 0.0
        %7002 = vmatpush2.msra.mxu0 %v4905
        %7003 = vmatprep.subr.mxu0 0.0
        %7004 = vmatpush2.msra.mxu0 %v4898
        %7005 = vmatprep.subr.mxu0 0.0
        %7006 = vmatpush2.msra.mxu0 %v4891
        %7007 = vmatprep.subr.mxu0 0.0
        %7008 = vmatpush2.msra.mxu0 %v4884
        %7009 = vmatprep.subr.mxu0 0.0
        %7010 = vmatpush2.msra.mxu0 %v4877
        %7011 = vmatprep.subr.mxu0 0.0
        %7012 = vmatpush2.msra.mxu0 %v4870
        %7013 = vmatprep.subr.mxu0 0.0
        %7014 = vmatpush2.msra.mxu0 %v4863
        %7015 = vmatprep.subr.mxu0 0.0
        %7016 = vmatpush2.msra.mxu0 %v4856
        %7017 = vmatprep.subr.mxu0 0.0
        %7018 = vmatpush2.msra.mxu0 %v4849
        %7019 = vmatprep.subr.mxu0 0.0
        %7020 = vmatpush2.msra.mxu0 %v4842
        %7021 = vmatprep.subr.mxu0 0.0
        %7022 = vmatpush2.msra.mxu0 %v4835
        %7023 = vmatprep.subr.mxu0 0.0
        %7024 = vmatpush2.msra.mxu0 %v4828
        %7025 = vmatprep.mubr.f32.mxu0 %v3810
        %7026 = vmatmul.mubr.f32.gmra.mxu0 %v3809
        %v7027 = vpop.f32.mrf.mxu0
        %v7028 = vadd.f32 %v6958, %v7027
        %v7029 = vpop.f32.mrf.mxu0
        %7030 = vdwg.mxu0
        %7031 = vmatprep.subr.mxu0 0.0
        %7032 = vmatpush1.msra.mxu0 %v5045
        %7033 = vmatprep.subr.mxu0 0.0
        %7034 = vmatpush1.msra.mxu0 %v5038
        %7035 = vmatprep.subr.mxu0 0.0
        %7036 = vmatpush1.msra.mxu0 %v5031
        %7037 = vmatprep.subr.mxu0 0.0
        %7038 = vmatpush1.msra.mxu0 %v5024
        %7039 = vmatprep.subr.mxu0 0.0
        %7040 = vmatpush1.msra.mxu0 %v5017
        %7041 = vmatprep.subr.mxu0 0.0
        %7042 = vmatpush1.msra.mxu0 %v5010
        %7043 = vmatprep.subr.mxu0 0.0
        %7044 = vmatpush1.msra.mxu0 %v5003
        %7045 = vmatprep.subr.mxu0 0.0
        %7046 = vmatpush1.msra.mxu0 %v4996
        %7047 = vmatprep.subr.mxu0 0.0
        %7048 = vmatpush1.msra.mxu0 %v4989
        %7049 = vmatprep.subr.mxu0 0.0
        %7050 = vmatpush1.msra.mxu0 %v4982
        %7051 = vmatprep.subr.mxu0 0.0
        %7052 = vmatpush1.msra.mxu0 %v4975
        %7053 = vmatprep.subr.mxu0 0.0
        %7054 = vmatpush1.msra.mxu0 %v4968
        %7055 = vmatprep.subr.mxu0 0.0
        %7056 = vmatpush1.msra.mxu0 %v4961
        %7057 = vmatprep.subr.mxu0 0.0
        %7058 = vmatpush1.msra.mxu0 %v4954
        %7059 = vmatprep.subr.mxu0 0.0
        %7060 = vmatpush1.msra.mxu0 %v4947
        %7061 = vmatprep.subr.mxu0 0.0
        %7062 = vmatpush1.msra.mxu0 %v4940
        %7063 = vmatprep.subr.mxu0 0.0
        %7064 = vmatpush2.msra.mxu0 %v5157
        %7065 = vmatprep.subr.mxu0 0.0
        %7066 = vmatpush2.msra.mxu0 %v5150
        %7067 = vmatprep.subr.mxu0 0.0
        %7068 = vmatpush2.msra.mxu0 %v5143
        %7069 = vmatprep.subr.mxu0 0.0
        %7070 = vmatpush2.msra.mxu0 %v5136
        %7071 = vmatprep.subr.mxu0 0.0
        %7072 = vmatpush2.msra.mxu0 %v5129
        %7073 = vmatprep.subr.mxu0 0.0
        %7074 = vmatpush2.msra.mxu0 %v5122
        %7075 = vmatprep.subr.mxu0 0.0
        %7076 = vmatpush2.msra.mxu0 %v5115
        %7077 = vmatprep.subr.mxu0 0.0
        %7078 = vmatpush2.msra.mxu0 %v5108
        %7079 = vmatprep.subr.mxu0 0.0
        %7080 = vmatpush2.msra.mxu0 %v5101
        %7081 = vmatprep.subr.mxu0 0.0
        %7082 = vmatpush2.msra.mxu0 %v5094
        %7083 = vmatprep.subr.mxu0 0.0
        %7084 = vmatpush2.msra.mxu0 %v5087
        %7085 = vmatprep.subr.mxu0 0.0
        %7086 = vmatpush2.msra.mxu0 %v5080
        %7087 = vmatprep.subr.mxu0 0.0
        %7088 = vmatpush2.msra.mxu0 %v5073
        %7089 = vmatprep.subr.mxu0 0.0
        %7090 = vmatpush2.msra.mxu0 %v5066
        %7091 = vmatprep.subr.mxu0 0.0
        %7092 = vmatpush2.msra.mxu0 %v5059
        %7093 = vmatprep.subr.mxu0 0.0
        %7094 = vmatpush2.msra.mxu0 %v5052
        %7095 = vmatprep.mubr.f32.mxu0 %v3812
        %7096 = vmatmul.mubr.f32.gmra.mxu0 %v3811
        %v7097 = vpop.f32.mrf.mxu0
        %v7098 = vadd.f32 %v7028, %v7097
        %v7099 = vpop.f32.mrf.mxu0
        %7100 = vdwg.mxu0
        %7101 = vmatprep.subr.mxu0 0.0
        %7102 = vmatpush1.msra.mxu0 0.0
        %7103 = vmatprep.subr.mxu0 0.0
        %7104 = vmatpush1.msra.mxu0 0.0
        %7105 = vmatprep.subr.mxu0 0.0
        %7106 = vmatpush1.msra.mxu0 0.0
        %7107 = vmatprep.subr.mxu0 0.0
        %7108 = vmatpush1.msra.mxu0 0.0
        %7109 = vmatprep.subr.mxu0 0.0
        %7110 = vmatpush1.msra.mxu0 0.0
        %7111 = vmatprep.subr.mxu0 0.0
        %7112 = vmatpush1.msra.mxu0 0.0
        %7113 = vmatprep.subr.mxu0 0.0
        %7114 = vmatpush1.msra.mxu0 0.0
        %7115 = vmatprep.subr.mxu0 0.0
        %7116 = vmatpush1.msra.mxu0 0.0
        %7117 = vmatprep.subr.mxu0 0.0
        %7118 = vmatpush1.msra.mxu0 0.0
        %7119 = vmatprep.subr.mxu0 0.0
        %7120 = vmatpush1.msra.mxu0 0.0
        %7121 = vmatprep.subr.mxu0 0.0
        %7122 = vmatpush1.msra.mxu0 0.0
        %7123 = vmatprep.subr.mxu0 0.0
        %7124 = vmatpush1.msra.mxu0 0.0
        %7125 = vmatprep.subr.mxu0 0.0
        %7126 = vmatpush1.msra.mxu0 %v5185
        %7127 = vmatprep.subr.mxu0 0.0
        %7128 = vmatpush1.msra.mxu0 %v5178
        %7129 = vmatprep.subr.mxu0 0.0
        %7130 = vmatpush1.msra.mxu0 %v5171
        %7131 = vmatprep.subr.mxu0 0.0
        %7132 = vmatpush1.msra.mxu0 %v5164
        %7133 = vmatprep.subr.mxu0 0.0
        %7134 = vmatpush2.msra.mxu0 0.0
        %7135 = vmatprep.subr.mxu0 0.0
        %7136 = vmatpush2.msra.mxu0 0.0
        %7137 = vmatprep.subr.mxu0 0.0
        %7138 = vmatpush2.msra.mxu0 0.0
        %7139 = vmatprep.subr.mxu0 0.0
        %7140 = vmatpush2.msra.mxu0 0.0
        %7141 = vmatprep.subr.mxu0 0.0
        %7142 = vmatpush2.msra.mxu0 0.0
        %7143 = vmatprep.subr.mxu0 0.0
        %7144 = vmatpush2.msra.mxu0 0.0
        %7145 = vmatprep.subr.mxu0 0.0
        %7146 = vmatpush2.msra.mxu0 0.0
        %7147 = vmatprep.subr.mxu0 0.0
        %7148 = vmatpush2.msra.mxu0 0.0
        %7149 = vmatprep.subr.mxu0 0.0
        %7150 = vmatpush2.msra.mxu0 0.0
        %7151 = vmatprep.subr.mxu0 0.0
        %7152 = vmatpush2.msra.mxu0 0.0
        %7153 = vmatprep.subr.mxu0 0.0
        %7154 = vmatpush2.msra.mxu0 0.0
        %7155 = vmatprep.subr.mxu0 0.0
        %7156 = vmatpush2.msra.mxu0 0.0
        %7157 = vmatprep.subr.mxu0 0.0
        %7158 = vmatpush2.msra.mxu0 0.0
        %7159 = vmatprep.subr.mxu0 0.0
        %7160 = vmatpush2.msra.mxu0 0.0
        %7161 = vmatprep.subr.mxu0 0.0
        %7162 = vmatpush2.msra.mxu0 0.0
        %7163 = vmatprep.subr.mxu0 0.0
        %7164 = vmatpush2.msra.mxu0 0.0
        %7165 = vmatprep.mubr.f32.mxu0 0.0
        %7166 = vmatmul.mubr.f32.gmra.mxu0 %v5188
        %v7167 = vpop.f32.mrf.mxu0
        %v7168 = vadd.f32 %v7098, %v7167
        %v7169 = vpop.f32.mrf.mxu0
        %7170 = vdwg.mxu0
        %v7171 = vtanh.pop %v5683
        %v7172 = vtanh.pop %v5685
        %v7173 = vtanh.pop %v6180
        %v7174 = vtanh.pop %v6182
        %v7175 = vtanh.pop %v6677
        %v7176 = vtanh.pop %v6679
        %v7177 = vtanh.pop %v7168
        %7178 = vst [vmem:[%s236] sm:$0xff] %v7171
        %7179 = vst [vmem:[%s236 + $0x8] sm:$0xff] %v7172
        %7180 = vst [vmem:[%s236 + $0x10] sm:$0xff] %v7173
        %7181 = vst [vmem:[%s236 + $0x18] sm:$0xff] %v7174
        %7182 = vst [vmem:[%s236 + $0x20] sm:$0xff] %v7175
        %7183 = vst [vmem:[%s236 + $0x28] sm:$0xff] %v7176
        %7184 = vst [vmem:[%s236 + $0x30] sm:$0xff] %v7177
        %p7185 = scmp.lt.s32.totalorder %s17, 1
        %s7186 = scalar_select %p7185, %s17, 1
        %s7187 = smul.addr %s7186, 7
        %s7188 = smul.addr %s7187, 8
        %s7189 = scalar_lea.vmem %s4, %s7188
        // Predicated region
        $region49: #{generator_forward.1} parent=35 // pred_check
          %p7190 = pneg %p124
        $region50: #{generator_forward.1} parent=35 // pred_check_branch
          %7192 = sbr.rel (%p7190) target = $region52
        $region51: #{generator_forward.1} parent=35 // pred_region
          _
        $region52: #{generator_forward.1} parent=35 // pred_fallthru
          _
      $region36: #{generator_forward.1} parent=5 // pred_fallthru
        _
      %p7193 = scmp.le.s32.totalorder 2, %s12
      // Predicated region
      $region53: #{generator_forward.1} parent=5 // pred_check
        %p7194 = pneg %p7193
      $region54: #{generator_forward.1} parent=5 // pred_check_branch
        %7196 = sbr.rel (%p7194) target = $region56
      $region55: #{generator_forward.1} parent=5 // pred_region
        %s7197 = ssub.s32 %s12, 2
        // Predicated region
        $region57: #{generator_forward.1} parent=55 // pred_check
          %p7198 = pneg %p130
        $region58: #{generator_forward.1} parent=55 // pred_check_branch
          %7200 = sbr.rel (%p7198) target = $region60
        $region59: #{generator_forward.1} parent=55 // pred_region
          %p7201 = scmp.lt.s32.totalorder %s18, 1
          %s7202 = scalar_select %p7201, %s18, 1
          %s7203 = smul.addr %s7202, 7
          %s7204 = smul.addr %s7203, 8
          %s7205 = scalar_lea.vmem %s4, %s7204
        $region60: #{generator_forward.1} parent=55 // pred_fallthru
          _
      $region56: #{generator_forward.1} parent=5 // pred_fallthru
        _
    $region6: #{generator_forward.1} parent=1 // loop_footer
      %s16 = sadd.s32 1, %s12
    $region7: #{generator_forward.1} parent=1 // loop_footer_branch
      %11 = sbr.rel target = $region3
    $region8: #{generator_forward.1} parent=1 // loop_exit
      _
    %7206 = vsyncpa [#allocation3], 1
    %s7207 = scalar_lea.sflag [#allocation3], 1
    %7208 = vsyncpa %s7207, 1
    %7209 = vsyncpa [#allocation5], 1

</llo_original>
